<compile_context>
chip_gen: v7x
topology: tpu7x:2x2x1
jax: 0.10.0
libtpu: 0.0.40
codegen_flags: <defaults>
</compile_context>

<pallas_src>
import numpy as np
import jax
import jax.numpy as jnp
from jax import lax
from jax.experimental import pallas as pl
from jax.experimental.pallas import tpu as pltpu

MAX_DELTA_LOG_WH = float(np.log(1000.0 / 16.0))


# ----------------------------------------------------------------------------
# Kernel 1: bbox_transform + clip_boxes_to_image, class-major, fused I/O slabs.
#   deltas slab layout (rows): [dx(Cm) ; dy(Cm) ; dw(Cm) ; dh(Cm)]
#   output slab layout (rows): [x1(Cm) ; y1(Cm) ; x2(Cm) ; y2(Cm)]
# ----------------------------------------------------------------------------
def _make_decode_kernel(Cm, imgs_per_step):
    def _decode_clip_kernel(im_ref, rois_ref, deltas_ref, out_ref):
        g = pl.program_id(0)
        for bl in range(imgs_per_step):          # static unroll over images in chunk
            b = g * imgs_per_step + bl
            h = im_ref[b, 0]
            w = im_ref[b, 1]

            rx1 = rois_ref[bl, 0:1, :]           # (1, R) lane-dense rows
            ry1 = rois_ref[bl, 1:2, :]
            rx2 = rois_ref[bl, 2:3, :]
            ry2 = rois_ref[bl, 3:4, :]
            widths = rx2 - rx1 + 1.0
            heights = ry2 - ry1 + 1.0
            ctr_x = rx1 + 0.5 * widths
            ctr_y = ry1 + 0.5 * heights

            d = deltas_ref[bl]                   # one (4*Cm, R) load, slice in-vreg
            dx = d[0 * Cm:1 * Cm, :] / 10.0      # weights (10, 10, 5, 5) as divides
            dy = d[1 * Cm:2 * Cm, :] / 10.0
            dw = jnp.minimum(d[2 * Cm:3 * Cm, :] / 5.0, MAX_DELTA_LOG_WH)
            dh = jnp.minimum(d[3 * Cm:4 * Cm, :] / 5.0, MAX_DELTA_LOG_WH)

            pred_ctr_x = dx * widths + ctr_x     # (1,R) broadcasts over class sublanes
            pred_ctr_y = dy * heights + ctr_y
            pred_w = jnp.exp(dw) * widths
            pred_h = jnp.exp(dh) * heights

            x1 = jnp.clip(pred_ctr_x - 0.5 * pred_w, 0.0, w - 1.0)
            y1 = jnp.clip(pred_ctr_y - 0.5 * pred_h, 0.0, h - 1.0)
            x2 = jnp.clip(pred_ctr_x + 0.5 * pred_w - 1.0, 0.0, w - 1.0)
            y2 = jnp.clip(pred_ctr_y + 0.5 * pred_h - 1.0, 0.0, h - 1.0)

            # Single fused (4*Cm, R) output block -> one lane-dense writeback DMA.
            out_ref[bl, 0 * Cm:1 * Cm, :] = x1
            out_ref[bl, 1 * Cm:2 * Cm, :] = y1
            out_ref[bl, 2 * Cm:3 * Cm, :] = x2
            out_ref[bl, 3 * Cm:4 * Cm, :] = y2

    return _decode_clip_kernel


def decode_and_clip(im_hw, rois_t, deltas_slab):
    """im_hw: (B,2) [h,w]; rois_t: (B,4,R); deltas_slab: (B,4*Cm,R).

    Returns (B, 4*Cm, R) slab [x1; y1; x2; y2]."""
    B, Cm4, R = deltas_slab.shape
    Cm = Cm4 // 4
    # Collapse the grid: a few images per step; keep a 2-way parallel axis when
    # possible so both v7x TensorCores stay busy.
    n_steps = 2 if (B >= 2 and B % 2 == 0) else 1
    ipb = B // n_steps

    roi_spec = pl.BlockSpec((ipb, 4, R), lambda g: (g, 0, 0))
    slab_spec = pl.BlockSpec((ipb, 4 * Cm, R), lambda g: (g, 0, 0))
    smem_spec = pl.BlockSpec(memory_space=pltpu.MemorySpace.SMEM)
    return pl.pallas_call(
        _make_decode_kernel(Cm, ipb),
        out_shape=jax.ShapeDtypeStruct((B, 4 * Cm, R), jnp.float32),
        grid=(n_steps,),
        in_specs=[smem_spec, roi_spec, slab_spec],
        out_specs=slab_spec,
        compiler_params=pltpu.CompilerParams(dimension_semantics=("parallel",)),
    )(im_hw, rois_t, deltas_slab)


# ----------------------------------------------------------------------------
# Kernel 2: greedy hard-NMS, all foreground classes of one image per grid step.
#   boxes slab (4*Cm, R): [x1(Cm); y1(Cm); x2(Cm); y2(Cm)], score-sorted per class.
#   cols (R, 4*Cm): same boxes with roi on sublanes, (x1,y1,x2,y2) per class on lanes.
# ----------------------------------------------------------------------------
def _make_nms_kernel(Cm, R, thr, group=8):
    thr = float(thr)

    def _nms_kernel(boxes_ref, valid_ref, cols_ref, keep_ref, s_ref):
        slab = boxes_ref[0]                      # (4*Cm, R) single load
        cols = cols_ref[0]                       # (R, 4*Cm) single load, slice in-vreg
        tri = (lax.broadcasted_iota(jnp.int32, (R, R), 1) >
               lax.broadcasted_iota(jnp.int32, (R, R), 0))

        # ---- build per-class suppress masks S[c, i, j] = 1 iff kept box i would
        # suppress box j (IoU > thr folded into a cross-multiply, j > i).
        # TODO(synk): for large Cm (e.g. COCO) convert this static unroll to a
        # lax.fori_loop / class-chunk grid axis to bound vreg pressure, and split
        # classes over a second "parallel" grid axis on v7x.
        for c in range(Cm):
            x1r = slab[0 * Cm + c:0 * Cm + c + 1, :]     # (1, R)
            y1r = slab[1 * Cm + c:1 * Cm + c + 1, :]
            x2r = slab[2 * Cm + c:2 * Cm + c + 1, :]
            y2r = slab[3 * Cm + c:3 * Cm + c + 1, :]
            x1c = cols[:, 4 * c + 0:4 * c + 1]           # (R, 1) in-vreg slices
            y1c = cols[:, 4 * c + 1:4 * c + 2]
            x2c = cols[:, 4 * c + 2:4 * c + 3]
            y2c = cols[:, 4 * c + 3:4 * c + 4]

            area_r = (x2r - x1r + 1.0) * (y2r - y1r + 1.0)   # (1, R)
            area_c = (x2c - x1c + 1.0) * (y2c - y1c + 1.0)   # (R, 1)
            iw = jnp.maximum(
                jnp.minimum(x2c, x2r) - jnp.maximum(x1c, x1r) + 1.0, 0.0)
            ih = jnp.maximum(
                jnp.minimum(y2c, y2r) - jnp.maximum(y1c, y1r) + 1.0, 0.0)
            inter = iw * ih                                  # (R, R)
            # IoU > thr  <=>  inter*(1+thr) > thr*(area_c+area_r)   (union > 0)
            cand = inter * (1.0 + thr) > thr * (area_c + area_r)
            s_ref[c] = jnp.where(cand & tri, 1.0, 0.0)

        # ---- blocked greedy sweep: resolve the GxG diagonal block serially on a
        # narrow (Cm, G) slice, then apply the group's finalized gates to all R
        # lanes with one batched max-tree update.  Keep state lives in vregs.
        k = valid_ref[0]                                     # (Cm, R) in {0, 1}
        for lo in range(0, R, group):
            g = min(group, R - lo)
            srows = s_ref[:, lo:lo + g, :]                   # (Cm, g, R) aligned chunk
            diag = srows[:, :, lo:lo + g]                    # (Cm, g, g)
            kg = k[:, lo:lo + g]                             # (Cm, g)
            for l in range(g):                               # short serial resolution
                gate = kg[:, l:l + 1]                        # (Cm, 1)
                kg = kg * (1.0 - gate * diag[:, l, :])
            # Combined suppression by the group's kept boxes, applied to all lanes
            # (suppress rows are triangular, so earlier lanes are untouched and the
            # group's own lanes reproduce kg exactly).
            terms = [kg[:, l:l + 1] * srows[:, l, :] for l in range(g)]
            while len(terms) > 1:                            # balanced max tree
                nxt = [jnp.maximum(terms[i], terms[i + 1])
                       for i in range(0, len(terms) - 1, 2)]
                if len(terms) % 2:
                    nxt.append(terms[-1])
                terms = nxt
            k = k * (1.0 - terms[0])
        keep_ref[0] = k

    return _nms_kernel


def nms_batched(boxes_slab, valid, cols, nms_threshold):
    """boxes_slab: (B,4*Cm,R) sorted; valid: (B,Cm,R); cols: (B,R,4*Cm) -> bool (B,Cm,R)."""
    B, Cm4, R = boxes_slab.shape
    Cm = Cm4 // 4

    # Explicit VMEM budget (compile-time check; matters on v7x's 64 MiB VMEM).
    def _pad_bytes(s, l):
        return ((s + 7) // 8) * 8 * ((l + 127) // 128) * 128 * 4
    scratch_bytes = Cm * R * R * 4
    io_bytes = (_pad_bytes(4 * Cm, R) + _pad_bytes(Cm, R) +
                _pad_bytes(R, 4 * Cm) + _pad_bytes(Cm, R))
    vmem_limit = 32 * 1024 * 1024
    assert scratch_bytes + 2 * io_bytes + (1 << 20) < vmem_limit, (
        "NMS scratch/IO exceeds VMEM budget; shrink R or split classes")

    slab_spec = pl.BlockSpec((1, 4 * Cm, R), lambda b: (b, 0, 0))
    row_spec = pl.BlockSpec((1, Cm, R), lambda b: (b, 0, 0))
    col_spec = pl.BlockSpec((1, R, 4 * Cm), lambda b: (b, 0, 0))
    keep = pl.pallas_call(
        _make_nms_kernel(Cm, R, nms_threshold),
        out_shape=jax.ShapeDtypeStruct((B, Cm, R), jnp.float32),
        grid=(B,),
        in_specs=[slab_spec, row_spec, col_spec],
        out_specs=row_spec,
        scratch_shapes=[pltpu.VMEM((Cm, R, R), jnp.float32)],
        compiler_params=pltpu.CompilerParams(
            dimension_semantics=("parallel",),
            vmem_limit_bytes=vmem_limit),
    )(boxes_slab, valid, cols)
    return keep > 0.5


# ----------------------------------------------------------------------------
# DetectionOutput module (JAX)
# ----------------------------------------------------------------------------
class DetectionOutput:
    def __init__(self, num_classes, post_nms_count=2000, nms_threshold=0.7,
                 score_threshold=0.01, max_detections_per_image=100,
                 class_agnostic_box_regression=False, force_max_output_size=True):
        self._num_classes = num_classes
        self._post_nms_count = post_nms_count
        self._nms_threshold = nms_threshold
        self._score_threshold = score_threshold
        self._max_detections_per_image = max_detections_per_image
        self._class_agnostic_box_regression = class_agnostic_box_regression
        self.force_max_output_size = force_max_output_size

    def _process_batched(self, rois, box_deltas, cls_scores, im_hw):
        """rois: (B,R,4); box_deltas: (B,R,D); cls_scores: (B,R,C); im_hw: (B,2)."""
        B, R, _ = rois.shape
        C = self._num_classes
        Cm = C - 1
        K = self._max_detections_per_image

        deltas = box_deltas.astype(jnp.float32).reshape(B, R, -1, 4)
        if self._class_agnostic_box_regression:
            deltas = jnp.broadcast_to(deltas[:, :, -1:, :], (B, R, C, 4))
        deltas = deltas[:, :, 1:, :]                       # foreground classes only

        # Fused class-major slab (B, 4*Cm, R): rows = [dx; dy; dw; dh] blocks.
        deltas_slab = jnp.transpose(deltas, (0, 3, 2, 1)).reshape(B, 4 * Cm, R)
        rois_t = jnp.transpose(rois.astype(jnp.float32), (0, 2, 1))   # (B, 4, R)

        boxes_slab = decode_and_clip(im_hw, rois_t, deltas_slab)      # (B, 4*Cm, R)

        scores_fg = jnp.transpose(cls_scores.astype(jnp.float32), (0, 2, 1))[:, 1:, :]

        # Per-class sort by descending score (glue).
        order = jnp.argsort(-scores_fg, axis=-1)                      # (B, Cm, R)
        scores_s = jnp.take_along_axis(scores_fg, order, axis=-1)
        order_rep = jnp.tile(order, (1, 4, 1))                        # (B, 4*Cm, R)
        boxes_slab_s = jnp.take_along_axis(boxes_slab, order_rep, axis=-1)

        valid = (scores_s > self._score_threshold).astype(jnp.float32)
        # Column slab (B, R, 4*Cm): roi index on sublanes, per-class coords on lanes.
        # TODO(synk): derive these columns in-kernel (XLU transpose) to drop this
        # XLA transpose + lane-sparse DMA entirely.
        slab4 = boxes_slab_s.reshape(B, 4, Cm, R)
        cols = jnp.transpose(slab4, (0, 3, 2, 1)).reshape(B, R, Cm * 4)
        boxes_s = jnp.transpose(slab4, (0, 2, 3, 1))                  # (B, Cm, R, 4)

        if self._nms_threshold > 0:
            keep = nms_batched(boxes_slab_s, valid, cols, self._nms_threshold)
        else:
            keep = valid > 0.5
        if self._post_nms_count > 0:
            rank = jnp.cumsum(keep.astype(jnp.int32), axis=-1)
            keep = keep & (rank <= self._post_nms_count)

        classes = jnp.broadcast_to(
            jnp.arange(1, C, dtype=jnp.int32)[None, :, None], (B, Cm, R))

        n = Cm * R
        flat_scores = scores_s.reshape(B, n)
        flat_keep = keep.reshape(B, n)
        flat_boxes = boxes_s.reshape(B, n, 4)
        flat_classes = classes.reshape(B, n)
        if n < K:  # pad so top_k is well defined
            pad = K - n
            flat_scores = jnp.pad(flat_scores, ((0, 0), (0, pad)))
            flat_keep = jnp.pad(flat_keep, ((0, 0), (0, pad)))
            flat_boxes = jnp.pad(flat_boxes, ((0, 0), (0, pad), (0, 0)))
            flat_classes = jnp.pad(flat_classes, ((0, 0), (0, pad)))

        masked = jnp.where(flat_keep, flat_scores, -jnp.inf)
        _, topi = lax.top_k(masked, K)                                # (B, K)
        sel_keep = jnp.take_along_axis(flat_keep, topi, axis=1)
        boxes_out = jnp.where(
            sel_keep[..., None],
            jnp.take_along_axis(flat_boxes, topi[..., None], axis=1), 0.0)
        scores_out = jnp.where(
            sel_keep, jnp.take_along_axis(flat_scores, topi, axis=1), 0.0)
        classes_out = jnp.where(
            sel_keep, jnp.take_along_axis(flat_classes, topi, axis=1), 0)
        return boxes_out, classes_out, scores_out                     # (B,K,..)

    def __call__(self, all_rois, all_box_deltas, all_cls_scores, im_info, batch_idx=None):
        if not isinstance(all_rois, (list, tuple)):
            all_rois = [all_rois]
        B = im_info.shape[0]
        K = self._max_detections_per_image
        im_hw = jnp.floor(im_info[:, :2]).astype(jnp.float32)          # (B,2) [h,w]

        same_shape = (len(all_rois) == B and
                      len({tuple(r.shape) for r in all_rois}) == 1)
        if same_shape:
            R = all_rois[0].shape[0]
            rois_b = jnp.stack([jnp.asarray(r, jnp.float32) for r in all_rois], axis=0)
            deltas_b = jnp.asarray(all_box_deltas, jnp.float32).reshape(B, R, -1)
            scores_b = jnp.asarray(all_cls_scores, jnp.float32).reshape(B, R, -1)
            boxes, classes, scores = self._process_batched(rois_b, deltas_b,
                                                           scores_b, im_hw)
        else:
            # Ragged fallback: per-image slabs (B=1 batched path each).
            boxes_l, classes_l, scores_l = [], [], []
            start = 0
            bd_all = jnp.asarray(all_box_deltas, jnp.float32)
            cs_all = jnp.asarray(all_cls_scores, jnp.float32)
            for i in range(B):
                r = jnp.asarray(all_rois[i], jnp.float32)
                Ri = r.shape[0]
                bd = bd_all[start:start + Ri][None]
                cs = cs_all[start:start + Ri][None]
                start += Ri
                b_i, c_i, s_i = self._process_batched(r[None], bd, cs, im_hw[i:i + 1])
                boxes_l.append(b_i); classes_l.append(c_i); scores_l.append(s_i)
            boxes = jnp.concatenate(boxes_l, axis=0)
            classes = jnp.concatenate(classes_l, axis=0)
            scores = jnp.concatenate(scores_l, axis=0)

        if batch_idx is None:
            ids = jnp.arange(B, dtype=jnp.int32)
        else:
            ids = jnp.asarray(batch_idx, dtype=jnp.int32).reshape(B)
        out_ids = jnp.broadcast_to(ids[:, None], (B, K)).reshape(B * K)
        return (boxes.reshape(B * K, 4), classes.reshape(B * K),
                scores.reshape(B * K), out_ids)


# ----------------------------------------------------------------------------
# Demo
# ----------------------------------------------------------------------------
if __name__ == "__main__":
    B = 2            # images in batch
    R = 128          # rois per image
    NUM_CLASSES = 5  # background + 4 foreground classes

    key = jax.random.PRNGKey(0)
    k1, k2, k3, k4 = jax.random.split(key, 4)

    # Random rois inside a 224x224 image.
    xy = jax.random.uniform(k1, (B, R, 2), minval=0.0, maxval=180.0)
    wh = jax.random.uniform(k2, (B, R, 2), minval=10.0, maxval=60.0)
    rois_batch = jnp.concatenate([xy, xy + wh], axis=-1).astype(jnp.float32)
    all_rois = tuple(rois_batch[i] for i in range(B))                  # list of (R,4)

    all_box_deltas = (0.5 * jax.random.normal(k3, (B * R, NUM_CLASSES * 4))).astype(jnp.float32)
    all_cls_scores = jax.nn.softmax(
        jax.random.normal(k4, (B * R, NUM_CLASSES)), axis=-1).astype(jnp.float32)
    im_info = jnp.array([[224.0, 224.0, 1.0],
                         [224.0, 224.0, 1.0]], dtype=jnp.float32)

    module = DetectionOutput(num_classes=NUM_CLASSES,
                             post_nms_count=2000,
                             nms_threshold=0.7,
                             score_threshold=0.01,
                             max_detections_per_image=100,
                             class_agnostic_box_regression=False,
                             force_max_output_size=True)

    @jax.jit
    def run(rois_tuple, box_deltas, cls_scores, info):
        return module(rois_tuple, box_deltas, cls_scores, info)

    boxes, classes, scores, batch_ids = jax.block_until_ready(
        run(all_rois, all_box_deltas, all_cls_scores, im_info))

    assert boxes.shape == (B * 100, 4)
    assert classes.shape == (B * 100,)
    assert scores.shape == (B * 100,)
    assert batch_ids.shape == (B * 100,)
    print("KERNEL_OK")
</pallas_src>

<mosaic_0001>
module attributes {stable_mosaic.version = 11 : i64} {
  func.func private @main(%arg0: i32) attributes {dimension_semantics = [#tpu.dimension_semantics<core_parallel>], iteration_bounds = array<i64: 2>, tpu.core_type = #tpu.core_type<sc_scalar_subcore>, window_params = []} {
    return
  }
}

module attributes {stable_mosaic.version = 11 : i64} {
  func.func private @main(%arg0: i32) attributes {dimension_semantics = [#tpu.dimension_semantics<core_parallel>], iteration_bounds = array<i64: 2>, tpu.core_type = #tpu.core_type<sc_scalar_subcore>, window_params = []} {
    return
  }
}

module attributes {stable_mosaic.version = 11 : i64} {
  func.func @_decode_clip_kernel(%arg0: i32, %arg1: memref<2x2xf32, #tpu.memory_space<smem>>, %arg2: memref<1x4x128xf32, #tpu.memory_space<vmem>>, %arg3: memref<1x16x128xf32, #tpu.memory_space<vmem>>, %arg4: memref<1x16x128xf32, #tpu.memory_space<vmem>>) attributes {dimension_semantics = [#tpu.dimension_semantics<parallel>], iteration_bounds = array<i64: 2>, scalar_prefetch = 0 : i64, scratch_operands = 0 : i64, tpu.core_type = #tpu.core_type<tc>, window_params = [{transform_indices = @transform_0, window_bounds = array<i64: 2, 2>}, {transform_indices = @transform_1, window_bounds = array<i64: 1, 4, 128>}, {transform_indices = @transform_2, window_bounds = array<i64: 1, 16, 128>}, {transform_indices = @transform_3, window_bounds = array<i64: 1, 16, 128>}]} {
    %c1_i32 = arith.constant 1 : i32
    %0 = arith.muli %arg0, %c1_i32 : i32
    %c0_i32 = arith.constant 0 : i32
    %1 = arith.addi %0, %c0_i32 : i32
    %2 = arith.index_cast %1 : i32 to index
    %c0 = arith.constant 0 : index
    %3 = memref.load %arg1[%2, %c0] : memref<2x2xf32, #tpu.memory_space<smem>>
    %4 = arith.index_cast %1 : i32 to index
    %c1 = arith.constant 1 : index
    %5 = memref.load %arg1[%4, %c1] : memref<2x2xf32, #tpu.memory_space<smem>>
    %c0_0 = arith.constant 0 : index
    %c0_1 = arith.constant 0 : index
    %c0_2 = arith.constant 0 : index
    %6 = vector.load %arg2[%c0_0, %c0_1, %c0_2] : memref<1x4x128xf32, #tpu.memory_space<vmem>>, vector<1x1x128xf32>
    %7 = vector.shape_cast %6 : vector<1x1x128xf32> to vector<1x128xf32>
    %c0_3 = arith.constant 0 : index
    %c1_4 = arith.constant 1 : index
    %c0_5 = arith.constant 0 : index
    %8 = vector.load %arg2[%c0_3, %c1_4, %c0_5] : memref<1x4x128xf32, #tpu.memory_space<vmem>>, vector<1x1x128xf32>
    %9 = vector.shape_cast %8 : vector<1x1x128xf32> to vector<1x128xf32>
    %c0_6 = arith.constant 0 : index
    %c2 = arith.constant 2 : index
    %c0_7 = arith.constant 0 : index
    %10 = vector.load %arg2[%c0_6, %c2, %c0_7] : memref<1x4x128xf32, #tpu.memory_space<vmem>>, vector<1x1x128xf32>
    %11 = vector.shape_cast %10 : vector<1x1x128xf32> to vector<1x128xf32>
    %c0_8 = arith.constant 0 : index
    %c3 = arith.constant 3 : index
    %c0_9 = arith.constant 0 : index
    %12 = vector.load %arg2[%c0_8, %c3, %c0_9] : memref<1x4x128xf32, #tpu.memory_space<vmem>>, vector<1x1x128xf32>
    %13 = vector.shape_cast %12 : vector<1x1x128xf32> to vector<1x128xf32>
    %14 = arith.subf %11, %7 : vector<1x128xf32>
    %cst = arith.constant 1.000000e+00 : f32
    %15 = vector.broadcast %cst : f32 to vector<1x128xf32>
    %16 = arith.addf %14, %15 : vector<1x128xf32>
    %17 = arith.subf %13, %9 : vector<1x128xf32>
    %cst_10 = arith.constant 1.000000e+00 : f32
    %18 = vector.broadcast %cst_10 : f32 to vector<1x128xf32>
    %19 = arith.addf %17, %18 : vector<1x128xf32>
    %cst_11 = arith.constant 5.000000e-01 : f32
    %20 = vector.broadcast %cst_11 : f32 to vector<1x128xf32>
    %21 = arith.mulf %20, %16 : vector<1x128xf32>
    %22 = arith.addf %7, %21 : vector<1x128xf32>
    %cst_12 = arith.constant 5.000000e-01 : f32
    %23 = vector.broadcast %cst_12 : f32 to vector<1x128xf32>
    %24 = arith.mulf %23, %19 : vector<1x128xf32>
    %25 = arith.addf %9, %24 : vector<1x128xf32>
    %c0_13 = arith.constant 0 : index
    %c0_14 = arith.constant 0 : index
    %c0_15 = arith.constant 0 : index
    %26 = vector.load %arg3[%c0_13, %c0_14, %c0_15] : memref<1x16x128xf32, #tpu.memory_space<vmem>>, vector<1x16x128xf32>
    %27 = vector.shape_cast %26 : vector<1x16x128xf32> to vector<16x128xf32>
    %28 = vector.extract_strided_slice %27 {offsets = [0, 0], sizes = [4, 128], strides = [1, 1]} : vector<16x128xf32> to vector<4x128xf32>
    %cst_16 = arith.constant 1.000000e+01 : f32
    %29 = vector.broadcast %cst_16 : f32 to vector<4x128xf32>
    %30 = arith.divf %28, %29 : vector<4x128xf32>
    %31 = vector.extract_strided_slice %27 {offsets = [4, 0], sizes = [4, 128], strides = [1, 1]} : vector<16x128xf32> to vector<4x128xf32>
    %cst_17 = arith.constant 1.000000e+01 : f32
    %32 = vector.broadcast %cst_17 : f32 to vector<4x128xf32>
    %33 = arith.divf %31, %32 : vector<4x128xf32>
    %34 = vector.extract_strided_slice %27 {offsets = [8, 0], sizes = [4, 128], strides = [1, 1]} : vector<16x128xf32> to vector<4x128xf32>
    %cst_18 = arith.constant 5.000000e+00 : f32
    %35 = vector.broadcast %cst_18 : f32 to vector<4x128xf32>
    %36 = arith.divf %34, %35 : vector<4x128xf32>
    %cst_19 = arith.constant 4.13516665 : f32
    %37 = vector.broadcast %cst_19 : f32 to vector<4x128xf32>
    %38 = arith.minimumf %36, %37 : vector<4x128xf32>
    %39 = vector.extract_strided_slice %27 {offsets = [12, 0], sizes = [4, 128], strides = [1, 1]} : vector<16x128xf32> to vector<4x128xf32>
    %cst_20 = arith.constant 5.000000e+00 : f32
    %40 = vector.broadcast %cst_20 : f32 to vector<4x128xf32>
    %41 = arith.divf %39, %40 : vector<4x128xf32>
    %cst_21 = arith.constant 4.13516665 : f32
    %42 = vector.broadcast %cst_21 : f32 to vector<4x128xf32>
    %43 = arith.minimumf %41, %42 : vector<4x128xf32>
    %44 = vector.broadcast %16 : vector<1x128xf32> to vector<4x128xf32>
    %45 = arith.mulf %30, %44 : vector<4x128xf32>
    %46 = vector.broadcast %22 : vector<1x128xf32> to vector<4x128xf32>
    %47 = arith.addf %45, %46 : vector<4x128xf32>
    %48 = vector.broadcast %19 : vector<1x128xf32> to vector<4x128xf32>
    %49 = arith.mulf %33, %48 : vector<4x128xf32>
    %50 = vector.broadcast %25 : vector<1x128xf32> to vector<4x128xf32>
    %51 = arith.addf %49, %50 : vector<4x128xf32>
    %52 = math.exp %38 : vector<4x128xf32>
    %53 = vector.broadcast %16 : vector<1x128xf32> to vector<4x128xf32>
    %54 = arith.mulf %52, %53 : vector<4x128xf32>
    %55 = math.exp %43 : vector<4x128xf32>
    %56 = vector.broadcast %19 : vector<1x128xf32> to vector<4x128xf32>
    %57 = arith.mulf %55, %56 : vector<4x128xf32>
    %cst_22 = arith.constant 5.000000e-01 : f32
    %58 = vector.broadcast %cst_22 : f32 to vector<4x128xf32>
    %59 = arith.mulf %58, %54 : vector<4x128xf32>
    %60 = arith.subf %47, %59 : vector<4x128xf32>
    %cst_23 = arith.constant 1.000000e+00 : f32
    %61 = arith.subf %5, %cst_23 : f32
    %cst_24 = arith.constant 0.000000e+00 : f32
    %62 = vector.broadcast %cst_24 : f32 to vector<4x128xf32>
    %63 = arith.maximumf %62, %60 : vector<4x128xf32>
    %64 = vector.broadcast %61 : f32 to vector<4x128xf32>
    %65 = arith.minimumf %64, %63 : vector<4x128xf32>
    %cst_25 = arith.constant 5.000000e-01 : f32
    %66 = vector.broadcast %cst_25 : f32 to vector<4x128xf32>
    %67 = arith.mulf %66, %57 : vector<4x128xf32>
    %68 = arith.subf %51, %67 : vector<4x128xf32>
    %cst_26 = arith.constant 1.000000e+00 : f32
    %69 = arith.subf %3, %cst_26 : f32
    %cst_27 = arith.constant 0.000000e+00 : f32
    %70 = vector.broadcast %cst_27 : f32 to vector<4x128xf32>
    %71 = arith.maximumf %70, %68 : vector<4x128xf32>
    %72 = vector.broadcast %69 : f32 to vector<4x128xf32>
    %73 = arith.minimumf %72, %71 : vector<4x128xf32>
    %cst_28 = arith.constant 5.000000e-01 : f32
    %74 = vector.broadcast %cst_28 : f32 to vector<4x128xf32>
    %75 = arith.mulf %74, %54 : vector<4x128xf32>
    %76 = arith.addf %47, %75 : vector<4x128xf32>
    %cst_29 = arith.constant 1.000000e+00 : f32
    %77 = vector.broadcast %cst_29 : f32 to vector<4x128xf32>
    %78 = arith.subf %76, %77 : vector<4x128xf32>
    %cst_30 = arith.constant 1.000000e+00 : f32
    %79 = arith.subf %5, %cst_30 : f32
    %cst_31 = arith.constant 0.000000e+00 : f32
    %80 = vector.broadcast %cst_31 : f32 to vector<4x128xf32>
    %81 = arith.maximumf %80, %78 : vector<4x128xf32>
    %82 = vector.broadcast %79 : f32 to vector<4x128xf32>
    %83 = arith.minimumf %82, %81 : vector<4x128xf32>
    %cst_32 = arith.constant 5.000000e-01 : f32
    %84 = vector.broadcast %cst_32 : f32 to vector<4x128xf32>
    %85 = arith.mulf %84, %57 : vector<4x128xf32>
    %86 = arith.addf %51, %85 : vector<4x128xf32>
    %cst_33 = arith.constant 1.000000e+00 : f32
    %87 = vector.broadcast %cst_33 : f32 to vector<4x128xf32>
    %88 = arith.subf %86, %87 : vector<4x128xf32>
    %cst_34 = arith.constant 1.000000e+00 : f32
    %89 = arith.subf %3, %cst_34 : f32
    %cst_35 = arith.constant 0.000000e+00 : f32
    %90 = vector.broadcast %cst_35 : f32 to vector<4x128xf32>
    %91 = arith.maximumf %90, %88 : vector<4x128xf32>
    %92 = vector.broadcast %89 : f32 to vector<4x128xf32>
    %93 = arith.minimumf %92, %91 : vector<4x128xf32>
    %c0_36 = arith.constant 0 : index
    %c0_37 = arith.constant 0 : index
    %c0_38 = arith.constant 0 : index
    %94 = vector.load %arg4[%c0_36, %c0_37, %c0_38] : memref<1x16x128xf32, #tpu.memory_space<vmem>>, vector<1x4x128xf32>
    %95 = vector.shape_cast %94 : vector<1x4x128xf32> to vector<4x128xf32>
    %96 = vector.shape_cast %65 : vector<4x128xf32> to vector<1x4x128xf32>
    tpu.vector_store %arg4[%c0_36, %c0_37, %c0_38], %96 {strides = array<i32>} : memref<1x16x128xf32, #tpu.memory_space<vmem>>, vector<1x4x128xf32>,
    %c0_39 = arith.constant 0 : index
    %c4 = arith.constant 4 : index
    %c0_40 = arith.constant 0 : index
    %97 = vector.load %arg4[%c0_39, %c4, %c0_40] : memref<1x16x128xf32, #tpu.memory_space<vmem>>, vector<1x4x128xf32>
    %98 = vector.shape_cast %97 : vector<1x4x128xf32> to vector<4x128xf32>
    %99 = vector.shape_cast %73 : vector<4x128xf32> to vector<1x4x128xf32>
    tpu.vector_store %arg4[%c0_39, %c4, %c0_40], %99 {strides = array<i32>} : memref<1x16x128xf32, #tpu.memory_space<vmem>>, vector<1x4x128xf32>,
    %c0_41 = arith.constant 0 : index
    %c8 = arith.constant 8 : index
    %c0_42 = arith.constant 0 : index
    %100 = vector.load %arg4[%c0_41, %c8, %c0_42] : memref<1x16x128xf32, #tpu.memory_space<vmem>>, vector<1x4x128xf32>
    %101 = vector.shape_cast %100 : vector<1x4x128xf32> to vector<4x128xf32>
    %102 = vector.shape_cast %83 : vector<4x128xf32> to vector<1x4x128xf32>
    tpu.vector_store %arg4[%c0_41, %c8, %c0_42], %102 {strides = array<i32>} : memref<1x16x128xf32, #tpu.memory_space<vmem>>, vector<1x4x128xf32>,
    %c0_43 = arith.constant 0 : index
    %c12 = arith.constant 12 : index
    %c0_44 = arith.constant 0 : index
    %103 = vector.load %arg4[%c0_43, %c12, %c0_44] : memref<1x16x128xf32, #tpu.memory_space<vmem>>, vector<1x4x128xf32>
    %104 = vector.shape_cast %103 : vector<1x4x128xf32> to vector<4x128xf32>
    %105 = vector.shape_cast %93 : vector<4x128xf32> to vector<1x4x128xf32>
    tpu.vector_store %arg4[%c0_43, %c12, %c0_44], %105 {strides = array<i32>} : memref<1x16x128xf32, #tpu.memory_space<vmem>>, vector<1x4x128xf32>,
    return
  }
  func.func @transform_0(%arg0: i32) -> (i32, i32) {
    %c0_i32 = arith.constant 0 : i32
    %c0_i32_0 = arith.constant 0 : i32
    %c0_i32_1 = arith.constant 0 : i32
    return %c0_i32, %c0_i32_0 : i32, i32
  }
  func.func @transform_1(%arg0: i32) -> (i32, i32, i32) {
    %c0_i32 = arith.constant 0 : i32
    %c0_i32_0 = arith.constant 0 : i32
    %c0_i32_1 = arith.constant 0 : i32
    return %arg0, %c0_i32, %c0_i32_0 : i32, i32, i32
  }
  func.func @transform_2(%arg0: i32) -> (i32, i32, i32) {
    %c0_i32 = arith.constant 0 : i32
    %c0_i32_0 = arith.constant 0 : i32
    %c0_i32_1 = arith.constant 0 : i32
    return %arg0, %c0_i32, %c0_i32_0 : i32, i32, i32
  }
  func.func @transform_3(%arg0: i32) -> (i32, i32, i32) {
    %c0_i32 = arith.constant 0 : i32
    %c0_i32_0 = arith.constant 0 : i32
    %c0_i32_1 = arith.constant 0 : i32
    return %arg0, %c0_i32, %c0_i32_0 : i32, i32, i32
  }
}

module attributes {stable_mosaic.version = 11 : i64} {
  func.func @_nms_kernel(%arg0: i32, %arg1: memref<1x16x128xf32, #tpu.memory_space<vmem>>, %arg2: memref<1x4x128xf32, #tpu.memory_space<vmem>>, %arg3: memref<1x128x16xf32, #tpu.memory_space<vmem>>, %arg4: memref<1x4x128xf32, #tpu.memory_space<vmem>>, %arg5: memref<4x128x128xf32, #tpu.memory_space<vmem>>) attributes {dimension_semantics = [#tpu.dimension_semantics<parallel>], iteration_bounds = array<i64: 2>, scalar_prefetch = 0 : i64, scratch_operands = 1 : i64, tpu.core_type = #tpu.core_type<tc>, window_params = [{transform_indices = @transform_0, window_bounds = array<i64: 1, 16, 128>}, {transform_indices = @transform_1, window_bounds = array<i64: 1, 4, 128>}, {transform_indices = @transform_2, window_bounds = array<i64: 1, 128, 16>}, {transform_indices = @transform_3, window_bounds = array<i64: 1, 4, 128>}]} {
    %c0 = arith.constant 0 : index
    %c0_0 = arith.constant 0 : index
    %c0_1 = arith.constant 0 : index
    %0 = vector.load %arg1[%c0, %c0_0, %c0_1] : memref<1x16x128xf32, #tpu.memory_space<vmem>>, vector<1x16x128xf32>
    %1 = vector.shape_cast %0 : vector<1x16x128xf32> to vector<16x128xf32>
    %c0_2 = arith.constant 0 : index
    %c0_3 = arith.constant 0 : index
    %c0_4 = arith.constant 0 : index
    %2 = vector.load %arg3[%c0_2, %c0_3, %c0_4] : memref<1x128x16xf32, #tpu.memory_space<vmem>>, vector<1x128x16xf32>
    %3 = vector.shape_cast %2 : vector<1x128x16xf32> to vector<128x16xf32>
    %4 = tpu.iota {dimensions = array<i32: 1>} : vector<128x128xi32>
    %5 = tpu.iota {dimensions = array<i32: 0>} : vector<128x128xi32>
    %6 = arith.cmpi sgt, %4, %5 : vector<128x128xi32>
    %7 = vector.extract_strided_slice %1 {offsets = [0, 0], sizes = [1, 128], strides = [1, 1]} : vector<16x128xf32> to vector<1x128xf32>
    %8 = vector.extract_strided_slice %1 {offsets = [4, 0], sizes = [1, 128], strides = [1, 1]} : vector<16x128xf32> to vector<1x128xf32>
    %9 = vector.extract_strided_slice %1 {offsets = [8, 0], sizes = [1, 128], strides = [1, 1]} : vector<16x128xf32> to vector<1x128xf32>
    %10 = vector.extract_strided_slice %1 {offsets = [12, 0], sizes = [1, 128], strides = [1, 1]} : vector<16x128xf32> to vector<1x128xf32>
    %11 = vector.extract_strided_slice %3 {offsets = [0, 0], sizes = [128, 1], strides = [1, 1]} : vector<128x16xf32> to vector<128x1xf32>
    %12 = vector.extract_strided_slice %3 {offsets = [0, 1], sizes = [128, 1], strides = [1, 1]} : vector<128x16xf32> to vector<128x1xf32>
    %13 = vector.extract_strided_slice %3 {offsets = [0, 2], sizes = [128, 1], strides = [1, 1]} : vector<128x16xf32> to vector<128x1xf32>
    %14 = vector.extract_strided_slice %3 {offsets = [0, 3], sizes = [128, 1], strides = [1, 1]} : vector<128x16xf32> to vector<128x1xf32>
    %15 = arith.subf %9, %7 : vector<1x128xf32>
    %cst = arith.constant 1.000000e+00 : f32
    %16 = vector.broadcast %cst : f32 to vector<1x128xf32>
    %17 = arith.addf %15, %16 : vector<1x128xf32>
    %18 = arith.subf %10, %8 : vector<1x128xf32>
    %cst_5 = arith.constant 1.000000e+00 : f32
    %19 = vector.broadcast %cst_5 : f32 to vector<1x128xf32>
    %20 = arith.addf %18, %19 : vector<1x128xf32>
    %21 = arith.mulf %17, %20 : vector<1x128xf32>
    %22 = arith.subf %13, %11 : vector<128x1xf32>
    %cst_6 = arith.constant 1.000000e+00 : f32
    %23 = vector.broadcast %cst_6 : f32 to vector<128x1xf32>
    %24 = arith.addf %22, %23 : vector<128x1xf32>
    %25 = arith.subf %14, %12 : vector<128x1xf32>
    %cst_7 = arith.constant 1.000000e+00 : f32
    %26 = vector.broadcast %cst_7 : f32 to vector<128x1xf32>
    %27 = arith.addf %25, %26 : vector<128x1xf32>
    %28 = arith.mulf %24, %27 : vector<128x1xf32>
    %29 = vector.broadcast %13 : vector<128x1xf32> to vector<128x128xf32>
    %30 = vector.broadcast %9 : vector<1x128xf32> to vector<128x128xf32>
    %31 = arith.minimumf %29, %30 : vector<128x128xf32>
    %32 = vector.broadcast %11 : vector<128x1xf32> to vector<128x128xf32>
    %33 = vector.broadcast %7 : vector<1x128xf32> to vector<128x128xf32>
    %34 = arith.maximumf %32, %33 : vector<128x128xf32>
    %35 = arith.subf %31, %34 : vector<128x128xf32>
    %cst_8 = arith.constant 1.000000e+00 : f32
    %36 = vector.broadcast %cst_8 : f32 to vector<128x128xf32>
    %37 = arith.addf %35, %36 : vector<128x128xf32>
    %cst_9 = arith.constant 0.000000e+00 : f32
    %38 = vector.broadcast %cst_9 : f32 to vector<128x128xf32>
    %39 = arith.maximumf %37, %38 : vector<128x128xf32>
    %40 = vector.broadcast %14 : vector<128x1xf32> to vector<128x128xf32>
    %41 = vector.broadcast %10 : vector<1x128xf32> to vector<128x128xf32>
    %42 = arith.minimumf %40, %41 : vector<128x128xf32>
    %43 = vector.broadcast %12 : vector<128x1xf32> to vector<128x128xf32>
    %44 = vector.broadcast %8 : vector<1x128xf32> to vector<128x128xf32>
    %45 = arith.maximumf %43, %44 : vector<128x128xf32>
    %46 = arith.subf %42, %45 : vector<128x128xf32>
    %cst_10 = arith.constant 1.000000e+00 : f32
    %47 = vector.broadcast %cst_10 : f32 to vector<128x128xf32>
    %48 = arith.addf %46, %47 : vector<128x128xf32>
    %cst_11 = arith.constant 0.000000e+00 : f32
    %49 = vector.broadcast %cst_11 : f32 to vector<128x128xf32>
    %50 = arith.maximumf %48, %49 : vector<128x128xf32>
    %51 = arith.mulf %39, %50 : vector<128x128xf32>
    %cst_12 = arith.constant 1.700000e+00 : f32
    %52 = vector.broadcast %cst_12 : f32 to vector<128x128xf32>
    %53 = arith.mulf %51, %52 : vector<128x128xf32>
    %54 = vector.broadcast %28 : vector<128x1xf32> to vector<128x128xf32>
    %55 = vector.broadcast %21 : vector<1x128xf32> to vector<128x128xf32>
    %56 = arith.addf %54, %55 : vector<128x128xf32>
    %cst_13 = arith.constant 0.699999988 : f32
    %57 = vector.broadcast %cst_13 : f32 to vector<128x128xf32>
    %58 = arith.mulf %57, %56 : vector<128x128xf32>
    %59 = arith.cmpf ogt, %53, %58 : vector<128x128xf32>
    %60 = arith.andi %59, %6 : vector<128x128xi1>
    %cst_14 = arith.constant 1.000000e+00 : f32
    %cst_15 = arith.constant 0.000000e+00 : f32
    %61 = vector.broadcast %cst_14 : f32 to vector<128x128xf32>
    %62 = vector.broadcast %cst_15 : f32 to vector<128x128xf32>
    %63 = arith.select %60, %61, %62 : vector<128x128xi1>, vector<128x128xf32>
    %c0_16 = arith.constant 0 : index
    %c0_17 = arith.constant 0 : index
    %c0_18 = arith.constant 0 : index
    %64 = vector.load %arg5[%c0_16, %c0_17, %c0_18] : memref<4x128x128xf32, #tpu.memory_space<vmem>>, vector<1x128x128xf32>
    %65 = vector.shape_cast %64 : vector<1x128x128xf32> to vector<128x128xf32>
    %66 = vector.shape_cast %63 : vector<128x128xf32> to vector<1x128x128xf32>
    tpu.vector_store %arg5[%c0_16, %c0_17, %c0_18], %66 {strides = array<i32>} : memref<4x128x128xf32, #tpu.memory_space<vmem>>, vector<1x128x128xf32>,
    %67 = vector.extract_strided_slice %1 {offsets = [1, 0], sizes = [1, 128], strides = [1, 1]} : vector<16x128xf32> to vector<1x128xf32>
    %68 = vector.extract_strided_slice %1 {offsets = [5, 0], sizes = [1, 128], strides = [1, 1]} : vector<16x128xf32> to vector<1x128xf32>
    %69 = vector.extract_strided_slice %1 {offsets = [9, 0], sizes = [1, 128], strides = [1, 1]} : vector<16x128xf32> to vector<1x128xf32>
    %70 = vector.extract_strided_slice %1 {offsets = [13, 0], sizes = [1, 128], strides = [1, 1]} : vector<16x128xf32> to vector<1x128xf32>
    %71 = vector.extract_strided_slice %3 {offsets = [0, 4], sizes = [128, 1], strides = [1, 1]} : vector<128x16xf32> to vector<128x1xf32>
    %72 = vector.extract_strided_slice %3 {offsets = [0, 5], sizes = [128, 1], strides = [1, 1]} : vector<128x16xf32> to vector<128x1xf32>
    %73 = vector.extract_strided_slice %3 {offsets = [0, 6], sizes = [128, 1], strides = [1, 1]} : vector<128x16xf32> to vector<128x1xf32>
    %74 = vector.extract_strided_slice %3 {offsets = [0, 7], sizes = [128, 1], strides = [1, 1]} : vector<128x16xf32> to vector<128x1xf32>
    %75 = arith.subf %69, %67 : vector<1x128xf32>
    %cst_19 = arith.constant 1.000000e+00 : f32
    %76 = vector.broadcast %cst_19 : f32 to vector<1x128xf32>
    %77 = arith.addf %75, %76 : vector<1x128xf32>
    %78 = arith.subf %70, %68 : vector<1x128xf32>
    %cst_20 = arith.constant 1.000000e+00 : f32
    %79 = vector.broadcast %cst_20 : f32 to vector<1x128xf32>
    %80 = arith.addf %78, %79 : vector<1x128xf32>
    %81 = arith.mulf %77, %80 : vector<1x128xf32>
    %82 = arith.subf %73, %71 : vector<128x1xf32>
    %cst_21 = arith.constant 1.000000e+00 : f32
    %83 = vector.broadcast %cst_21 : f32 to vector<128x1xf32>
    %84 = arith.addf %82, %83 : vector<128x1xf32>
    %85 = arith.subf %74, %72 : vector<128x1xf32>
    %cst_22 = arith.constant 1.000000e+00 : f32
    %86 = vector.broadcast %cst_22 : f32 to vector<128x1xf32>
    %87 = arith.addf %85, %86 : vector<128x1xf32>
    %88 = arith.mulf %84, %87 : vector<128x1xf32>
    %89 = vector.broadcast %73 : vector<128x1xf32> to vector<128x128xf32>
    %90 = vector.broadcast %69 : vector<1x128xf32> to vector<128x128xf32>
    %91 = arith.minimumf %89, %90 : vector<128x128xf32>
    %92 = vector.broadcast %71 : vector<128x1xf32> to vector<128x128xf32>
    %93 = vector.broadcast %67 : vector<1x128xf32> to vector<128x128xf32>
    %94 = arith.maximumf %92, %93 : vector<128x128xf32>
    %95 = arith.subf %91, %94 : vector<128x128xf32>
    %cst_23 = arith.constant 1.000000e+00 : f32
    %96 = vector.broadcast %cst_23 : f32 to vector<128x128xf32>
    %97 = arith.addf %95, %96 : vector<128x128xf32>
    %cst_24 = arith.constant 0.000000e+00 : f32
    %98 = vector.broadcast %cst_24 : f32 to vector<128x128xf32>
    %99 = arith.maximumf %97, %98 : vector<128x128xf32>
    %100 = vector.broadcast %74 : vector<128x1xf32> to vector<128x128xf32>
    %101 = vector.broadcast %70 : vector<1x128xf32> to vector<128x128xf32>
    %102 = arith.minimumf %100, %101 : vector<128x128xf32>
    %103 = vector.broadcast %72 : vector<128x1xf32> to vector<128x128xf32>
    %104 = vector.broadcast %68 : vector<1x128xf32> to vector<128x128xf32>
    %105 = arith.maximumf %103, %104 : vector<128x128xf32>
    %106 = arith.subf %102, %105 : vector<128x128xf32>
    %cst_25 = arith.constant 1.000000e+00 : f32
    %107 = vector.broadcast %cst_25 : f32 to vector<128x128xf32>
    %108 = arith.addf %106, %107 : vector<128x128xf32>
    %cst_26 = arith.constant 0.000000e+00 : f32
    %109 = vector.broadcast %cst_26 : f32 to vector<128x128xf32>
    %110 = arith.maximumf %108, %109 : vector<128x128xf32>
    %111 = arith.mulf %99, %110 : vector<128x128xf32>
    %cst_27 = arith.constant 1.700000e+00 : f32
    %112 = vector.broadcast %cst_27 : f32 to vector<128x128xf32>
    %113 = arith.mulf %111, %112 : vector<128x128xf32>
    %114 = vector.broadcast %88 : vector<128x1xf32> to vector<128x128xf32>
    %115 = vector.broadcast %81 : vector<1x128xf32> to vector<128x128xf32>
    %116 = arith.addf %114, %115 : vector<128x128xf32>
    %cst_28 = arith.constant 0.699999988 : f32
    %117 = vector.broadcast %cst_28 : f32 to vector<128x128xf32>
    %118 = arith.mulf %117, %116 : vector<128x128xf32>
    %119 = arith.cmpf ogt, %113, %118 : vector<128x128xf32>
    %120 = arith.andi %119, %6 : vector<128x128xi1>
    %cst_29 = arith.constant 1.000000e+00 : f32
    %cst_30 = arith.constant 0.000000e+00 : f32
    %121 = vector.broadcast %cst_29 : f32 to vector<128x128xf32>
    %122 = vector.broadcast %cst_30 : f32 to vector<128x128xf32>
    %123 = arith.select %120, %121, %122 : vector<128x128xi1>, vector<128x128xf32>
    %c1 = arith.constant 1 : index
    %c0_31 = arith.constant 0 : index
    %c0_32 = arith.constant 0 : index
    %124 = vector.load %arg5[%c1, %c0_31, %c0_32] : memref<4x128x128xf32, #tpu.memory_space<vmem>>, vector<1x128x128xf32>
    %125 = vector.shape_cast %124 : vector<1x128x128xf32> to vector<128x128xf32>
    %126 = vector.shape_cast %123 : vector<128x128xf32> to vector<1x128x128xf32>
    tpu.vector_store %arg5[%c1, %c0_31, %c0_32], %126 {strides = array<i32>} : memref<4x128x128xf32, #tpu.memory_space<vmem>>, vector<1x128x128xf32>,
    %127 = vector.extract_strided_slice %1 {offsets = [2, 0], sizes = [1, 128], strides = [1, 1]} : vector<16x128xf32> to vector<1x128xf32>
    %128 = vector.extract_strided_slice %1 {offsets = [6, 0], sizes = [1, 128], strides = [1, 1]} : vector<16x128xf32> to vector<1x128xf32>
    %129 = vector.extract_strided_slice %1 {offsets = [10, 0], sizes = [1, 128], strides = [1, 1]} : vector<16x128xf32> to vector<1x128xf32>
    %130 = vector.extract_strided_slice %1 {offsets = [14, 0], sizes = [1, 128], strides = [1, 1]} : vector<16x128xf32> to vector<1x128xf32>
    %131 = vector.extract_strided_slice %3 {offsets = [0, 8], sizes = [128, 1], strides = [1, 1]} : vector<128x16xf32> to vector<128x1xf32>
    %132 = vector.extract_strided_slice %3 {offsets = [0, 9], sizes = [128, 1], strides = [1, 1]} : vector<128x16xf32> to vector<128x1xf32>
    %133 = vector.extract_strided_slice %3 {offsets = [0, 10], sizes = [128, 1], strides = [1, 1]} : vector<128x16xf32> to vector<128x1xf32>
    %134 = vector.extract_strided_slice %3 {offsets = [0, 11], sizes = [128, 1], strides = [1, 1]} : vector<128x16xf32> to vector<128x1xf32>
    %135 = arith.subf %129, %127 : vector<1x128xf32>
    %cst_33 = arith.constant 1.000000e+00 : f32
    %136 = vector.broadcast %cst_33 : f32 to vector<1x128xf32>
    %137 = arith.addf %135, %136 : vector<1x128xf32>
    %138 = arith.subf %130, %128 : vector<1x128xf32>
    %cst_34 = arith.constant 1.000000e+00 : f32
    %139 = vector.broadcast %cst_34 : f32 to vector<1x128xf32>
    %140 = arith.addf %138, %139 : vector<1x128xf32>
    %141 = arith.mulf %137, %140 : vector<1x128xf32>
    %142 = arith.subf %133, %131 : vector<128x1xf32>
    %cst_35 = arith.constant 1.000000e+00 : f32
    %143 = vector.broadcast %cst_35 : f32 to vector<128x1xf32>
    %144 = arith.addf %142, %143 : vector<128x1xf32>
    %145 = arith.subf %134, %132 : vector<128x1xf32>
    %cst_36 = arith.constant 1.000000e+00 : f32
    %146 = vector.broadcast %cst_36 : f32 to vector<128x1xf32>
    %147 = arith.addf %145, %146 : vector<128x1xf32>
    %148 = arith.mulf %144, %147 : vector<128x1xf32>
    %149 = vector.broadcast %133 : vector<128x1xf32> to vector<128x128xf32>
    %150 = vector.broadcast %129 : vector<1x128xf32> to vector<128x128xf32>
    %151 = arith.minimumf %149, %150 : vector<128x128xf32>
    %152 = vector.broadcast %131 : vector<128x1xf32> to vector<128x128xf32>
    %153 = vector.broadcast %127 : vector<1x128xf32> to vector<128x128xf32>
    %154 = arith.maximumf %152, %153 : vector<128x128xf32>
    %155 = arith.subf %151, %154 : vector<128x128xf32>
    %cst_37 = arith.constant 1.000000e+00 : f32
    %156 = vector.broadcast %cst_37 : f32 to vector<128x128xf32>
    %157 = arith.addf %155, %156 : vector<128x128xf32>
    %cst_38 = arith.constant 0.000000e+00 : f32
    %158 = vector.broadcast %cst_38 : f32 to vector<128x128xf32>
    %159 = arith.maximumf %157, %158 : vector<128x128xf32>
    %160 = vector.broadcast %134 : vector<128x1xf32> to vector<128x128xf32>
    %161 = vector.broadcast %130 : vector<1x128xf32> to vector<128x128xf32>
    %162 = arith.minimumf %160, %161 : vector<128x128xf32>
    %163 = vector.broadcast %132 : vector<128x1xf32> to vector<128x128xf32>
    %164 = vector.broadcast %128 : vector<1x128xf32> to vector<128x128xf32>
    %165 = arith.maximumf %163, %164 : vector<128x128xf32>
    %166 = arith.subf %162, %165 : vector<128x128xf32>
    %cst_39 = arith.constant 1.000000e+00 : f32
    %167 = vector.broadcast %cst_39 : f32 to vector<128x128xf32>
    %168 = arith.addf %166, %167 : vector<128x128xf32>
    %cst_40 = arith.constant 0.000000e+00 : f32
    %169 = vector.broadcast %cst_40 : f32 to vector<128x128xf32>
    %170 = arith.maximumf %168, %169 : vector<128x128xf32>
    %171 = arith.mulf %159, %170 : vector<128x128xf32>
    %cst_41 = arith.constant 1.700000e+00 : f32
    %172 = vector.broadcast %cst_41 : f32 to vector<128x128xf32>
    %173 = arith.mulf %171, %172 : vector<128x128xf32>
    %174 = vector.broadcast %148 : vector<128x1xf32> to vector<128x128xf32>
    %175 = vector.broadcast %141 : vector<1x128xf32> to vector<128x128xf32>
    %176 = arith.addf %174, %175 : vector<128x128xf32>
    %cst_42 = arith.constant 0.699999988 : f32
    %177 = vector.broadcast %cst_42 : f32 to vector<128x128xf32>
    %178 = arith.mulf %177, %176 : vector<128x128xf32>
    %179 = arith.cmpf ogt, %173, %178 : vector<128x128xf32>
    %180 = arith.andi %179, %6 : vector<128x128xi1>
    %cst_43 = arith.constant 1.000000e+00 : f32
    %cst_44 = arith.constant 0.000000e+00 : f32
    %181 = vector.broadcast %cst_43 : f32 to vector<128x128xf32>
    %182 = vector.broadcast %cst_44 : f32 to vector<128x128xf32>
    %183 = arith.select %180, %181, %182 : vector<128x128xi1>, vector<128x128xf32>
    %c2 = arith.constant 2 : index
    %c0_45 = arith.constant 0 : index
    %c0_46 = arith.constant 0 : index
    %184 = vector.load %arg5[%c2, %c0_45, %c0_46] : memref<4x128x128xf32, #tpu.memory_space<vmem>>, vector<1x128x128xf32>
    %185 = vector.shape_cast %184 : vector<1x128x128xf32> to vector<128x128xf32>
    %186 = vector.shape_cast %183 : vector<128x128xf32> to vector<1x128x128xf32>
    tpu.vector_store %arg5[%c2, %c0_45, %c0_46], %186 {strides = array<i32>} : memref<4x128x128xf32, #tpu.memory_space<vmem>>, vector<1x128x128xf32>,
    %187 = vector.extract_strided_slice %1 {offsets = [3, 0], sizes = [1, 128], strides = [1, 1]} : vector<16x128xf32> to vector<1x128xf32>
    %188 = vector.extract_strided_slice %1 {offsets = [7, 0], sizes = [1, 128], strides = [1, 1]} : vector<16x128xf32> to vector<1x128xf32>
    %189 = vector.extract_strided_slice %1 {offsets = [11, 0], sizes = [1, 128], strides = [1, 1]} : vector<16x128xf32> to vector<1x128xf32>
    %190 = vector.extract_strided_slice %1 {offsets = [15, 0], sizes = [1, 128], strides = [1, 1]} : vector<16x128xf32> to vector<1x128xf32>
    %191 = vector.extract_strided_slice %3 {offsets = [0, 12], sizes = [128, 1], strides = [1, 1]} : vector<128x16xf32> to vector<128x1xf32>
    %192 = vector.extract_strided_slice %3 {offsets = [0, 13], sizes = [128, 1], strides = [1, 1]} : vector<128x16xf32> to vector<128x1xf32>
    %193 = vector.extract_strided_slice %3 {offsets = [0, 14], sizes = [128, 1], strides = [1, 1]} : vector<128x16xf32> to vector<128x1xf32>
    %194 = vector.extract_strided_slice %3 {offsets = [0, 15], sizes = [128, 1], strides = [1, 1]} : vector<128x16xf32> to vector<128x1xf32>
    %195 = arith.subf %189, %187 : vector<1x128xf32>
    %cst_47 = arith.constant 1.000000e+00 : f32
    %196 = vector.broadcast %cst_47 : f32 to vector<1x128xf32>
    %197 = arith.addf %195, %196 : vector<1x128xf32>
    %198 = arith.subf %190, %188 : vector<1x128xf32>
    %cst_48 = arith.constant 1.000000e+00 : f32
    %199 = vector.broadcast %cst_48 : f32 to vector<1x128xf32>
    %200 = arith.addf %198, %199 : vector<1x128xf32>
    %201 = arith.mulf %197, %200 : vector<1x128xf32>
    %202 = arith.subf %193, %191 : vector<128x1xf32>
    %cst_49 = arith.constant 1.000000e+00 : f32
    %203 = vector.broadcast %cst_49 : f32 to vector<128x1xf32>
    %204 = arith.addf %202, %203 : vector<128x1xf32>
    %205 = arith.subf %194, %192 : vector<128x1xf32>
    %cst_50 = arith.constant 1.000000e+00 : f32
    %206 = vector.broadcast %cst_50 : f32 to vector<128x1xf32>
    %207 = arith.addf %205, %206 : vector<128x1xf32>
    %208 = arith.mulf %204, %207 : vector<128x1xf32>
    %209 = vector.broadcast %193 : vector<128x1xf32> to vector<128x128xf32>
    %210 = vector.broadcast %189 : vector<1x128xf32> to vector<128x128xf32>
    %211 = arith.minimumf %209, %210 : vector<128x128xf32>
    %212 = vector.broadcast %191 : vector<128x1xf32> to vector<128x128xf32>
    %213 = vector.broadcast %187 : vector<1x128xf32> to vector<128x128xf32>
    %214 = arith.maximumf %212, %213 : vector<128x128xf32>
    %215 = arith.subf %211, %214 : vector<128x128xf32>
    %cst_51 = arith.constant 1.000000e+00 : f32
    %216 = vector.broadcast %cst_51 : f32 to vector<128x128xf32>
    %217 = arith.addf %215, %216 : vector<128x128xf32>
    %cst_52 = arith.constant 0.000000e+00 : f32
    %218 = vector.broadcast %cst_52 : f32 to vector<128x128xf32>
    %219 = arith.maximumf %217, %218 : vector<128x128xf32>
    %220 = vector.broadcast %194 : vector<128x1xf32> to vector<128x128xf32>
    %221 = vector.broadcast %190 : vector<1x128xf32> to vector<128x128xf32>
    %222 = arith.minimumf %220, %221 : vector<128x128xf32>
    %223 = vector.broadcast %192 : vector<128x1xf32> to vector<128x128xf32>
    %224 = vector.broadcast %188 : vector<1x128xf32> to vector<128x128xf32>
    %225 = arith.maximumf %223, %224 : vector<128x128xf32>
    %226 = arith.subf %222, %225 : vector<128x128xf32>
    %cst_53 = arith.constant 1.000000e+00 : f32
    %227 = vector.broadcast %cst_53 : f32 to vector<128x128xf32>
    %228 = arith.addf %226, %227 : vector<128x128xf32>
    %cst_54 = arith.constant 0.000000e+00 : f32
    %229 = vector.broadcast %cst_54 : f32 to vector<128x128xf32>
    %230 = arith.maximumf %228, %229 : vector<128x128xf32>
    %231 = arith.mulf %219, %230 : vector<128x128xf32>
    %cst_55 = arith.constant 1.700000e+00 : f32
    %232 = vector.broadcast %cst_55 : f32 to vector<128x128xf32>
    %233 = arith.mulf %231, %232 : vector<128x128xf32>
    %234 = vector.broadcast %208 : vector<128x1xf32> to vector<128x128xf32>
    %235 = vector.broadcast %201 : vector<1x128xf32> to vector<128x128xf32>
    %236 = arith.addf %234, %235 : vector<128x128xf32>
    %cst_56 = arith.constant 0.699999988 : f32
    %237 = vector.broadcast %cst_56 : f32 to vector<128x128xf32>
    %238 = arith.mulf %237, %236 : vector<128x128xf32>
    %239 = arith.cmpf ogt, %233, %238 : vector<128x128xf32>
    %240 = arith.andi %239, %6 : vector<128x128xi1>
    %cst_57 = arith.constant 1.000000e+00 : f32
    %cst_58 = arith.constant 0.000000e+00 : f32
    %241 = vector.broadcast %cst_57 : f32 to vector<128x128xf32>
    %242 = vector.broadcast %cst_58 : f32 to vector<128x128xf32>
    %243 = arith.select %240, %241, %242 : vector<128x128xi1>, vector<128x128xf32>
    %c3 = arith.constant 3 : index
    %c0_59 = arith.constant 0 : index
    %c0_60 = arith.constant 0 : index
    %244 = vector.load %arg5[%c3, %c0_59, %c0_60] : memref<4x128x128xf32, #tpu.memory_space<vmem>>, vector<1x128x128xf32>
    %245 = vector.shape_cast %244 : vector<1x128x128xf32> to vector<128x128xf32>
    %246 = vector.shape_cast %243 : vector<128x128xf32> to vector<1x128x128xf32>
    tpu.vector_store %arg5[%c3, %c0_59, %c0_60], %246 {strides = array<i32>} : memref<4x128x128xf32, #tpu.memory_space<vmem>>, vector<1x128x128xf32>,
    %c0_61 = arith.constant 0 : index
    %c0_62 = arith.constant 0 : index
    %c0_63 = arith.constant 0 : index
    %247 = vector.load %arg2[%c0_61, %c0_62, %c0_63] : memref<1x4x128xf32, #tpu.memory_space<vmem>>, vector<1x4x128xf32>
    %248 = vector.shape_cast %247 : vector<1x4x128xf32> to vector<4x128xf32>
    %c0_64 = arith.constant 0 : index
    %c0_65 = arith.constant 0 : index
    %c0_66 = arith.constant 0 : index
    %249 = vector.load %arg5[%c0_64, %c0_65, %c0_66] : memref<4x128x128xf32, #tpu.memory_space<vmem>>, vector<4x8x128xf32>
    %250 = vector.extract_strided_slice %249 {offsets = [0, 0, 0], sizes = [4, 8, 8], strides = [1, 1, 1]} : vector<4x8x128xf32> to vector<4x8x8xf32>
    %251 = vector.extract_strided_slice %248 {offsets = [0, 0], sizes = [4, 8], strides = [1, 1]} : vector<4x128xf32> to vector<4x8xf32>
    %252 = vector.extract_strided_slice %251 {offsets = [0, 0], sizes = [4, 1], strides = [1, 1]} : vector<4x8xf32> to vector<4x1xf32>
    %253 = vector.extract_strided_slice %250 {offsets = [0, 0, 0], sizes = [4, 1, 8], strides = [1, 1, 1]} : vector<4x8x8xf32> to vector<4x1x8xf32>
    %254 = vector.shape_cast %253 : vector<4x1x8xf32> to vector<4x8xf32>
    %255 = vector.broadcast %252 : vector<4x1xf32> to vector<4x8xf32>
    %256 = arith.mulf %255, %254 : vector<4x8xf32>
    %cst_67 = arith.constant 1.000000e+00 : f32
    %257 = vector.broadcast %cst_67 : f32 to vector<4x8xf32>
    %258 = arith.subf %257, %256 : vector<4x8xf32>
    %259 = arith.mulf %251, %258 : vector<4x8xf32>
    %260 = vector.extract_strided_slice %259 {offsets = [0, 1], sizes = [4, 1], strides = [1, 1]} : vector<4x8xf32> to vector<4x1xf32>
    %261 = vector.extract_strided_slice %250 {offsets = [0, 1, 0], sizes = [4, 1, 8], strides = [1, 1, 1]} : vector<4x8x8xf32> to vector<4x1x8xf32>
    %262 = vector.shape_cast %261 : vector<4x1x8xf32> to vector<4x8xf32>
    %263 = vector.broadcast %260 : vector<4x1xf32> to vector<4x8xf32>
    %264 = arith.mulf %263, %262 : vector<4x8xf32>
    %cst_68 = arith.constant 1.000000e+00 : f32
    %265 = vector.broadcast %cst_68 : f32 to vector<4x8xf32>
    %266 = arith.subf %265, %264 : vector<4x8xf32>
    %267 = arith.mulf %259, %266 : vector<4x8xf32>
    %268 = vector.extract_strided_slice %267 {offsets = [0, 2], sizes = [4, 1], strides = [1, 1]} : vector<4x8xf32> to vector<4x1xf32>
    %269 = vector.extract_strided_slice %250 {offsets = [0, 2, 0], sizes = [4, 1, 8], strides = [1, 1, 1]} : vector<4x8x8xf32> to vector<4x1x8xf32>
    %270 = vector.shape_cast %269 : vector<4x1x8xf32> to vector<4x8xf32>
    %271 = vector.broadcast %268 : vector<4x1xf32> to vector<4x8xf32>
    %272 = arith.mulf %271, %270 : vector<4x8xf32>
    %cst_69 = arith.constant 1.000000e+00 : f32
    %273 = vector.broadcast %cst_69 : f32 to vector<4x8xf32>
    %274 = arith.subf %273, %272 : vector<4x8xf32>
    %275 = arith.mulf %267, %274 : vector<4x8xf32>
    %276 = vector.extract_strided_slice %275 {offsets = [0, 3], sizes = [4, 1], strides = [1, 1]} : vector<4x8xf32> to vector<4x1xf32>
    %277 = vector.extract_strided_slice %250 {offsets = [0, 3, 0], sizes = [4, 1, 8], strides = [1, 1, 1]} : vector<4x8x8xf32> to vector<4x1x8xf32>
    %278 = vector.shape_cast %277 : vector<4x1x8xf32> to vector<4x8xf32>
    %279 = vector.broadcast %276 : vector<4x1xf32> to vector<4x8xf32>
    %280 = arith.mulf %279, %278 : vector<4x8xf32>
    %cst_70 = arith.constant 1.000000e+00 : f32
    %281 = vector.broadcast %cst_70 : f32 to vector<4x8xf32>
    %282 = arith.subf %281, %280 : vector<4x8xf32>
    %283 = arith.mulf %275, %282 : vector<4x8xf32>
    %284 = vector.extract_strided_slice %283 {offsets = [0, 4], sizes = [4, 1], strides = [1, 1]} : vector<4x8xf32> to vector<4x1xf32>
    %285 = vector.extract_strided_slice %250 {offsets = [0, 4, 0], sizes = [4, 1, 8], strides = [1, 1, 1]} : vector<4x8x8xf32> to vector<4x1x8xf32>
    %286 = vector.shape_cast %285 : vector<4x1x8xf32> to vector<4x8xf32>
    %287 = vector.broadcast %284 : vector<4x1xf32> to vector<4x8xf32>
    %288 = arith.mulf %287, %286 : vector<4x8xf32>
    %cst_71 = arith.constant 1.000000e+00 : f32
    %289 = vector.broadcast %cst_71 : f32 to vector<4x8xf32>
    %290 = arith.subf %289, %288 : vector<4x8xf32>
    %291 = arith.mulf %283, %290 : vector<4x8xf32>
    %292 = vector.extract_strided_slice %291 {offsets = [0, 5], sizes = [4, 1], strides = [1, 1]} : vector<4x8xf32> to vector<4x1xf32>
    %293 = vector.extract_strided_slice %250 {offsets = [0, 5, 0], sizes = [4, 1, 8], strides = [1, 1, 1]} : vector<4x8x8xf32> to vector<4x1x8xf32>
    %294 = vector.shape_cast %293 : vector<4x1x8xf32> to vector<4x8xf32>
    %295 = vector.broadcast %292 : vector<4x1xf32> to vector<4x8xf32>
    %296 = arith.mulf %295, %294 : vector<4x8xf32>
    %cst_72 = arith.constant 1.000000e+00 : f32
    %297 = vector.broadcast %cst_72 : f32 to vector<4x8xf32>
    %298 = arith.subf %297, %296 : vector<4x8xf32>
    %299 = arith.mulf %291, %298 : vector<4x8xf32>
    %300 = vector.extract_strided_slice %299 {offsets = [0, 6], sizes = [4, 1], strides = [1, 1]} : vector<4x8xf32> to vector<4x1xf32>
    %301 = vector.extract_strided_slice %250 {offsets = [0, 6, 0], sizes = [4, 1, 8], strides = [1, 1, 1]} : vector<4x8x8xf32> to vector<4x1x8xf32>
    %302 = vector.shape_cast %301 : vector<4x1x8xf32> to vector<4x8xf32>
    %303 = vector.broadcast %300 : vector<4x1xf32> to vector<4x8xf32>
    %304 = arith.mulf %303, %302 : vector<4x8xf32>
    %cst_73 = arith.constant 1.000000e+00 : f32
    %305 = vector.broadcast %cst_73 : f32 to vector<4x8xf32>
    %306 = arith.subf %305, %304 : vector<4x8xf32>
    %307 = arith.mulf %299, %306 : vector<4x8xf32>
    %308 = vector.extract_strided_slice %307 {offsets = [0, 7], sizes = [4, 1], strides = [1, 1]} : vector<4x8xf32> to vector<4x1xf32>
    %309 = vector.extract_strided_slice %250 {offsets = [0, 7, 0], sizes = [4, 1, 8], strides = [1, 1, 1]} : vector<4x8x8xf32> to vector<4x1x8xf32>
    %310 = vector.shape_cast %309 : vector<4x1x8xf32> to vector<4x8xf32>
    %311 = vector.broadcast %308 : vector<4x1xf32> to vector<4x8xf32>
    %312 = arith.mulf %311, %310 : vector<4x8xf32>
    %cst_74 = arith.constant 1.000000e+00 : f32
    %313 = vector.broadcast %cst_74 : f32 to vector<4x8xf32>
    %314 = arith.subf %313, %312 : vector<4x8xf32>
    %315 = arith.mulf %307, %314 : vector<4x8xf32>
    %316 = vector.extract_strided_slice %315 {offsets = [0, 0], sizes = [4, 1], strides = [1, 1]} : vector<4x8xf32> to vector<4x1xf32>
    %317 = vector.extract_strided_slice %249 {offsets = [0, 0, 0], sizes = [4, 1, 128], strides = [1, 1, 1]} : vector<4x8x128xf32> to vector<4x1x128xf32>
    %318 = vector.shape_cast %317 : vector<4x1x128xf32> to vector<4x128xf32>
    %319 = vector.broadcast %316 : vector<4x1xf32> to vector<4x128xf32>
    %320 = arith.mulf %319, %318 : vector<4x128xf32>
    %321 = vector.extract_strided_slice %315 {offsets = [0, 1], sizes = [4, 1], strides = [1, 1]} : vector<4x8xf32> to vector<4x1xf32>
    %322 = vector.extract_strided_slice %249 {offsets = [0, 1, 0], sizes = [4, 1, 128], strides = [1, 1, 1]} : vector<4x8x128xf32> to vector<4x1x128xf32>
    %323 = vector.shape_cast %322 : vector<4x1x128xf32> to vector<4x128xf32>
    %324 = vector.broadcast %321 : vector<4x1xf32> to vector<4x128xf32>
    %325 = arith.mulf %324, %323 : vector<4x128xf32>
    %326 = vector.extract_strided_slice %315 {offsets = [0, 2], sizes = [4, 1], strides = [1, 1]} : vector<4x8xf32> to vector<4x1xf32>
    %327 = vector.extract_strided_slice %249 {offsets = [0, 2, 0], sizes = [4, 1, 128], strides = [1, 1, 1]} : vector<4x8x128xf32> to vector<4x1x128xf32>
    %328 = vector.shape_cast %327 : vector<4x1x128xf32> to vector<4x128xf32>
    %329 = vector.broadcast %326 : vector<4x1xf32> to vector<4x128xf32>
    %330 = arith.mulf %329, %328 : vector<4x128xf32>
    %331 = vector.extract_strided_slice %315 {offsets = [0, 3], sizes = [4, 1], strides = [1, 1]} : vector<4x8xf32> to vector<4x1xf32>
    %332 = vector.extract_strided_slice %249 {offsets = [0, 3, 0], sizes = [4, 1, 128], strides = [1, 1, 1]} : vector<4x8x128xf32> to vector<4x1x128xf32>
    %333 = vector.shape_cast %332 : vector<4x1x128xf32> to vector<4x128xf32>
    %334 = vector.broadcast %331 : vector<4x1xf32> to vector<4x128xf32>
    %335 = arith.mulf %334, %333 : vector<4x128xf32>
    %336 = vector.extract_strided_slice %315 {offsets = [0, 4], sizes = [4, 1], strides = [1, 1]} : vector<4x8xf32> to vector<4x1xf32>
    %337 = vector.extract_strided_slice %249 {offsets = [0, 4, 0], sizes = [4, 1, 128], strides = [1, 1, 1]} : vector<4x8x128xf32> to vector<4x1x128xf32>
    %338 = vector.shape_cast %337 : vector<4x1x128xf32> to vector<4x128xf32>
    %339 = vector.broadcast %336 : vector<4x1xf32> to vector<4x128xf32>
    %340 = arith.mulf %339, %338 : vector<4x128xf32>
    %341 = vector.extract_strided_slice %315 {offsets = [0, 5], sizes = [4, 1], strides = [1, 1]} : vector<4x8xf32> to vector<4x1xf32>
    %342 = vector.extract_strided_slice %249 {offsets = [0, 5, 0], sizes = [4, 1, 128], strides = [1, 1, 1]} : vector<4x8x128xf32> to vector<4x1x128xf32>
    %343 = vector.shape_cast %342 : vector<4x1x128xf32> to vector<4x128xf32>
    %344 = vector.broadcast %341 : vector<4x1xf32> to vector<4x128xf32>
    %345 = arith.mulf %344, %343 : vector<4x128xf32>
    %346 = vector.extract_strided_slice %315 {offsets = [0, 6], sizes = [4, 1], strides = [1, 1]} : vector<4x8xf32> to vector<4x1xf32>
    %347 = vector.extract_strided_slice %249 {offsets = [0, 6, 0], sizes = [4, 1, 128], strides = [1, 1, 1]} : vector<4x8x128xf32> to vector<4x1x128xf32>
    %348 = vector.shape_cast %347 : vector<4x1x128xf32> to vector<4x128xf32>
    %349 = vector.broadcast %346 : vector<4x1xf32> to vector<4x128xf32>
    %350 = arith.mulf %349, %348 : vector<4x128xf32>
    %351 = vector.extract_strided_slice %315 {offsets = [0, 7], sizes = [4, 1], strides = [1, 1]} : vector<4x8xf32> to vector<4x1xf32>
    %352 = vector.extract_strided_slice %249 {offsets = [0, 7, 0], sizes = [4, 1, 128], strides = [1, 1, 1]} : vector<4x8x128xf32> to vector<4x1x128xf32>
    %353 = vector.shape_cast %352 : vector<4x1x128xf32> to vector<4x128xf32>
    %354 = vector.broadcast %351 : vector<4x1xf32> to vector<4x128xf32>
    %355 = arith.mulf %354, %353 : vector<4x128xf32>
    %356 = arith.maximumf %320, %325 : vector<4x128xf32>
    %357 = arith.maximumf %330, %335 : vector<4x128xf32>
    %358 = arith.maximumf %340, %345 : vector<4x128xf32>
    %359 = arith.maximumf %350, %355 : vector<4x128xf32>
    %360 = arith.maximumf %356, %357 : vector<4x128xf32>
    %361 = arith.maximumf %358, %359 : vector<4x128xf32>
    %362 = arith.maximumf %360, %361 : vector<4x128xf32>
    %cst_75 = arith.constant 1.000000e+00 : f32
    %363 = vector.broadcast %cst_75 : f32 to vector<4x128xf32>
    %364 = arith.subf %363, %362 : vector<4x128xf32>
    %365 = arith.mulf %248, %364 : vector<4x128xf32>
    %c0_76 = arith.constant 0 : index
    %c8 = arith.constant 8 : index
    %c0_77 = arith.constant 0 : index
    %366 = vector.load %arg5[%c0_76, %c8, %c0_77] : memref<4x128x128xf32, #tpu.memory_space<vmem>>, vector<4x8x128xf32>
    %367 = vector.extract_strided_slice %366 {offsets = [0, 0, 8], sizes = [4, 8, 8], strides = [1, 1, 1]} : vector<4x8x128xf32> to vector<4x8x8xf32>
    %368 = vector.extract_strided_slice %365 {offsets = [0, 8], sizes = [4, 8], strides = [1, 1]} : vector<4x128xf32> to vector<4x8xf32>
    %369 = vector.extract_strided_slice %368 {offsets = [0, 0], sizes = [4, 1], strides = [1, 1]} : vector<4x8xf32> to vector<4x1xf32>
    %370 = vector.extract_strided_slice %367 {offsets = [0, 0, 0], sizes = [4, 1, 8], strides = [1, 1, 1]} : vector<4x8x8xf32> to vector<4x1x8xf32>
    %371 = vector.shape_cast %370 : vector<4x1x8xf32> to vector<4x8xf32>
    %372 = vector.broadcast %369 : vector<4x1xf32> to vector<4x8xf32>
    %373 = arith.mulf %372, %371 : vector<4x8xf32>
    %cst_78 = arith.constant 1.000000e+00 : f32
    %374 = vector.broadcast %cst_78 : f32 to vector<4x8xf32>
    %375 = arith.subf %374, %373 : vector<4x8xf32>
    %376 = arith.mulf %368, %375 : vector<4x8xf32>
    %377 = vector.extract_strided_slice %376 {offsets = [0, 1], sizes = [4, 1], strides = [1, 1]} : vector<4x8xf32> to vector<4x1xf32>
    %378 = vector.extract_strided_slice %367 {offsets = [0, 1, 0], sizes = [4, 1, 8], strides = [1, 1, 1]} : vector<4x8x8xf32> to vector<4x1x8xf32>
    %379 = vector.shape_cast %378 : vector<4x1x8xf32> to vector<4x8xf32>
    %380 = vector.broadcast %377 : vector<4x1xf32> to vector<4x8xf32>
    %381 = arith.mulf %380, %379 : vector<4x8xf32>
    %cst_79 = arith.constant 1.000000e+00 : f32
    %382 = vector.broadcast %cst_79 : f32 to vector<4x8xf32>
    %383 = arith.subf %382, %381 : vector<4x8xf32>
    %384 = arith.mulf %376, %383 : vector<4x8xf32>
    %385 = vector.extract_strided_slice %384 {offsets = [0, 2], sizes = [4, 1], strides = [1, 1]} : vector<4x8xf32> to vector<4x1xf32>
    %386 = vector.extract_strided_slice %367 {offsets = [0, 2, 0], sizes = [4, 1, 8], strides = [1, 1, 1]} : vector<4x8x8xf32> to vector<4x1x8xf32>
    %387 = vector.shape_cast %386 : vector<4x1x8xf32> to vector<4x8xf32>
    %388 = vector.broadcast %385 : vector<4x1xf32> to vector<4x8xf32>
    %389 = arith.mulf %388, %387 : vector<4x8xf32>
    %cst_80 = arith.constant 1.000000e+00 : f32
    %390 = vector.broadcast %cst_80 : f32 to vector<4x8xf32>
    %391 = arith.subf %390, %389 : vector<4x8xf32>
    %392 = arith.mulf %384, %391 : vector<4x8xf32>
    %393 = vector.extract_strided_slice %392 {offsets = [0, 3], sizes = [4, 1], strides = [1, 1]} : vector<4x8xf32> to vector<4x1xf32>
    %394 = vector.extract_strided_slice %367 {offsets = [0, 3, 0], sizes = [4, 1, 8], strides = [1, 1, 1]} : vector<4x8x8xf32> to vector<4x1x8xf32>
    %395 = vector.shape_cast %394 : vector<4x1x8xf32> to vector<4x8xf32>
    %396 = vector.broadcast %393 : vector<4x1xf32> to vector<4x8xf32>
    %397 = arith.mulf %396, %395 : vector<4x8xf32>
    %cst_81 = arith.constant 1.000000e+00 : f32
    %398 = vector.broadcast %cst_81 : f32 to vector<4x8xf32>
    %399 = arith.subf %398, %397 : vector<4x8xf32>
    %400 = arith.mulf %392, %399 : vector<4x8xf32>
    %401 = vector.extract_strided_slice %400 {offsets = [0, 4], sizes = [4, 1], strides = [1, 1]} : vector<4x8xf32> to vector<4x1xf32>
    %402 = vector.extract_strided_slice %367 {offsets = [0, 4, 0], sizes = [4, 1, 8], strides = [1, 1, 1]} : vector<4x8x8xf32> to vector<4x1x8xf32>
    %403 = vector.shape_cast %402 : vector<4x1x8xf32> to vector<4x8xf32>
    %404 = vector.broadcast %401 : vector<4x1xf32> to vector<4x8xf32>
    %405 = arith.mulf %404, %403 : vector<4x8xf32>
    %cst_82 = arith.constant 1.000000e+00 : f32
    %406 = vector.broadcast %cst_82 : f32 to vector<4x8xf32>
    %407 = arith.subf %406, %405 : vector<4x8xf32>
    %408 = arith.mulf %400, %407 : vector<4x8xf32>
    %409 = vector.extract_strided_slice %408 {offsets = [0, 5], sizes = [4, 1], strides = [1, 1]} : vector<4x8xf32> to vector<4x1xf32>
    %410 = vector.extract_strided_slice %367 {offsets = [0, 5, 0], sizes = [4, 1, 8], strides = [1, 1, 1]} : vector<4x8x8xf32> to vector<4x1x8xf32>
    %411 = vector.shape_cast %410 : vector<4x1x8xf32> to vector<4x8xf32>
    %412 = vector.broadcast %409 : vector<4x1xf32> to vector<4x8xf32>
    %413 = arith.mulf %412, %411 : vector<4x8xf32>
    %cst_83 = arith.constant 1.000000e+00 : f32
    %414 = vector.broadcast %cst_83 : f32 to vector<4x8xf32>
    %415 = arith.subf %414, %413 : vector<4x8xf32>
    %416 = arith.mulf %408, %415 : vector<4x8xf32>
    %417 = vector.extract_strided_slice %416 {offsets = [0, 6], sizes = [4, 1], strides = [1, 1]} : vector<4x8xf32> to vector<4x1xf32>
    %418 = vector.extract_strided_slice %367 {offsets = [0, 6, 0], sizes = [4, 1, 8], strides = [1, 1, 1]} : vector<4x8x8xf32> to vector<4x1x8xf32>
    %419 = vector.shape_cast %418 : vector<4x1x8xf32> to vector<4x8xf32>
    %420 = vector.broadcast %417 : vector<4x1xf32> to vector<4x8xf32>
    %421 = arith.mulf %420, %419 : vector<4x8xf32>
    %cst_84 = arith.constant 1.000000e+00 : f32
    %422 = vector.broadcast %cst_84 : f32 to vector<4x8xf32>
    %423 = arith.subf %422, %421 : vector<4x8xf32>
    %424 = arith.mulf %416, %423 : vector<4x8xf32>
    %425 = vector.extract_strided_slice %424 {offsets = [0, 7], sizes = [4, 1], strides = [1, 1]} : vector<4x8xf32> to vector<4x1xf32>
    %426 = vector.extract_strided_slice %367 {offsets = [0, 7, 0], sizes = [4, 1, 8], strides = [1, 1, 1]} : vector<4x8x8xf32> to vector<4x1x8xf32>
    %427 = vector.shape_cast %426 : vector<4x1x8xf32> to vector<4x8xf32>
    %428 = vector.broadcast %425 : vector<4x1xf32> to vector<4x8xf32>
    %429 = arith.mulf %428, %427 : vector<4x8xf32>
    %cst_85 = arith.constant 1.000000e+00 : f32
    %430 = vector.broadcast %cst_85 : f32 to vector<4x8xf32>
    %431 = arith.subf %430, %429 : vector<4x8xf32>
    %432 = arith.mulf %424, %431 : vector<4x8xf32>
    %433 = vector.extract_strided_slice %432 {offsets = [0, 0], sizes = [4, 1], strides = [1, 1]} : vector<4x8xf32> to vector<4x1xf32>
    %434 = vector.extract_strided_slice %366 {offsets = [0, 0, 0], sizes = [4, 1, 128], strides = [1, 1, 1]} : vector<4x8x128xf32> to vector<4x1x128xf32>
    %435 = vector.shape_cast %434 : vector<4x1x128xf32> to vector<4x128xf32>
    %436 = vector.broadcast %433 : vector<4x1xf32> to vector<4x128xf32>
    %437 = arith.mulf %436, %435 : vector<4x128xf32>
    %438 = vector.extract_strided_slice %432 {offsets = [0, 1], sizes = [4, 1], strides = [1, 1]} : vector<4x8xf32> to vector<4x1xf32>
    %439 = vector.extract_strided_slice %366 {offsets = [0, 1, 0], sizes = [4, 1, 128], strides = [1, 1, 1]} : vector<4x8x128xf32> to vector<4x1x128xf32>
    %440 = vector.shape_cast %439 : vector<4x1x128xf32> to vector<4x128xf32>
    %441 = vector.broadcast %438 : vector<4x1xf32> to vector<4x128xf32>
    %442 = arith.mulf %441, %440 : vector<4x128xf32>
    %443 = vector.extract_strided_slice %432 {offsets = [0, 2], sizes = [4, 1], strides = [1, 1]} : vector<4x8xf32> to vector<4x1xf32>
    %444 = vector.extract_strided_slice %366 {offsets = [0, 2, 0], sizes = [4, 1, 128], strides = [1, 1, 1]} : vector<4x8x128xf32> to vector<4x1x128xf32>
    %445 = vector.shape_cast %444 : vector<4x1x128xf32> to vector<4x128xf32>
    %446 = vector.broadcast %443 : vector<4x1xf32> to vector<4x128xf32>
    %447 = arith.mulf %446, %445 : vector<4x128xf32>
    %448 = vector.extract_strided_slice %432 {offsets = [0, 3], sizes = [4, 1], strides = [1, 1]} : vector<4x8xf32> to vector<4x1xf32>
    %449 = vector.extract_strided_slice %366 {offsets = [0, 3, 0], sizes = [4, 1, 128], strides = [1, 1, 1]} : vector<4x8x128xf32> to vector<4x1x128xf32>
    %450 = vector.shape_cast %449 : vector<4x1x128xf32> to vector<4x128xf32>
    %451 = vector.broadcast %448 : vector<4x1xf32> to vector<4x128xf32>
    %452 = arith.mulf %451, %450 : vector<4x128xf32>
    %453 = vector.extract_strided_slice %432 {offsets = [0, 4], sizes = [4, 1], strides = [1, 1]} : vector<4x8xf32> to vector<4x1xf32>
    %454 = vector.extract_strided_slice %366 {offsets = [0, 4, 0], sizes = [4, 1, 128], strides = [1, 1, 1]} : vector<4x8x128xf32> to vector<4x1x128xf32>
    %455 = vector.shape_cast %454 : vector<4x1x128xf32> to vector<4x128xf32>
    %456 = vector.broadcast %453 : vector<4x1xf32> to vector<4x128xf32>
    %457 = arith.mulf %456, %455 : vector<4x128xf32>
    %458 = vector.extract_strided_slice %432 {offsets = [0, 5], sizes = [4, 1], strides = [1, 1]} : vector<4x8xf32> to vector<4x1xf32>
    %459 = vector.extract_strided_slice %366 {offsets = [0, 5, 0], sizes = [4, 1, 128], strides = [1, 1, 1]} : vector<4x8x128xf32> to vector<4x1x128xf32>
    %460 = vector.shape_cast %459 : vector<4x1x128xf32> to vector<4x128xf32>
    %461 = vector.broadcast %458 : vector<4x1xf32> to vector<4x128xf32>
    %462 = arith.mulf %461, %460 : vector<4x128xf32>
    %463 = vector.extract_strided_slice %432 {offsets = [0, 6], sizes = [4, 1], strides = [1, 1]} : vector<4x8xf32> to vector<4x1xf32>
    %464 = vector.extract_strided_slice %366 {offsets = [0, 6, 0], sizes = [4, 1, 128], strides = [1, 1, 1]} : vector<4x8x128xf32> to vector<4x1x128xf32>
    %465 = vector.shape_cast %464 : vector<4x1x128xf32> to vector<4x128xf32>
    %466 = vector.broadcast %463 : vector<4x1xf32> to vector<4x128xf32>
    %467 = arith.mulf %466, %465 : vector<4x128xf32>
    %468 = vector.extract_strided_slice %432 {offsets = [0, 7], sizes = [4, 1], strides = [1, 1]} : vector<4x8xf32> to vector<4x1xf32>
    %469 = vector.extract_strided_slice %366 {offsets = [0, 7, 0], sizes = [4, 1, 128], strides = [1, 1, 1]} : vector<4x8x128xf32> to vector<4x1x128xf32>
    %470 = vector.shape_cast %469 : vector<4x1x128xf32> to vector<4x128xf32>
    %471 = vector.broadcast %468 : vector<4x1xf32> to vector<4x128xf32>
    %472 = arith.mulf %471, %470 : vector<4x128xf32>
    %473 = arith.maximumf %437, %442 : vector<4x128xf32>
    %474 = arith.maximumf %447, %452 : vector<4x128xf32>
    %475 = arith.maximumf %457, %462 : vector<4x128xf32>
    %476 = arith.maximumf %467, %472 : vector<4x128xf32>
    %477 = arith.maximumf %473, %474 : vector<4x128xf32>
    %478 = arith.maximumf %475, %476 : vector<4x128xf32>
    %479 = arith.maximumf %477, %478 : vector<4x128xf32>
    %cst_86 = arith.constant 1.000000e+00 : f32
    %480 = vector.broadcast %cst_86 : f32 to vector<4x128xf32>
    %481 = arith.subf %480, %479 : vector<4x128xf32>
    %482 = arith.mulf %365, %481 : vector<4x128xf32>
    %c0_87 = arith.constant 0 : index
    %c16 = arith.constant 16 : index
    %c0_88 = arith.constant 0 : index
    %483 = vector.load %arg5[%c0_87, %c16, %c0_88] : memref<4x128x128xf32, #tpu.memory_space<vmem>>, vector<4x8x128xf32>
    %484 = vector.extract_strided_slice %483 {offsets = [0, 0, 16], sizes = [4, 8, 8], strides = [1, 1, 1]} : vector<4x8x128xf32> to vector<4x8x8xf32>
    %485 = vector.extract_strided_slice %482 {offsets = [0, 16], sizes = [4, 8], strides = [1, 1]} : vector<4x128xf32> to vector<4x8xf32>
    %486 = vector.extract_strided_slice %485 {offsets = [0, 0], sizes = [4, 1], strides = [1, 1]} : vector<4x8xf32> to vector<4x1xf32>
    %487 = vector.extract_strided_slice %484 {offsets = [0, 0, 0], sizes = [4, 1, 8], strides = [1, 1, 1]} : vector<4x8x8xf32> to vector<4x1x8xf32>
    %488 = vector.shape_cast %487 : vector<4x1x8xf32> to vector<4x8xf32>
    %489 = vector.broadcast %486 : vector<4x1xf32> to vector<4x8xf32>
    %490 = arith.mulf %489, %488 : vector<4x8xf32>
    %cst_89 = arith.constant 1.000000e+00 : f32
    %491 = vector.broadcast %cst_89 : f32 to vector<4x8xf32>
    %492 = arith.subf %491, %490 : vector<4x8xf32>
    %493 = arith.mulf %485, %492 : vector<4x8xf32>
    %494 = vector.extract_strided_slice %493 {offsets = [0, 1], sizes = [4, 1], strides = [1, 1]} : vector<4x8xf32> to vector<4x1xf32>
    %495 = vector.extract_strided_slice %484 {offsets = [0, 1, 0], sizes = [4, 1, 8], strides = [1, 1, 1]} : vector<4x8x8xf32> to vector<4x1x8xf32>
    %496 = vector.shape_cast %495 : vector<4x1x8xf32> to vector<4x8xf32>
    %497 = vector.broadcast %494 : vector<4x1xf32> to vector<4x8xf32>
    %498 = arith.mulf %497, %496 : vector<4x8xf32>
    %cst_90 = arith.constant 1.000000e+00 : f32
    %499 = vector.broadcast %cst_90 : f32 to vector<4x8xf32>
    %500 = arith.subf %499, %498 : vector<4x8xf32>
    %501 = arith.mulf %493, %500 : vector<4x8xf32>
    %502 = vector.extract_strided_slice %501 {offsets = [0, 2], sizes = [4, 1], strides = [1, 1]} : vector<4x8xf32> to vector<4x1xf32>
    %503 = vector.extract_strided_slice %484 {offsets = [0, 2, 0], sizes = [4, 1, 8], strides = [1, 1, 1]} : vector<4x8x8xf32> to vector<4x1x8xf32>
    %504 = vector.shape_cast %503 : vector<4x1x8xf32> to vector<4x8xf32>
    %505 = vector.broadcast %502 : vector<4x1xf32> to vector<4x8xf32>
    %506 = arith.mulf %505, %504 : vector<4x8xf32>
    %cst_91 = arith.constant 1.000000e+00 : f32
    %507 = vector.broadcast %cst_91 : f32 to vector<4x8xf32>
    %508 = arith.subf %507, %506 : vector<4x8xf32>
    %509 = arith.mulf %501, %508 : vector<4x8xf32>
    %510 = vector.extract_strided_slice %509 {offsets = [0, 3], sizes = [4, 1], strides = [1, 1]} : vector<4x8xf32> to vector<4x1xf32>
    %511 = vector.extract_strided_slice %484 {offsets = [0, 3, 0], sizes = [4, 1, 8], strides = [1, 1, 1]} : vector<4x8x8xf32> to vector<4x1x8xf32>
    %512 = vector.shape_cast %511 : vector<4x1x8xf32> to vector<4x8xf32>
    %513 = vector.broadcast %510 : vector<4x1xf32> to vector<4x8xf32>
    %514 = arith.mulf %513, %512 : vector<4x8xf32>
    %cst_92 = arith.constant 1.000000e+00 : f32
    %515 = vector.broadcast %cst_92 : f32 to vector<4x8xf32>
    %516 = arith.subf %515, %514 : vector<4x8xf32>
    %517 = arith.mulf %509, %516 : vector<4x8xf32>
    %518 = vector.extract_strided_slice %517 {offsets = [0, 4], sizes = [4, 1], strides = [1, 1]} : vector<4x8xf32> to vector<4x1xf32>
    %519 = vector.extract_strided_slice %484 {offsets = [0, 4, 0], sizes = [4, 1, 8], strides = [1, 1, 1]} : vector<4x8x8xf32> to vector<4x1x8xf32>
    %520 = vector.shape_cast %519 : vector<4x1x8xf32> to vector<4x8xf32>
    %521 = vector.broadcast %518 : vector<4x1xf32> to vector<4x8xf32>
    %522 = arith.mulf %521, %520 : vector<4x8xf32>
    %cst_93 = arith.constant 1.000000e+00 : f32
    %523 = vector.broadcast %cst_93 : f32 to vector<4x8xf32>
    %524 = arith.subf %523, %522 : vector<4x8xf32>
    %525 = arith.mulf %517, %524 : vector<4x8xf32>
    %526 = vector.extract_strided_slice %525 {offsets = [0, 5], sizes = [4, 1], strides = [1, 1]} : vector<4x8xf32> to vector<4x1xf32>
    %527 = vector.extract_strided_slice %484 {offsets = [0, 5, 0], sizes = [4, 1, 8], strides = [1, 1, 1]} : vector<4x8x8xf32> to vector<4x1x8xf32>
    %528 = vector.shape_cast %527 : vector<4x1x8xf32> to vector<4x8xf32>
    %529 = vector.broadcast %526 : vector<4x1xf32> to vector<4x8xf32>
    %530 = arith.mulf %529, %528 : vector<4x8xf32>
    %cst_94 = arith.constant 1.000000e+00 : f32
    %531 = vector.broadcast %cst_94 : f32 to vector<4x8xf32>
    %532 = arith.subf %531, %530 : vector<4x8xf32>
    %533 = arith.mulf %525, %532 : vector<4x8xf32>
    %534 = vector.extract_strided_slice %533 {offsets = [0, 6], sizes = [4, 1], strides = [1, 1]} : vector<4x8xf32> to vector<4x1xf32>
    %535 = vector.extract_strided_slice %484 {offsets = [0, 6, 0], sizes = [4, 1, 8], strides = [1, 1, 1]} : vector<4x8x8xf32> to vector<4x1x8xf32>
    %536 = vector.shape_cast %535 : vector<4x1x8xf32> to vector<4x8xf32>
    %537 = vector.broadcast %534 : vector<4x1xf32> to vector<4x8xf32>
    %538 = arith.mulf %537, %536 : vector<4x8xf32>
    %cst_95 = arith.constant 1.000000e+00 : f32
    %539 = vector.broadcast %cst_95 : f32 to vector<4x8xf32>
    %540 = arith.subf %539, %538 : vector<4x8xf32>
    %541 = arith.mulf %533, %540 : vector<4x8xf32>
    %542 = vector.extract_strided_slice %541 {offsets = [0, 7], sizes = [4, 1], strides = [1, 1]} : vector<4x8xf32> to vector<4x1xf32>
    %543 = vector.extract_strided_slice %484 {offsets = [0, 7, 0], sizes = [4, 1, 8], strides = [1, 1, 1]} : vector<4x8x8xf32> to vector<4x1x8xf32>
    %544 = vector.shape_cast %543 : vector<4x1x8xf32> to vector<4x8xf32>
    %545 = vector.broadcast %542 : vector<4x1xf32> to vector<4x8xf32>
    %546 = arith.mulf %545, %544 : vector<4x8xf32>
    %cst_96 = arith.constant 1.000000e+00 : f32
    %547 = vector.broadcast %cst_96 : f32 to vector<4x8xf32>
    %548 = arith.subf %547, %546 : vector<4x8xf32>
    %549 = arith.mulf %541, %548 : vector<4x8xf32>
    %550 = vector.extract_strided_slice %549 {offsets = [0, 0], sizes = [4, 1], strides = [1, 1]} : vector<4x8xf32> to vector<4x1xf32>
    %551 = vector.extract_strided_slice %483 {offsets = [0, 0, 0], sizes = [4, 1, 128], strides = [1, 1, 1]} : vector<4x8x128xf32> to vector<4x1x128xf32>
    %552 = vector.shape_cast %551 : vector<4x1x128xf32> to vector<4x128xf32>
    %553 = vector.broadcast %550 : vector<4x1xf32> to vector<4x128xf32>
    %554 = arith.mulf %553, %552 : vector<4x128xf32>
    %555 = vector.extract_strided_slice %549 {offsets = [0, 1], sizes = [4, 1], strides = [1, 1]} : vector<4x8xf32> to vector<4x1xf32>
    %556 = vector.extract_strided_slice %483 {offsets = [0, 1, 0], sizes = [4, 1, 128], strides = [1, 1, 1]} : vector<4x8x128xf32> to vector<4x1x128xf32>
    %557 = vector.shape_cast %556 : vector<4x1x128xf32> to vector<4x128xf32>
    %558 = vector.broadcast %555 : vector<4x1xf32> to vector<4x128xf32>
    %559 = arith.mulf %558, %557 : vector<4x128xf32>
    %560 = vector.extract_strided_slice %549 {offsets = [0, 2], sizes = [4, 1], strides = [1, 1]} : vector<4x8xf32> to vector<4x1xf32>
    %561 = vector.extract_strided_slice %483 {offsets = [0, 2, 0], sizes = [4, 1, 128], strides = [1, 1, 1]} : vector<4x8x128xf32> to vector<4x1x128xf32>
    %562 = vector.shape_cast %561 : vector<4x1x128xf32> to vector<4x128xf32>
    %563 = vector.broadcast %560 : vector<4x1xf32> to vector<4x128xf32>
    %564 = arith.mulf %563, %562 : vector<4x128xf32>
    %565 = vector.extract_strided_slice %549 {offsets = [0, 3], sizes = [4, 1], strides = [1, 1]} : vector<4x8xf32> to vector<4x1xf32>
    %566 = vector.extract_strided_slice %483 {offsets = [0, 3, 0], sizes = [4, 1, 128], strides = [1, 1, 1]} : vector<4x8x128xf32> to vector<4x1x128xf32>
    %567 = vector.shape_cast %566 : vector<4x1x128xf32> to vector<4x128xf32>
    %568 = vector.broadcast %565 : vector<4x1xf32> to vector<4x128xf32>
    %569 = arith.mulf %568, %567 : vector<4x128xf32>
    %570 = vector.extract_strided_slice %549 {offsets = [0, 4], sizes = [4, 1], strides = [1, 1]} : vector<4x8xf32> to vector<4x1xf32>
    %571 = vector.extract_strided_slice %483 {offsets = [0, 4, 0], sizes = [4, 1, 128], strides = [1, 1, 1]} : vector<4x8x128xf32> to vector<4x1x128xf32>
    %572 = vector.shape_cast %571 : vector<4x1x128xf32> to vector<4x128xf32>
    %573 = vector.broadcast %570 : vector<4x1xf32> to vector<4x128xf32>
    %574 = arith.mulf %573, %572 : vector<4x128xf32>
    %575 = vector.extract_strided_slice %549 {offsets = [0, 5], sizes = [4, 1], strides = [1, 1]} : vector<4x8xf32> to vector<4x1xf32>
    %576 = vector.extract_strided_slice %483 {offsets = [0, 5, 0], sizes = [4, 1, 128], strides = [1, 1, 1]} : vector<4x8x128xf32> to vector<4x1x128xf32>
    %577 = vector.shape_cast %576 : vector<4x1x128xf32> to vector<4x128xf32>
    %578 = vector.broadcast %575 : vector<4x1xf32> to vector<4x128xf32>
    %579 = arith.mulf %578, %577 : vector<4x128xf32>
    %580 = vector.extract_strided_slice %549 {offsets = [0, 6], sizes = [4, 1], strides = [1, 1]} : vector<4x8xf32> to vector<4x1xf32>
    %581 = vector.extract_strided_slice %483 {offsets = [0, 6, 0], sizes = [4, 1, 128], strides = [1, 1, 1]} : vector<4x8x128xf32> to vector<4x1x128xf32>
    %582 = vector.shape_cast %581 : vector<4x1x128xf32> to vector<4x128xf32>
    %583 = vector.broadcast %580 : vector<4x1xf32> to vector<4x128xf32>
    %584 = arith.mulf %583, %582 : vector<4x128xf32>
    %585 = vector.extract_strided_slice %549 {offsets = [0, 7], sizes = [4, 1], strides = [1, 1]} : vector<4x8xf32> to vector<4x1xf32>
    %586 = vector.extract_strided_slice %483 {offsets = [0, 7, 0], sizes = [4, 1, 128], strides = [1, 1, 1]} : vector<4x8x128xf32> to vector<4x1x128xf32>
    %587 = vector.shape_cast %586 : vector<4x1x128xf32> to vector<4x128xf32>
    %588 = vector.broadcast %585 : vector<4x1xf32> to vector<4x128xf32>
    %589 = arith.mulf %588, %587 : vector<4x128xf32>
    %590 = arith.maximumf %554, %559 : vector<4x128xf32>
    %591 = arith.maximumf %564, %569 : vector<4x128xf32>
    %592 = arith.maximumf %574, %579 : vector<4x128xf32>
    %593 = arith.maximumf %584, %589 : vector<4x128xf32>
    %594 = arith.maximumf %590, %591 : vector<4x128xf32>
    %595 = arith.maximumf %592, %593 : vector<4x128xf32>
    %596 = arith.maximumf %594, %595 : vector<4x128xf32>
    %cst_97 = arith.constant 1.000000e+00 : f32
    %597 = vector.broadcast %cst_97 : f32 to vector<4x128xf32>
    %598 = arith.subf %597, %596 : vector<4x128xf32>
    %599 = arith.mulf %482, %598 : vector<4x128xf32>
    %c0_98 = arith.constant 0 : index
    %c24 = arith.constant 24 : index
    %c0_99 = arith.constant 0 : index
    %600 = vector.load %arg5[%c0_98, %c24, %c0_99] : memref<4x128x128xf32, #tpu.memory_space<vmem>>, vector<4x8x128xf32>
    %601 = vector.extract_strided_slice %600 {offsets = [0, 0, 24], sizes = [4, 8, 8], strides = [1, 1, 1]} : vector<4x8x128xf32> to vector<4x8x8xf32>
    %602 = vector.extract_strided_slice %599 {offsets = [0, 24], sizes = [4, 8], strides = [1, 1]} : vector<4x128xf32> to vector<4x8xf32>
    %603 = vector.extract_strided_slice %602 {offsets = [0, 0], sizes = [4, 1], strides = [1, 1]} : vector<4x8xf32> to vector<4x1xf32>
    %604 = vector.extract_strided_slice %601 {offsets = [0, 0, 0], sizes = [4, 1, 8], strides = [1, 1, 1]} : vector<4x8x8xf32> to vector<4x1x8xf32>
    %605 = vector.shape_cast %604 : vector<4x1x8xf32> to vector<4x8xf32>
    %606 = vector.broadcast %603 : vector<4x1xf32> to vector<4x8xf32>
    %607 = arith.mulf %606, %605 : vector<4x8xf32>
    %cst_100 = arith.constant 1.000000e+00 : f32
    %608 = vector.broadcast %cst_100 : f32 to vector<4x8xf32>
    %609 = arith.subf %608, %607 : vector<4x8xf32>
    %610 = arith.mulf %602, %609 : vector<4x8xf32>
    %611 = vector.extract_strided_slice %610 {offsets = [0, 1], sizes = [4, 1], strides = [1, 1]} : vector<4x8xf32> to vector<4x1xf32>
    %612 = vector.extract_strided_slice %601 {offsets = [0, 1, 0], sizes = [4, 1, 8], strides = [1, 1, 1]} : vector<4x8x8xf32> to vector<4x1x8xf32>
    %613 = vector.shape_cast %612 : vector<4x1x8xf32> to vector<4x8xf32>
    %614 = vector.broadcast %611 : vector<4x1xf32> to vector<4x8xf32>
    %615 = arith.mulf %614, %613 : vector<4x8xf32>
    %cst_101 = arith.constant 1.000000e+00 : f32
    %616 = vector.broadcast %cst_101 : f32 to vector<4x8xf32>
    %617 = arith.subf %616, %615 : vector<4x8xf32>
    %618 = arith.mulf %610, %617 : vector<4x8xf32>
    %619 = vector.extract_strided_slice %618 {offsets = [0, 2], sizes = [4, 1], strides = [1, 1]} : vector<4x8xf32> to vector<4x1xf32>
    %620 = vector.extract_strided_slice %601 {offsets = [0, 2, 0], sizes = [4, 1, 8], strides = [1, 1, 1]} : vector<4x8x8xf32> to vector<4x1x8xf32>
    %621 = vector.shape_cast %620 : vector<4x1x8xf32> to vector<4x8xf32>
    %622 = vector.broadcast %619 : vector<4x1xf32> to vector<4x8xf32>
    %623 = arith.mulf %622, %621 : vector<4x8xf32>
    %cst_102 = arith.constant 1.000000e+00 : f32
    %624 = vector.broadcast %cst_102 : f32 to vector<4x8xf32>
    %625 = arith.subf %624, %623 : vector<4x8xf32>
    %626 = arith.mulf %618, %625 : vector<4x8xf32>
    %627 = vector.extract_strided_slice %626 {offsets = [0, 3], sizes = [4, 1], strides = [1, 1]} : vector<4x8xf32> to vector<4x1xf32>
    %628 = vector.extract_strided_slice %601 {offsets = [0, 3, 0], sizes = [4, 1, 8], strides = [1, 1, 1]} : vector<4x8x8xf32> to vector<4x1x8xf32>
    %629 = vector.shape_cast %628 : vector<4x1x8xf32> to vector<4x8xf32>
    %630 = vector.broadcast %627 : vector<4x1xf32> to vector<4x8xf32>
    %631 = arith.mulf %630, %629 : vector<4x8xf32>
    %cst_103 = arith.constant 1.000000e+00 : f32
    %632 = vector.broadcast %cst_103 : f32 to vector<4x8xf32>
    %633 = arith.subf %632, %631 : vector<4x8xf32>
    %634 = arith.mulf %626, %633 : vector<4x8xf32>
    %635 = vector.extract_strided_slice %634 {offsets = [0, 4], sizes = [4, 1], strides = [1, 1]} : vector<4x8xf32> to vector<4x1xf32>
    %636 = vector.extract_strided_slice %601 {offsets = [0, 4, 0], sizes = [4, 1, 8], strides = [1, 1, 1]} : vector<4x8x8xf32> to vector<4x1x8xf32>
    %637 = vector.shape_cast %636 : vector<4x1x8xf32> to vector<4x8xf32>
    %638 = vector.broadcast %635 : vector<4x1xf32> to vector<4x8xf32>
    %639 = arith.mulf %638, %637 : vector<4x8xf32>
    %cst_104 = arith.constant 1.000000e+00 : f32
    %640 = vector.broadcast %cst_104 : f32 to vector<4x8xf32>
    %641 = arith.subf %640, %639 : vector<4x8xf32>
    %642 = arith.mulf %634, %641 : vector<4x8xf32>
    %643 = vector.extract_strided_slice %642 {offsets = [0, 5], sizes = [4, 1], strides = [1, 1]} : vector<4x8xf32> to vector<4x1xf32>
    %644 = vector.extract_strided_slice %601 {offsets = [0, 5, 0], sizes = [4, 1, 8], strides = [1, 1, 1]} : vector<4x8x8xf32> to vector<4x1x8xf32>
    %645 = vector.shape_cast %644 : vector<4x1x8xf32> to vector<4x8xf32>
    %646 = vector.broadcast %643 : vector<4x1xf32> to vector<4x8xf32>
    %647 = arith.mulf %646, %645 : vector<4x8xf32>
    %cst_105 = arith.constant 1.000000e+00 : f32
    %648 = vector.broadcast %cst_105 : f32 to vector<4x8xf32>
    %649 = arith.subf %648, %647 : vector<4x8xf32>
    %650 = arith.mulf %642, %649 : vector<4x8xf32>
    %651 = vector.extract_strided_slice %650 {offsets = [0, 6], sizes = [4, 1], strides = [1, 1]} : vector<4x8xf32> to vector<4x1xf32>
    %652 = vector.extract_strided_slice %601 {offsets = [0, 6, 0], sizes = [4, 1, 8], strides = [1, 1, 1]} : vector<4x8x8xf32> to vector<4x1x8xf32>
    %653 = vector.shape_cast %652 : vector<4x1x8xf32> to vector<4x8xf32>
    %654 = vector.broadcast %651 : vector<4x1xf32> to vector<4x8xf32>
    %655 = arith.mulf %654, %653 : vector<4x8xf32>
    %cst_106 = arith.constant 1.000000e+00 : f32
    %656 = vector.broadcast %cst_106 : f32 to vector<4x8xf32>
    %657 = arith.subf %656, %655 : vector<4x8xf32>
    %658 = arith.mulf %650, %657 : vector<4x8xf32>
    %659 = vector.extract_strided_slice %658 {offsets = [0, 7], sizes = [4, 1], strides = [1, 1]} : vector<4x8xf32> to vector<4x1xf32>
    %660 = vector.extract_strided_slice %601 {offsets = [0, 7, 0], sizes = [4, 1, 8], strides = [1, 1, 1]} : vector<4x8x8xf32> to vector<4x1x8xf32>
    %661 = vector.shape_cast %660 : vector<4x1x8xf32> to vector<4x8xf32>
    %662 = vector.broadcast %659 : vector<4x1xf32> to vector<4x8xf32>
    %663 = arith.mulf %662, %661 : vector<4x8xf32>
    %cst_107 = arith.constant 1.000000e+00 : f32
    %664 = vector.broadcast %cst_107 : f32 to vector<4x8xf32>
    %665 = arith.subf %664, %663 : vector<4x8xf32>
    %666 = arith.mulf %658, %665 : vector<4x8xf32>
    %667 = vector.extract_strided_slice %666 {offsets = [0, 0], sizes = [4, 1], strides = [1, 1]} : vector<4x8xf32> to vector<4x1xf32>
    %668 = vector.extract_strided_slice %600 {offsets = [0, 0, 0], sizes = [4, 1, 128], strides = [1, 1, 1]} : vector<4x8x128xf32> to vector<4x1x128xf32>
    %669 = vector.shape_cast %668 : vector<4x1x128xf32> to vector<4x128xf32>
    %670 = vector.broadcast %667 : vector<4x1xf32> to vector<4x128xf32>
    %671 = arith.mulf %670, %669 : vector<4x128xf32>
    %672 = vector.extract_strided_slice %666 {offsets = [0, 1], sizes = [4, 1], strides = [1, 1]} : vector<4x8xf32> to vector<4x1xf32>
    %673 = vector.extract_strided_slice %600 {offsets = [0, 1, 0], sizes = [4, 1, 128], strides = [1, 1, 1]} : vector<4x8x128xf32> to vector<4x1x128xf32>
    %674 = vector.shape_cast %673 : vector<4x1x128xf32> to vector<4x128xf32>
    %675 = vector.broadcast %672 : vector<4x1xf32> to vector<4x128xf32>
    %676 = arith.mulf %675, %674 : vector<4x128xf32>
    %677 = vector.extract_strided_slice %666 {offsets = [0, 2], sizes = [4, 1], strides = [1, 1]} : vector<4x8xf32> to vector<4x1xf32>
    %678 = vector.extract_strided_slice %600 {offsets = [0, 2, 0], sizes = [4, 1, 128], strides = [1, 1, 1]} : vector<4x8x128xf32> to vector<4x1x128xf32>
    %679 = vector.shape_cast %678 : vector<4x1x128xf32> to vector<4x128xf32>
    %680 = vector.broadcast %677 : vector<4x1xf32> to vector<4x128xf32>
    %681 = arith.mulf %680, %679 : vector<4x128xf32>
    %682 = vector.extract_strided_slice %666 {offsets = [0, 3], sizes = [4, 1], strides = [1, 1]} : vector<4x8xf32> to vector<4x1xf32>
    %683 = vector.extract_strided_slice %600 {offsets = [0, 3, 0], sizes = [4, 1, 128], strides = [1, 1, 1]} : vector<4x8x128xf32> to vector<4x1x128xf32>
    %684 = vector.shape_cast %683 : vector<4x1x128xf32> to vector<4x128xf32>
    %685 = vector.broadcast %682 : vector<4x1xf32> to vector<4x128xf32>
    %686 = arith.mulf %685, %684 : vector<4x128xf32>
    %687 = vector.extract_strided_slice %666 {offsets = [0, 4], sizes = [4, 1], strides = [1, 1]} : vector<4x8xf32> to vector<4x1xf32>
    %688 = vector.extract_strided_slice %600 {offsets = [0, 4, 0], sizes = [4, 1, 128], strides = [1, 1, 1]} : vector<4x8x128xf32> to vector<4x1x128xf32>
    %689 = vector.shape_cast %688 : vector<4x1x128xf32> to vector<4x128xf32>
    %690 = vector.broadcast %687 : vector<4x1xf32> to vector<4x128xf32>
    %691 = arith.mulf %690, %689 : vector<4x128xf32>
    %692 = vector.extract_strided_slice %666 {offsets = [0, 5], sizes = [4, 1], strides = [1, 1]} : vector<4x8xf32> to vector<4x1xf32>
    %693 = vector.extract_strided_slice %600 {offsets = [0, 5, 0], sizes = [4, 1, 128], strides = [1, 1, 1]} : vector<4x8x128xf32> to vector<4x1x128xf32>
    %694 = vector.shape_cast %693 : vector<4x1x128xf32> to vector<4x128xf32>
    %695 = vector.broadcast %692 : vector<4x1xf32> to vector<4x128xf32>
    %696 = arith.mulf %695, %694 : vector<4x128xf32>
    %697 = vector.extract_strided_slice %666 {offsets = [0, 6], sizes = [4, 1], strides = [1, 1]} : vector<4x8xf32> to vector<4x1xf32>
    %698 = vector.extract_strided_slice %600 {offsets = [0, 6, 0], sizes = [4, 1, 128], strides = [1, 1, 1]} : vector<4x8x128xf32> to vector<4x1x128xf32>
    %699 = vector.shape_cast %698 : vector<4x1x128xf32> to vector<4x128xf32>
    %700 = vector.broadcast %697 : vector<4x1xf32> to vector<4x128xf32>
    %701 = arith.mulf %700, %699 : vector<4x128xf32>
    %702 = vector.extract_strided_slice %666 {offsets = [0, 7], sizes = [4, 1], strides = [1, 1]} : vector<4x8xf32> to vector<4x1xf32>
    %703 = vector.extract_strided_slice %600 {offsets = [0, 7, 0], sizes = [4, 1, 128], strides = [1, 1, 1]} : vector<4x8x128xf32> to vector<4x1x128xf32>
    %704 = vector.shape_cast %703 : vector<4x1x128xf32> to vector<4x128xf32>
    %705 = vector.broadcast %702 : vector<4x1xf32> to vector<4x128xf32>
    %706 = arith.mulf %705, %704 : vector<4x128xf32>
    %707 = arith.maximumf %671, %676 : vector<4x128xf32>
    %708 = arith.maximumf %681, %686 : vector<4x128xf32>
    %709 = arith.maximumf %691, %696 : vector<4x128xf32>
    %710 = arith.maximumf %701, %706 : vector<4x128xf32>
    %711 = arith.maximumf %707, %708 : vector<4x128xf32>
    %712 = arith.maximumf %709, %710 : vector<4x128xf32>
    %713 = arith.maximumf %711, %712 : vector<4x128xf32>
    %cst_108 = arith.constant 1.000000e+00 : f32
    %714 = vector.broadcast %cst_108 : f32 to vector<4x128xf32>
    %715 = arith.subf %714, %713 : vector<4x128xf32>
    %716 = arith.mulf %599, %715 : vector<4x128xf32>
    %c0_109 = arith.constant 0 : index
    %c32 = arith.constant 32 : index
    %c0_110 = arith.constant 0 : index
    %717 = vector.load %arg5[%c0_109, %c32, %c0_110] : memref<4x128x128xf32, #tpu.memory_space<vmem>>, vector<4x8x128xf32>
    %718 = vector.extract_strided_slice %717 {offsets = [0, 0, 32], sizes = [4, 8, 8], strides = [1, 1, 1]} : vector<4x8x128xf32> to vector<4x8x8xf32>
    %719 = vector.extract_strided_slice %716 {offsets = [0, 32], sizes = [4, 8], strides = [1, 1]} : vector<4x128xf32> to vector<4x8xf32>
    %720 = vector.extract_strided_slice %719 {offsets = [0, 0], sizes = [4, 1], strides = [1, 1]} : vector<4x8xf32> to vector<4x1xf32>
    %721 = vector.extract_strided_slice %718 {offsets = [0, 0, 0], sizes = [4, 1, 8], strides = [1, 1, 1]} : vector<4x8x8xf32> to vector<4x1x8xf32>
    %722 = vector.shape_cast %721 : vector<4x1x8xf32> to vector<4x8xf32>
    %723 = vector.broadcast %720 : vector<4x1xf32> to vector<4x8xf32>
    %724 = arith.mulf %723, %722 : vector<4x8xf32>
    %cst_111 = arith.constant 1.000000e+00 : f32
    %725 = vector.broadcast %cst_111 : f32 to vector<4x8xf32>
    %726 = arith.subf %725, %724 : vector<4x8xf32>
    %727 = arith.mulf %719, %726 : vector<4x8xf32>
    %728 = vector.extract_strided_slice %727 {offsets = [0, 1], sizes = [4, 1], strides = [1, 1]} : vector<4x8xf32> to vector<4x1xf32>
    %729 = vector.extract_strided_slice %718 {offsets = [0, 1, 0], sizes = [4, 1, 8], strides = [1, 1, 1]} : vector<4x8x8xf32> to vector<4x1x8xf32>
    %730 = vector.shape_cast %729 : vector<4x1x8xf32> to vector<4x8xf32>
    %731 = vector.broadcast %728 : vector<4x1xf32> to vector<4x8xf32>
    %732 = arith.mulf %731, %730 : vector<4x8xf32>
    %cst_112 = arith.constant 1.000000e+00 : f32
    %733 = vector.broadcast %cst_112 : f32 to vector<4x8xf32>
    %734 = arith.subf %733, %732 : vector<4x8xf32>
    %735 = arith.mulf %727, %734 : vector<4x8xf32>
    %736 = vector.extract_strided_slice %735 {offsets = [0, 2], sizes = [4, 1], strides = [1, 1]} : vector<4x8xf32> to vector<4x1xf32>
    %737 = vector.extract_strided_slice %718 {offsets = [0, 2, 0], sizes = [4, 1, 8], strides = [1, 1, 1]} : vector<4x8x8xf32> to vector<4x1x8xf32>
    %738 = vector.shape_cast %737 : vector<4x1x8xf32> to vector<4x8xf32>
    %739 = vector.broadcast %736 : vector<4x1xf32> to vector<4x8xf32>
    %740 = arith.mulf %739, %738 : vector<4x8xf32>
    %cst_113 = arith.constant 1.000000e+00 : f32
    %741 = vector.broadcast %cst_113 : f32 to vector<4x8xf32>
    %742 = arith.subf %741, %740 : vector<4x8xf32>
    %743 = arith.mulf %735, %742 : vector<4x8xf32>
    %744 = vector.extract_strided_slice %743 {offsets = [0, 3], sizes = [4, 1], strides = [1, 1]} : vector<4x8xf32> to vector<4x1xf32>
    %745 = vector.extract_strided_slice %718 {offsets = [0, 3, 0], sizes = [4, 1, 8], strides = [1, 1, 1]} : vector<4x8x8xf32> to vector<4x1x8xf32>
    %746 = vector.shape_cast %745 : vector<4x1x8xf32> to vector<4x8xf32>
    %747 = vector.broadcast %744 : vector<4x1xf32> to vector<4x8xf32>
    %748 = arith.mulf %747, %746 : vector<4x8xf32>
    %cst_114 = arith.constant 1.000000e+00 : f32
    %749 = vector.broadcast %cst_114 : f32 to vector<4x8xf32>
    %750 = arith.subf %749, %748 : vector<4x8xf32>
    %751 = arith.mulf %743, %750 : vector<4x8xf32>
    %752 = vector.extract_strided_slice %751 {offsets = [0, 4], sizes = [4, 1], strides = [1, 1]} : vector<4x8xf32> to vector<4x1xf32>
    %753 = vector.extract_strided_slice %718 {offsets = [0, 4, 0], sizes = [4, 1, 8], strides = [1, 1, 1]} : vector<4x8x8xf32> to vector<4x1x8xf32>
    %754 = vector.shape_cast %753 : vector<4x1x8xf32> to vector<4x8xf32>
    %755 = vector.broadcast %752 : vector<4x1xf32> to vector<4x8xf32>
    %756 = arith.mulf %755, %754 : vector<4x8xf32>
    %cst_115 = arith.constant 1.000000e+00 : f32
    %757 = vector.broadcast %cst_115 : f32 to vector<4x8xf32>
    %758 = arith.subf %757, %756 : vector<4x8xf32>
    %759 = arith.mulf %751, %758 : vector<4x8xf32>
    %760 = vector.extract_strided_slice %759 {offsets = [0, 5], sizes = [4, 1], strides = [1, 1]} : vector<4x8xf32> to vector<4x1xf32>
    %761 = vector.extract_strided_slice %718 {offsets = [0, 5, 0], sizes = [4, 1, 8], strides = [1, 1, 1]} : vector<4x8x8xf32> to vector<4x1x8xf32>
    %762 = vector.shape_cast %761 : vector<4x1x8xf32> to vector<4x8xf32>
    %763 = vector.broadcast %760 : vector<4x1xf32> to vector<4x8xf32>
    %764 = arith.mulf %763, %762 : vector<4x8xf32>
    %cst_116 = arith.constant 1.000000e+00 : f32
    %765 = vector.broadcast %cst_116 : f32 to vector<4x8xf32>
    %766 = arith.subf %765, %764 : vector<4x8xf32>
    %767 = arith.mulf %759, %766 : vector<4x8xf32>
    %768 = vector.extract_strided_slice %767 {offsets = [0, 6], sizes = [4, 1], strides = [1, 1]} : vector<4x8xf32> to vector<4x1xf32>
    %769 = vector.extract_strided_slice %718 {offsets = [0, 6, 0], sizes = [4, 1, 8], strides = [1, 1, 1]} : vector<4x8x8xf32> to vector<4x1x8xf32>
    %770 = vector.shape_cast %769 : vector<4x1x8xf32> to vector<4x8xf32>
    %771 = vector.broadcast %768 : vector<4x1xf32> to vector<4x8xf32>
    %772 = arith.mulf %771, %770 : vector<4x8xf32>
    %cst_117 = arith.constant 1.000000e+00 : f32
    %773 = vector.broadcast %cst_117 : f32 to vector<4x8xf32>
    %774 = arith.subf %773, %772 : vector<4x8xf32>
    %775 = arith.mulf %767, %774 : vector<4x8xf32>
    %776 = vector.extract_strided_slice %775 {offsets = [0, 7], sizes = [4, 1], strides = [1, 1]} : vector<4x8xf32> to vector<4x1xf32>
    %777 = vector.extract_strided_slice %718 {offsets = [0, 7, 0], sizes = [4, 1, 8], strides = [1, 1, 1]} : vector<4x8x8xf32> to vector<4x1x8xf32>
    %778 = vector.shape_cast %777 : vector<4x1x8xf32> to vector<4x8xf32>
    %779 = vector.broadcast %776 : vector<4x1xf32> to vector<4x8xf32>
    %780 = arith.mulf %779, %778 : vector<4x8xf32>
    %cst_118 = arith.constant 1.000000e+00 : f32
    %781 = vector.broadcast %cst_118 : f32 to vector<4x8xf32>
    %782 = arith.subf %781, %780 : vector<4x8xf32>
    %783 = arith.mulf %775, %782 : vector<4x8xf32>
    %784 = vector.extract_strided_slice %783 {offsets = [0, 0], sizes = [4, 1], strides = [1, 1]} : vector<4x8xf32> to vector<4x1xf32>
    %785 = vector.extract_strided_slice %717 {offsets = [0, 0, 0], sizes = [4, 1, 128], strides = [1, 1, 1]} : vector<4x8x128xf32> to vector<4x1x128xf32>
    %786 = vector.shape_cast %785 : vector<4x1x128xf32> to vector<4x128xf32>
    %787 = vector.broadcast %784 : vector<4x1xf32> to vector<4x128xf32>
    %788 = arith.mulf %787, %786 : vector<4x128xf32>
    %789 = vector.extract_strided_slice %783 {offsets = [0, 1], sizes = [4, 1], strides = [1, 1]} : vector<4x8xf32> to vector<4x1xf32>
    %790 = vector.extract_strided_slice %717 {offsets = [0, 1, 0], sizes = [4, 1, 128], strides = [1, 1, 1]} : vector<4x8x128xf32> to vector<4x1x128xf32>
    %791 = vector.shape_cast %790 : vector<4x1x128xf32> to vector<4x128xf32>
    %792 = vector.broadcast %789 : vector<4x1xf32> to vector<4x128xf32>
    %793 = arith.mulf %792, %791 : vector<4x128xf32>
    %794 = vector.extract_strided_slice %783 {offsets = [0, 2], sizes = [4, 1], strides = [1, 1]} : vector<4x8xf32> to vector<4x1xf32>
    %795 = vector.extract_strided_slice %717 {offsets = [0, 2, 0], sizes = [4, 1, 128], strides = [1, 1, 1]} : vector<4x8x128xf32> to vector<4x1x128xf32>
    %796 = vector.shape_cast %795 : vector<4x1x128xf32> to vector<4x128xf32>
    %797 = vector.broadcast %794 : vector<4x1xf32> to vector<4x128xf32>
    %798 = arith.mulf %797, %796 : vector<4x128xf32>
    %799 = vector.extract_strided_slice %783 {offsets = [0, 3], sizes = [4, 1], strides = [1, 1]} : vector<4x8xf32> to vector<4x1xf32>
    %800 = vector.extract_strided_slice %717 {offsets = [0, 3, 0], sizes = [4, 1, 128], strides = [1, 1, 1]} : vector<4x8x128xf32> to vector<4x1x128xf32>
    %801 = vector.shape_cast %800 : vector<4x1x128xf32> to vector<4x128xf32>
    %802 = vector.broadcast %799 : vector<4x1xf32> to vector<4x128xf32>
    %803 = arith.mulf %802, %801 : vector<4x128xf32>
    %804 = vector.extract_strided_slice %783 {offsets = [0, 4], sizes = [4, 1], strides = [1, 1]} : vector<4x8xf32> to vector<4x1xf32>
    %805 = vector.extract_strided_slice %717 {offsets = [0, 4, 0], sizes = [4, 1, 128], strides = [1, 1, 1]} : vector<4x8x128xf32> to vector<4x1x128xf32>
    %806 = vector.shape_cast %805 : vector<4x1x128xf32> to vector<4x128xf32>
    %807 = vector.broadcast %804 : vector<4x1xf32> to vector<4x128xf32>
    %808 = arith.mulf %807, %806 : vector<4x128xf32>
    %809 = vector.extract_strided_slice %783 {offsets = [0, 5], sizes = [4, 1], strides = [1, 1]} : vector<4x8xf32> to vector<4x1xf32>
    %810 = vector.extract_strided_slice %717 {offsets = [0, 5, 0], sizes = [4, 1, 128], strides = [1, 1, 1]} : vector<4x8x128xf32> to vector<4x1x128xf32>
    %811 = vector.shape_cast %810 : vector<4x1x128xf32> to vector<4x128xf32>
    %812 = vector.broadcast %809 : vector<4x1xf32> to vector<4x128xf32>
    %813 = arith.mulf %812, %811 : vector<4x128xf32>
    %814 = vector.extract_strided_slice %783 {offsets = [0, 6], sizes = [4, 1], strides = [1, 1]} : vector<4x8xf32> to vector<4x1xf32>
    %815 = vector.extract_strided_slice %717 {offsets = [0, 6, 0], sizes = [4, 1, 128], strides = [1, 1, 1]} : vector<4x8x128xf32> to vector<4x1x128xf32>
    %816 = vector.shape_cast %815 : vector<4x1x128xf32> to vector<4x128xf32>
    %817 = vector.broadcast %814 : vector<4x1xf32> to vector<4x128xf32>
    %818 = arith.mulf %817, %816 : vector<4x128xf32>
    %819 = vector.extract_strided_slice %783 {offsets = [0, 7], sizes = [4, 1], strides = [1, 1]} : vector<4x8xf32> to vector<4x1xf32>
    %820 = vector.extract_strided_slice %717 {offsets = [0, 7, 0], sizes = [4, 1, 128], strides = [1, 1, 1]} : vector<4x8x128xf32> to vector<4x1x128xf32>
    %821 = vector.shape_cast %820 : vector<4x1x128xf32> to vector<4x128xf32>
    %822 = vector.broadcast %819 : vector<4x1xf32> to vector<4x128xf32>
    %823 = arith.mulf %822, %821 : vector<4x128xf32>
    %824 = arith.maximumf %788, %793 : vector<4x128xf32>
    %825 = arith.maximumf %798, %803 : vector<4x128xf32>
    %826 = arith.maximumf %808, %813 : vector<4x128xf32>
    %827 = arith.maximumf %818, %823 : vector<4x128xf32>
    %828 = arith.maximumf %824, %825 : vector<4x128xf32>
    %829 = arith.maximumf %826, %827 : vector<4x128xf32>
    %830 = arith.maximumf %828, %829 : vector<4x128xf32>
    %cst_119 = arith.constant 1.000000e+00 : f32
    %831 = vector.broadcast %cst_119 : f32 to vector<4x128xf32>
    %832 = arith.subf %831, %830 : vector<4x128xf32>
    %833 = arith.mulf %716, %832 : vector<4x128xf32>
    %c0_120 = arith.constant 0 : index
    %c40 = arith.constant 40 : index
    %c0_121 = arith.constant 0 : index
    %834 = vector.load %arg5[%c0_120, %c40, %c0_121] : memref<4x128x128xf32, #tpu.memory_space<vmem>>, vector<4x8x128xf32>
    %835 = vector.extract_strided_slice %834 {offsets = [0, 0, 40], sizes = [4, 8, 8], strides = [1, 1, 1]} : vector<4x8x128xf32> to vector<4x8x8xf32>
    %836 = vector.extract_strided_slice %833 {offsets = [0, 40], sizes = [4, 8], strides = [1, 1]} : vector<4x128xf32> to vector<4x8xf32>
    %837 = vector.extract_strided_slice %836 {offsets = [0, 0], sizes = [4, 1], strides = [1, 1]} : vector<4x8xf32> to vector<4x1xf32>
    %838 = vector.extract_strided_slice %835 {offsets = [0, 0, 0], sizes = [4, 1, 8], strides = [1, 1, 1]} : vector<4x8x8xf32> to vector<4x1x8xf32>
    %839 = vector.shape_cast %838 : vector<4x1x8xf32> to vector<4x8xf32>
    %840 = vector.broadcast %837 : vector<4x1xf32> to vector<4x8xf32>
    %841 = arith.mulf %840, %839 : vector<4x8xf32>
    %cst_122 = arith.constant 1.000000e+00 : f32
    %842 = vector.broadcast %cst_122 : f32 to vector<4x8xf32>
    %843 = arith.subf %842, %841 : vector<4x8xf32>
    %844 = arith.mulf %836, %843 : vector<4x8xf32>
    %845 = vector.extract_strided_slice %844 {offsets = [0, 1], sizes = [4, 1], strides = [1, 1]} : vector<4x8xf32> to vector<4x1xf32>
    %846 = vector.extract_strided_slice %835 {offsets = [0, 1, 0], sizes = [4, 1, 8], strides = [1, 1, 1]} : vector<4x8x8xf32> to vector<4x1x8xf32>
    %847 = vector.shape_cast %846 : vector<4x1x8xf32> to vector<4x8xf32>
    %848 = vector.broadcast %845 : vector<4x1xf32> to vector<4x8xf32>
    %849 = arith.mulf %848, %847 : vector<4x8xf32>
    %cst_123 = arith.constant 1.000000e+00 : f32
    %850 = vector.broadcast %cst_123 : f32 to vector<4x8xf32>
    %851 = arith.subf %850, %849 : vector<4x8xf32>
    %852 = arith.mulf %844, %851 : vector<4x8xf32>
    %853 = vector.extract_strided_slice %852 {offsets = [0, 2], sizes = [4, 1], strides = [1, 1]} : vector<4x8xf32> to vector<4x1xf32>
    %854 = vector.extract_strided_slice %835 {offsets = [0, 2, 0], sizes = [4, 1, 8], strides = [1, 1, 1]} : vector<4x8x8xf32> to vector<4x1x8xf32>
    %855 = vector.shape_cast %854 : vector<4x1x8xf32> to vector<4x8xf32>
    %856 = vector.broadcast %853 : vector<4x1xf32> to vector<4x8xf32>
    %857 = arith.mulf %856, %855 : vector<4x8xf32>
    %cst_124 = arith.constant 1.000000e+00 : f32
    %858 = vector.broadcast %cst_124 : f32 to vector<4x8xf32>
    %859 = arith.subf %858, %857 : vector<4x8xf32>
    %860 = arith.mulf %852, %859 : vector<4x8xf32>
    %861 = vector.extract_strided_slice %860 {offsets = [0, 3], sizes = [4, 1], strides = [1, 1]} : vector<4x8xf32> to vector<4x1xf32>
    %862 = vector.extract_strided_slice %835 {offsets = [0, 3, 0], sizes = [4, 1, 8], strides = [1, 1, 1]} : vector<4x8x8xf32> to vector<4x1x8xf32>
    %863 = vector.shape_cast %862 : vector<4x1x8xf32> to vector<4x8xf32>
    %864 = vector.broadcast %861 : vector<4x1xf32> to vector<4x8xf32>
    %865 = arith.mulf %864, %863 : vector<4x8xf32>
    %cst_125 = arith.constant 1.000000e+00 : f32
    %866 = vector.broadcast %cst_125 : f32 to vector<4x8xf32>
    %867 = arith.subf %866, %865 : vector<4x8xf32>
    %868 = arith.mulf %860, %867 : vector<4x8xf32>
    %869 = vector.extract_strided_slice %868 {offsets = [0, 4], sizes = [4, 1], strides = [1, 1]} : vector<4x8xf32> to vector<4x1xf32>
    %870 = vector.extract_strided_slice %835 {offsets = [0, 4, 0], sizes = [4, 1, 8], strides = [1, 1, 1]} : vector<4x8x8xf32> to vector<4x1x8xf32>
    %871 = vector.shape_cast %870 : vector<4x1x8xf32> to vector<4x8xf32>
    %872 = vector.broadcast %869 : vector<4x1xf32> to vector<4x8xf32>
    %873 = arith.mulf %872, %871 : vector<4x8xf32>
    %cst_126 = arith.constant 1.000000e+00 : f32
    %874 = vector.broadcast %cst_126 : f32 to vector<4x8xf32>
    %875 = arith.subf %874, %873 : vector<4x8xf32>
    %876 = arith.mulf %868, %875 : vector<4x8xf32>
    %877 = vector.extract_strided_slice %876 {offsets = [0, 5], sizes = [4, 1], strides = [1, 1]} : vector<4x8xf32> to vector<4x1xf32>
    %878 = vector.extract_strided_slice %835 {offsets = [0, 5, 0], sizes = [4, 1, 8], strides = [1, 1, 1]} : vector<4x8x8xf32> to vector<4x1x8xf32>
    %879 = vector.shape_cast %878 : vector<4x1x8xf32> to vector<4x8xf32>
    %880 = vector.broadcast %877 : vector<4x1xf32> to vector<4x8xf32>
    %881 = arith.mulf %880, %879 : vector<4x8xf32>
    %cst_127 = arith.constant 1.000000e+00 : f32
    %882 = vector.broadcast %cst_127 : f32 to vector<4x8xf32>
    %883 = arith.subf %882, %881 : vector<4x8xf32>
    %884 = arith.mulf %876, %883 : vector<4x8xf32>
    %885 = vector.extract_strided_slice %884 {offsets = [0, 6], sizes = [4, 1], strides = [1, 1]} : vector<4x8xf32> to vector<4x1xf32>
    %886 = vector.extract_strided_slice %835 {offsets = [0, 6, 0], sizes = [4, 1, 8], strides = [1, 1, 1]} : vector<4x8x8xf32> to vector<4x1x8xf32>
    %887 = vector.shape_cast %886 : vector<4x1x8xf32> to vector<4x8xf32>
    %888 = vector.broadcast %885 : vector<4x1xf32> to vector<4x8xf32>
    %889 = arith.mulf %888, %887 : vector<4x8xf32>
    %cst_128 = arith.constant 1.000000e+00 : f32
    %890 = vector.broadcast %cst_128 : f32 to vector<4x8xf32>
    %891 = arith.subf %890, %889 : vector<4x8xf32>
    %892 = arith.mulf %884, %891 : vector<4x8xf32>
    %893 = vector.extract_strided_slice %892 {offsets = [0, 7], sizes = [4, 1], strides = [1, 1]} : vector<4x8xf32> to vector<4x1xf32>
    %894 = vector.extract_strided_slice %835 {offsets = [0, 7, 0], sizes = [4, 1, 8], strides = [1, 1, 1]} : vector<4x8x8xf32> to vector<4x1x8xf32>
    %895 = vector.shape_cast %894 : vector<4x1x8xf32> to vector<4x8xf32>
    %896 = vector.broadcast %893 : vector<4x1xf32> to vector<4x8xf32>
    %897 = arith.mulf %896, %895 : vector<4x8xf32>
    %cst_129 = arith.constant 1.000000e+00 : f32
    %898 = vector.broadcast %cst_129 : f32 to vector<4x8xf32>
    %899 = arith.subf %898, %897 : vector<4x8xf32>
    %900 = arith.mulf %892, %899 : vector<4x8xf32>
    %901 = vector.extract_strided_slice %900 {offsets = [0, 0], sizes = [4, 1], strides = [1, 1]} : vector<4x8xf32> to vector<4x1xf32>
    %902 = vector.extract_strided_slice %834 {offsets = [0, 0, 0], sizes = [4, 1, 128], strides = [1, 1, 1]} : vector<4x8x128xf32> to vector<4x1x128xf32>
    %903 = vector.shape_cast %902 : vector<4x1x128xf32> to vector<4x128xf32>
    %904 = vector.broadcast %901 : vector<4x1xf32> to vector<4x128xf32>
    %905 = arith.mulf %904, %903 : vector<4x128xf32>
    %906 = vector.extract_strided_slice %900 {offsets = [0, 1], sizes = [4, 1], strides = [1, 1]} : vector<4x8xf32> to vector<4x1xf32>
    %907 = vector.extract_strided_slice %834 {offsets = [0, 1, 0], sizes = [4, 1, 128], strides = [1, 1, 1]} : vector<4x8x128xf32> to vector<4x1x128xf32>
    %908 = vector.shape_cast %907 : vector<4x1x128xf32> to vector<4x128xf32>
    %909 = vector.broadcast %906 : vector<4x1xf32> to vector<4x128xf32>
    %910 = arith.mulf %909, %908 : vector<4x128xf32>
    %911 = vector.extract_strided_slice %900 {offsets = [0, 2], sizes = [4, 1], strides = [1, 1]} : vector<4x8xf32> to vector<4x1xf32>
    %912 = vector.extract_strided_slice %834 {offsets = [0, 2, 0], sizes = [4, 1, 128], strides = [1, 1, 1]} : vector<4x8x128xf32> to vector<4x1x128xf32>
    %913 = vector.shape_cast %912 : vector<4x1x128xf32> to vector<4x128xf32>
    %914 = vector.broadcast %911 : vector<4x1xf32> to vector<4x128xf32>
    %915 = arith.mulf %914, %913 : vector<4x128xf32>
    %916 = vector.extract_strided_slice %900 {offsets = [0, 3], sizes = [4, 1], strides = [1, 1]} : vector<4x8xf32> to vector<4x1xf32>
    %917 = vector.extract_strided_slice %834 {offsets = [0, 3, 0], sizes = [4, 1, 128], strides = [1, 1, 1]} : vector<4x8x128xf32> to vector<4x1x128xf32>
    %918 = vector.shape_cast %917 : vector<4x1x128xf32> to vector<4x128xf32>
    %919 = vector.broadcast %916 : vector<4x1xf32> to vector<4x128xf32>
    %920 = arith.mulf %919, %918 : vector<4x128xf32>
    %921 = vector.extract_strided_slice %900 {offsets = [0, 4], sizes = [4, 1], strides = [1, 1]} : vector<4x8xf32> to vector<4x1xf32>
    %922 = vector.extract_strided_slice %834 {offsets = [0, 4, 0], sizes = [4, 1, 128], strides = [1, 1, 1]} : vector<4x8x128xf32> to vector<4x1x128xf32>
    %923 = vector.shape_cast %922 : vector<4x1x128xf32> to vector<4x128xf32>
    %924 = vector.broadcast %921 : vector<4x1xf32> to vector<4x128xf32>
    %925 = arith.mulf %924, %923 : vector<4x128xf32>
    %926 = vector.extract_strided_slice %900 {offsets = [0, 5], sizes = [4, 1], strides = [1, 1]} : vector<4x8xf32> to vector<4x1xf32>
    %927 = vector.extract_strided_slice %834 {offsets = [0, 5, 0], sizes = [4, 1, 128], strides = [1, 1, 1]} : vector<4x8x128xf32> to vector<4x1x128xf32>
    %928 = vector.shape_cast %927 : vector<4x1x128xf32> to vector<4x128xf32>
    %929 = vector.broadcast %926 : vector<4x1xf32> to vector<4x128xf32>
    %930 = arith.mulf %929, %928 : vector<4x128xf32>
    %931 = vector.extract_strided_slice %900 {offsets = [0, 6], sizes = [4, 1], strides = [1, 1]} : vector<4x8xf32> to vector<4x1xf32>
    %932 = vector.extract_strided_slice %834 {offsets = [0, 6, 0], sizes = [4, 1, 128], strides = [1, 1, 1]} : vector<4x8x128xf32> to vector<4x1x128xf32>
    %933 = vector.shape_cast %932 : vector<4x1x128xf32> to vector<4x128xf32>
    %934 = vector.broadcast %931 : vector<4x1xf32> to vector<4x128xf32>
    %935 = arith.mulf %934, %933 : vector<4x128xf32>
    %936 = vector.extract_strided_slice %900 {offsets = [0, 7], sizes = [4, 1], strides = [1, 1]} : vector<4x8xf32> to vector<4x1xf32>
    %937 = vector.extract_strided_slice %834 {offsets = [0, 7, 0], sizes = [4, 1, 128], strides = [1, 1, 1]} : vector<4x8x128xf32> to vector<4x1x128xf32>
    %938 = vector.shape_cast %937 : vector<4x1x128xf32> to vector<4x128xf32>
    %939 = vector.broadcast %936 : vector<4x1xf32> to vector<4x128xf32>
    %940 = arith.mulf %939, %938 : vector<4x128xf32>
    %941 = arith.maximumf %905, %910 : vector<4x128xf32>
    %942 = arith.maximumf %915, %920 : vector<4x128xf32>
    %943 = arith.maximumf %925, %930 : vector<4x128xf32>
    %944 = arith.maximumf %935, %940 : vector<4x128xf32>
    %945 = arith.maximumf %941, %942 : vector<4x128xf32>
    %946 = arith.maximumf %943, %944 : vector<4x128xf32>
    %947 = arith.maximumf %945, %946 : vector<4x128xf32>
    %cst_130 = arith.constant 1.000000e+00 : f32
    %948 = vector.broadcast %cst_130 : f32 to vector<4x128xf32>
    %949 = arith.subf %948, %947 : vector<4x128xf32>
    %950 = arith.mulf %833, %949 : vector<4x128xf32>
    %c0_131 = arith.constant 0 : index
    %c48 = arith.constant 48 : index
    %c0_132 = arith.constant 0 : index
    %951 = vector.load %arg5[%c0_131, %c48, %c0_132] : memref<4x128x128xf32, #tpu.memory_space<vmem>>, vector<4x8x128xf32>
    %952 = vector.extract_strided_slice %951 {offsets = [0, 0, 48], sizes = [4, 8, 8], strides = [1, 1, 1]} : vector<4x8x128xf32> to vector<4x8x8xf32>
    %953 = vector.extract_strided_slice %950 {offsets = [0, 48], sizes = [4, 8], strides = [1, 1]} : vector<4x128xf32> to vector<4x8xf32>
    %954 = vector.extract_strided_slice %953 {offsets = [0, 0], sizes = [4, 1], strides = [1, 1]} : vector<4x8xf32> to vector<4x1xf32>
    %955 = vector.extract_strided_slice %952 {offsets = [0, 0, 0], sizes = [4, 1, 8], strides = [1, 1, 1]} : vector<4x8x8xf32> to vector<4x1x8xf32>
    %956 = vector.shape_cast %955 : vector<4x1x8xf32> to vector<4x8xf32>
    %957 = vector.broadcast %954 : vector<4x1xf32> to vector<4x8xf32>
    %958 = arith.mulf %957, %956 : vector<4x8xf32>
    %cst_133 = arith.constant 1.000000e+00 : f32
    %959 = vector.broadcast %cst_133 : f32 to vector<4x8xf32>
    %960 = arith.subf %959, %958 : vector<4x8xf32>
    %961 = arith.mulf %953, %960 : vector<4x8xf32>
    %962 = vector.extract_strided_slice %961 {offsets = [0, 1], sizes = [4, 1], strides = [1, 1]} : vector<4x8xf32> to vector<4x1xf32>
    %963 = vector.extract_strided_slice %952 {offsets = [0, 1, 0], sizes = [4, 1, 8], strides = [1, 1, 1]} : vector<4x8x8xf32> to vector<4x1x8xf32>
    %964 = vector.shape_cast %963 : vector<4x1x8xf32> to vector<4x8xf32>
    %965 = vector.broadcast %962 : vector<4x1xf32> to vector<4x8xf32>
    %966 = arith.mulf %965, %964 : vector<4x8xf32>
    %cst_134 = arith.constant 1.000000e+00 : f32
    %967 = vector.broadcast %cst_134 : f32 to vector<4x8xf32>
    %968 = arith.subf %967, %966 : vector<4x8xf32>
    %969 = arith.mulf %961, %968 : vector<4x8xf32>
    %970 = vector.extract_strided_slice %969 {offsets = [0, 2], sizes = [4, 1], strides = [1, 1]} : vector<4x8xf32> to vector<4x1xf32>
    %971 = vector.extract_strided_slice %952 {offsets = [0, 2, 0], sizes = [4, 1, 8], strides = [1, 1, 1]} : vector<4x8x8xf32> to vector<4x1x8xf32>
    %972 = vector.shape_cast %971 : vector<4x1x8xf32> to vector<4x8xf32>
    %973 = vector.broadcast %970 : vector<4x1xf32> to vector<4x8xf32>
    %974 = arith.mulf %973, %972 : vector<4x8xf32>
    %cst_135 = arith.constant 1.000000e+00 : f32
    %975 = vector.broadcast %cst_135 : f32 to vector<4x8xf32>
    %976 = arith.subf %975, %974 : vector<4x8xf32>
    %977 = arith.mulf %969, %976 : vector<4x8xf32>
    %978 = vector.extract_strided_slice %977 {offsets = [0, 3], sizes = [4, 1], strides = [1, 1]} : vector<4x8xf32> to vector<4x1xf32>
    %979 = vector.extract_strided_slice %952 {offsets = [0, 3, 0], sizes = [4, 1, 8], strides = [1, 1, 1]} : vector<4x8x8xf32> to vector<4x1x8xf32>
    %980 = vector.shape_cast %979 : vector<4x1x8xf32> to vector<4x8xf32>
    %981 = vector.broadcast %978 : vector<4x1xf32> to vector<4x8xf32>
    %982 = arith.mulf %981, %980 : vector<4x8xf32>
    %cst_136 = arith.constant 1.000000e+00 : f32
    %983 = vector.broadcast %cst_136 : f32 to vector<4x8xf32>
    %984 = arith.subf %983, %982 : vector<4x8xf32>
    %985 = arith.mulf %977, %984 : vector<4x8xf32>
    %986 = vector.extract_strided_slice %985 {offsets = [0, 4], sizes = [4, 1], strides = [1, 1]} : vector<4x8xf32> to vector<4x1xf32>
    %987 = vector.extract_strided_slice %952 {offsets = [0, 4, 0], sizes = [4, 1, 8], strides = [1, 1, 1]} : vector<4x8x8xf32> to vector<4x1x8xf32>
    %988 = vector.shape_cast %987 : vector<4x1x8xf32> to vector<4x8xf32>
    %989 = vector.broadcast %986 : vector<4x1xf32> to vector<4x8xf32>
    %990 = arith.mulf %989, %988 : vector<4x8xf32>
    %cst_137 = arith.constant 1.000000e+00 : f32
    %991 = vector.broadcast %cst_137 : f32 to vector<4x8xf32>
    %992 = arith.subf %991, %990 : vector<4x8xf32>
    %993 = arith.mulf %985, %992 : vector<4x8xf32>
    %994 = vector.extract_strided_slice %993 {offsets = [0, 5], sizes = [4, 1], strides = [1, 1]} : vector<4x8xf32> to vector<4x1xf32>
    %995 = vector.extract_strided_slice %952 {offsets = [0, 5, 0], sizes = [4, 1, 8], strides = [1, 1, 1]} : vector<4x8x8xf32> to vector<4x1x8xf32>
    %996 = vector.shape_cast %995 : vector<4x1x8xf32> to vector<4x8xf32>
    %997 = vector.broadcast %994 : vector<4x1xf32> to vector<4x8xf32>
    %998 = arith.mulf %997, %996 : vector<4x8xf32>
    %cst_138 = arith.constant 1.000000e+00 : f32
    %999 = vector.broadcast %cst_138 : f32 to vector<4x8xf32>
    %1000 = arith.subf %999, %998 : vector<4x8xf32>
    %1001 = arith.mulf %993, %1000 : vector<4x8xf32>
    %1002 = vector.extract_strided_slice %1001 {offsets = [0, 6], sizes = [4, 1], strides = [1, 1]} : vector<4x8xf32> to vector<4x1xf32>
    %1003 = vector.extract_strided_slice %952 {offsets = [0, 6, 0], sizes = [4, 1, 8], strides = [1, 1, 1]} : vector<4x8x8xf32> to vector<4x1x8xf32>
    %1004 = vector.shape_cast %1003 : vector<4x1x8xf32> to vector<4x8xf32>
    %1005 = vector.broadcast %1002 : vector<4x1xf32> to vector<4x8xf32>
    %1006 = arith.mulf %1005, %1004 : vector<4x8xf32>
    %cst_139 = arith.constant 1.000000e+00 : f32
    %1007 = vector.broadcast %cst_139 : f32 to vector<4x8xf32>
    %1008 = arith.subf %1007, %1006 : vector<4x8xf32>
    %1009 = arith.mulf %1001, %1008 : vector<4x8xf32>
    %1010 = vector.extract_strided_slice %1009 {offsets = [0, 7], sizes = [4, 1], strides = [1, 1]} : vector<4x8xf32> to vector<4x1xf32>
    %1011 = vector.extract_strided_slice %952 {offsets = [0, 7, 0], sizes = [4, 1, 8], strides = [1, 1, 1]} : vector<4x8x8xf32> to vector<4x1x8xf32>
    %1012 = vector.shape_cast %1011 : vector<4x1x8xf32> to vector<4x8xf32>
    %1013 = vector.broadcast %1010 : vector<4x1xf32> to vector<4x8xf32>
    %1014 = arith.mulf %1013, %1012 : vector<4x8xf32>
    %cst_140 = arith.constant 1.000000e+00 : f32
    %1015 = vector.broadcast %cst_140 : f32 to vector<4x8xf32>
    %1016 = arith.subf %1015, %1014 : vector<4x8xf32>
    %1017 = arith.mulf %1009, %1016 : vector<4x8xf32>
    %1018 = vector.extract_strided_slice %1017 {offsets = [0, 0], sizes = [4, 1], strides = [1, 1]} : vector<4x8xf32> to vector<4x1xf32>
    %1019 = vector.extract_strided_slice %951 {offsets = [0, 0, 0], sizes = [4, 1, 128], strides = [1, 1, 1]} : vector<4x8x128xf32> to vector<4x1x128xf32>
    %1020 = vector.shape_cast %1019 : vector<4x1x128xf32> to vector<4x128xf32>
    %1021 = vector.broadcast %1018 : vector<4x1xf32> to vector<4x128xf32>
    %1022 = arith.mulf %1021, %1020 : vector<4x128xf32>
    %1023 = vector.extract_strided_slice %1017 {offsets = [0, 1], sizes = [4, 1], strides = [1, 1]} : vector<4x8xf32> to vector<4x1xf32>
    %1024 = vector.extract_strided_slice %951 {offsets = [0, 1, 0], sizes = [4, 1, 128], strides = [1, 1, 1]} : vector<4x8x128xf32> to vector<4x1x128xf32>
    %1025 = vector.shape_cast %1024 : vector<4x1x128xf32> to vector<4x128xf32>
    %1026 = vector.broadcast %1023 : vector<4x1xf32> to vector<4x128xf32>
    %1027 = arith.mulf %1026, %1025 : vector<4x128xf32>
    %1028 = vector.extract_strided_slice %1017 {offsets = [0, 2], sizes = [4, 1], strides = [1, 1]} : vector<4x8xf32> to vector<4x1xf32>
    %1029 = vector.extract_strided_slice %951 {offsets = [0, 2, 0], sizes = [4, 1, 128], strides = [1, 1, 1]} : vector<4x8x128xf32> to vector<4x1x128xf32>
    %1030 = vector.shape_cast %1029 : vector<4x1x128xf32> to vector<4x128xf32>
    %1031 = vector.broadcast %1028 : vector<4x1xf32> to vector<4x128xf32>
    %1032 = arith.mulf %1031, %1030 : vector<4x128xf32>
    %1033 = vector.extract_strided_slice %1017 {offsets = [0, 3], sizes = [4, 1], strides = [1, 1]} : vector<4x8xf32> to vector<4x1xf32>
    %1034 = vector.extract_strided_slice %951 {offsets = [0, 3, 0], sizes = [4, 1, 128], strides = [1, 1, 1]} : vector<4x8x128xf32> to vector<4x1x128xf32>
    %1035 = vector.shape_cast %1034 : vector<4x1x128xf32> to vector<4x128xf32>
    %1036 = vector.broadcast %1033 : vector<4x1xf32> to vector<4x128xf32>
    %1037 = arith.mulf %1036, %1035 : vector<4x128xf32>
    %1038 = vector.extract_strided_slice %1017 {offsets = [0, 4], sizes = [4, 1], strides = [1, 1]} : vector<4x8xf32> to vector<4x1xf32>
    %1039 = vector.extract_strided_slice %951 {offsets = [0, 4, 0], sizes = [4, 1, 128], strides = [1, 1, 1]} : vector<4x8x128xf32> to vector<4x1x128xf32>
    %1040 = vector.shape_cast %1039 : vector<4x1x128xf32> to vector<4x128xf32>
    %1041 = vector.broadcast %1038 : vector<4x1xf32> to vector<4x128xf32>
    %1042 = arith.mulf %1041, %1040 : vector<4x128xf32>
    %1043 = vector.extract_strided_slice %1017 {offsets = [0, 5], sizes = [4, 1], strides = [1, 1]} : vector<4x8xf32> to vector<4x1xf32>
    %1044 = vector.extract_strided_slice %951 {offsets = [0, 5, 0], sizes = [4, 1, 128], strides = [1, 1, 1]} : vector<4x8x128xf32> to vector<4x1x128xf32>
    %1045 = vector.shape_cast %1044 : vector<4x1x128xf32> to vector<4x128xf32>
    %1046 = vector.broadcast %1043 : vector<4x1xf32> to vector<4x128xf32>
    %1047 = arith.mulf %1046, %1045 : vector<4x128xf32>
    %1048 = vector.extract_strided_slice %1017 {offsets = [0, 6], sizes = [4, 1], strides = [1, 1]} : vector<4x8xf32> to vector<4x1xf32>
    %1049 = vector.extract_strided_slice %951 {offsets = [0, 6, 0], sizes = [4, 1, 128], strides = [1, 1, 1]} : vector<4x8x128xf32> to vector<4x1x128xf32>
    %1050 = vector.shape_cast %1049 : vector<4x1x128xf32> to vector<4x128xf32>
    %1051 = vector.broadcast %1048 : vector<4x1xf32> to vector<4x128xf32>
    %1052 = arith.mulf %1051, %1050 : vector<4x128xf32>
    %1053 = vector.extract_strided_slice %1017 {offsets = [0, 7], sizes = [4, 1], strides = [1, 1]} : vector<4x8xf32> to vector<4x1xf32>
    %1054 = vector.extract_strided_slice %951 {offsets = [0, 7, 0], sizes = [4, 1, 128], strides = [1, 1, 1]} : vector<4x8x128xf32> to vector<4x1x128xf32>
    %1055 = vector.shape_cast %1054 : vector<4x1x128xf32> to vector<4x128xf32>
    %1056 = vector.broadcast %1053 : vector<4x1xf32> to vector<4x128xf32>
    %1057 = arith.mulf %1056, %1055 : vector<4x128xf32>
    %1058 = arith.maximumf %1022, %1027 : vector<4x128xf32>
    %1059 = arith.maximumf %1032, %1037 : vector<4x128xf32>
    %1060 = arith.maximumf %1042, %1047 : vector<4x128xf32>
    %1061 = arith.maximumf %1052, %1057 : vector<4x128xf32>
    %1062 = arith.maximumf %1058, %1059 : vector<4x128xf32>
    %1063 = arith.maximumf %1060, %1061 : vector<4x128xf32>
    %1064 = arith.maximumf %1062, %1063 : vector<4x128xf32>
    %cst_141 = arith.constant 1.000000e+00 : f32
    %1065 = vector.broadcast %cst_141 : f32 to vector<4x128xf32>
    %1066 = arith.subf %1065, %1064 : vector<4x128xf32>
    %1067 = arith.mulf %950, %1066 : vector<4x128xf32>
    %c0_142 = arith.constant 0 : index
    %c56 = arith.constant 56 : index
    %c0_143 = arith.constant 0 : index
    %1068 = vector.load %arg5[%c0_142, %c56, %c0_143] : memref<4x128x128xf32, #tpu.memory_space<vmem>>, vector<4x8x128xf32>
    %1069 = vector.extract_strided_slice %1068 {offsets = [0, 0, 56], sizes = [4, 8, 8], strides = [1, 1, 1]} : vector<4x8x128xf32> to vector<4x8x8xf32>
    %1070 = vector.extract_strided_slice %1067 {offsets = [0, 56], sizes = [4, 8], strides = [1, 1]} : vector<4x128xf32> to vector<4x8xf32>
    %1071 = vector.extract_strided_slice %1070 {offsets = [0, 0], sizes = [4, 1], strides = [1, 1]} : vector<4x8xf32> to vector<4x1xf32>
    %1072 = vector.extract_strided_slice %1069 {offsets = [0, 0, 0], sizes = [4, 1, 8], strides = [1, 1, 1]} : vector<4x8x8xf32> to vector<4x1x8xf32>
    %1073 = vector.shape_cast %1072 : vector<4x1x8xf32> to vector<4x8xf32>
    %1074 = vector.broadcast %1071 : vector<4x1xf32> to vector<4x8xf32>
    %1075 = arith.mulf %1074, %1073 : vector<4x8xf32>
    %cst_144 = arith.constant 1.000000e+00 : f32
    %1076 = vector.broadcast %cst_144 : f32 to vector<4x8xf32>
    %1077 = arith.subf %1076, %1075 : vector<4x8xf32>
    %1078 = arith.mulf %1070, %1077 : vector<4x8xf32>
    %1079 = vector.extract_strided_slice %1078 {offsets = [0, 1], sizes = [4, 1], strides = [1, 1]} : vector<4x8xf32> to vector<4x1xf32>
    %1080 = vector.extract_strided_slice %1069 {offsets = [0, 1, 0], sizes = [4, 1, 8], strides = [1, 1, 1]} : vector<4x8x8xf32> to vector<4x1x8xf32>
    %1081 = vector.shape_cast %1080 : vector<4x1x8xf32> to vector<4x8xf32>
    %1082 = vector.broadcast %1079 : vector<4x1xf32> to vector<4x8xf32>
    %1083 = arith.mulf %1082, %1081 : vector<4x8xf32>
    %cst_145 = arith.constant 1.000000e+00 : f32
    %1084 = vector.broadcast %cst_145 : f32 to vector<4x8xf32>
    %1085 = arith.subf %1084, %1083 : vector<4x8xf32>
    %1086 = arith.mulf %1078, %1085 : vector<4x8xf32>
    %1087 = vector.extract_strided_slice %1086 {offsets = [0, 2], sizes = [4, 1], strides = [1, 1]} : vector<4x8xf32> to vector<4x1xf32>
    %1088 = vector.extract_strided_slice %1069 {offsets = [0, 2, 0], sizes = [4, 1, 8], strides = [1, 1, 1]} : vector<4x8x8xf32> to vector<4x1x8xf32>
    %1089 = vector.shape_cast %1088 : vector<4x1x8xf32> to vector<4x8xf32>
    %1090 = vector.broadcast %1087 : vector<4x1xf32> to vector<4x8xf32>
    %1091 = arith.mulf %1090, %1089 : vector<4x8xf32>
    %cst_146 = arith.constant 1.000000e+00 : f32
    %1092 = vector.broadcast %cst_146 : f32 to vector<4x8xf32>
    %1093 = arith.subf %1092, %1091 : vector<4x8xf32>
    %1094 = arith.mulf %1086, %1093 : vector<4x8xf32>
    %1095 = vector.extract_strided_slice %1094 {offsets = [0, 3], sizes = [4, 1], strides = [1, 1]} : vector<4x8xf32> to vector<4x1xf32>
    %1096 = vector.extract_strided_slice %1069 {offsets = [0, 3, 0], sizes = [4, 1, 8], strides = [1, 1, 1]} : vector<4x8x8xf32> to vector<4x1x8xf32>
    %1097 = vector.shape_cast %1096 : vector<4x1x8xf32> to vector<4x8xf32>
    %1098 = vector.broadcast %1095 : vector<4x1xf32> to vector<4x8xf32>
    %1099 = arith.mulf %1098, %1097 : vector<4x8xf32>
    %cst_147 = arith.constant 1.000000e+00 : f32
    %1100 = vector.broadcast %cst_147 : f32 to vector<4x8xf32>
    %1101 = arith.subf %1100, %1099 : vector<4x8xf32>
    %1102 = arith.mulf %1094, %1101 : vector<4x8xf32>
    %1103 = vector.extract_strided_slice %1102 {offsets = [0, 4], sizes = [4, 1], strides = [1, 1]} : vector<4x8xf32> to vector<4x1xf32>
    %1104 = vector.extract_strided_slice %1069 {offsets = [0, 4, 0], sizes = [4, 1, 8], strides = [1, 1, 1]} : vector<4x8x8xf32> to vector<4x1x8xf32>
    %1105 = vector.shape_cast %1104 : vector<4x1x8xf32> to vector<4x8xf32>
    %1106 = vector.broadcast %1103 : vector<4x1xf32> to vector<4x8xf32>
    %1107 = arith.mulf %1106, %1105 : vector<4x8xf32>
    %cst_148 = arith.constant 1.000000e+00 : f32
    %1108 = vector.broadcast %cst_148 : f32 to vector<4x8xf32>
    %1109 = arith.subf %1108, %1107 : vector<4x8xf32>
    %1110 = arith.mulf %1102, %1109 : vector<4x8xf32>
    %1111 = vector.extract_strided_slice %1110 {offsets = [0, 5], sizes = [4, 1], strides = [1, 1]} : vector<4x8xf32> to vector<4x1xf32>
    %1112 = vector.extract_strided_slice %1069 {offsets = [0, 5, 0], sizes = [4, 1, 8], strides = [1, 1, 1]} : vector<4x8x8xf32> to vector<4x1x8xf32>
    %1113 = vector.shape_cast %1112 : vector<4x1x8xf32> to vector<4x8xf32>
    %1114 = vector.broadcast %1111 : vector<4x1xf32> to vector<4x8xf32>
    %1115 = arith.mulf %1114, %1113 : vector<4x8xf32>
    %cst_149 = arith.constant 1.000000e+00 : f32
    %1116 = vector.broadcast %cst_149 : f32 to vector<4x8xf32>
    %1117 = arith.subf %1116, %1115 : vector<4x8xf32>
    %1118 = arith.mulf %1110, %1117 : vector<4x8xf32>
    %1119 = vector.extract_strided_slice %1118 {offsets = [0, 6], sizes = [4, 1], strides = [1, 1]} : vector<4x8xf32> to vector<4x1xf32>
    %1120 = vector.extract_strided_slice %1069 {offsets = [0, 6, 0], sizes = [4, 1, 8], strides = [1, 1, 1]} : vector<4x8x8xf32> to vector<4x1x8xf32>
    %1121 = vector.shape_cast %1120 : vector<4x1x8xf32> to vector<4x8xf32>
    %1122 = vector.broadcast %1119 : vector<4x1xf32> to vector<4x8xf32>
    %1123 = arith.mulf %1122, %1121 : vector<4x8xf32>
    %cst_150 = arith.constant 1.000000e+00 : f32
    %1124 = vector.broadcast %cst_150 : f32 to vector<4x8xf32>
    %1125 = arith.subf %1124, %1123 : vector<4x8xf32>
    %1126 = arith.mulf %1118, %1125 : vector<4x8xf32>
    %1127 = vector.extract_strided_slice %1126 {offsets = [0, 7], sizes = [4, 1], strides = [1, 1]} : vector<4x8xf32> to vector<4x1xf32>
    %1128 = vector.extract_strided_slice %1069 {offsets = [0, 7, 0], sizes = [4, 1, 8], strides = [1, 1, 1]} : vector<4x8x8xf32> to vector<4x1x8xf32>
    %1129 = vector.shape_cast %1128 : vector<4x1x8xf32> to vector<4x8xf32>
    %1130 = vector.broadcast %1127 : vector<4x1xf32> to vector<4x8xf32>
    %1131 = arith.mulf %1130, %1129 : vector<4x8xf32>
    %cst_151 = arith.constant 1.000000e+00 : f32
    %1132 = vector.broadcast %cst_151 : f32 to vector<4x8xf32>
    %1133 = arith.subf %1132, %1131 : vector<4x8xf32>
    %1134 = arith.mulf %1126, %1133 : vector<4x8xf32>
    %1135 = vector.extract_strided_slice %1134 {offsets = [0, 0], sizes = [4, 1], strides = [1, 1]} : vector<4x8xf32> to vector<4x1xf32>
    %1136 = vector.extract_strided_slice %1068 {offsets = [0, 0, 0], sizes = [4, 1, 128], strides = [1, 1, 1]} : vector<4x8x128xf32> to vector<4x1x128xf32>
    %1137 = vector.shape_cast %1136 : vector<4x1x128xf32> to vector<4x128xf32>
    %1138 = vector.broadcast %1135 : vector<4x1xf32> to vector<4x128xf32>
    %1139 = arith.mulf %1138, %1137 : vector<4x128xf32>
    %1140 = vector.extract_strided_slice %1134 {offsets = [0, 1], sizes = [4, 1], strides = [1, 1]} : vector<4x8xf32> to vector<4x1xf32>
    %1141 = vector.extract_strided_slice %1068 {offsets = [0, 1, 0], sizes = [4, 1, 128], strides = [1, 1, 1]} : vector<4x8x128xf32> to vector<4x1x128xf32>
    %1142 = vector.shape_cast %1141 : vector<4x1x128xf32> to vector<4x128xf32>
    %1143 = vector.broadcast %1140 : vector<4x1xf32> to vector<4x128xf32>
    %1144 = arith.mulf %1143, %1142 : vector<4x128xf32>
    %1145 = vector.extract_strided_slice %1134 {offsets = [0, 2], sizes = [4, 1], strides = [1, 1]} : vector<4x8xf32> to vector<4x1xf32>
    %1146 = vector.extract_strided_slice %1068 {offsets = [0, 2, 0], sizes = [4, 1, 128], strides = [1, 1, 1]} : vector<4x8x128xf32> to vector<4x1x128xf32>
    %1147 = vector.shape_cast %1146 : vector<4x1x128xf32> to vector<4x128xf32>
    %1148 = vector.broadcast %1145 : vector<4x1xf32> to vector<4x128xf32>
    %1149 = arith.mulf %1148, %1147 : vector<4x128xf32>
    %1150 = vector.extract_strided_slice %1134 {offsets = [0, 3], sizes = [4, 1], strides = [1, 1]} : vector<4x8xf32> to vector<4x1xf32>
    %1151 = vector.extract_strided_slice %1068 {offsets = [0, 3, 0], sizes = [4, 1, 128], strides = [1, 1, 1]} : vector<4x8x128xf32> to vector<4x1x128xf32>
    %1152 = vector.shape_cast %1151 : vector<4x1x128xf32> to vector<4x128xf32>
    %1153 = vector.broadcast %1150 : vector<4x1xf32> to vector<4x128xf32>
    %1154 = arith.mulf %1153, %1152 : vector<4x128xf32>
    %1155 = vector.extract_strided_slice %1134 {offsets = [0, 4], sizes = [4, 1], strides = [1, 1]} : vector<4x8xf32> to vector<4x1xf32>
    %1156 = vector.extract_strided_slice %1068 {offsets = [0, 4, 0], sizes = [4, 1, 128], strides = [1, 1, 1]} : vector<4x8x128xf32> to vector<4x1x128xf32>
    %1157 = vector.shape_cast %1156 : vector<4x1x128xf32> to vector<4x128xf32>
    %1158 = vector.broadcast %1155 : vector<4x1xf32> to vector<4x128xf32>
    %1159 = arith.mulf %1158, %1157 : vector<4x128xf32>
    %1160 = vector.extract_strided_slice %1134 {offsets = [0, 5], sizes = [4, 1], strides = [1, 1]} : vector<4x8xf32> to vector<4x1xf32>
    %1161 = vector.extract_strided_slice %1068 {offsets = [0, 5, 0], sizes = [4, 1, 128], strides = [1, 1, 1]} : vector<4x8x128xf32> to vector<4x1x128xf32>
    %1162 = vector.shape_cast %1161 : vector<4x1x128xf32> to vector<4x128xf32>
    %1163 = vector.broadcast %1160 : vector<4x1xf32> to vector<4x128xf32>
    %1164 = arith.mulf %1163, %1162 : vector<4x128xf32>
    %1165 = vector.extract_strided_slice %1134 {offsets = [0, 6], sizes = [4, 1], strides = [1, 1]} : vector<4x8xf32> to vector<4x1xf32>
    %1166 = vector.extract_strided_slice %1068 {offsets = [0, 6, 0], sizes = [4, 1, 128], strides = [1, 1, 1]} : vector<4x8x128xf32> to vector<4x1x128xf32>
    %1167 = vector.shape_cast %1166 : vector<4x1x128xf32> to vector<4x128xf32>
    %1168 = vector.broadcast %1165 : vector<4x1xf32> to vector<4x128xf32>
    %1169 = arith.mulf %1168, %1167 : vector<4x128xf32>
    %1170 = vector.extract_strided_slice %1134 {offsets = [0, 7], sizes = [4, 1], strides = [1, 1]} : vector<4x8xf32> to vector<4x1xf32>
    %1171 = vector.extract_strided_slice %1068 {offsets = [0, 7, 0], sizes = [4, 1, 128], strides = [1, 1, 1]} : vector<4x8x128xf32> to vector<4x1x128xf32>
    %1172 = vector.shape_cast %1171 : vector<4x1x128xf32> to vector<4x128xf32>
    %1173 = vector.broadcast %1170 : vector<4x1xf32> to vector<4x128xf32>
    %1174 = arith.mulf %1173, %1172 : vector<4x128xf32>
    %1175 = arith.maximumf %1139, %1144 : vector<4x128xf32>
    %1176 = arith.maximumf %1149, %1154 : vector<4x128xf32>
    %1177 = arith.maximumf %1159, %1164 : vector<4x128xf32>
    %1178 = arith.maximumf %1169, %1174 : vector<4x128xf32>
    %1179 = arith.maximumf %1175, %1176 : vector<4x128xf32>
    %1180 = arith.maximumf %1177, %1178 : vector<4x128xf32>
    %1181 = arith.maximumf %1179, %1180 : vector<4x128xf32>
    %cst_152 = arith.constant 1.000000e+00 : f32
    %1182 = vector.broadcast %cst_152 : f32 to vector<4x128xf32>
    %1183 = arith.subf %1182, %1181 : vector<4x128xf32>
    %1184 = arith.mulf %1067, %1183 : vector<4x128xf32>
    %c0_153 = arith.constant 0 : index
    %c64 = arith.constant 64 : index
    %c0_154 = arith.constant 0 : index
    %1185 = vector.load %arg5[%c0_153, %c64, %c0_154] : memref<4x128x128xf32, #tpu.memory_space<vmem>>, vector<4x8x128xf32>
    %1186 = vector.extract_strided_slice %1185 {offsets = [0, 0, 64], sizes = [4, 8, 8], strides = [1, 1, 1]} : vector<4x8x128xf32> to vector<4x8x8xf32>
    %1187 = vector.extract_strided_slice %1184 {offsets = [0, 64], sizes = [4, 8], strides = [1, 1]} : vector<4x128xf32> to vector<4x8xf32>
    %1188 = vector.extract_strided_slice %1187 {offsets = [0, 0], sizes = [4, 1], strides = [1, 1]} : vector<4x8xf32> to vector<4x1xf32>
    %1189 = vector.extract_strided_slice %1186 {offsets = [0, 0, 0], sizes = [4, 1, 8], strides = [1, 1, 1]} : vector<4x8x8xf32> to vector<4x1x8xf32>
    %1190 = vector.shape_cast %1189 : vector<4x1x8xf32> to vector<4x8xf32>
    %1191 = vector.broadcast %1188 : vector<4x1xf32> to vector<4x8xf32>
    %1192 = arith.mulf %1191, %1190 : vector<4x8xf32>
    %cst_155 = arith.constant 1.000000e+00 : f32
    %1193 = vector.broadcast %cst_155 : f32 to vector<4x8xf32>
    %1194 = arith.subf %1193, %1192 : vector<4x8xf32>
    %1195 = arith.mulf %1187, %1194 : vector<4x8xf32>
    %1196 = vector.extract_strided_slice %1195 {offsets = [0, 1], sizes = [4, 1], strides = [1, 1]} : vector<4x8xf32> to vector<4x1xf32>
    %1197 = vector.extract_strided_slice %1186 {offsets = [0, 1, 0], sizes = [4, 1, 8], strides = [1, 1, 1]} : vector<4x8x8xf32> to vector<4x1x8xf32>
    %1198 = vector.shape_cast %1197 : vector<4x1x8xf32> to vector<4x8xf32>
    %1199 = vector.broadcast %1196 : vector<4x1xf32> to vector<4x8xf32>
    %1200 = arith.mulf %1199, %1198 : vector<4x8xf32>
    %cst_156 = arith.constant 1.000000e+00 : f32
    %1201 = vector.broadcast %cst_156 : f32 to vector<4x8xf32>
    %1202 = arith.subf %1201, %1200 : vector<4x8xf32>
    %1203 = arith.mulf %1195, %1202 : vector<4x8xf32>
    %1204 = vector.extract_strided_slice %1203 {offsets = [0, 2], sizes = [4, 1], strides = [1, 1]} : vector<4x8xf32> to vector<4x1xf32>
    %1205 = vector.extract_strided_slice %1186 {offsets = [0, 2, 0], sizes = [4, 1, 8], strides = [1, 1, 1]} : vector<4x8x8xf32> to vector<4x1x8xf32>
    %1206 = vector.shape_cast %1205 : vector<4x1x8xf32> to vector<4x8xf32>
    %1207 = vector.broadcast %1204 : vector<4x1xf32> to vector<4x8xf32>
    %1208 = arith.mulf %1207, %1206 : vector<4x8xf32>
    %cst_157 = arith.constant 1.000000e+00 : f32
    %1209 = vector.broadcast %cst_157 : f32 to vector<4x8xf32>
    %1210 = arith.subf %1209, %1208 : vector<4x8xf32>
    %1211 = arith.mulf %1203, %1210 : vector<4x8xf32>
    %1212 = vector.extract_strided_slice %1211 {offsets = [0, 3], sizes = [4, 1], strides = [1, 1]} : vector<4x8xf32> to vector<4x1xf32>
    %1213 = vector.extract_strided_slice %1186 {offsets = [0, 3, 0], sizes = [4, 1, 8], strides = [1, 1, 1]} : vector<4x8x8xf32> to vector<4x1x8xf32>
    %1214 = vector.shape_cast %1213 : vector<4x1x8xf32> to vector<4x8xf32>
    %1215 = vector.broadcast %1212 : vector<4x1xf32> to vector<4x8xf32>
    %1216 = arith.mulf %1215, %1214 : vector<4x8xf32>
    %cst_158 = arith.constant 1.000000e+00 : f32
    %1217 = vector.broadcast %cst_158 : f32 to vector<4x8xf32>
    %1218 = arith.subf %1217, %1216 : vector<4x8xf32>
    %1219 = arith.mulf %1211, %1218 : vector<4x8xf32>
    %1220 = vector.extract_strided_slice %1219 {offsets = [0, 4], sizes = [4, 1], strides = [1, 1]} : vector<4x8xf32> to vector<4x1xf32>
    %1221 = vector.extract_strided_slice %1186 {offsets = [0, 4, 0], sizes = [4, 1, 8], strides = [1, 1, 1]} : vector<4x8x8xf32> to vector<4x1x8xf32>
    %1222 = vector.shape_cast %1221 : vector<4x1x8xf32> to vector<4x8xf32>
    %1223 = vector.broadcast %1220 : vector<4x1xf32> to vector<4x8xf32>
    %1224 = arith.mulf %1223, %1222 : vector<4x8xf32>
    %cst_159 = arith.constant 1.000000e+00 : f32
    %1225 = vector.broadcast %cst_159 : f32 to vector<4x8xf32>
    %1226 = arith.subf %1225, %1224 : vector<4x8xf32>
    %1227 = arith.mulf %1219, %1226 : vector<4x8xf32>
    %1228 = vector.extract_strided_slice %1227 {offsets = [0, 5], sizes = [4, 1], strides = [1, 1]} : vector<4x8xf32> to vector<4x1xf32>
    %1229 = vector.extract_strided_slice %1186 {offsets = [0, 5, 0], sizes = [4, 1, 8], strides = [1, 1, 1]} : vector<4x8x8xf32> to vector<4x1x8xf32>
    %1230 = vector.shape_cast %1229 : vector<4x1x8xf32> to vector<4x8xf32>
    %1231 = vector.broadcast %1228 : vector<4x1xf32> to vector<4x8xf32>
    %1232 = arith.mulf %1231, %1230 : vector<4x8xf32>
    %cst_160 = arith.constant 1.000000e+00 : f32
    %1233 = vector.broadcast %cst_160 : f32 to vector<4x8xf32>
    %1234 = arith.subf %1233, %1232 : vector<4x8xf32>
    %1235 = arith.mulf %1227, %1234 : vector<4x8xf32>
    %1236 = vector.extract_strided_slice %1235 {offsets = [0, 6], sizes = [4, 1], strides = [1, 1]} : vector<4x8xf32> to vector<4x1xf32>
    %1237 = vector.extract_strided_slice %1186 {offsets = [0, 6, 0], sizes = [4, 1, 8], strides = [1, 1, 1]} : vector<4x8x8xf32> to vector<4x1x8xf32>
    %1238 = vector.shape_cast %1237 : vector<4x1x8xf32> to vector<4x8xf32>
    %1239 = vector.broadcast %1236 : vector<4x1xf32> to vector<4x8xf32>
    %1240 = arith.mulf %1239, %1238 : vector<4x8xf32>
    %cst_161 = arith.constant 1.000000e+00 : f32
    %1241 = vector.broadcast %cst_161 : f32 to vector<4x8xf32>
    %1242 = arith.subf %1241, %1240 : vector<4x8xf32>
    %1243 = arith.mulf %1235, %1242 : vector<4x8xf32>
    %1244 = vector.extract_strided_slice %1243 {offsets = [0, 7], sizes = [4, 1], strides = [1, 1]} : vector<4x8xf32> to vector<4x1xf32>
    %1245 = vector.extract_strided_slice %1186 {offsets = [0, 7, 0], sizes = [4, 1, 8], strides = [1, 1, 1]} : vector<4x8x8xf32> to vector<4x1x8xf32>
    %1246 = vector.shape_cast %1245 : vector<4x1x8xf32> to vector<4x8xf32>
    %1247 = vector.broadcast %1244 : vector<4x1xf32> to vector<4x8xf32>
    %1248 = arith.mulf %1247, %1246 : vector<4x8xf32>
    %cst_162 = arith.constant 1.000000e+00 : f32
    %1249 = vector.broadcast %cst_162 : f32 to vector<4x8xf32>
    %1250 = arith.subf %1249, %1248 : vector<4x8xf32>
    %1251 = arith.mulf %1243, %1250 : vector<4x8xf32>
    %1252 = vector.extract_strided_slice %1251 {offsets = [0, 0], sizes = [4, 1], strides = [1, 1]} : vector<4x8xf32> to vector<4x1xf32>
    %1253 = vector.extract_strided_slice %1185 {offsets = [0, 0, 0], sizes = [4, 1, 128], strides = [1, 1, 1]} : vector<4x8x128xf32> to vector<4x1x128xf32>
    %1254 = vector.shape_cast %1253 : vector<4x1x128xf32> to vector<4x128xf32>
    %1255 = vector.broadcast %1252 : vector<4x1xf32> to vector<4x128xf32>
    %1256 = arith.mulf %1255, %1254 : vector<4x128xf32>
    %1257 = vector.extract_strided_slice %1251 {offsets = [0, 1], sizes = [4, 1], strides = [1, 1]} : vector<4x8xf32> to vector<4x1xf32>
    %1258 = vector.extract_strided_slice %1185 {offsets = [0, 1, 0], sizes = [4, 1, 128], strides = [1, 1, 1]} : vector<4x8x128xf32> to vector<4x1x128xf32>
    %1259 = vector.shape_cast %1258 : vector<4x1x128xf32> to vector<4x128xf32>
    %1260 = vector.broadcast %1257 : vector<4x1xf32> to vector<4x128xf32>
    %1261 = arith.mulf %1260, %1259 : vector<4x128xf32>
    %1262 = vector.extract_strided_slice %1251 {offsets = [0, 2], sizes = [4, 1], strides = [1, 1]} : vector<4x8xf32> to vector<4x1xf32>
    %1263 = vector.extract_strided_slice %1185 {offsets = [0, 2, 0], sizes = [4, 1, 128], strides = [1, 1, 1]} : vector<4x8x128xf32> to vector<4x1x128xf32>
    %1264 = vector.shape_cast %1263 : vector<4x1x128xf32> to vector<4x128xf32>
    %1265 = vector.broadcast %1262 : vector<4x1xf32> to vector<4x128xf32>
    %1266 = arith.mulf %1265, %1264 : vector<4x128xf32>
    %1267 = vector.extract_strided_slice %1251 {offsets = [0, 3], sizes = [4, 1], strides = [1, 1]} : vector<4x8xf32> to vector<4x1xf32>
    %1268 = vector.extract_strided_slice %1185 {offsets = [0, 3, 0], sizes = [4, 1, 128], strides = [1, 1, 1]} : vector<4x8x128xf32> to vector<4x1x128xf32>
    %1269 = vector.shape_cast %1268 : vector<4x1x128xf32> to vector<4x128xf32>
    %1270 = vector.broadcast %1267 : vector<4x1xf32> to vector<4x128xf32>
    %1271 = arith.mulf %1270, %1269 : vector<4x128xf32>
    %1272 = vector.extract_strided_slice %1251 {offsets = [0, 4], sizes = [4, 1], strides = [1, 1]} : vector<4x8xf32> to vector<4x1xf32>
    %1273 = vector.extract_strided_slice %1185 {offsets = [0, 4, 0], sizes = [4, 1, 128], strides = [1, 1, 1]} : vector<4x8x128xf32> to vector<4x1x128xf32>
    %1274 = vector.shape_cast %1273 : vector<4x1x128xf32> to vector<4x128xf32>
    %1275 = vector.broadcast %1272 : vector<4x1xf32> to vector<4x128xf32>
    %1276 = arith.mulf %1275, %1274 : vector<4x128xf32>
    %1277 = vector.extract_strided_slice %1251 {offsets = [0, 5], sizes = [4, 1], strides = [1, 1]} : vector<4x8xf32> to vector<4x1xf32>
    %1278 = vector.extract_strided_slice %1185 {offsets = [0, 5, 0], sizes = [4, 1, 128], strides = [1, 1, 1]} : vector<4x8x128xf32> to vector<4x1x128xf32>
    %1279 = vector.shape_cast %1278 : vector<4x1x128xf32> to vector<4x128xf32>
    %1280 = vector.broadcast %1277 : vector<4x1xf32> to vector<4x128xf32>
    %1281 = arith.mulf %1280, %1279 : vector<4x128xf32>
    %1282 = vector.extract_strided_slice %1251 {offsets = [0, 6], sizes = [4, 1], strides = [1, 1]} : vector<4x8xf32> to vector<4x1xf32>
    %1283 = vector.extract_strided_slice %1185 {offsets = [0, 6, 0], sizes = [4, 1, 128], strides = [1, 1, 1]} : vector<4x8x128xf32> to vector<4x1x128xf32>
    %1284 = vector.shape_cast %1283 : vector<4x1x128xf32> to vector<4x128xf32>
    %1285 = vector.broadcast %1282 : vector<4x1xf32> to vector<4x128xf32>
    %1286 = arith.mulf %1285, %1284 : vector<4x128xf32>
    %1287 = vector.extract_strided_slice %1251 {offsets = [0, 7], sizes = [4, 1], strides = [1, 1]} : vector<4x8xf32> to vector<4x1xf32>
    %1288 = vector.extract_strided_slice %1185 {offsets = [0, 7, 0], sizes = [4, 1, 128], strides = [1, 1, 1]} : vector<4x8x128xf32> to vector<4x1x128xf32>
    %1289 = vector.shape_cast %1288 : vector<4x1x128xf32> to vector<4x128xf32>
    %1290 = vector.broadcast %1287 : vector<4x1xf32> to vector<4x128xf32>
    %1291 = arith.mulf %1290, %1289 : vector<4x128xf32>
    %1292 = arith.maximumf %1256, %1261 : vector<4x128xf32>
    %1293 = arith.maximumf %1266, %1271 : vector<4x128xf32>
    %1294 = arith.maximumf %1276, %1281 : vector<4x128xf32>
    %1295 = arith.maximumf %1286, %1291 : vector<4x128xf32>
    %1296 = arith.maximumf %1292, %1293 : vector<4x128xf32>
    %1297 = arith.maximumf %1294, %1295 : vector<4x128xf32>
    %1298 = arith.maximumf %1296, %1297 : vector<4x128xf32>
    %cst_163 = arith.constant 1.000000e+00 : f32
    %1299 = vector.broadcast %cst_163 : f32 to vector<4x128xf32>
    %1300 = arith.subf %1299, %1298 : vector<4x128xf32>
    %1301 = arith.mulf %1184, %1300 : vector<4x128xf32>
    %c0_164 = arith.constant 0 : index
    %c72 = arith.constant 72 : index
    %c0_165 = arith.constant 0 : index
    %1302 = vector.load %arg5[%c0_164, %c72, %c0_165] : memref<4x128x128xf32, #tpu.memory_space<vmem>>, vector<4x8x128xf32>
    %1303 = vector.extract_strided_slice %1302 {offsets = [0, 0, 72], sizes = [4, 8, 8], strides = [1, 1, 1]} : vector<4x8x128xf32> to vector<4x8x8xf32>
    %1304 = vector.extract_strided_slice %1301 {offsets = [0, 72], sizes = [4, 8], strides = [1, 1]} : vector<4x128xf32> to vector<4x8xf32>
    %1305 = vector.extract_strided_slice %1304 {offsets = [0, 0], sizes = [4, 1], strides = [1, 1]} : vector<4x8xf32> to vector<4x1xf32>
    %1306 = vector.extract_strided_slice %1303 {offsets = [0, 0, 0], sizes = [4, 1, 8], strides = [1, 1, 1]} : vector<4x8x8xf32> to vector<4x1x8xf32>
    %1307 = vector.shape_cast %1306 : vector<4x1x8xf32> to vector<4x8xf32>
    %1308 = vector.broadcast %1305 : vector<4x1xf32> to vector<4x8xf32>
    %1309 = arith.mulf %1308, %1307 : vector<4x8xf32>
    %cst_166 = arith.constant 1.000000e+00 : f32
    %1310 = vector.broadcast %cst_166 : f32 to vector<4x8xf32>
    %1311 = arith.subf %1310, %1309 : vector<4x8xf32>
    %1312 = arith.mulf %1304, %1311 : vector<4x8xf32>
    %1313 = vector.extract_strided_slice %1312 {offsets = [0, 1], sizes = [4, 1], strides = [1, 1]} : vector<4x8xf32> to vector<4x1xf32>
    %1314 = vector.extract_strided_slice %1303 {offsets = [0, 1, 0], sizes = [4, 1, 8], strides = [1, 1, 1]} : vector<4x8x8xf32> to vector<4x1x8xf32>
    %1315 = vector.shape_cast %1314 : vector<4x1x8xf32> to vector<4x8xf32>
    %1316 = vector.broadcast %1313 : vector<4x1xf32> to vector<4x8xf32>
    %1317 = arith.mulf %1316, %1315 : vector<4x8xf32>
    %cst_167 = arith.constant 1.000000e+00 : f32
    %1318 = vector.broadcast %cst_167 : f32 to vector<4x8xf32>
    %1319 = arith.subf %1318, %1317 : vector<4x8xf32>
    %1320 = arith.mulf %1312, %1319 : vector<4x8xf32>
    %1321 = vector.extract_strided_slice %1320 {offsets = [0, 2], sizes = [4, 1], strides = [1, 1]} : vector<4x8xf32> to vector<4x1xf32>
    %1322 = vector.extract_strided_slice %1303 {offsets = [0, 2, 0], sizes = [4, 1, 8], strides = [1, 1, 1]} : vector<4x8x8xf32> to vector<4x1x8xf32>
    %1323 = vector.shape_cast %1322 : vector<4x1x8xf32> to vector<4x8xf32>
    %1324 = vector.broadcast %1321 : vector<4x1xf32> to vector<4x8xf32>
    %1325 = arith.mulf %1324, %1323 : vector<4x8xf32>
    %cst_168 = arith.constant 1.000000e+00 : f32
    %1326 = vector.broadcast %cst_168 : f32 to vector<4x8xf32>
    %1327 = arith.subf %1326, %1325 : vector<4x8xf32>
    %1328 = arith.mulf %1320, %1327 : vector<4x8xf32>
    %1329 = vector.extract_strided_slice %1328 {offsets = [0, 3], sizes = [4, 1], strides = [1, 1]} : vector<4x8xf32> to vector<4x1xf32>
    %1330 = vector.extract_strided_slice %1303 {offsets = [0, 3, 0], sizes = [4, 1, 8], strides = [1, 1, 1]} : vector<4x8x8xf32> to vector<4x1x8xf32>
    %1331 = vector.shape_cast %1330 : vector<4x1x8xf32> to vector<4x8xf32>
    %1332 = vector.broadcast %1329 : vector<4x1xf32> to vector<4x8xf32>
    %1333 = arith.mulf %1332, %1331 : vector<4x8xf32>
    %cst_169 = arith.constant 1.000000e+00 : f32
    %1334 = vector.broadcast %cst_169 : f32 to vector<4x8xf32>
    %1335 = arith.subf %1334, %1333 : vector<4x8xf32>
    %1336 = arith.mulf %1328, %1335 : vector<4x8xf32>
    %1337 = vector.extract_strided_slice %1336 {offsets = [0, 4], sizes = [4, 1], strides = [1, 1]} : vector<4x8xf32> to vector<4x1xf32>
    %1338 = vector.extract_strided_slice %1303 {offsets = [0, 4, 0], sizes = [4, 1, 8], strides = [1, 1, 1]} : vector<4x8x8xf32> to vector<4x1x8xf32>
    %1339 = vector.shape_cast %1338 : vector<4x1x8xf32> to vector<4x8xf32>
    %1340 = vector.broadcast %1337 : vector<4x1xf32> to vector<4x8xf32>
    %1341 = arith.mulf %1340, %1339 : vector<4x8xf32>
    %cst_170 = arith.constant 1.000000e+00 : f32
    %1342 = vector.broadcast %cst_170 : f32 to vector<4x8xf32>
    %1343 = arith.subf %1342, %1341 : vector<4x8xf32>
    %1344 = arith.mulf %1336, %1343 : vector<4x8xf32>
    %1345 = vector.extract_strided_slice %1344 {offsets = [0, 5], sizes = [4, 1], strides = [1, 1]} : vector<4x8xf32> to vector<4x1xf32>
    %1346 = vector.extract_strided_slice %1303 {offsets = [0, 5, 0], sizes = [4, 1, 8], strides = [1, 1, 1]} : vector<4x8x8xf32> to vector<4x1x8xf32>
    %1347 = vector.shape_cast %1346 : vector<4x1x8xf32> to vector<4x8xf32>
    %1348 = vector.broadcast %1345 : vector<4x1xf32> to vector<4x8xf32>
    %1349 = arith.mulf %1348, %1347 : vector<4x8xf32>
    %cst_171 = arith.constant 1.000000e+00 : f32
    %1350 = vector.broadcast %cst_171 : f32 to vector<4x8xf32>
    %1351 = arith.subf %1350, %1349 : vector<4x8xf32>
    %1352 = arith.mulf %1344, %1351 : vector<4x8xf32>
    %1353 = vector.extract_strided_slice %1352 {offsets = [0, 6], sizes = [4, 1], strides = [1, 1]} : vector<4x8xf32> to vector<4x1xf32>
    %1354 = vector.extract_strided_slice %1303 {offsets = [0, 6, 0], sizes = [4, 1, 8], strides = [1, 1, 1]} : vector<4x8x8xf32> to vector<4x1x8xf32>
    %1355 = vector.shape_cast %1354 : vector<4x1x8xf32> to vector<4x8xf32>
    %1356 = vector.broadcast %1353 : vector<4x1xf32> to vector<4x8xf32>
    %1357 = arith.mulf %1356, %1355 : vector<4x8xf32>
    %cst_172 = arith.constant 1.000000e+00 : f32
    %1358 = vector.broadcast %cst_172 : f32 to vector<4x8xf32>
    %1359 = arith.subf %1358, %1357 : vector<4x8xf32>
    %1360 = arith.mulf %1352, %1359 : vector<4x8xf32>
    %1361 = vector.extract_strided_slice %1360 {offsets = [0, 7], sizes = [4, 1], strides = [1, 1]} : vector<4x8xf32> to vector<4x1xf32>
    %1362 = vector.extract_strided_slice %1303 {offsets = [0, 7, 0], sizes = [4, 1, 8], strides = [1, 1, 1]} : vector<4x8x8xf32> to vector<4x1x8xf32>
    %1363 = vector.shape_cast %1362 : vector<4x1x8xf32> to vector<4x8xf32>
    %1364 = vector.broadcast %1361 : vector<4x1xf32> to vector<4x8xf32>
    %1365 = arith.mulf %1364, %1363 : vector<4x8xf32>
    %cst_173 = arith.constant 1.000000e+00 : f32
    %1366 = vector.broadcast %cst_173 : f32 to vector<4x8xf32>
    %1367 = arith.subf %1366, %1365 : vector<4x8xf32>
    %1368 = arith.mulf %1360, %1367 : vector<4x8xf32>
    %1369 = vector.extract_strided_slice %1368 {offsets = [0, 0], sizes = [4, 1], strides = [1, 1]} : vector<4x8xf32> to vector<4x1xf32>
    %1370 = vector.extract_strided_slice %1302 {offsets = [0, 0, 0], sizes = [4, 1, 128], strides = [1, 1, 1]} : vector<4x8x128xf32> to vector<4x1x128xf32>
    %1371 = vector.shape_cast %1370 : vector<4x1x128xf32> to vector<4x128xf32>
    %1372 = vector.broadcast %1369 : vector<4x1xf32> to vector<4x128xf32>
    %1373 = arith.mulf %1372, %1371 : vector<4x128xf32>
    %1374 = vector.extract_strided_slice %1368 {offsets = [0, 1], sizes = [4, 1], strides = [1, 1]} : vector<4x8xf32> to vector<4x1xf32>
    %1375 = vector.extract_strided_slice %1302 {offsets = [0, 1, 0], sizes = [4, 1, 128], strides = [1, 1, 1]} : vector<4x8x128xf32> to vector<4x1x128xf32>
    %1376 = vector.shape_cast %1375 : vector<4x1x128xf32> to vector<4x128xf32>
    %1377 = vector.broadcast %1374 : vector<4x1xf32> to vector<4x128xf32>
    %1378 = arith.mulf %1377, %1376 : vector<4x128xf32>
    %1379 = vector.extract_strided_slice %1368 {offsets = [0, 2], sizes = [4, 1], strides = [1, 1]} : vector<4x8xf32> to vector<4x1xf32>
    %1380 = vector.extract_strided_slice %1302 {offsets = [0, 2, 0], sizes = [4, 1, 128], strides = [1, 1, 1]} : vector<4x8x128xf32> to vector<4x1x128xf32>
    %1381 = vector.shape_cast %1380 : vector<4x1x128xf32> to vector<4x128xf32>
    %1382 = vector.broadcast %1379 : vector<4x1xf32> to vector<4x128xf32>
    %1383 = arith.mulf %1382, %1381 : vector<4x128xf32>
    %1384 = vector.extract_strided_slice %1368 {offsets = [0, 3], sizes = [4, 1], strides = [1, 1]} : vector<4x8xf32> to vector<4x1xf32>
    %1385 = vector.extract_strided_slice %1302 {offsets = [0, 3, 0], sizes = [4, 1, 128], strides = [1, 1, 1]} : vector<4x8x128xf32> to vector<4x1x128xf32>
    %1386 = vector.shape_cast %1385 : vector<4x1x128xf32> to vector<4x128xf32>
    %1387 = vector.broadcast %1384 : vector<4x1xf32> to vector<4x128xf32>
    %1388 = arith.mulf %1387, %1386 : vector<4x128xf32>
    %1389 = vector.extract_strided_slice %1368 {offsets = [0, 4], sizes = [4, 1], strides = [1, 1]} : vector<4x8xf32> to vector<4x1xf32>
    %1390 = vector.extract_strided_slice %1302 {offsets = [0, 4, 0], sizes = [4, 1, 128], strides = [1, 1, 1]} : vector<4x8x128xf32> to vector<4x1x128xf32>
    %1391 = vector.shape_cast %1390 : vector<4x1x128xf32> to vector<4x128xf32>
    %1392 = vector.broadcast %1389 : vector<4x1xf32> to vector<4x128xf32>
    %1393 = arith.mulf %1392, %1391 : vector<4x128xf32>
    %1394 = vector.extract_strided_slice %1368 {offsets = [0, 5], sizes = [4, 1], strides = [1, 1]} : vector<4x8xf32> to vector<4x1xf32>
    %1395 = vector.extract_strided_slice %1302 {offsets = [0, 5, 0], sizes = [4, 1, 128], strides = [1, 1, 1]} : vector<4x8x128xf32> to vector<4x1x128xf32>
    %1396 = vector.shape_cast %1395 : vector<4x1x128xf32> to vector<4x128xf32>
    %1397 = vector.broadcast %1394 : vector<4x1xf32> to vector<4x128xf32>
    %1398 = arith.mulf %1397, %1396 : vector<4x128xf32>
    %1399 = vector.extract_strided_slice %1368 {offsets = [0, 6], sizes = [4, 1], strides = [1, 1]} : vector<4x8xf32> to vector<4x1xf32>
    %1400 = vector.extract_strided_slice %1302 {offsets = [0, 6, 0], sizes = [4, 1, 128], strides = [1, 1, 1]} : vector<4x8x128xf32> to vector<4x1x128xf32>
    %1401 = vector.shape_cast %1400 : vector<4x1x128xf32> to vector<4x128xf32>
    %1402 = vector.broadcast %1399 : vector<4x1xf32> to vector<4x128xf32>
    %1403 = arith.mulf %1402, %1401 : vector<4x128xf32>
    %1404 = vector.extract_strided_slice %1368 {offsets = [0, 7], sizes = [4, 1], strides = [1, 1]} : vector<4x8xf32> to vector<4x1xf32>
    %1405 = vector.extract_strided_slice %1302 {offsets = [0, 7, 0], sizes = [4, 1, 128], strides = [1, 1, 1]} : vector<4x8x128xf32> to vector<4x1x128xf32>
    %1406 = vector.shape_cast %1405 : vector<4x1x128xf32> to vector<4x128xf32>
    %1407 = vector.broadcast %1404 : vector<4x1xf32> to vector<4x128xf32>
    %1408 = arith.mulf %1407, %1406 : vector<4x128xf32>
    %1409 = arith.maximumf %1373, %1378 : vector<4x128xf32>
    %1410 = arith.maximumf %1383, %1388 : vector<4x128xf32>
    %1411 = arith.maximumf %1393, %1398 : vector<4x128xf32>
    %1412 = arith.maximumf %1403, %1408 : vector<4x128xf32>
    %1413 = arith.maximumf %1409, %1410 : vector<4x128xf32>
    %1414 = arith.maximumf %1411, %1412 : vector<4x128xf32>
    %1415 = arith.maximumf %1413, %1414 : vector<4x128xf32>
    %cst_174 = arith.constant 1.000000e+00 : f32
    %1416 = vector.broadcast %cst_174 : f32 to vector<4x128xf32>
    %1417 = arith.subf %1416, %1415 : vector<4x128xf32>
    %1418 = arith.mulf %1301, %1417 : vector<4x128xf32>
    %c0_175 = arith.constant 0 : index
    %c80 = arith.constant 80 : index
    %c0_176 = arith.constant 0 : index
    %1419 = vector.load %arg5[%c0_175, %c80, %c0_176] : memref<4x128x128xf32, #tpu.memory_space<vmem>>, vector<4x8x128xf32>
    %1420 = vector.extract_strided_slice %1419 {offsets = [0, 0, 80], sizes = [4, 8, 8], strides = [1, 1, 1]} : vector<4x8x128xf32> to vector<4x8x8xf32>
    %1421 = vector.extract_strided_slice %1418 {offsets = [0, 80], sizes = [4, 8], strides = [1, 1]} : vector<4x128xf32> to vector<4x8xf32>
    %1422 = vector.extract_strided_slice %1421 {offsets = [0, 0], sizes = [4, 1], strides = [1, 1]} : vector<4x8xf32> to vector<4x1xf32>
    %1423 = vector.extract_strided_slice %1420 {offsets = [0, 0, 0], sizes = [4, 1, 8], strides = [1, 1, 1]} : vector<4x8x8xf32> to vector<4x1x8xf32>
    %1424 = vector.shape_cast %1423 : vector<4x1x8xf32> to vector<4x8xf32>
    %1425 = vector.broadcast %1422 : vector<4x1xf32> to vector<4x8xf32>
    %1426 = arith.mulf %1425, %1424 : vector<4x8xf32>
    %cst_177 = arith.constant 1.000000e+00 : f32
    %1427 = vector.broadcast %cst_177 : f32 to vector<4x8xf32>
    %1428 = arith.subf %1427, %1426 : vector<4x8xf32>
    %1429 = arith.mulf %1421, %1428 : vector<4x8xf32>
    %1430 = vector.extract_strided_slice %1429 {offsets = [0, 1], sizes = [4, 1], strides = [1, 1]} : vector<4x8xf32> to vector<4x1xf32>
    %1431 = vector.extract_strided_slice %1420 {offsets = [0, 1, 0], sizes = [4, 1, 8], strides = [1, 1, 1]} : vector<4x8x8xf32> to vector<4x1x8xf32>
    %1432 = vector.shape_cast %1431 : vector<4x1x8xf32> to vector<4x8xf32>
    %1433 = vector.broadcast %1430 : vector<4x1xf32> to vector<4x8xf32>
    %1434 = arith.mulf %1433, %1432 : vector<4x8xf32>
    %cst_178 = arith.constant 1.000000e+00 : f32
    %1435 = vector.broadcast %cst_178 : f32 to vector<4x8xf32>
    %1436 = arith.subf %1435, %1434 : vector<4x8xf32>
    %1437 = arith.mulf %1429, %1436 : vector<4x8xf32>
    %1438 = vector.extract_strided_slice %1437 {offsets = [0, 2], sizes = [4, 1], strides = [1, 1]} : vector<4x8xf32> to vector<4x1xf32>
    %1439 = vector.extract_strided_slice %1420 {offsets = [0, 2, 0], sizes = [4, 1, 8], strides = [1, 1, 1]} : vector<4x8x8xf32> to vector<4x1x8xf32>
    %1440 = vector.shape_cast %1439 : vector<4x1x8xf32> to vector<4x8xf32>
    %1441 = vector.broadcast %1438 : vector<4x1xf32> to vector<4x8xf32>
    %1442 = arith.mulf %1441, %1440 : vector<4x8xf32>
    %cst_179 = arith.constant 1.000000e+00 : f32
    %1443 = vector.broadcast %cst_179 : f32 to vector<4x8xf32>
    %1444 = arith.subf %1443, %1442 : vector<4x8xf32>
    %1445 = arith.mulf %1437, %1444 : vector<4x8xf32>
    %1446 = vector.extract_strided_slice %1445 {offsets = [0, 3], sizes = [4, 1], strides = [1, 1]} : vector<4x8xf32> to vector<4x1xf32>
    %1447 = vector.extract_strided_slice %1420 {offsets = [0, 3, 0], sizes = [4, 1, 8], strides = [1, 1, 1]} : vector<4x8x8xf32> to vector<4x1x8xf32>
    %1448 = vector.shape_cast %1447 : vector<4x1x8xf32> to vector<4x8xf32>
    %1449 = vector.broadcast %1446 : vector<4x1xf32> to vector<4x8xf32>
    %1450 = arith.mulf %1449, %1448 : vector<4x8xf32>
    %cst_180 = arith.constant 1.000000e+00 : f32
    %1451 = vector.broadcast %cst_180 : f32 to vector<4x8xf32>
    %1452 = arith.subf %1451, %1450 : vector<4x8xf32>
    %1453 = arith.mulf %1445, %1452 : vector<4x8xf32>
    %1454 = vector.extract_strided_slice %1453 {offsets = [0, 4], sizes = [4, 1], strides = [1, 1]} : vector<4x8xf32> to vector<4x1xf32>
    %1455 = vector.extract_strided_slice %1420 {offsets = [0, 4, 0], sizes = [4, 1, 8], strides = [1, 1, 1]} : vector<4x8x8xf32> to vector<4x1x8xf32>
    %1456 = vector.shape_cast %1455 : vector<4x1x8xf32> to vector<4x8xf32>
    %1457 = vector.broadcast %1454 : vector<4x1xf32> to vector<4x8xf32>
    %1458 = arith.mulf %1457, %1456 : vector<4x8xf32>
    %cst_181 = arith.constant 1.000000e+00 : f32
    %1459 = vector.broadcast %cst_181 : f32 to vector<4x8xf32>
    %1460 = arith.subf %1459, %1458 : vector<4x8xf32>
    %1461 = arith.mulf %1453, %1460 : vector<4x8xf32>
    %1462 = vector.extract_strided_slice %1461 {offsets = [0, 5], sizes = [4, 1], strides = [1, 1]} : vector<4x8xf32> to vector<4x1xf32>
    %1463 = vector.extract_strided_slice %1420 {offsets = [0, 5, 0], sizes = [4, 1, 8], strides = [1, 1, 1]} : vector<4x8x8xf32> to vector<4x1x8xf32>
    %1464 = vector.shape_cast %1463 : vector<4x1x8xf32> to vector<4x8xf32>
    %1465 = vector.broadcast %1462 : vector<4x1xf32> to vector<4x8xf32>
    %1466 = arith.mulf %1465, %1464 : vector<4x8xf32>
    %cst_182 = arith.constant 1.000000e+00 : f32
    %1467 = vector.broadcast %cst_182 : f32 to vector<4x8xf32>
    %1468 = arith.subf %1467, %1466 : vector<4x8xf32>
    %1469 = arith.mulf %1461, %1468 : vector<4x8xf32>
    %1470 = vector.extract_strided_slice %1469 {offsets = [0, 6], sizes = [4, 1], strides = [1, 1]} : vector<4x8xf32> to vector<4x1xf32>
    %1471 = vector.extract_strided_slice %1420 {offsets = [0, 6, 0], sizes = [4, 1, 8], strides = [1, 1, 1]} : vector<4x8x8xf32> to vector<4x1x8xf32>
    %1472 = vector.shape_cast %1471 : vector<4x1x8xf32> to vector<4x8xf32>
    %1473 = vector.broadcast %1470 : vector<4x1xf32> to vector<4x8xf32>
    %1474 = arith.mulf %1473, %1472 : vector<4x8xf32>
    %cst_183 = arith.constant 1.000000e+00 : f32
    %1475 = vector.broadcast %cst_183 : f32 to vector<4x8xf32>
    %1476 = arith.subf %1475, %1474 : vector<4x8xf32>
    %1477 = arith.mulf %1469, %1476 : vector<4x8xf32>
    %1478 = vector.extract_strided_slice %1477 {offsets = [0, 7], sizes = [4, 1], strides = [1, 1]} : vector<4x8xf32> to vector<4x1xf32>
    %1479 = vector.extract_strided_slice %1420 {offsets = [0, 7, 0], sizes = [4, 1, 8], strides = [1, 1, 1]} : vector<4x8x8xf32> to vector<4x1x8xf32>
    %1480 = vector.shape_cast %1479 : vector<4x1x8xf32> to vector<4x8xf32>
    %1481 = vector.broadcast %1478 : vector<4x1xf32> to vector<4x8xf32>
    %1482 = arith.mulf %1481, %1480 : vector<4x8xf32>
    %cst_184 = arith.constant 1.000000e+00 : f32
    %1483 = vector.broadcast %cst_184 : f32 to vector<4x8xf32>
    %1484 = arith.subf %1483, %1482 : vector<4x8xf32>
    %1485 = arith.mulf %1477, %1484 : vector<4x8xf32>
    %1486 = vector.extract_strided_slice %1485 {offsets = [0, 0], sizes = [4, 1], strides = [1, 1]} : vector<4x8xf32> to vector<4x1xf32>
    %1487 = vector.extract_strided_slice %1419 {offsets = [0, 0, 0], sizes = [4, 1, 128], strides = [1, 1, 1]} : vector<4x8x128xf32> to vector<4x1x128xf32>
    %1488 = vector.shape_cast %1487 : vector<4x1x128xf32> to vector<4x128xf32>
    %1489 = vector.broadcast %1486 : vector<4x1xf32> to vector<4x128xf32>
    %1490 = arith.mulf %1489, %1488 : vector<4x128xf32>
    %1491 = vector.extract_strided_slice %1485 {offsets = [0, 1], sizes = [4, 1], strides = [1, 1]} : vector<4x8xf32> to vector<4x1xf32>
    %1492 = vector.extract_strided_slice %1419 {offsets = [0, 1, 0], sizes = [4, 1, 128], strides = [1, 1, 1]} : vector<4x8x128xf32> to vector<4x1x128xf32>
    %1493 = vector.shape_cast %1492 : vector<4x1x128xf32> to vector<4x128xf32>
    %1494 = vector.broadcast %1491 : vector<4x1xf32> to vector<4x128xf32>
    %1495 = arith.mulf %1494, %1493 : vector<4x128xf32>
    %1496 = vector.extract_strided_slice %1485 {offsets = [0, 2], sizes = [4, 1], strides = [1, 1]} : vector<4x8xf32> to vector<4x1xf32>
    %1497 = vector.extract_strided_slice %1419 {offsets = [0, 2, 0], sizes = [4, 1, 128], strides = [1, 1, 1]} : vector<4x8x128xf32> to vector<4x1x128xf32>
    %1498 = vector.shape_cast %1497 : vector<4x1x128xf32> to vector<4x128xf32>
    %1499 = vector.broadcast %1496 : vector<4x1xf32> to vector<4x128xf32>
    %1500 = arith.mulf %1499, %1498 : vector<4x128xf32>
    %1501 = vector.extract_strided_slice %1485 {offsets = [0, 3], sizes = [4, 1], strides = [1, 1]} : vector<4x8xf32> to vector<4x1xf32>
    %1502 = vector.extract_strided_slice %1419 {offsets = [0, 3, 0], sizes = [4, 1, 128], strides = [1, 1, 1]} : vector<4x8x128xf32> to vector<4x1x128xf32>
    %1503 = vector.shape_cast %1502 : vector<4x1x128xf32> to vector<4x128xf32>
    %1504 = vector.broadcast %1501 : vector<4x1xf32> to vector<4x128xf32>
    %1505 = arith.mulf %1504, %1503 : vector<4x128xf32>
    %1506 = vector.extract_strided_slice %1485 {offsets = [0, 4], sizes = [4, 1], strides = [1, 1]} : vector<4x8xf32> to vector<4x1xf32>
    %1507 = vector.extract_strided_slice %1419 {offsets = [0, 4, 0], sizes = [4, 1, 128], strides = [1, 1, 1]} : vector<4x8x128xf32> to vector<4x1x128xf32>
    %1508 = vector.shape_cast %1507 : vector<4x1x128xf32> to vector<4x128xf32>
    %1509 = vector.broadcast %1506 : vector<4x1xf32> to vector<4x128xf32>
    %1510 = arith.mulf %1509, %1508 : vector<4x128xf32>
    %1511 = vector.extract_strided_slice %1485 {offsets = [0, 5], sizes = [4, 1], strides = [1, 1]} : vector<4x8xf32> to vector<4x1xf32>
    %1512 = vector.extract_strided_slice %1419 {offsets = [0, 5, 0], sizes = [4, 1, 128], strides = [1, 1, 1]} : vector<4x8x128xf32> to vector<4x1x128xf32>
    %1513 = vector.shape_cast %1512 : vector<4x1x128xf32> to vector<4x128xf32>
    %1514 = vector.broadcast %1511 : vector<4x1xf32> to vector<4x128xf32>
    %1515 = arith.mulf %1514, %1513 : vector<4x128xf32>
    %1516 = vector.extract_strided_slice %1485 {offsets = [0, 6], sizes = [4, 1], strides = [1, 1]} : vector<4x8xf32> to vector<4x1xf32>
    %1517 = vector.extract_strided_slice %1419 {offsets = [0, 6, 0], sizes = [4, 1, 128], strides = [1, 1, 1]} : vector<4x8x128xf32> to vector<4x1x128xf32>
    %1518 = vector.shape_cast %1517 : vector<4x1x128xf32> to vector<4x128xf32>
    %1519 = vector.broadcast %1516 : vector<4x1xf32> to vector<4x128xf32>
    %1520 = arith.mulf %1519, %1518 : vector<4x128xf32>
    %1521 = vector.extract_strided_slice %1485 {offsets = [0, 7], sizes = [4, 1], strides = [1, 1]} : vector<4x8xf32> to vector<4x1xf32>
    %1522 = vector.extract_strided_slice %1419 {offsets = [0, 7, 0], sizes = [4, 1, 128], strides = [1, 1, 1]} : vector<4x8x128xf32> to vector<4x1x128xf32>
    %1523 = vector.shape_cast %1522 : vector<4x1x128xf32> to vector<4x128xf32>
    %1524 = vector.broadcast %1521 : vector<4x1xf32> to vector<4x128xf32>
    %1525 = arith.mulf %1524, %1523 : vector<4x128xf32>
    %1526 = arith.maximumf %1490, %1495 : vector<4x128xf32>
    %1527 = arith.maximumf %1500, %1505 : vector<4x128xf32>
    %1528 = arith.maximumf %1510, %1515 : vector<4x128xf32>
    %1529 = arith.maximumf %1520, %1525 : vector<4x128xf32>
    %1530 = arith.maximumf %1526, %1527 : vector<4x128xf32>
    %1531 = arith.maximumf %1528, %1529 : vector<4x128xf32>
    %1532 = arith.maximumf %1530, %1531 : vector<4x128xf32>
    %cst_185 = arith.constant 1.000000e+00 : f32
    %1533 = vector.broadcast %cst_185 : f32 to vector<4x128xf32>
    %1534 = arith.subf %1533, %1532 : vector<4x128xf32>
    %1535 = arith.mulf %1418, %1534 : vector<4x128xf32>
    %c0_186 = arith.constant 0 : index
    %c88 = arith.constant 88 : index
    %c0_187 = arith.constant 0 : index
    %1536 = vector.load %arg5[%c0_186, %c88, %c0_187] : memref<4x128x128xf32, #tpu.memory_space<vmem>>, vector<4x8x128xf32>
    %1537 = vector.extract_strided_slice %1536 {offsets = [0, 0, 88], sizes = [4, 8, 8], strides = [1, 1, 1]} : vector<4x8x128xf32> to vector<4x8x8xf32>
    %1538 = vector.extract_strided_slice %1535 {offsets = [0, 88], sizes = [4, 8], strides = [1, 1]} : vector<4x128xf32> to vector<4x8xf32>
    %1539 = vector.extract_strided_slice %1538 {offsets = [0, 0], sizes = [4, 1], strides = [1, 1]} : vector<4x8xf32> to vector<4x1xf32>
    %1540 = vector.extract_strided_slice %1537 {offsets = [0, 0, 0], sizes = [4, 1, 8], strides = [1, 1, 1]} : vector<4x8x8xf32> to vector<4x1x8xf32>
    %1541 = vector.shape_cast %1540 : vector<4x1x8xf32> to vector<4x8xf32>
    %1542 = vector.broadcast %1539 : vector<4x1xf32> to vector<4x8xf32>
    %1543 = arith.mulf %1542, %1541 : vector<4x8xf32>
    %cst_188 = arith.constant 1.000000e+00 : f32
    %1544 = vector.broadcast %cst_188 : f32 to vector<4x8xf32>
    %1545 = arith.subf %1544, %1543 : vector<4x8xf32>
    %1546 = arith.mulf %1538, %1545 : vector<4x8xf32>
    %1547 = vector.extract_strided_slice %1546 {offsets = [0, 1], sizes = [4, 1], strides = [1, 1]} : vector<4x8xf32> to vector<4x1xf32>
    %1548 = vector.extract_strided_slice %1537 {offsets = [0, 1, 0], sizes = [4, 1, 8], strides = [1, 1, 1]} : vector<4x8x8xf32> to vector<4x1x8xf32>
    %1549 = vector.shape_cast %1548 : vector<4x1x8xf32> to vector<4x8xf32>
    %1550 = vector.broadcast %1547 : vector<4x1xf32> to vector<4x8xf32>
    %1551 = arith.mulf %1550, %1549 : vector<4x8xf32>
    %cst_189 = arith.constant 1.000000e+00 : f32
    %1552 = vector.broadcast %cst_189 : f32 to vector<4x8xf32>
    %1553 = arith.subf %1552, %1551 : vector<4x8xf32>
    %1554 = arith.mulf %1546, %1553 : vector<4x8xf32>
    %1555 = vector.extract_strided_slice %1554 {offsets = [0, 2], sizes = [4, 1], strides = [1, 1]} : vector<4x8xf32> to vector<4x1xf32>
    %1556 = vector.extract_strided_slice %1537 {offsets = [0, 2, 0], sizes = [4, 1, 8], strides = [1, 1, 1]} : vector<4x8x8xf32> to vector<4x1x8xf32>
    %1557 = vector.shape_cast %1556 : vector<4x1x8xf32> to vector<4x8xf32>
    %1558 = vector.broadcast %1555 : vector<4x1xf32> to vector<4x8xf32>
    %1559 = arith.mulf %1558, %1557 : vector<4x8xf32>
    %cst_190 = arith.constant 1.000000e+00 : f32
    %1560 = vector.broadcast %cst_190 : f32 to vector<4x8xf32>
    %1561 = arith.subf %1560, %1559 : vector<4x8xf32>
    %1562 = arith.mulf %1554, %1561 : vector<4x8xf32>
    %1563 = vector.extract_strided_slice %1562 {offsets = [0, 3], sizes = [4, 1], strides = [1, 1]} : vector<4x8xf32> to vector<4x1xf32>
    %1564 = vector.extract_strided_slice %1537 {offsets = [0, 3, 0], sizes = [4, 1, 8], strides = [1, 1, 1]} : vector<4x8x8xf32> to vector<4x1x8xf32>
    %1565 = vector.shape_cast %1564 : vector<4x1x8xf32> to vector<4x8xf32>
    %1566 = vector.broadcast %1563 : vector<4x1xf32> to vector<4x8xf32>
    %1567 = arith.mulf %1566, %1565 : vector<4x8xf32>
    %cst_191 = arith.constant 1.000000e+00 : f32
    %1568 = vector.broadcast %cst_191 : f32 to vector<4x8xf32>
    %1569 = arith.subf %1568, %1567 : vector<4x8xf32>
    %1570 = arith.mulf %1562, %1569 : vector<4x8xf32>
    %1571 = vector.extract_strided_slice %1570 {offsets = [0, 4], sizes = [4, 1], strides = [1, 1]} : vector<4x8xf32> to vector<4x1xf32>
    %1572 = vector.extract_strided_slice %1537 {offsets = [0, 4, 0], sizes = [4, 1, 8], strides = [1, 1, 1]} : vector<4x8x8xf32> to vector<4x1x8xf32>
    %1573 = vector.shape_cast %1572 : vector<4x1x8xf32> to vector<4x8xf32>
    %1574 = vector.broadcast %1571 : vector<4x1xf32> to vector<4x8xf32>
    %1575 = arith.mulf %1574, %1573 : vector<4x8xf32>
    %cst_192 = arith.constant 1.000000e+00 : f32
    %1576 = vector.broadcast %cst_192 : f32 to vector<4x8xf32>
    %1577 = arith.subf %1576, %1575 : vector<4x8xf32>
    %1578 = arith.mulf %1570, %1577 : vector<4x8xf32>
    %1579 = vector.extract_strided_slice %1578 {offsets = [0, 5], sizes = [4, 1], strides = [1, 1]} : vector<4x8xf32> to vector<4x1xf32>
    %1580 = vector.extract_strided_slice %1537 {offsets = [0, 5, 0], sizes = [4, 1, 8], strides = [1, 1, 1]} : vector<4x8x8xf32> to vector<4x1x8xf32>
    %1581 = vector.shape_cast %1580 : vector<4x1x8xf32> to vector<4x8xf32>
    %1582 = vector.broadcast %1579 : vector<4x1xf32> to vector<4x8xf32>
    %1583 = arith.mulf %1582, %1581 : vector<4x8xf32>
    %cst_193 = arith.constant 1.000000e+00 : f32
    %1584 = vector.broadcast %cst_193 : f32 to vector<4x8xf32>
    %1585 = arith.subf %1584, %1583 : vector<4x8xf32>
    %1586 = arith.mulf %1578, %1585 : vector<4x8xf32>
    %1587 = vector.extract_strided_slice %1586 {offsets = [0, 6], sizes = [4, 1], strides = [1, 1]} : vector<4x8xf32> to vector<4x1xf32>
    %1588 = vector.extract_strided_slice %1537 {offsets = [0, 6, 0], sizes = [4, 1, 8], strides = [1, 1, 1]} : vector<4x8x8xf32> to vector<4x1x8xf32>
    %1589 = vector.shape_cast %1588 : vector<4x1x8xf32> to vector<4x8xf32>
    %1590 = vector.broadcast %1587 : vector<4x1xf32> to vector<4x8xf32>
    %1591 = arith.mulf %1590, %1589 : vector<4x8xf32>
    %cst_194 = arith.constant 1.000000e+00 : f32
    %1592 = vector.broadcast %cst_194 : f32 to vector<4x8xf32>
    %1593 = arith.subf %1592, %1591 : vector<4x8xf32>
    %1594 = arith.mulf %1586, %1593 : vector<4x8xf32>
    %1595 = vector.extract_strided_slice %1594 {offsets = [0, 7], sizes = [4, 1], strides = [1, 1]} : vector<4x8xf32> to vector<4x1xf32>
    %1596 = vector.extract_strided_slice %1537 {offsets = [0, 7, 0], sizes = [4, 1, 8], strides = [1, 1, 1]} : vector<4x8x8xf32> to vector<4x1x8xf32>
    %1597 = vector.shape_cast %1596 : vector<4x1x8xf32> to vector<4x8xf32>
    %1598 = vector.broadcast %1595 : vector<4x1xf32> to vector<4x8xf32>
    %1599 = arith.mulf %1598, %1597 : vector<4x8xf32>
    %cst_195 = arith.constant 1.000000e+00 : f32
    %1600 = vector.broadcast %cst_195 : f32 to vector<4x8xf32>
    %1601 = arith.subf %1600, %1599 : vector<4x8xf32>
    %1602 = arith.mulf %1594, %1601 : vector<4x8xf32>
    %1603 = vector.extract_strided_slice %1602 {offsets = [0, 0], sizes = [4, 1], strides = [1, 1]} : vector<4x8xf32> to vector<4x1xf32>
    %1604 = vector.extract_strided_slice %1536 {offsets = [0, 0, 0], sizes = [4, 1, 128], strides = [1, 1, 1]} : vector<4x8x128xf32> to vector<4x1x128xf32>
    %1605 = vector.shape_cast %1604 : vector<4x1x128xf32> to vector<4x128xf32>
    %1606 = vector.broadcast %1603 : vector<4x1xf32> to vector<4x128xf32>
    %1607 = arith.mulf %1606, %1605 : vector<4x128xf32>
    %1608 = vector.extract_strided_slice %1602 {offsets = [0, 1], sizes = [4, 1], strides = [1, 1]} : vector<4x8xf32> to vector<4x1xf32>
    %1609 = vector.extract_strided_slice %1536 {offsets = [0, 1, 0], sizes = [4, 1, 128], strides = [1, 1, 1]} : vector<4x8x128xf32> to vector<4x1x128xf32>
    %1610 = vector.shape_cast %1609 : vector<4x1x128xf32> to vector<4x128xf32>
    %1611 = vector.broadcast %1608 : vector<4x1xf32> to vector<4x128xf32>
    %1612 = arith.mulf %1611, %1610 : vector<4x128xf32>
    %1613 = vector.extract_strided_slice %1602 {offsets = [0, 2], sizes = [4, 1], strides = [1, 1]} : vector<4x8xf32> to vector<4x1xf32>
    %1614 = vector.extract_strided_slice %1536 {offsets = [0, 2, 0], sizes = [4, 1, 128], strides = [1, 1, 1]} : vector<4x8x128xf32> to vector<4x1x128xf32>
    %1615 = vector.shape_cast %1614 : vector<4x1x128xf32> to vector<4x128xf32>
    %1616 = vector.broadcast %1613 : vector<4x1xf32> to vector<4x128xf32>
    %1617 = arith.mulf %1616, %1615 : vector<4x128xf32>
    %1618 = vector.extract_strided_slice %1602 {offsets = [0, 3], sizes = [4, 1], strides = [1, 1]} : vector<4x8xf32> to vector<4x1xf32>
    %1619 = vector.extract_strided_slice %1536 {offsets = [0, 3, 0], sizes = [4, 1, 128], strides = [1, 1, 1]} : vector<4x8x128xf32> to vector<4x1x128xf32>
    %1620 = vector.shape_cast %1619 : vector<4x1x128xf32> to vector<4x128xf32>
    %1621 = vector.broadcast %1618 : vector<4x1xf32> to vector<4x128xf32>
    %1622 = arith.mulf %1621, %1620 : vector<4x128xf32>
    %1623 = vector.extract_strided_slice %1602 {offsets = [0, 4], sizes = [4, 1], strides = [1, 1]} : vector<4x8xf32> to vector<4x1xf32>
    %1624 = vector.extract_strided_slice %1536 {offsets = [0, 4, 0], sizes = [4, 1, 128], strides = [1, 1, 1]} : vector<4x8x128xf32> to vector<4x1x128xf32>
    %1625 = vector.shape_cast %1624 : vector<4x1x128xf32> to vector<4x128xf32>
    %1626 = vector.broadcast %1623 : vector<4x1xf32> to vector<4x128xf32>
    %1627 = arith.mulf %1626, %1625 : vector<4x128xf32>
    %1628 = vector.extract_strided_slice %1602 {offsets = [0, 5], sizes = [4, 1], strides = [1, 1]} : vector<4x8xf32> to vector<4x1xf32>
    %1629 = vector.extract_strided_slice %1536 {offsets = [0, 5, 0], sizes = [4, 1, 128], strides = [1, 1, 1]} : vector<4x8x128xf32> to vector<4x1x128xf32>
    %1630 = vector.shape_cast %1629 : vector<4x1x128xf32> to vector<4x128xf32>
    %1631 = vector.broadcast %1628 : vector<4x1xf32> to vector<4x128xf32>
    %1632 = arith.mulf %1631, %1630 : vector<4x128xf32>
    %1633 = vector.extract_strided_slice %1602 {offsets = [0, 6], sizes = [4, 1], strides = [1, 1]} : vector<4x8xf32> to vector<4x1xf32>
    %1634 = vector.extract_strided_slice %1536 {offsets = [0, 6, 0], sizes = [4, 1, 128], strides = [1, 1, 1]} : vector<4x8x128xf32> to vector<4x1x128xf32>
    %1635 = vector.shape_cast %1634 : vector<4x1x128xf32> to vector<4x128xf32>
    %1636 = vector.broadcast %1633 : vector<4x1xf32> to vector<4x128xf32>
    %1637 = arith.mulf %1636, %1635 : vector<4x128xf32>
    %1638 = vector.extract_strided_slice %1602 {offsets = [0, 7], sizes = [4, 1], strides = [1, 1]} : vector<4x8xf32> to vector<4x1xf32>
    %1639 = vector.extract_strided_slice %1536 {offsets = [0, 7, 0], sizes = [4, 1, 128], strides = [1, 1, 1]} : vector<4x8x128xf32> to vector<4x1x128xf32>
    %1640 = vector.shape_cast %1639 : vector<4x1x128xf32> to vector<4x128xf32>
    %1641 = vector.broadcast %1638 : vector<4x1xf32> to vector<4x128xf32>
    %1642 = arith.mulf %1641, %1640 : vector<4x128xf32>
    %1643 = arith.maximumf %1607, %1612 : vector<4x128xf32>
    %1644 = arith.maximumf %1617, %1622 : vector<4x128xf32>
    %1645 = arith.maximumf %1627, %1632 : vector<4x128xf32>
    %1646 = arith.maximumf %1637, %1642 : vector<4x128xf32>
    %1647 = arith.maximumf %1643, %1644 : vector<4x128xf32>
    %1648 = arith.maximumf %1645, %1646 : vector<4x128xf32>
    %1649 = arith.maximumf %1647, %1648 : vector<4x128xf32>
    %cst_196 = arith.constant 1.000000e+00 : f32
    %1650 = vector.broadcast %cst_196 : f32 to vector<4x128xf32>
    %1651 = arith.subf %1650, %1649 : vector<4x128xf32>
    %1652 = arith.mulf %1535, %1651 : vector<4x128xf32>
    %c0_197 = arith.constant 0 : index
    %c96 = arith.constant 96 : index
    %c0_198 = arith.constant 0 : index
    %1653 = vector.load %arg5[%c0_197, %c96, %c0_198] : memref<4x128x128xf32, #tpu.memory_space<vmem>>, vector<4x8x128xf32>
    %1654 = vector.extract_strided_slice %1653 {offsets = [0, 0, 96], sizes = [4, 8, 8], strides = [1, 1, 1]} : vector<4x8x128xf32> to vector<4x8x8xf32>
    %1655 = vector.extract_strided_slice %1652 {offsets = [0, 96], sizes = [4, 8], strides = [1, 1]} : vector<4x128xf32> to vector<4x8xf32>
    %1656 = vector.extract_strided_slice %1655 {offsets = [0, 0], sizes = [4, 1], strides = [1, 1]} : vector<4x8xf32> to vector<4x1xf32>
    %1657 = vector.extract_strided_slice %1654 {offsets = [0, 0, 0], sizes = [4, 1, 8], strides = [1, 1, 1]} : vector<4x8x8xf32> to vector<4x1x8xf32>
    %1658 = vector.shape_cast %1657 : vector<4x1x8xf32> to vector<4x8xf32>
    %1659 = vector.broadcast %1656 : vector<4x1xf32> to vector<4x8xf32>
    %1660 = arith.mulf %1659, %1658 : vector<4x8xf32>
    %cst_199 = arith.constant 1.000000e+00 : f32
    %1661 = vector.broadcast %cst_199 : f32 to vector<4x8xf32>
    %1662 = arith.subf %1661, %1660 : vector<4x8xf32>
    %1663 = arith.mulf %1655, %1662 : vector<4x8xf32>
    %1664 = vector.extract_strided_slice %1663 {offsets = [0, 1], sizes = [4, 1], strides = [1, 1]} : vector<4x8xf32> to vector<4x1xf32>
    %1665 = vector.extract_strided_slice %1654 {offsets = [0, 1, 0], sizes = [4, 1, 8], strides = [1, 1, 1]} : vector<4x8x8xf32> to vector<4x1x8xf32>
    %1666 = vector.shape_cast %1665 : vector<4x1x8xf32> to vector<4x8xf32>
    %1667 = vector.broadcast %1664 : vector<4x1xf32> to vector<4x8xf32>
    %1668 = arith.mulf %1667, %1666 : vector<4x8xf32>
    %cst_200 = arith.constant 1.000000e+00 : f32
    %1669 = vector.broadcast %cst_200 : f32 to vector<4x8xf32>
    %1670 = arith.subf %1669, %1668 : vector<4x8xf32>
    %1671 = arith.mulf %1663, %1670 : vector<4x8xf32>
    %1672 = vector.extract_strided_slice %1671 {offsets = [0, 2], sizes = [4, 1], strides = [1, 1]} : vector<4x8xf32> to vector<4x1xf32>
    %1673 = vector.extract_strided_slice %1654 {offsets = [0, 2, 0], sizes = [4, 1, 8], strides = [1, 1, 1]} : vector<4x8x8xf32> to vector<4x1x8xf32>
    %1674 = vector.shape_cast %1673 : vector<4x1x8xf32> to vector<4x8xf32>
    %1675 = vector.broadcast %1672 : vector<4x1xf32> to vector<4x8xf32>
    %1676 = arith.mulf %1675, %1674 : vector<4x8xf32>
    %cst_201 = arith.constant 1.000000e+00 : f32
    %1677 = vector.broadcast %cst_201 : f32 to vector<4x8xf32>
    %1678 = arith.subf %1677, %1676 : vector<4x8xf32>
    %1679 = arith.mulf %1671, %1678 : vector<4x8xf32>
    %1680 = vector.extract_strided_slice %1679 {offsets = [0, 3], sizes = [4, 1], strides = [1, 1]} : vector<4x8xf32> to vector<4x1xf32>
    %1681 = vector.extract_strided_slice %1654 {offsets = [0, 3, 0], sizes = [4, 1, 8], strides = [1, 1, 1]} : vector<4x8x8xf32> to vector<4x1x8xf32>
    %1682 = vector.shape_cast %1681 : vector<4x1x8xf32> to vector<4x8xf32>
    %1683 = vector.broadcast %1680 : vector<4x1xf32> to vector<4x8xf32>
    %1684 = arith.mulf %1683, %1682 : vector<4x8xf32>
    %cst_202 = arith.constant 1.000000e+00 : f32
    %1685 = vector.broadcast %cst_202 : f32 to vector<4x8xf32>
    %1686 = arith.subf %1685, %1684 : vector<4x8xf32>
    %1687 = arith.mulf %1679, %1686 : vector<4x8xf32>
    %1688 = vector.extract_strided_slice %1687 {offsets = [0, 4], sizes = [4, 1], strides = [1, 1]} : vector<4x8xf32> to vector<4x1xf32>
    %1689 = vector.extract_strided_slice %1654 {offsets = [0, 4, 0], sizes = [4, 1, 8], strides = [1, 1, 1]} : vector<4x8x8xf32> to vector<4x1x8xf32>
    %1690 = vector.shape_cast %1689 : vector<4x1x8xf32> to vector<4x8xf32>
    %1691 = vector.broadcast %1688 : vector<4x1xf32> to vector<4x8xf32>
    %1692 = arith.mulf %1691, %1690 : vector<4x8xf32>
    %cst_203 = arith.constant 1.000000e+00 : f32
    %1693 = vector.broadcast %cst_203 : f32 to vector<4x8xf32>
    %1694 = arith.subf %1693, %1692 : vector<4x8xf32>
    %1695 = arith.mulf %1687, %1694 : vector<4x8xf32>
    %1696 = vector.extract_strided_slice %1695 {offsets = [0, 5], sizes = [4, 1], strides = [1, 1]} : vector<4x8xf32> to vector<4x1xf32>
    %1697 = vector.extract_strided_slice %1654 {offsets = [0, 5, 0], sizes = [4, 1, 8], strides = [1, 1, 1]} : vector<4x8x8xf32> to vector<4x1x8xf32>
    %1698 = vector.shape_cast %1697 : vector<4x1x8xf32> to vector<4x8xf32>
    %1699 = vector.broadcast %1696 : vector<4x1xf32> to vector<4x8xf32>
    %1700 = arith.mulf %1699, %1698 : vector<4x8xf32>
    %cst_204 = arith.constant 1.000000e+00 : f32
    %1701 = vector.broadcast %cst_204 : f32 to vector<4x8xf32>
    %1702 = arith.subf %1701, %1700 : vector<4x8xf32>
    %1703 = arith.mulf %1695, %1702 : vector<4x8xf32>
    %1704 = vector.extract_strided_slice %1703 {offsets = [0, 6], sizes = [4, 1], strides = [1, 1]} : vector<4x8xf32> to vector<4x1xf32>
    %1705 = vector.extract_strided_slice %1654 {offsets = [0, 6, 0], sizes = [4, 1, 8], strides = [1, 1, 1]} : vector<4x8x8xf32> to vector<4x1x8xf32>
    %1706 = vector.shape_cast %1705 : vector<4x1x8xf32> to vector<4x8xf32>
    %1707 = vector.broadcast %1704 : vector<4x1xf32> to vector<4x8xf32>
    %1708 = arith.mulf %1707, %1706 : vector<4x8xf32>
    %cst_205 = arith.constant 1.000000e+00 : f32
    %1709 = vector.broadcast %cst_205 : f32 to vector<4x8xf32>
    %1710 = arith.subf %1709, %1708 : vector<4x8xf32>
    %1711 = arith.mulf %1703, %1710 : vector<4x8xf32>
    %1712 = vector.extract_strided_slice %1711 {offsets = [0, 7], sizes = [4, 1], strides = [1, 1]} : vector<4x8xf32> to vector<4x1xf32>
    %1713 = vector.extract_strided_slice %1654 {offsets = [0, 7, 0], sizes = [4, 1, 8], strides = [1, 1, 1]} : vector<4x8x8xf32> to vector<4x1x8xf32>
    %1714 = vector.shape_cast %1713 : vector<4x1x8xf32> to vector<4x8xf32>
    %1715 = vector.broadcast %1712 : vector<4x1xf32> to vector<4x8xf32>
    %1716 = arith.mulf %1715, %1714 : vector<4x8xf32>
    %cst_206 = arith.constant 1.000000e+00 : f32
    %1717 = vector.broadcast %cst_206 : f32 to vector<4x8xf32>
    %1718 = arith.subf %1717, %1716 : vector<4x8xf32>
    %1719 = arith.mulf %1711, %1718 : vector<4x8xf32>
    %1720 = vector.extract_strided_slice %1719 {offsets = [0, 0], sizes = [4, 1], strides = [1, 1]} : vector<4x8xf32> to vector<4x1xf32>
    %1721 = vector.extract_strided_slice %1653 {offsets = [0, 0, 0], sizes = [4, 1, 128], strides = [1, 1, 1]} : vector<4x8x128xf32> to vector<4x1x128xf32>
    %1722 = vector.shape_cast %1721 : vector<4x1x128xf32> to vector<4x128xf32>
    %1723 = vector.broadcast %1720 : vector<4x1xf32> to vector<4x128xf32>
    %1724 = arith.mulf %1723, %1722 : vector<4x128xf32>
    %1725 = vector.extract_strided_slice %1719 {offsets = [0, 1], sizes = [4, 1], strides = [1, 1]} : vector<4x8xf32> to vector<4x1xf32>
    %1726 = vector.extract_strided_slice %1653 {offsets = [0, 1, 0], sizes = [4, 1, 128], strides = [1, 1, 1]} : vector<4x8x128xf32> to vector<4x1x128xf32>
    %1727 = vector.shape_cast %1726 : vector<4x1x128xf32> to vector<4x128xf32>
    %1728 = vector.broadcast %1725 : vector<4x1xf32> to vector<4x128xf32>
    %1729 = arith.mulf %1728, %1727 : vector<4x128xf32>
    %1730 = vector.extract_strided_slice %1719 {offsets = [0, 2], sizes = [4, 1], strides = [1, 1]} : vector<4x8xf32> to vector<4x1xf32>
    %1731 = vector.extract_strided_slice %1653 {offsets = [0, 2, 0], sizes = [4, 1, 128], strides = [1, 1, 1]} : vector<4x8x128xf32> to vector<4x1x128xf32>
    %1732 = vector.shape_cast %1731 : vector<4x1x128xf32> to vector<4x128xf32>
    %1733 = vector.broadcast %1730 : vector<4x1xf32> to vector<4x128xf32>
    %1734 = arith.mulf %1733, %1732 : vector<4x128xf32>
    %1735 = vector.extract_strided_slice %1719 {offsets = [0, 3], sizes = [4, 1], strides = [1, 1]} : vector<4x8xf32> to vector<4x1xf32>
    %1736 = vector.extract_strided_slice %1653 {offsets = [0, 3, 0], sizes = [4, 1, 128], strides = [1, 1, 1]} : vector<4x8x128xf32> to vector<4x1x128xf32>
    %1737 = vector.shape_cast %1736 : vector<4x1x128xf32> to vector<4x128xf32>
    %1738 = vector.broadcast %1735 : vector<4x1xf32> to vector<4x128xf32>
    %1739 = arith.mulf %1738, %1737 : vector<4x128xf32>
    %1740 = vector.extract_strided_slice %1719 {offsets = [0, 4], sizes = [4, 1], strides = [1, 1]} : vector<4x8xf32> to vector<4x1xf32>
    %1741 = vector.extract_strided_slice %1653 {offsets = [0, 4, 0], sizes = [4, 1, 128], strides = [1, 1, 1]} : vector<4x8x128xf32> to vector<4x1x128xf32>
    %1742 = vector.shape_cast %1741 : vector<4x1x128xf32> to vector<4x128xf32>
    %1743 = vector.broadcast %1740 : vector<4x1xf32> to vector<4x128xf32>
    %1744 = arith.mulf %1743, %1742 : vector<4x128xf32>
    %1745 = vector.extract_strided_slice %1719 {offsets = [0, 5], sizes = [4, 1], strides = [1, 1]} : vector<4x8xf32> to vector<4x1xf32>
    %1746 = vector.extract_strided_slice %1653 {offsets = [0, 5, 0], sizes = [4, 1, 128], strides = [1, 1, 1]} : vector<4x8x128xf32> to vector<4x1x128xf32>
    %1747 = vector.shape_cast %1746 : vector<4x1x128xf32> to vector<4x128xf32>
    %1748 = vector.broadcast %1745 : vector<4x1xf32> to vector<4x128xf32>
    %1749 = arith.mulf %1748, %1747 : vector<4x128xf32>
    %1750 = vector.extract_strided_slice %1719 {offsets = [0, 6], sizes = [4, 1], strides = [1, 1]} : vector<4x8xf32> to vector<4x1xf32>
    %1751 = vector.extract_strided_slice %1653 {offsets = [0, 6, 0], sizes = [4, 1, 128], strides = [1, 1, 1]} : vector<4x8x128xf32> to vector<4x1x128xf32>
    %1752 = vector.shape_cast %1751 : vector<4x1x128xf32> to vector<4x128xf32>
    %1753 = vector.broadcast %1750 : vector<4x1xf32> to vector<4x128xf32>
    %1754 = arith.mulf %1753, %1752 : vector<4x128xf32>
    %1755 = vector.extract_strided_slice %1719 {offsets = [0, 7], sizes = [4, 1], strides = [1, 1]} : vector<4x8xf32> to vector<4x1xf32>
    %1756 = vector.extract_strided_slice %1653 {offsets = [0, 7, 0], sizes = [4, 1, 128], strides = [1, 1, 1]} : vector<4x8x128xf32> to vector<4x1x128xf32>
    %1757 = vector.shape_cast %1756 : vector<4x1x128xf32> to vector<4x128xf32>
    %1758 = vector.broadcast %1755 : vector<4x1xf32> to vector<4x128xf32>
    %1759 = arith.mulf %1758, %1757 : vector<4x128xf32>
    %1760 = arith.maximumf %1724, %1729 : vector<4x128xf32>
    %1761 = arith.maximumf %1734, %1739 : vector<4x128xf32>
    %1762 = arith.maximumf %1744, %1749 : vector<4x128xf32>
    %1763 = arith.maximumf %1754, %1759 : vector<4x128xf32>
    %1764 = arith.maximumf %1760, %1761 : vector<4x128xf32>
    %1765 = arith.maximumf %1762, %1763 : vector<4x128xf32>
    %1766 = arith.maximumf %1764, %1765 : vector<4x128xf32>
    %cst_207 = arith.constant 1.000000e+00 : f32
    %1767 = vector.broadcast %cst_207 : f32 to vector<4x128xf32>
    %1768 = arith.subf %1767, %1766 : vector<4x128xf32>
    %1769 = arith.mulf %1652, %1768 : vector<4x128xf32>
    %c0_208 = arith.constant 0 : index
    %c104 = arith.constant 104 : index
    %c0_209 = arith.constant 0 : index
    %1770 = vector.load %arg5[%c0_208, %c104, %c0_209] : memref<4x128x128xf32, #tpu.memory_space<vmem>>, vector<4x8x128xf32>
    %1771 = vector.extract_strided_slice %1770 {offsets = [0, 0, 104], sizes = [4, 8, 8], strides = [1, 1, 1]} : vector<4x8x128xf32> to vector<4x8x8xf32>
    %1772 = vector.extract_strided_slice %1769 {offsets = [0, 104], sizes = [4, 8], strides = [1, 1]} : vector<4x128xf32> to vector<4x8xf32>
    %1773 = vector.extract_strided_slice %1772 {offsets = [0, 0], sizes = [4, 1], strides = [1, 1]} : vector<4x8xf32> to vector<4x1xf32>
    %1774 = vector.extract_strided_slice %1771 {offsets = [0, 0, 0], sizes = [4, 1, 8], strides = [1, 1, 1]} : vector<4x8x8xf32> to vector<4x1x8xf32>
    %1775 = vector.shape_cast %1774 : vector<4x1x8xf32> to vector<4x8xf32>
    %1776 = vector.broadcast %1773 : vector<4x1xf32> to vector<4x8xf32>
    %1777 = arith.mulf %1776, %1775 : vector<4x8xf32>
    %cst_210 = arith.constant 1.000000e+00 : f32
    %1778 = vector.broadcast %cst_210 : f32 to vector<4x8xf32>
    %1779 = arith.subf %1778, %1777 : vector<4x8xf32>
    %1780 = arith.mulf %1772, %1779 : vector<4x8xf32>
    %1781 = vector.extract_strided_slice %1780 {offsets = [0, 1], sizes = [4, 1], strides = [1, 1]} : vector<4x8xf32> to vector<4x1xf32>
    %1782 = vector.extract_strided_slice %1771 {offsets = [0, 1, 0], sizes = [4, 1, 8], strides = [1, 1, 1]} : vector<4x8x8xf32> to vector<4x1x8xf32>
    %1783 = vector.shape_cast %1782 : vector<4x1x8xf32> to vector<4x8xf32>
    %1784 = vector.broadcast %1781 : vector<4x1xf32> to vector<4x8xf32>
    %1785 = arith.mulf %1784, %1783 : vector<4x8xf32>
    %cst_211 = arith.constant 1.000000e+00 : f32
    %1786 = vector.broadcast %cst_211 : f32 to vector<4x8xf32>
    %1787 = arith.subf %1786, %1785 : vector<4x8xf32>
    %1788 = arith.mulf %1780, %1787 : vector<4x8xf32>
    %1789 = vector.extract_strided_slice %1788 {offsets = [0, 2], sizes = [4, 1], strides = [1, 1]} : vector<4x8xf32> to vector<4x1xf32>
    %1790 = vector.extract_strided_slice %1771 {offsets = [0, 2, 0], sizes = [4, 1, 8], strides = [1, 1, 1]} : vector<4x8x8xf32> to vector<4x1x8xf32>
    %1791 = vector.shape_cast %1790 : vector<4x1x8xf32> to vector<4x8xf32>
    %1792 = vector.broadcast %1789 : vector<4x1xf32> to vector<4x8xf32>
    %1793 = arith.mulf %1792, %1791 : vector<4x8xf32>
    %cst_212 = arith.constant 1.000000e+00 : f32
    %1794 = vector.broadcast %cst_212 : f32 to vector<4x8xf32>
    %1795 = arith.subf %1794, %1793 : vector<4x8xf32>
    %1796 = arith.mulf %1788, %1795 : vector<4x8xf32>
    %1797 = vector.extract_strided_slice %1796 {offsets = [0, 3], sizes = [4, 1], strides = [1, 1]} : vector<4x8xf32> to vector<4x1xf32>
    %1798 = vector.extract_strided_slice %1771 {offsets = [0, 3, 0], sizes = [4, 1, 8], strides = [1, 1, 1]} : vector<4x8x8xf32> to vector<4x1x8xf32>
    %1799 = vector.shape_cast %1798 : vector<4x1x8xf32> to vector<4x8xf32>
    %1800 = vector.broadcast %1797 : vector<4x1xf32> to vector<4x8xf32>
    %1801 = arith.mulf %1800, %1799 : vector<4x8xf32>
    %cst_213 = arith.constant 1.000000e+00 : f32
    %1802 = vector.broadcast %cst_213 : f32 to vector<4x8xf32>
    %1803 = arith.subf %1802, %1801 : vector<4x8xf32>
    %1804 = arith.mulf %1796, %1803 : vector<4x8xf32>
    %1805 = vector.extract_strided_slice %1804 {offsets = [0, 4], sizes = [4, 1], strides = [1, 1]} : vector<4x8xf32> to vector<4x1xf32>
    %1806 = vector.extract_strided_slice %1771 {offsets = [0, 4, 0], sizes = [4, 1, 8], strides = [1, 1, 1]} : vector<4x8x8xf32> to vector<4x1x8xf32>
    %1807 = vector.shape_cast %1806 : vector<4x1x8xf32> to vector<4x8xf32>
    %1808 = vector.broadcast %1805 : vector<4x1xf32> to vector<4x8xf32>
    %1809 = arith.mulf %1808, %1807 : vector<4x8xf32>
    %cst_214 = arith.constant 1.000000e+00 : f32
    %1810 = vector.broadcast %cst_214 : f32 to vector<4x8xf32>
    %1811 = arith.subf %1810, %1809 : vector<4x8xf32>
    %1812 = arith.mulf %1804, %1811 : vector<4x8xf32>
    %1813 = vector.extract_strided_slice %1812 {offsets = [0, 5], sizes = [4, 1], strides = [1, 1]} : vector<4x8xf32> to vector<4x1xf32>
    %1814 = vector.extract_strided_slice %1771 {offsets = [0, 5, 0], sizes = [4, 1, 8], strides = [1, 1, 1]} : vector<4x8x8xf32> to vector<4x1x8xf32>
    %1815 = vector.shape_cast %1814 : vector<4x1x8xf32> to vector<4x8xf32>
    %1816 = vector.broadcast %1813 : vector<4x1xf32> to vector<4x8xf32>
    %1817 = arith.mulf %1816, %1815 : vector<4x8xf32>
    %cst_215 = arith.constant 1.000000e+00 : f32
    %1818 = vector.broadcast %cst_215 : f32 to vector<4x8xf32>
    %1819 = arith.subf %1818, %1817 : vector<4x8xf32>
    %1820 = arith.mulf %1812, %1819 : vector<4x8xf32>
    %1821 = vector.extract_strided_slice %1820 {offsets = [0, 6], sizes = [4, 1], strides = [1, 1]} : vector<4x8xf32> to vector<4x1xf32>
    %1822 = vector.extract_strided_slice %1771 {offsets = [0, 6, 0], sizes = [4, 1, 8], strides = [1, 1, 1]} : vector<4x8x8xf32> to vector<4x1x8xf32>
    %1823 = vector.shape_cast %1822 : vector<4x1x8xf32> to vector<4x8xf32>
    %1824 = vector.broadcast %1821 : vector<4x1xf32> to vector<4x8xf32>
    %1825 = arith.mulf %1824, %1823 : vector<4x8xf32>
    %cst_216 = arith.constant 1.000000e+00 : f32
    %1826 = vector.broadcast %cst_216 : f32 to vector<4x8xf32>
    %1827 = arith.subf %1826, %1825 : vector<4x8xf32>
    %1828 = arith.mulf %1820, %1827 : vector<4x8xf32>
    %1829 = vector.extract_strided_slice %1828 {offsets = [0, 7], sizes = [4, 1], strides = [1, 1]} : vector<4x8xf32> to vector<4x1xf32>
    %1830 = vector.extract_strided_slice %1771 {offsets = [0, 7, 0], sizes = [4, 1, 8], strides = [1, 1, 1]} : vector<4x8x8xf32> to vector<4x1x8xf32>
    %1831 = vector.shape_cast %1830 : vector<4x1x8xf32> to vector<4x8xf32>
    %1832 = vector.broadcast %1829 : vector<4x1xf32> to vector<4x8xf32>
    %1833 = arith.mulf %1832, %1831 : vector<4x8xf32>
    %cst_217 = arith.constant 1.000000e+00 : f32
    %1834 = vector.broadcast %cst_217 : f32 to vector<4x8xf32>
    %1835 = arith.subf %1834, %1833 : vector<4x8xf32>
    %1836 = arith.mulf %1828, %1835 : vector<4x8xf32>
    %1837 = vector.extract_strided_slice %1836 {offsets = [0, 0], sizes = [4, 1], strides = [1, 1]} : vector<4x8xf32> to vector<4x1xf32>
    %1838 = vector.extract_strided_slice %1770 {offsets = [0, 0, 0], sizes = [4, 1, 128], strides = [1, 1, 1]} : vector<4x8x128xf32> to vector<4x1x128xf32>
    %1839 = vector.shape_cast %1838 : vector<4x1x128xf32> to vector<4x128xf32>
    %1840 = vector.broadcast %1837 : vector<4x1xf32> to vector<4x128xf32>
    %1841 = arith.mulf %1840, %1839 : vector<4x128xf32>
    %1842 = vector.extract_strided_slice %1836 {offsets = [0, 1], sizes = [4, 1], strides = [1, 1]} : vector<4x8xf32> to vector<4x1xf32>
    %1843 = vector.extract_strided_slice %1770 {offsets = [0, 1, 0], sizes = [4, 1, 128], strides = [1, 1, 1]} : vector<4x8x128xf32> to vector<4x1x128xf32>
    %1844 = vector.shape_cast %1843 : vector<4x1x128xf32> to vector<4x128xf32>
    %1845 = vector.broadcast %1842 : vector<4x1xf32> to vector<4x128xf32>
    %1846 = arith.mulf %1845, %1844 : vector<4x128xf32>
    %1847 = vector.extract_strided_slice %1836 {offsets = [0, 2], sizes = [4, 1], strides = [1, 1]} : vector<4x8xf32> to vector<4x1xf32>
    %1848 = vector.extract_strided_slice %1770 {offsets = [0, 2, 0], sizes = [4, 1, 128], strides = [1, 1, 1]} : vector<4x8x128xf32> to vector<4x1x128xf32>
    %1849 = vector.shape_cast %1848 : vector<4x1x128xf32> to vector<4x128xf32>
    %1850 = vector.broadcast %1847 : vector<4x1xf32> to vector<4x128xf32>
    %1851 = arith.mulf %1850, %1849 : vector<4x128xf32>
    %1852 = vector.extract_strided_slice %1836 {offsets = [0, 3], sizes = [4, 1], strides = [1, 1]} : vector<4x8xf32> to vector<4x1xf32>
    %1853 = vector.extract_strided_slice %1770 {offsets = [0, 3, 0], sizes = [4, 1, 128], strides = [1, 1, 1]} : vector<4x8x128xf32> to vector<4x1x128xf32>
    %1854 = vector.shape_cast %1853 : vector<4x1x128xf32> to vector<4x128xf32>
    %1855 = vector.broadcast %1852 : vector<4x1xf32> to vector<4x128xf32>
    %1856 = arith.mulf %1855, %1854 : vector<4x128xf32>
    %1857 = vector.extract_strided_slice %1836 {offsets = [0, 4], sizes = [4, 1], strides = [1, 1]} : vector<4x8xf32> to vector<4x1xf32>
    %1858 = vector.extract_strided_slice %1770 {offsets = [0, 4, 0], sizes = [4, 1, 128], strides = [1, 1, 1]} : vector<4x8x128xf32> to vector<4x1x128xf32>
    %1859 = vector.shape_cast %1858 : vector<4x1x128xf32> to vector<4x128xf32>
    %1860 = vector.broadcast %1857 : vector<4x1xf32> to vector<4x128xf32>
    %1861 = arith.mulf %1860, %1859 : vector<4x128xf32>
    %1862 = vector.extract_strided_slice %1836 {offsets = [0, 5], sizes = [4, 1], strides = [1, 1]} : vector<4x8xf32> to vector<4x1xf32>
    %1863 = vector.extract_strided_slice %1770 {offsets = [0, 5, 0], sizes = [4, 1, 128], strides = [1, 1, 1]} : vector<4x8x128xf32> to vector<4x1x128xf32>
    %1864 = vector.shape_cast %1863 : vector<4x1x128xf32> to vector<4x128xf32>
    %1865 = vector.broadcast %1862 : vector<4x1xf32> to vector<4x128xf32>
    %1866 = arith.mulf %1865, %1864 : vector<4x128xf32>
    %1867 = vector.extract_strided_slice %1836 {offsets = [0, 6], sizes = [4, 1], strides = [1, 1]} : vector<4x8xf32> to vector<4x1xf32>
    %1868 = vector.extract_strided_slice %1770 {offsets = [0, 6, 0], sizes = [4, 1, 128], strides = [1, 1, 1]} : vector<4x8x128xf32> to vector<4x1x128xf32>
    %1869 = vector.shape_cast %1868 : vector<4x1x128xf32> to vector<4x128xf32>
    %1870 = vector.broadcast %1867 : vector<4x1xf32> to vector<4x128xf32>
    %1871 = arith.mulf %1870, %1869 : vector<4x128xf32>
    %1872 = vector.extract_strided_slice %1836 {offsets = [0, 7], sizes = [4, 1], strides = [1, 1]} : vector<4x8xf32> to vector<4x1xf32>
    %1873 = vector.extract_strided_slice %1770 {offsets = [0, 7, 0], sizes = [4, 1, 128], strides = [1, 1, 1]} : vector<4x8x128xf32> to vector<4x1x128xf32>
    %1874 = vector.shape_cast %1873 : vector<4x1x128xf32> to vector<4x128xf32>
    %1875 = vector.broadcast %1872 : vector<4x1xf32> to vector<4x128xf32>
    %1876 = arith.mulf %1875, %1874 : vector<4x128xf32>
    %1877 = arith.maximumf %1841, %1846 : vector<4x128xf32>
    %1878 = arith.maximumf %1851, %1856 : vector<4x128xf32>
    %1879 = arith.maximumf %1861, %1866 : vector<4x128xf32>
    %1880 = arith.maximumf %1871, %1876 : vector<4x128xf32>
    %1881 = arith.maximumf %1877, %1878 : vector<4x128xf32>
    %1882 = arith.maximumf %1879, %1880 : vector<4x128xf32>
    %1883 = arith.maximumf %1881, %1882 : vector<4x128xf32>
    %cst_218 = arith.constant 1.000000e+00 : f32
    %1884 = vector.broadcast %cst_218 : f32 to vector<4x128xf32>
    %1885 = arith.subf %1884, %1883 : vector<4x128xf32>
    %1886 = arith.mulf %1769, %1885 : vector<4x128xf32>
    %c0_219 = arith.constant 0 : index
    %c112 = arith.constant 112 : index
    %c0_220 = arith.constant 0 : index
    %1887 = vector.load %arg5[%c0_219, %c112, %c0_220] : memref<4x128x128xf32, #tpu.memory_space<vmem>>, vector<4x8x128xf32>
    %1888 = vector.extract_strided_slice %1887 {offsets = [0, 0, 112], sizes = [4, 8, 8], strides = [1, 1, 1]} : vector<4x8x128xf32> to vector<4x8x8xf32>
    %1889 = vector.extract_strided_slice %1886 {offsets = [0, 112], sizes = [4, 8], strides = [1, 1]} : vector<4x128xf32> to vector<4x8xf32>
    %1890 = vector.extract_strided_slice %1889 {offsets = [0, 0], sizes = [4, 1], strides = [1, 1]} : vector<4x8xf32> to vector<4x1xf32>
    %1891 = vector.extract_strided_slice %1888 {offsets = [0, 0, 0], sizes = [4, 1, 8], strides = [1, 1, 1]} : vector<4x8x8xf32> to vector<4x1x8xf32>
    %1892 = vector.shape_cast %1891 : vector<4x1x8xf32> to vector<4x8xf32>
    %1893 = vector.broadcast %1890 : vector<4x1xf32> to vector<4x8xf32>
    %1894 = arith.mulf %1893, %1892 : vector<4x8xf32>
    %cst_221 = arith.constant 1.000000e+00 : f32
    %1895 = vector.broadcast %cst_221 : f32 to vector<4x8xf32>
    %1896 = arith.subf %1895, %1894 : vector<4x8xf32>
    %1897 = arith.mulf %1889, %1896 : vector<4x8xf32>
    %1898 = vector.extract_strided_slice %1897 {offsets = [0, 1], sizes = [4, 1], strides = [1, 1]} : vector<4x8xf32> to vector<4x1xf32>
    %1899 = vector.extract_strided_slice %1888 {offsets = [0, 1, 0], sizes = [4, 1, 8], strides = [1, 1, 1]} : vector<4x8x8xf32> to vector<4x1x8xf32>
    %1900 = vector.shape_cast %1899 : vector<4x1x8xf32> to vector<4x8xf32>
    %1901 = vector.broadcast %1898 : vector<4x1xf32> to vector<4x8xf32>
    %1902 = arith.mulf %1901, %1900 : vector<4x8xf32>
    %cst_222 = arith.constant 1.000000e+00 : f32
    %1903 = vector.broadcast %cst_222 : f32 to vector<4x8xf32>
    %1904 = arith.subf %1903, %1902 : vector<4x8xf32>
    %1905 = arith.mulf %1897, %1904 : vector<4x8xf32>
    %1906 = vector.extract_strided_slice %1905 {offsets = [0, 2], sizes = [4, 1], strides = [1, 1]} : vector<4x8xf32> to vector<4x1xf32>
    %1907 = vector.extract_strided_slice %1888 {offsets = [0, 2, 0], sizes = [4, 1, 8], strides = [1, 1, 1]} : vector<4x8x8xf32> to vector<4x1x8xf32>
    %1908 = vector.shape_cast %1907 : vector<4x1x8xf32> to vector<4x8xf32>
    %1909 = vector.broadcast %1906 : vector<4x1xf32> to vector<4x8xf32>
    %1910 = arith.mulf %1909, %1908 : vector<4x8xf32>
    %cst_223 = arith.constant 1.000000e+00 : f32
    %1911 = vector.broadcast %cst_223 : f32 to vector<4x8xf32>
    %1912 = arith.subf %1911, %1910 : vector<4x8xf32>
    %1913 = arith.mulf %1905, %1912 : vector<4x8xf32>
    %1914 = vector.extract_strided_slice %1913 {offsets = [0, 3], sizes = [4, 1], strides = [1, 1]} : vector<4x8xf32> to vector<4x1xf32>
    %1915 = vector.extract_strided_slice %1888 {offsets = [0, 3, 0], sizes = [4, 1, 8], strides = [1, 1, 1]} : vector<4x8x8xf32> to vector<4x1x8xf32>
    %1916 = vector.shape_cast %1915 : vector<4x1x8xf32> to vector<4x8xf32>
    %1917 = vector.broadcast %1914 : vector<4x1xf32> to vector<4x8xf32>
    %1918 = arith.mulf %1917, %1916 : vector<4x8xf32>
    %cst_224 = arith.constant 1.000000e+00 : f32
    %1919 = vector.broadcast %cst_224 : f32 to vector<4x8xf32>
    %1920 = arith.subf %1919, %1918 : vector<4x8xf32>
    %1921 = arith.mulf %1913, %1920 : vector<4x8xf32>
    %1922 = vector.extract_strided_slice %1921 {offsets = [0, 4], sizes = [4, 1], strides = [1, 1]} : vector<4x8xf32> to vector<4x1xf32>
    %1923 = vector.extract_strided_slice %1888 {offsets = [0, 4, 0], sizes = [4, 1, 8], strides = [1, 1, 1]} : vector<4x8x8xf32> to vector<4x1x8xf32>
    %1924 = vector.shape_cast %1923 : vector<4x1x8xf32> to vector<4x8xf32>
    %1925 = vector.broadcast %1922 : vector<4x1xf32> to vector<4x8xf32>
    %1926 = arith.mulf %1925, %1924 : vector<4x8xf32>
    %cst_225 = arith.constant 1.000000e+00 : f32
    %1927 = vector.broadcast %cst_225 : f32 to vector<4x8xf32>
    %1928 = arith.subf %1927, %1926 : vector<4x8xf32>
    %1929 = arith.mulf %1921, %1928 : vector<4x8xf32>
    %1930 = vector.extract_strided_slice %1929 {offsets = [0, 5], sizes = [4, 1], strides = [1, 1]} : vector<4x8xf32> to vector<4x1xf32>
    %1931 = vector.extract_strided_slice %1888 {offsets = [0, 5, 0], sizes = [4, 1, 8], strides = [1, 1, 1]} : vector<4x8x8xf32> to vector<4x1x8xf32>
    %1932 = vector.shape_cast %1931 : vector<4x1x8xf32> to vector<4x8xf32>
    %1933 = vector.broadcast %1930 : vector<4x1xf32> to vector<4x8xf32>
    %1934 = arith.mulf %1933, %1932 : vector<4x8xf32>
    %cst_226 = arith.constant 1.000000e+00 : f32
    %1935 = vector.broadcast %cst_226 : f32 to vector<4x8xf32>
    %1936 = arith.subf %1935, %1934 : vector<4x8xf32>
    %1937 = arith.mulf %1929, %1936 : vector<4x8xf32>
    %1938 = vector.extract_strided_slice %1937 {offsets = [0, 6], sizes = [4, 1], strides = [1, 1]} : vector<4x8xf32> to vector<4x1xf32>
    %1939 = vector.extract_strided_slice %1888 {offsets = [0, 6, 0], sizes = [4, 1, 8], strides = [1, 1, 1]} : vector<4x8x8xf32> to vector<4x1x8xf32>
    %1940 = vector.shape_cast %1939 : vector<4x1x8xf32> to vector<4x8xf32>
    %1941 = vector.broadcast %1938 : vector<4x1xf32> to vector<4x8xf32>
    %1942 = arith.mulf %1941, %1940 : vector<4x8xf32>
    %cst_227 = arith.constant 1.000000e+00 : f32
    %1943 = vector.broadcast %cst_227 : f32 to vector<4x8xf32>
    %1944 = arith.subf %1943, %1942 : vector<4x8xf32>
    %1945 = arith.mulf %1937, %1944 : vector<4x8xf32>
    %1946 = vector.extract_strided_slice %1945 {offsets = [0, 7], sizes = [4, 1], strides = [1, 1]} : vector<4x8xf32> to vector<4x1xf32>
    %1947 = vector.extract_strided_slice %1888 {offsets = [0, 7, 0], sizes = [4, 1, 8], strides = [1, 1, 1]} : vector<4x8x8xf32> to vector<4x1x8xf32>
    %1948 = vector.shape_cast %1947 : vector<4x1x8xf32> to vector<4x8xf32>
    %1949 = vector.broadcast %1946 : vector<4x1xf32> to vector<4x8xf32>
    %1950 = arith.mulf %1949, %1948 : vector<4x8xf32>
    %cst_228 = arith.constant 1.000000e+00 : f32
    %1951 = vector.broadcast %cst_228 : f32 to vector<4x8xf32>
    %1952 = arith.subf %1951, %1950 : vector<4x8xf32>
    %1953 = arith.mulf %1945, %1952 : vector<4x8xf32>
    %1954 = vector.extract_strided_slice %1953 {offsets = [0, 0], sizes = [4, 1], strides = [1, 1]} : vector<4x8xf32> to vector<4x1xf32>
    %1955 = vector.extract_strided_slice %1887 {offsets = [0, 0, 0], sizes = [4, 1, 128], strides = [1, 1, 1]} : vector<4x8x128xf32> to vector<4x1x128xf32>
    %1956 = vector.shape_cast %1955 : vector<4x1x128xf32> to vector<4x128xf32>
    %1957 = vector.broadcast %1954 : vector<4x1xf32> to vector<4x128xf32>
    %1958 = arith.mulf %1957, %1956 : vector<4x128xf32>
    %1959 = vector.extract_strided_slice %1953 {offsets = [0, 1], sizes = [4, 1], strides = [1, 1]} : vector<4x8xf32> to vector<4x1xf32>
    %1960 = vector.extract_strided_slice %1887 {offsets = [0, 1, 0], sizes = [4, 1, 128], strides = [1, 1, 1]} : vector<4x8x128xf32> to vector<4x1x128xf32>
    %1961 = vector.shape_cast %1960 : vector<4x1x128xf32> to vector<4x128xf32>
    %1962 = vector.broadcast %1959 : vector<4x1xf32> to vector<4x128xf32>
    %1963 = arith.mulf %1962, %1961 : vector<4x128xf32>
    %1964 = vector.extract_strided_slice %1953 {offsets = [0, 2], sizes = [4, 1], strides = [1, 1]} : vector<4x8xf32> to vector<4x1xf32>
    %1965 = vector.extract_strided_slice %1887 {offsets = [0, 2, 0], sizes = [4, 1, 128], strides = [1, 1, 1]} : vector<4x8x128xf32> to vector<4x1x128xf32>
    %1966 = vector.shape_cast %1965 : vector<4x1x128xf32> to vector<4x128xf32>
    %1967 = vector.broadcast %1964 : vector<4x1xf32> to vector<4x128xf32>
    %1968 = arith.mulf %1967, %1966 : vector<4x128xf32>
    %1969 = vector.extract_strided_slice %1953 {offsets = [0, 3], sizes = [4, 1], strides = [1, 1]} : vector<4x8xf32> to vector<4x1xf32>
    %1970 = vector.extract_strided_slice %1887 {offsets = [0, 3, 0], sizes = [4, 1, 128], strides = [1, 1, 1]} : vector<4x8x128xf32> to vector<4x1x128xf32>
    %1971 = vector.shape_cast %1970 : vector<4x1x128xf32> to vector<4x128xf32>
    %1972 = vector.broadcast %1969 : vector<4x1xf32> to vector<4x128xf32>
    %1973 = arith.mulf %1972, %1971 : vector<4x128xf32>
    %1974 = vector.extract_strided_slice %1953 {offsets = [0, 4], sizes = [4, 1], strides = [1, 1]} : vector<4x8xf32> to vector<4x1xf32>
    %1975 = vector.extract_strided_slice %1887 {offsets = [0, 4, 0], sizes = [4, 1, 128], strides = [1, 1, 1]} : vector<4x8x128xf32> to vector<4x1x128xf32>
    %1976 = vector.shape_cast %1975 : vector<4x1x128xf32> to vector<4x128xf32>
    %1977 = vector.broadcast %1974 : vector<4x1xf32> to vector<4x128xf32>
    %1978 = arith.mulf %1977, %1976 : vector<4x128xf32>
    %1979 = vector.extract_strided_slice %1953 {offsets = [0, 5], sizes = [4, 1], strides = [1, 1]} : vector<4x8xf32> to vector<4x1xf32>
    %1980 = vector.extract_strided_slice %1887 {offsets = [0, 5, 0], sizes = [4, 1, 128], strides = [1, 1, 1]} : vector<4x8x128xf32> to vector<4x1x128xf32>
    %1981 = vector.shape_cast %1980 : vector<4x1x128xf32> to vector<4x128xf32>
    %1982 = vector.broadcast %1979 : vector<4x1xf32> to vector<4x128xf32>
    %1983 = arith.mulf %1982, %1981 : vector<4x128xf32>
    %1984 = vector.extract_strided_slice %1953 {offsets = [0, 6], sizes = [4, 1], strides = [1, 1]} : vector<4x8xf32> to vector<4x1xf32>
    %1985 = vector.extract_strided_slice %1887 {offsets = [0, 6, 0], sizes = [4, 1, 128], strides = [1, 1, 1]} : vector<4x8x128xf32> to vector<4x1x128xf32>
    %1986 = vector.shape_cast %1985 : vector<4x1x128xf32> to vector<4x128xf32>
    %1987 = vector.broadcast %1984 : vector<4x1xf32> to vector<4x128xf32>
    %1988 = arith.mulf %1987, %1986 : vector<4x128xf32>
    %1989 = vector.extract_strided_slice %1953 {offsets = [0, 7], sizes = [4, 1], strides = [1, 1]} : vector<4x8xf32> to vector<4x1xf32>
    %1990 = vector.extract_strided_slice %1887 {offsets = [0, 7, 0], sizes = [4, 1, 128], strides = [1, 1, 1]} : vector<4x8x128xf32> to vector<4x1x128xf32>
    %1991 = vector.shape_cast %1990 : vector<4x1x128xf32> to vector<4x128xf32>
    %1992 = vector.broadcast %1989 : vector<4x1xf32> to vector<4x128xf32>
    %1993 = arith.mulf %1992, %1991 : vector<4x128xf32>
    %1994 = arith.maximumf %1958, %1963 : vector<4x128xf32>
    %1995 = arith.maximumf %1968, %1973 : vector<4x128xf32>
    %1996 = arith.maximumf %1978, %1983 : vector<4x128xf32>
    %1997 = arith.maximumf %1988, %1993 : vector<4x128xf32>
    %1998 = arith.maximumf %1994, %1995 : vector<4x128xf32>
    %1999 = arith.maximumf %1996, %1997 : vector<4x128xf32>
    %2000 = arith.maximumf %1998, %1999 : vector<4x128xf32>
    %cst_229 = arith.constant 1.000000e+00 : f32
    %2001 = vector.broadcast %cst_229 : f32 to vector<4x128xf32>
    %2002 = arith.subf %2001, %2000 : vector<4x128xf32>
    %2003 = arith.mulf %1886, %2002 : vector<4x128xf32>
    %c0_230 = arith.constant 0 : index
    %c120 = arith.constant 120 : index
    %c0_231 = arith.constant 0 : index
    %2004 = vector.load %arg5[%c0_230, %c120, %c0_231] : memref<4x128x128xf32, #tpu.memory_space<vmem>>, vector<4x8x128xf32>
    %2005 = vector.extract_strided_slice %2004 {offsets = [0, 0, 120], sizes = [4, 8, 8], strides = [1, 1, 1]} : vector<4x8x128xf32> to vector<4x8x8xf32>
    %2006 = vector.extract_strided_slice %2003 {offsets = [0, 120], sizes = [4, 8], strides = [1, 1]} : vector<4x128xf32> to vector<4x8xf32>
    %2007 = vector.extract_strided_slice %2006 {offsets = [0, 0], sizes = [4, 1], strides = [1, 1]} : vector<4x8xf32> to vector<4x1xf32>
    %2008 = vector.extract_strided_slice %2005 {offsets = [0, 0, 0], sizes = [4, 1, 8], strides = [1, 1, 1]} : vector<4x8x8xf32> to vector<4x1x8xf32>
    %2009 = vector.shape_cast %2008 : vector<4x1x8xf32> to vector<4x8xf32>
    %2010 = vector.broadcast %2007 : vector<4x1xf32> to vector<4x8xf32>
    %2011 = arith.mulf %2010, %2009 : vector<4x8xf32>
    %cst_232 = arith.constant 1.000000e+00 : f32
    %2012 = vector.broadcast %cst_232 : f32 to vector<4x8xf32>
    %2013 = arith.subf %2012, %2011 : vector<4x8xf32>
    %2014 = arith.mulf %2006, %2013 : vector<4x8xf32>
    %2015 = vector.extract_strided_slice %2014 {offsets = [0, 1], sizes = [4, 1], strides = [1, 1]} : vector<4x8xf32> to vector<4x1xf32>
    %2016 = vector.extract_strided_slice %2005 {offsets = [0, 1, 0], sizes = [4, 1, 8], strides = [1, 1, 1]} : vector<4x8x8xf32> to vector<4x1x8xf32>
    %2017 = vector.shape_cast %2016 : vector<4x1x8xf32> to vector<4x8xf32>
    %2018 = vector.broadcast %2015 : vector<4x1xf32> to vector<4x8xf32>
    %2019 = arith.mulf %2018, %2017 : vector<4x8xf32>
    %cst_233 = arith.constant 1.000000e+00 : f32
    %2020 = vector.broadcast %cst_233 : f32 to vector<4x8xf32>
    %2021 = arith.subf %2020, %2019 : vector<4x8xf32>
    %2022 = arith.mulf %2014, %2021 : vector<4x8xf32>
    %2023 = vector.extract_strided_slice %2022 {offsets = [0, 2], sizes = [4, 1], strides = [1, 1]} : vector<4x8xf32> to vector<4x1xf32>
    %2024 = vector.extract_strided_slice %2005 {offsets = [0, 2, 0], sizes = [4, 1, 8], strides = [1, 1, 1]} : vector<4x8x8xf32> to vector<4x1x8xf32>
    %2025 = vector.shape_cast %2024 : vector<4x1x8xf32> to vector<4x8xf32>
    %2026 = vector.broadcast %2023 : vector<4x1xf32> to vector<4x8xf32>
    %2027 = arith.mulf %2026, %2025 : vector<4x8xf32>
    %cst_234 = arith.constant 1.000000e+00 : f32
    %2028 = vector.broadcast %cst_234 : f32 to vector<4x8xf32>
    %2029 = arith.subf %2028, %2027 : vector<4x8xf32>
    %2030 = arith.mulf %2022, %2029 : vector<4x8xf32>
    %2031 = vector.extract_strided_slice %2030 {offsets = [0, 3], sizes = [4, 1], strides = [1, 1]} : vector<4x8xf32> to vector<4x1xf32>
    %2032 = vector.extract_strided_slice %2005 {offsets = [0, 3, 0], sizes = [4, 1, 8], strides = [1, 1, 1]} : vector<4x8x8xf32> to vector<4x1x8xf32>
    %2033 = vector.shape_cast %2032 : vector<4x1x8xf32> to vector<4x8xf32>
    %2034 = vector.broadcast %2031 : vector<4x1xf32> to vector<4x8xf32>
    %2035 = arith.mulf %2034, %2033 : vector<4x8xf32>
    %cst_235 = arith.constant 1.000000e+00 : f32
    %2036 = vector.broadcast %cst_235 : f32 to vector<4x8xf32>
    %2037 = arith.subf %2036, %2035 : vector<4x8xf32>
    %2038 = arith.mulf %2030, %2037 : vector<4x8xf32>
    %2039 = vector.extract_strided_slice %2038 {offsets = [0, 4], sizes = [4, 1], strides = [1, 1]} : vector<4x8xf32> to vector<4x1xf32>
    %2040 = vector.extract_strided_slice %2005 {offsets = [0, 4, 0], sizes = [4, 1, 8], strides = [1, 1, 1]} : vector<4x8x8xf32> to vector<4x1x8xf32>
    %2041 = vector.shape_cast %2040 : vector<4x1x8xf32> to vector<4x8xf32>
    %2042 = vector.broadcast %2039 : vector<4x1xf32> to vector<4x8xf32>
    %2043 = arith.mulf %2042, %2041 : vector<4x8xf32>
    %cst_236 = arith.constant 1.000000e+00 : f32
    %2044 = vector.broadcast %cst_236 : f32 to vector<4x8xf32>
    %2045 = arith.subf %2044, %2043 : vector<4x8xf32>
    %2046 = arith.mulf %2038, %2045 : vector<4x8xf32>
    %2047 = vector.extract_strided_slice %2046 {offsets = [0, 5], sizes = [4, 1], strides = [1, 1]} : vector<4x8xf32> to vector<4x1xf32>
    %2048 = vector.extract_strided_slice %2005 {offsets = [0, 5, 0], sizes = [4, 1, 8], strides = [1, 1, 1]} : vector<4x8x8xf32> to vector<4x1x8xf32>
    %2049 = vector.shape_cast %2048 : vector<4x1x8xf32> to vector<4x8xf32>
    %2050 = vector.broadcast %2047 : vector<4x1xf32> to vector<4x8xf32>
    %2051 = arith.mulf %2050, %2049 : vector<4x8xf32>
    %cst_237 = arith.constant 1.000000e+00 : f32
    %2052 = vector.broadcast %cst_237 : f32 to vector<4x8xf32>
    %2053 = arith.subf %2052, %2051 : vector<4x8xf32>
    %2054 = arith.mulf %2046, %2053 : vector<4x8xf32>
    %2055 = vector.extract_strided_slice %2054 {offsets = [0, 6], sizes = [4, 1], strides = [1, 1]} : vector<4x8xf32> to vector<4x1xf32>
    %2056 = vector.extract_strided_slice %2005 {offsets = [0, 6, 0], sizes = [4, 1, 8], strides = [1, 1, 1]} : vector<4x8x8xf32> to vector<4x1x8xf32>
    %2057 = vector.shape_cast %2056 : vector<4x1x8xf32> to vector<4x8xf32>
    %2058 = vector.broadcast %2055 : vector<4x1xf32> to vector<4x8xf32>
    %2059 = arith.mulf %2058, %2057 : vector<4x8xf32>
    %cst_238 = arith.constant 1.000000e+00 : f32
    %2060 = vector.broadcast %cst_238 : f32 to vector<4x8xf32>
    %2061 = arith.subf %2060, %2059 : vector<4x8xf32>
    %2062 = arith.mulf %2054, %2061 : vector<4x8xf32>
    %2063 = vector.extract_strided_slice %2062 {offsets = [0, 7], sizes = [4, 1], strides = [1, 1]} : vector<4x8xf32> to vector<4x1xf32>
    %2064 = vector.extract_strided_slice %2005 {offsets = [0, 7, 0], sizes = [4, 1, 8], strides = [1, 1, 1]} : vector<4x8x8xf32> to vector<4x1x8xf32>
    %2065 = vector.shape_cast %2064 : vector<4x1x8xf32> to vector<4x8xf32>
    %2066 = vector.broadcast %2063 : vector<4x1xf32> to vector<4x8xf32>
    %2067 = arith.mulf %2066, %2065 : vector<4x8xf32>
    %cst_239 = arith.constant 1.000000e+00 : f32
    %2068 = vector.broadcast %cst_239 : f32 to vector<4x8xf32>
    %2069 = arith.subf %2068, %2067 : vector<4x8xf32>
    %2070 = arith.mulf %2062, %2069 : vector<4x8xf32>
    %2071 = vector.extract_strided_slice %2070 {offsets = [0, 0], sizes = [4, 1], strides = [1, 1]} : vector<4x8xf32> to vector<4x1xf32>
    %2072 = vector.extract_strided_slice %2004 {offsets = [0, 0, 0], sizes = [4, 1, 128], strides = [1, 1, 1]} : vector<4x8x128xf32> to vector<4x1x128xf32>
    %2073 = vector.shape_cast %2072 : vector<4x1x128xf32> to vector<4x128xf32>
    %2074 = vector.broadcast %2071 : vector<4x1xf32> to vector<4x128xf32>
    %2075 = arith.mulf %2074, %2073 : vector<4x128xf32>
    %2076 = vector.extract_strided_slice %2070 {offsets = [0, 1], sizes = [4, 1], strides = [1, 1]} : vector<4x8xf32> to vector<4x1xf32>
    %2077 = vector.extract_strided_slice %2004 {offsets = [0, 1, 0], sizes = [4, 1, 128], strides = [1, 1, 1]} : vector<4x8x128xf32> to vector<4x1x128xf32>
    %2078 = vector.shape_cast %2077 : vector<4x1x128xf32> to vector<4x128xf32>
    %2079 = vector.broadcast %2076 : vector<4x1xf32> to vector<4x128xf32>
    %2080 = arith.mulf %2079, %2078 : vector<4x128xf32>
    %2081 = vector.extract_strided_slice %2070 {offsets = [0, 2], sizes = [4, 1], strides = [1, 1]} : vector<4x8xf32> to vector<4x1xf32>
    %2082 = vector.extract_strided_slice %2004 {offsets = [0, 2, 0], sizes = [4, 1, 128], strides = [1, 1, 1]} : vector<4x8x128xf32> to vector<4x1x128xf32>
    %2083 = vector.shape_cast %2082 : vector<4x1x128xf32> to vector<4x128xf32>
    %2084 = vector.broadcast %2081 : vector<4x1xf32> to vector<4x128xf32>
    %2085 = arith.mulf %2084, %2083 : vector<4x128xf32>
    %2086 = vector.extract_strided_slice %2070 {offsets = [0, 3], sizes = [4, 1], strides = [1, 1]} : vector<4x8xf32> to vector<4x1xf32>
    %2087 = vector.extract_strided_slice %2004 {offsets = [0, 3, 0], sizes = [4, 1, 128], strides = [1, 1, 1]} : vector<4x8x128xf32> to vector<4x1x128xf32>
    %2088 = vector.shape_cast %2087 : vector<4x1x128xf32> to vector<4x128xf32>
    %2089 = vector.broadcast %2086 : vector<4x1xf32> to vector<4x128xf32>
    %2090 = arith.mulf %2089, %2088 : vector<4x128xf32>
    %2091 = vector.extract_strided_slice %2070 {offsets = [0, 4], sizes = [4, 1], strides = [1, 1]} : vector<4x8xf32> to vector<4x1xf32>
    %2092 = vector.extract_strided_slice %2004 {offsets = [0, 4, 0], sizes = [4, 1, 128], strides = [1, 1, 1]} : vector<4x8x128xf32> to vector<4x1x128xf32>
    %2093 = vector.shape_cast %2092 : vector<4x1x128xf32> to vector<4x128xf32>
    %2094 = vector.broadcast %2091 : vector<4x1xf32> to vector<4x128xf32>
    %2095 = arith.mulf %2094, %2093 : vector<4x128xf32>
    %2096 = vector.extract_strided_slice %2070 {offsets = [0, 5], sizes = [4, 1], strides = [1, 1]} : vector<4x8xf32> to vector<4x1xf32>
    %2097 = vector.extract_strided_slice %2004 {offsets = [0, 5, 0], sizes = [4, 1, 128], strides = [1, 1, 1]} : vector<4x8x128xf32> to vector<4x1x128xf32>
    %2098 = vector.shape_cast %2097 : vector<4x1x128xf32> to vector<4x128xf32>
    %2099 = vector.broadcast %2096 : vector<4x1xf32> to vector<4x128xf32>
    %2100 = arith.mulf %2099, %2098 : vector<4x128xf32>
    %2101 = vector.extract_strided_slice %2070 {offsets = [0, 6], sizes = [4, 1], strides = [1, 1]} : vector<4x8xf32> to vector<4x1xf32>
    %2102 = vector.extract_strided_slice %2004 {offsets = [0, 6, 0], sizes = [4, 1, 128], strides = [1, 1, 1]} : vector<4x8x128xf32> to vector<4x1x128xf32>
    %2103 = vector.shape_cast %2102 : vector<4x1x128xf32> to vector<4x128xf32>
    %2104 = vector.broadcast %2101 : vector<4x1xf32> to vector<4x128xf32>
    %2105 = arith.mulf %2104, %2103 : vector<4x128xf32>
    %2106 = vector.extract_strided_slice %2070 {offsets = [0, 7], sizes = [4, 1], strides = [1, 1]} : vector<4x8xf32> to vector<4x1xf32>
    %2107 = vector.extract_strided_slice %2004 {offsets = [0, 7, 0], sizes = [4, 1, 128], strides = [1, 1, 1]} : vector<4x8x128xf32> to vector<4x1x128xf32>
    %2108 = vector.shape_cast %2107 : vector<4x1x128xf32> to vector<4x128xf32>
    %2109 = vector.broadcast %2106 : vector<4x1xf32> to vector<4x128xf32>
    %2110 = arith.mulf %2109, %2108 : vector<4x128xf32>
    %2111 = arith.maximumf %2075, %2080 : vector<4x128xf32>
    %2112 = arith.maximumf %2085, %2090 : vector<4x128xf32>
    %2113 = arith.maximumf %2095, %2100 : vector<4x128xf32>
    %2114 = arith.maximumf %2105, %2110 : vector<4x128xf32>
    %2115 = arith.maximumf %2111, %2112 : vector<4x128xf32>
    %2116 = arith.maximumf %2113, %2114 : vector<4x128xf32>
    %2117 = arith.maximumf %2115, %2116 : vector<4x128xf32>
    %cst_240 = arith.constant 1.000000e+00 : f32
    %2118 = vector.broadcast %cst_240 : f32 to vector<4x128xf32>
    %2119 = arith.subf %2118, %2117 : vector<4x128xf32>
    %2120 = arith.mulf %2003, %2119 : vector<4x128xf32>
    %c0_241 = arith.constant 0 : index
    %c0_242 = arith.constant 0 : index
    %c0_243 = arith.constant 0 : index
    %2121 = vector.load %arg4[%c0_241, %c0_242, %c0_243] : memref<1x4x128xf32, #tpu.memory_space<vmem>>, vector<1x4x128xf32>
    %2122 = vector.shape_cast %2121 : vector<1x4x128xf32> to vector<4x128xf32>
    %2123 = vector.shape_cast %2120 : vector<4x128xf32> to vector<1x4x128xf32>
    tpu.vector_store %arg4[%c0_241, %c0_242, %c0_243], %2123 {strides = array<i32>} : memref<1x4x128xf32, #tpu.memory_space<vmem>>, vector<1x4x128xf32>,
    return
  }
  func.func @transform_0(%arg0: i32) -> (i32, i32, i32) {
    %c0_i32 = arith.constant 0 : i32
    %c0_i32_0 = arith.constant 0 : i32
    %c0_i32_1 = arith.constant 0 : i32
    return %arg0, %c0_i32, %c0_i32_0 : i32, i32, i32
  }
  func.func @transform_1(%arg0: i32) -> (i32, i32, i32) {
    %c0_i32 = arith.constant 0 : i32
    %c0_i32_0 = arith.constant 0 : i32
    %c0_i32_1 = arith.constant 0 : i32
    return %arg0, %c0_i32, %c0_i32_0 : i32, i32, i32
  }
  func.func @transform_2(%arg0: i32) -> (i32, i32, i32) {
    %c0_i32 = arith.constant 0 : i32
    %c0_i32_0 = arith.constant 0 : i32
    %c0_i32_1 = arith.constant 0 : i32
    return %arg0, %c0_i32, %c0_i32_0 : i32, i32, i32
  }
  func.func @transform_3(%arg0: i32) -> (i32, i32, i32) {
    %c0_i32 = arith.constant 0 : i32
    %c0_i32_0 = arith.constant 0 : i32
    %c0_i32_1 = arith.constant 0 : i32
    return %arg0, %c0_i32, %c0_i32_0 : i32, i32, i32
  }
}

</mosaic_0001>

<llo_original>
// kernel: run.2
$region0: #{run.2}
  #allocation0 [shape = 'u32[]', space=smem, size = 0x4, offset = 0x4, fixed_abs, tag = 'smem constant byte address 0x4 - core index']
  #allocation1 [shape = 'u32[144,128]{1,0:T(1,128)}', space=vmem, size = 0x12000, scoped, tag = 'internal scratch']
  %s0 = inlined_call_operand.vmem [shape: f32[2,2], index: 0, kind: input, shape index: {}]
  %s1 = inlined_call_operand.vmem [shape: f32[2,4,128], index: 1, kind: input, shape index: {}]
  %s2 = inlined_call_operand.vmem [shape: f32[2,16,128], index: 2, kind: input, shape index: {}]
  %s3 = inlined_call_operand.hbm [shape: f32[2,16,128], index: 3, kind: output, shape index: {}]
  %s4 = sld [smem:[#allocation0]]
  $region49: #{run.2} parent=0
    _
  %s6 = ssub.s32 1, %s4
  %s7 = scalar_select 0, %s6, %s4
  $region1: #{run.2} parent=0
    #allocation2 [shape = 'u8[1024]{0}', space=smem, size = 0x400, scoped, tag = 'input window, operand 0, single buffered']
    #allocation3 [shape = 's32[2]{0}', space=sflag, size = 0x8, scoped, tag = 'scoped memory for run.2']
    #allocation4 [shape = 's32[2]{0}', space=sflag, size = 0x8, scoped, tag = 'scoped memory for run.2']
    #allocation5 [shape = 'u8[16384]{0}', space=vmem, size = 0x4000, scoped, tag = 'output window, operand 0']
    %8 = vsyncpa [#allocation4], 0
    %9 = vsyncpa [#allocation3], 0
    %s10 = scalar_lea.sflag [#allocation3], 1
    %11 = vsyncpa %s10, 0
    loop: start=0, step=1, limit=4
    $region2: #{run.2} parent=1 // loop_pre_header
      _
    $region3: #{run.2} parent=1 // loop_header
      %s13 = sphi 0, %s17
      %p14 = scmp.ge.s32.totalorder %s13, 4
      %s21 = sphi 0, %s21
      %s23 = sphi 0, %s21
      %s24 = sphi 0, %s23
      %s38 = sphi 0, %s24
      %s44 = sphi 0, %s46
      %s47 = sphi 0, %s44
      %s48 = sphi 0, %s47
      %s64 = sphi 0, %s48
      %s70 = sphi 0, %s72
      %s73 = sphi 0, %s70
      %s74 = sphi 0, %s73
      %s90 = sphi 0, %s74
      %s96 = sphi 0, %s98
      %s99 = sphi 0, %s96
      %s100 = sphi 0, %s99
      %s116 = sphi 0, %s100
    $region4: #{run.2} parent=1 // loop_header_branch
      %16 = sbr.rel (%p14) target = $region8
    $region5: #{run.2} parent=1 // loop_body
      %s18 = ssub.s32 %s13, 1
      %s19 = ssub.s32 %s13, 2
      %s20 = sadd.s32 %s13, 1
      %s22 = sadd.s32 %s21, 1
      %p25 = scmp.eq.s32.totalorder %s13, 1
      %p26 = scmp.ne.s32.totalorder %s21, %s23
      %p27 = scmp.eq.s32.totalorder %s13, 0
      %p28 = por %p26, %p27
      %p29 = scmp.ne.s32.totalorder %s21, %s23
      %p30 = scmp.eq.s32.totalorder %s18, 1
      %p31 = por %p29, %p30
      %p32 = scmp.ne.s32.totalorder %s23, %s24
      %p33 = scmp.eq.s32.totalorder %s18, 0
      %p34 = por %p32, %p33
      %p35 = scmp.ne.s32.totalorder %s23, %s24
      %p36 = scmp.eq.s32.totalorder %s19, 1
      %p37 = por %p35, %p36
      %p39 = scmp.ne.s32.totalorder %s24, %s38
      %p40 = scmp.eq.s32.totalorder %s19, 0
      %p41 = por %p39, %p40
      %s42 = ssub.s32 %s13, %s20
      %p43 = scmp.eq.s32.totalorder %s42, 0
      %s45 = sadd.s32 %s44, 1
      %s46 = scalar_select %p43, %s44, %s45
      %p49 = pneg %p43
      %p50 = scmp.eq.s32.totalorder %s13, 1
      %p51 = por %p49, %p50
      %p52 = scmp.ne.s32.totalorder %s44, %s47
      %p53 = scmp.eq.s32.totalorder %s13, 0
      %p54 = por %p52, %p53
      %p55 = scmp.ne.s32.totalorder %s44, %s47
      %p56 = scmp.eq.s32.totalorder %s18, 1
      %p57 = por %p55, %p56
      %p58 = scmp.ne.s32.totalorder %s47, %s48
      %p59 = scmp.eq.s32.totalorder %s18, 0
      %p60 = por %p58, %p59
      %p61 = scmp.ne.s32.totalorder %s47, %s48
      %p62 = scmp.eq.s32.totalorder %s19, 1
      %p63 = por %p61, %p62
      %p65 = scmp.ne.s32.totalorder %s48, %s64
      %p66 = scmp.eq.s32.totalorder %s19, 0
      %p67 = por %p65, %p66
      %s68 = ssub.s32 %s13, %s20
      %p69 = scmp.eq.s32.totalorder %s68, 0
      %s71 = sadd.s32 %s70, 1
      %s72 = scalar_select %p69, %s70, %s71
      %p75 = pneg %p69
      %p76 = scmp.eq.s32.totalorder %s13, 1
      %p77 = por %p75, %p76
      %p78 = scmp.ne.s32.totalorder %s70, %s73
      %p79 = scmp.eq.s32.totalorder %s13, 0
      %p80 = por %p78, %p79
      %p81 = scmp.ne.s32.totalorder %s70, %s73
      %p82 = scmp.eq.s32.totalorder %s18, 1
      %p83 = por %p81, %p82
      %p84 = scmp.ne.s32.totalorder %s73, %s74
      %p85 = scmp.eq.s32.totalorder %s18, 0
      %p86 = por %p84, %p85
      %p87 = scmp.ne.s32.totalorder %s73, %s74
      %p88 = scmp.eq.s32.totalorder %s19, 1
      %p89 = por %p87, %p88
      %p91 = scmp.ne.s32.totalorder %s74, %s90
      %p92 = scmp.eq.s32.totalorder %s19, 0
      %p93 = por %p91, %p92
      %s94 = ssub.s32 %s13, %s20
      %p95 = scmp.eq.s32.totalorder %s94, 0
      %s97 = sadd.s32 %s96, 1
      %s98 = scalar_select %p95, %s96, %s97
      %p101 = pneg %p95
      %p102 = scmp.eq.s32.totalorder %s13, 1
      %p103 = por %p101, %p102
      %p104 = scmp.ne.s32.totalorder %s96, %s99
      %p105 = scmp.eq.s32.totalorder %s13, 0
      %p106 = por %p104, %p105
      %p107 = scmp.ne.s32.totalorder %s96, %s99
      %p108 = scmp.eq.s32.totalorder %s18, 1
      %p109 = por %p107, %p108
      %p110 = scmp.ne.s32.totalorder %s99, %s100
      %p111 = scmp.eq.s32.totalorder %s18, 0
      %p112 = por %p110, %p111
      %p113 = scmp.ne.s32.totalorder %s99, %s100
      %p114 = scmp.eq.s32.totalorder %s19, 1
      %p115 = por %p113, %p114
      %p117 = scmp.ne.s32.totalorder %s100, %s116
      %p118 = scmp.eq.s32.totalorder %s19, 0
      %p119 = por %p117, %p118
      %p120 = scmp.le.s32.totalorder 1, %s13
      %p121 = scmp.lt.s32.totalorder %s13, 3
      %p122 = pnand %p120, %p121
      %p123 = pneg %p122
      // Predicated region
      $region9: #{run.2} parent=5 // pred_check
        _
      $region10: #{run.2} parent=5 // pred_check_branch
        %125 = sbr.rel (%p122) target = $region12
      $region11: #{run.2} parent=5 // pred_region
        %s126 = ssub.s32 %s13, 1
        // Predicated region
        $region13: #{run.2} parent=11 // pred_check
          %p127 = pneg %p34
        $region14: #{run.2} parent=11 // pred_check_branch
          %129 = sbr.rel (%p127) target = $region16
        $region15: #{run.2} parent=11 // pred_region
          %s131 = ssub.s32 32, 32
          %132 = vsyncadd [#allocation4], %s131
          %s134 = sshll.u32 %s0, 4
          %s135 = int_to_ptr.vmem [resolvable:$true] %s134
          %137 = dma.vmem_to_smem %s135, 32, [#allocation2], [#allocation4]
        $region16: #{run.2} parent=11 // pred_fallthru
          _
      $region12: #{run.2} parent=5 // pred_fallthru
        _
      %p138 = scmp.lt.s32.totalorder %s13, 2
      // Predicated region
      $region17: #{run.2} parent=5 // pred_check
        %p139 = pneg %p138
      $region18: #{run.2} parent=5 // pred_check_branch
        %141 = sbr.rel (%p139) target = $region20
      $region19: #{run.2} parent=5 // pred_region
        // Predicated region
        $region21: #{run.2} parent=19 // pred_check
          %p142 = pneg %p54
        $region22: #{run.2} parent=19 // pred_check_branch
          %144 = sbr.rel (%p142) target = $region24
        $region23: #{run.2} parent=19 // pred_region
          %p145 = scmp.lt.s32.totalorder %s13, 1
          %s146 = scalar_select %p145, %s13, 1
          %s147 = smul.addr %s146, 4
          %s148 = scalar_lea.vmem %s1, %s147
        $region24: #{run.2} parent=19 // pred_fallthru
          _
        // Predicated region
        $region25: #{run.2} parent=19 // pred_check
          %p149 = pneg %p80
        $region26: #{run.2} parent=19 // pred_check_branch
          %151 = sbr.rel (%p149) target = $region28
        $region27: #{run.2} parent=19 // pred_region
          %p152 = scmp.lt.s32.totalorder %s13, 1
          %s153 = scalar_select %p152, %s13, 1
          %s154 = smul.addr %s153, 2
          %s155 = smul.addr %s154, 8
          %s156 = scalar_lea.vmem %s2, %s155
        $region28: #{run.2} parent=19 // pred_fallthru
          _
      $region20: #{run.2} parent=5 // pred_fallthru
        _
      %p157 = scmp.le.s32.totalorder 1, %s13
      %p158 = scmp.lt.s32.totalorder %s13, 3
      %p159 = pnand %p157, %p158
      %p160 = pneg %p159
      // Predicated region
      $region29: #{run.2} parent=5 // pred_check
        _
      $region30: #{run.2} parent=5 // pred_check_branch
        %162 = sbr.rel (%p159) target = $region32
      $region31: #{run.2} parent=5 // pred_region
        %s163 = ssub.s32 %s13, 1
        // Predicated region
        $region33: #{run.2} parent=31 // pred_check
          %p164 = pneg %p34
        $region34: #{run.2} parent=31 // pred_check_branch
          %166 = sbr.rel (%p164) target = $region36
        $region35: #{run.2} parent=31 // pred_region
          %167 = dma.done [#allocation4], 32
        $region36: #{run.2} parent=31 // pred_fallthru
          _
        %168 = sfence
        %p169 = pneg %p34
        %p170 = pneg %p31
        %p171 = scmp.lt.s32.totalorder %s18, 1
        %s172 = scalar_select %p171, %s18, 1
        %s173 = smul.addr %s172, 4
        %s174 = scalar_lea.vmem %s1, %s173
        %p175 = pneg %p60
        %p176 = pneg %p57
        %p177 = scmp.lt.s32.totalorder %s18, 1
        %s178 = scalar_select %p177, %s18, 1
        %s179 = smul.addr %s178, 2
        %s180 = smul.addr %s179, 8
        %s181 = scalar_lea.vmem %s2, %s180
        %p182 = pneg %p86
        %p183 = pneg %p83
        %p184 = pneg %p112
        %p185 = pneg %p109
        %s186 = sand.u32 %s99, 1
        %s187 = scalar_lea.sflag [#allocation3], %s186
        %s188 = sand.u32 %s99, 1
        %s189 = smul.addr %s188, 16
        %s190 = scalar_lea.vmem [#allocation5], %s189
        %p191 = scmp.lt.s32.totalorder %s18, 1
        %s192 = scalar_select %p191, %s18, 1
        %s193 = smul.addr %s192, 4
        %s194 = scalar_lea.vmem %s1, %s193
        %p195 = scmp.lt.s32.totalorder %s18, 1
        %s196 = scalar_select %p195, %s18, 1
        %s197 = smul.addr %s196, 2
        %s198 = smul.addr %s197, 8
        %s199 = scalar_lea.vmem %s2, %s198
        %s200 = smul.u32 %s18, 128
        %s201 = sld [smem:[#allocation2 + %s200]]
        %s202 = sadd.s32 %s200, 1
        %s203 = sld [smem:[#allocation2 + %s202]]
        %v204 = vld [vmem:[%s194] sm:$0x1]
        %v205 = vld [vmem:[%s194 + $0x1] sm:$0x1]
        %v206 = vld [vmem:[%s194 + $0x2] sm:$0x1]
        %v207 = vld [vmem:[%s194 + $0x3] sm:$0x1]
        %v208 = vsub.f32 %v206, %v204
        %v209 = vadd.f32 %v208, 1.0
        %v210 = vsub.f32 %v207, %v205
        %v211 = vadd.f32 %v210, 1.0
        %v212 = vmul.f32 %v209, 0.5
        %v213 = vadd.f32 %v204, %v212
        %v214 = vmul.f32 %v211, 0.5
        %v215 = vadd.f32 %v205, %v214
        %v216 = vld [vmem:[%s199] sm:$0xff]
        %v217 = vld [vmem:[%s199 + $0x8] sm:$0xff]
        %v218 = vrcp.pop 10.0
        %v219 = vmul.f32 %v216, %v218
        %v220 = vrcp.pop 5.0
        %v221 = vmul.f32 %v217, %v220
        %v222 = vmin.f32 %v221, 4.1351666
        %v223 = vlaneseq
        %v224 = vshrl.u32 %v223, 7
        %v225 = vsub.s32 0, %v224
        %v226 = vrot.slane %v209, %v225
        %v227 = vmul.f32 %v219, %v226
        %v228 = vlaneseq
        %v229 = vshrl.u32 %v228, 7
        %v230 = vsub.s32 0, %v229
        %v231 = vrot.slane %v213, %v230
        %v232 = vadd.f32 %v227, %v231
        %v233 = vlaneseq
        %v234 = vshrl.u32 %v233, 7
        %v235 = vsub.s32 0, %v234
        %v236 = vrot.slane %v211, %v235
        %v237 = vmul.f32 %v219, %v236
        %v238 = vlaneseq
        %v239 = vshrl.u32 %v238, 7
        %v240 = vsub.s32 0, %v239
        %v241 = vrot.slane %v215, %v240
        %v242 = vadd.f32 %v237, %v241
        %v243 = vmul.f32 %v222, 1.442695
        %v244 = vpow.pop %v243
        %v245 = vmul.f32 %v244, %v226
        %v246 = vmul.f32 %v244, %v236
        %v247 = vmul.f32 %v245, 0.5
        %v248 = vsub.f32 %v232, %v247
        %s249 = ssub.f32 %s203, 1.0
        %v250 = vmax.f32 %v248, 0.0
        %v251 = vstv %s249
        %v252 = vmin.f32 %v251, %v250
        %v253 = vmul.f32 %v246, 0.5
        %v254 = vsub.f32 %v242, %v253
        %s255 = ssub.f32 %s201, 1.0
        %v256 = vmax.f32 %v254, 0.0
        %v257 = vstv %s255
        %v258 = vmin.f32 %v257, %v256
        %v259 = vadd.f32 %v232, %v247
        %v260 = vsub.f32 %v259, 1.0
        %v261 = vmax.f32 %v260, 0.0
        %v262 = vmin.f32 %v251, %v261
        %v263 = vadd.f32 %v242, %v253
        %v264 = vsub.f32 %v263, 1.0
        %v265 = vmax.f32 %v264, 0.0
        %v266 = vmin.f32 %v257, %v265
        %267 = vst [vmem:[%s190] sm:$0xf] %v252
        %268 = vst [vmem:[%s190] sm:$0xf0] %v258
        %269 = vst [vmem:[%s190 + $0x8] sm:$0xf] %v262
        %270 = vst [vmem:[%s190 + $0x8] sm:$0xf0] %v266
        %s271 = sand.u32 %s99, 1
        %s272 = scalar_lea.sflag [#allocation3], %s271
        %s273 = sand.u32 %s99, 1
        %s274 = smul.addr %s273, 16
        %s275 = scalar_lea.vmem [#allocation5], %s274
        // Predicated region
        $region37: #{run.2} parent=31 // pred_check
          %p276 = pneg %p109
        $region38: #{run.2} parent=31 // pred_check_branch
          %278 = sbr.rel (%p276) target = $region40
        $region39: #{run.2} parent=31 // pred_region
          %s280 = ssub.s32 256, 256
          %281 = vsyncadd %s272, %s280
          %s282 = smul.addr %s18, 2
          %s283 = smul.addr %s282, 128
          %s284 = scalar_lea.hbm %s3, %s283
          %s285 = sshll.u32 %s275, 4
          %s286 = int_to_ptr.vmem [resolvable:$true] %s285
          %291 = dma.vmem_to_hbm [thread:$0]  %s286, 256, %s284, %s272, 128, 128, 8
        $region40: #{run.2} parent=31 // pred_fallthru
          _
      $region32: #{run.2} parent=5 // pred_fallthru
        _
      %p292 = scmp.le.s32.totalorder 2, %s13
      // Predicated region
      $region41: #{run.2} parent=5 // pred_check
        %p293 = pneg %p292
      $region42: #{run.2} parent=5 // pred_check_branch
        %295 = sbr.rel (%p293) target = $region44
      $region43: #{run.2} parent=5 // pred_region
        %s296 = ssub.s32 %s13, 2
        // Predicated region
        $region45: #{run.2} parent=43 // pred_check
          %p297 = pneg %p115
        $region46: #{run.2} parent=43 // pred_check_branch
          %299 = sbr.rel (%p297) target = $region48
        $region47: #{run.2} parent=43 // pred_region
          %s300 = sand.u32 %s100, 1
          %s301 = scalar_lea.sflag [#allocation3], %s300
          %s302 = sand.u32 %s100, 1
          %s303 = smul.addr %s302, 16
          %s304 = scalar_lea.vmem [#allocation5], %s303
          %305 = dma.done %s301, 256
        $region48: #{run.2} parent=43 // pred_fallthru
          _
      $region44: #{run.2} parent=5 // pred_fallthru
        _
    $region6: #{run.2} parent=1 // loop_footer
      %s17 = sadd.s32 1, %s13
    $region7: #{run.2} parent=1 // loop_footer_branch
      %12 = sbr.rel target = $region3
    $region8: #{run.2} parent=1 // loop_exit
      _
    %306 = vsyncpa [#allocation3], 1
    %s307 = scalar_lea.sflag [#allocation3], 1
    %308 = vsyncpa %s307, 1
    %309 = vsyncpa [#allocation4], 1
    %s310 = scalar_lea.sflag [#allocation4], 1
    %311 = vsyncpa %s310, 1

// kernel: run.3
$region0: #{run.3}
  #allocation0 [shape = 'u32[]', space=smem, size = 0x4, offset = 0x4, fixed_abs, tag = 'smem constant byte address 0x4 - core index']
  #allocation1 [shape = 'u32[144,128]{1,0:T(1,128)}', space=vmem, size = 0x12000, scoped, tag = 'internal scratch']
  #allocation2 [shape = 'f32[4,128,128]{2,1,0:T(8,128)}', space=vmem, size = 0x40000, scoped, tag = 'scratch operand']
  %s0 = inlined_call_operand.vmem [shape: f32[2,16,128], index: 0, kind: input, shape index: {}]
  %s1 = inlined_call_operand.vmem [shape: f32[2,4,128], index: 1, kind: input, shape index: {}]
  %s2 = inlined_call_operand.vmem [shape: f32[2,128,16], index: 2, kind: input, shape index: {}]
  %s3 = inlined_call_operand.vmem [shape: f32[2,4,128], index: 3, kind: output, shape index: {}]
  %s4 = sld [smem:[#allocation0]]
  $region45: #{run.3} parent=0
    _
  %s6 = ssub.s32 1, %s4
  %s7 = scalar_select 0, %s6, %s4
  loop: start=0, step=1, limit=4
  $region2: #{run.3} parent=0 // loop_pre_header
    _
  $region3: #{run.3} parent=0 // loop_header
    %s9 = sphi 0, %s13
    %p10 = scmp.ge.s32.totalorder %s9, 4
    %s19 = sphi 0, %s21
    %s22 = sphi 0, %s19
    %s23 = sphi 0, %s22
    %s39 = sphi 0, %s23
    %s45 = sphi 0, %s47
    %s48 = sphi 0, %s45
    %s49 = sphi 0, %s48
    %s65 = sphi 0, %s49
    %s71 = sphi 0, %s73
    %s74 = sphi 0, %s71
    %s75 = sphi 0, %s74
    %s91 = sphi 0, %s75
    %s97 = sphi 0, %s99
    %s100 = sphi 0, %s97
    %s101 = sphi 0, %s100
    %s117 = sphi 0, %s101
  $region4: #{run.3} parent=0 // loop_header_branch
    %12 = sbr.rel (%p10) target = $region8
  $region5: #{run.3} parent=0 // loop_body
    %s14 = ssub.s32 %s9, 1
    %s15 = ssub.s32 %s9, 2
    %s16 = sadd.s32 %s9, 1
    %s17 = ssub.s32 %s9, %s16
    %p18 = scmp.eq.s32.totalorder %s17, 0
    %s20 = sadd.s32 %s19, 1
    %s21 = scalar_select %p18, %s19, %s20
    %p24 = pneg %p18
    %p25 = scmp.eq.s32.totalorder %s9, 1
    %p26 = por %p24, %p25
    %p27 = scmp.ne.s32.totalorder %s19, %s22
    %p28 = scmp.eq.s32.totalorder %s9, 0
    %p29 = por %p27, %p28
    %p30 = scmp.ne.s32.totalorder %s19, %s22
    %p31 = scmp.eq.s32.totalorder %s14, 1
    %p32 = por %p30, %p31
    %p33 = scmp.ne.s32.totalorder %s22, %s23
    %p34 = scmp.eq.s32.totalorder %s14, 0
    %p35 = por %p33, %p34
    %p36 = scmp.ne.s32.totalorder %s22, %s23
    %p37 = scmp.eq.s32.totalorder %s15, 1
    %p38 = por %p36, %p37
    %p40 = scmp.ne.s32.totalorder %s23, %s39
    %p41 = scmp.eq.s32.totalorder %s15, 0
    %p42 = por %p40, %p41
    %s43 = ssub.s32 %s9, %s16
    %p44 = scmp.eq.s32.totalorder %s43, 0
    %s46 = sadd.s32 %s45, 1
    %s47 = scalar_select %p44, %s45, %s46
    %p50 = pneg %p44
    %p51 = scmp.eq.s32.totalorder %s9, 1
    %p52 = por %p50, %p51
    %p53 = scmp.ne.s32.totalorder %s45, %s48
    %p54 = scmp.eq.s32.totalorder %s9, 0
    %p55 = por %p53, %p54
    %p56 = scmp.ne.s32.totalorder %s45, %s48
    %p57 = scmp.eq.s32.totalorder %s14, 1
    %p58 = por %p56, %p57
    %p59 = scmp.ne.s32.totalorder %s48, %s49
    %p60 = scmp.eq.s32.totalorder %s14, 0
    %p61 = por %p59, %p60
    %p62 = scmp.ne.s32.totalorder %s48, %s49
    %p63 = scmp.eq.s32.totalorder %s15, 1
    %p64 = por %p62, %p63
    %p66 = scmp.ne.s32.totalorder %s49, %s65
    %p67 = scmp.eq.s32.totalorder %s15, 0
    %p68 = por %p66, %p67
    %s69 = ssub.s32 %s9, %s16
    %p70 = scmp.eq.s32.totalorder %s69, 0
    %s72 = sadd.s32 %s71, 1
    %s73 = scalar_select %p70, %s71, %s72
    %p76 = pneg %p70
    %p77 = scmp.eq.s32.totalorder %s9, 1
    %p78 = por %p76, %p77
    %p79 = scmp.ne.s32.totalorder %s71, %s74
    %p80 = scmp.eq.s32.totalorder %s9, 0
    %p81 = por %p79, %p80
    %p82 = scmp.ne.s32.totalorder %s71, %s74
    %p83 = scmp.eq.s32.totalorder %s14, 1
    %p84 = por %p82, %p83
    %p85 = scmp.ne.s32.totalorder %s74, %s75
    %p86 = scmp.eq.s32.totalorder %s14, 0
    %p87 = por %p85, %p86
    %p88 = scmp.ne.s32.totalorder %s74, %s75
    %p89 = scmp.eq.s32.totalorder %s15, 1
    %p90 = por %p88, %p89
    %p92 = scmp.ne.s32.totalorder %s75, %s91
    %p93 = scmp.eq.s32.totalorder %s15, 0
    %p94 = por %p92, %p93
    %s95 = ssub.s32 %s9, %s16
    %p96 = scmp.eq.s32.totalorder %s95, 0
    %s98 = sadd.s32 %s97, 1
    %s99 = scalar_select %p96, %s97, %s98
    %p102 = pneg %p96
    %p103 = scmp.eq.s32.totalorder %s9, 1
    %p104 = por %p102, %p103
    %p105 = scmp.ne.s32.totalorder %s97, %s100
    %p106 = scmp.eq.s32.totalorder %s9, 0
    %p107 = por %p105, %p106
    %p108 = scmp.ne.s32.totalorder %s97, %s100
    %p109 = scmp.eq.s32.totalorder %s14, 1
    %p110 = por %p108, %p109
    %p111 = scmp.ne.s32.totalorder %s100, %s101
    %p112 = scmp.eq.s32.totalorder %s14, 0
    %p113 = por %p111, %p112
    %p114 = scmp.ne.s32.totalorder %s100, %s101
    %p115 = scmp.eq.s32.totalorder %s15, 1
    %p116 = por %p114, %p115
    %p118 = scmp.ne.s32.totalorder %s101, %s117
    %p119 = scmp.eq.s32.totalorder %s15, 0
    %p120 = por %p118, %p119
    %p121 = scmp.le.s32.totalorder 1, %s9
    %p122 = scmp.lt.s32.totalorder %s9, 3
    %p123 = pnand %p121, %p122
    %p124 = pneg %p123
    // Predicated region
    $region9: #{run.3} parent=5 // pred_check
      _
    $region10: #{run.3} parent=5 // pred_check_branch
      %126 = sbr.rel (%p123) target = $region12
    $region11: #{run.3} parent=5 // pred_region
      %s127 = ssub.s32 %s9, 1
    $region12: #{run.3} parent=5 // pred_fallthru
      _
    %p128 = scmp.lt.s32.totalorder %s9, 2
    // Predicated region
    $region13: #{run.3} parent=5 // pred_check
      %p129 = pneg %p128
    $region14: #{run.3} parent=5 // pred_check_branch
      %131 = sbr.rel (%p129) target = $region16
    $region15: #{run.3} parent=5 // pred_region
      // Predicated region
      $region17: #{run.3} parent=15 // pred_check
        %p132 = pneg %p29
      $region18: #{run.3} parent=15 // pred_check_branch
        %134 = sbr.rel (%p132) target = $region20
      $region19: #{run.3} parent=15 // pred_region
        %p135 = scmp.lt.s32.totalorder %s9, 1
        %s136 = scalar_select %p135, %s9, 1
        %s137 = smul.addr %s136, 2
        %s138 = smul.addr %s137, 8
        %s139 = scalar_lea.vmem %s0, %s138
      $region20: #{run.3} parent=15 // pred_fallthru
        _
      // Predicated region
      $region21: #{run.3} parent=15 // pred_check
        %p140 = pneg %p55
      $region22: #{run.3} parent=15 // pred_check_branch
        %142 = sbr.rel (%p140) target = $region24
      $region23: #{run.3} parent=15 // pred_region
        %p143 = scmp.lt.s32.totalorder %s9, 1
        %s144 = scalar_select %p143, %s9, 1
        %s145 = smul.addr %s144, 4
        %s146 = scalar_lea.vmem %s1, %s145
      $region24: #{run.3} parent=15 // pred_fallthru
        _
      // Predicated region
      $region25: #{run.3} parent=15 // pred_check
        %p147 = pneg %p81
      $region26: #{run.3} parent=15 // pred_check_branch
        %149 = sbr.rel (%p147) target = $region28
      $region27: #{run.3} parent=15 // pred_region
        %p150 = scmp.lt.s32.totalorder %s9, 1
        %s151 = scalar_select %p150, %s9, 1
        %s152 = smul.addr %s151, 16
        %s153 = smul.addr %s152, 8
        %s154 = scalar_lea.vmem %s2, %s153
      $region28: #{run.3} parent=15 // pred_fallthru
        _
    $region16: #{run.3} parent=5 // pred_fallthru
      _
    %p155 = scmp.le.s32.totalorder 1, %s9
    %p156 = scmp.lt.s32.totalorder %s9, 3
    %p157 = pnand %p155, %p156
    %p158 = pneg %p157
    // Predicated region
    $region29: #{run.3} parent=5 // pred_check
      _
    $region30: #{run.3} parent=5 // pred_check_branch
      %160 = sbr.rel (%p157) target = $region32
    $region31: #{run.3} parent=5 // pred_region
      %s161 = ssub.s32 %s9, 1
      %p162 = scmp.lt.s32.totalorder %s14, 1
      %s163 = scalar_select %p162, %s14, 1
      %s164 = smul.addr %s163, 2
      %s165 = smul.addr %s164, 8
      %s166 = scalar_lea.vmem %s0, %s165
      %p167 = pneg %p35
      %p168 = pneg %p32
      %p169 = scmp.lt.s32.totalorder %s14, 1
      %s170 = scalar_select %p169, %s14, 1
      %s171 = smul.addr %s170, 4
      %s172 = scalar_lea.vmem %s1, %s171
      %p173 = pneg %p61
      %p174 = pneg %p58
      %p175 = scmp.lt.s32.totalorder %s14, 1
      %s176 = scalar_select %p175, %s14, 1
      %s177 = smul.addr %s176, 16
      %s178 = smul.addr %s177, 8
      %s179 = scalar_lea.vmem %s2, %s178
      %p180 = pneg %p87
      %p181 = pneg %p84
      %p182 = pneg %p113
      %p183 = pneg %p110
      %p184 = scmp.lt.s32.totalorder %s14, 1
      %s185 = scalar_select %p184, %s14, 1
      %s186 = smul.addr %s185, 4
      %s187 = scalar_lea.vmem %s3, %s186
      %p188 = scmp.lt.s32.totalorder %s14, 1
      %s189 = scalar_select %p188, %s14, 1
      %s190 = smul.addr %s189, 2
      %s191 = smul.addr %s190, 8
      %s192 = scalar_lea.vmem %s0, %s191
      %p193 = scmp.lt.s32.totalorder %s14, 1
      %s194 = scalar_select %p193, %s14, 1
      %s195 = smul.addr %s194, 4
      %s196 = scalar_lea.vmem %s1, %s195
      %p197 = scmp.lt.s32.totalorder %s14, 1
      %s198 = scalar_select %p197, %s14, 1
      %s199 = smul.addr %s198, 16
      %s200 = smul.addr %s199, 8
      %s201 = scalar_lea.vmem %s2, %s200
      %p202 = scmp.lt.s32.totalorder %s14, 1
      %s203 = scalar_select %p202, %s14, 1
      %s204 = smul.addr %s203, 4
      %s205 = scalar_lea.vmem %s3, %s204
      %v206 = vld [vmem:[%s192] sm:$0xff]
      %v207 = vld [vmem:[%s192 + $0x8] sm:$0xff]
      %v208 = vld [vmem:[%s201] sm:$0xff]
      %v209 = vld [vmem:[%s201 + $0x8] sm:$0xff]
      %v210 = vld [vmem:[%s201 + $0x10] sm:$0xff]
      %v211 = vld [vmem:[%s201 + $0x18] sm:$0xff]
      %v212 = vld [vmem:[%s201 + $0x20] sm:$0xff]
      %v213 = vld [vmem:[%s201 + $0x28] sm:$0xff]
      %v214 = vld [vmem:[%s201 + $0x30] sm:$0xff]
      %v215 = vld [vmem:[%s201 + $0x38] sm:$0xff]
      %v216 = vld [vmem:[%s201 + $0x40] sm:$0xff]
      %v217 = vld [vmem:[%s201 + $0x48] sm:$0xff]
      %v218 = vld [vmem:[%s201 + $0x50] sm:$0xff]
      %v219 = vld [vmem:[%s201 + $0x58] sm:$0xff]
      %v220 = vld [vmem:[%s201 + $0x60] sm:$0xff]
      %v221 = vld [vmem:[%s201 + $0x68] sm:$0xff]
      %v222 = vld [vmem:[%s201 + $0x70] sm:$0xff]
      %v223 = vld [vmem:[%s201 + $0x78] sm:$0xff]
      %v224 = vlaneseq
      %v225 = vand.u32 %v224, 127
      %v226 = vlaneseq
      %v227 = vshrl.u32 %v226, 7
      %v228 = vadd.s32 %v227, 8
      %v229 = vadd.s32 %v227, 16
      %v230 = vadd.s32 %v227, 24
      %v231 = vadd.s32 %v227, 32
      %v232 = vadd.s32 %v227, 40
      %v233 = vadd.s32 %v227, 48
      %v234 = vadd.s32 %v227, 56
      %v235 = vadd.s32 %v227, 64
      %v236 = vadd.s32 %v227, 72
      %v237 = vadd.s32 %v227, 80
      %v238 = vadd.s32 %v227, 88
      %v239 = vadd.s32 %v227, 96
      %v240 = vadd.s32 %v227, 104
      %v241 = vadd.s32 %v227, 112
      %v242 = vadd.s32 %v227, 120
      %vm243 = vcmp.gt.s32.totalorder %v225, %v227
      %vm244 = vcmp.gt.s32.totalorder %v225, %v228
      %vm245 = vcmp.gt.s32.totalorder %v225, %v229
      %vm246 = vcmp.gt.s32.totalorder %v225, %v230
      %vm247 = vcmp.gt.s32.totalorder %v225, %v231
      %vm248 = vcmp.gt.s32.totalorder %v225, %v232
      %vm249 = vcmp.gt.s32.totalorder %v225, %v233
      %vm250 = vcmp.gt.s32.totalorder %v225, %v234
      %vm251 = vcmp.gt.s32.totalorder %v225, %v235
      %vm252 = vcmp.gt.s32.totalorder %v225, %v236
      %vm253 = vcmp.gt.s32.totalorder %v225, %v237
      %vm254 = vcmp.gt.s32.totalorder %v225, %v238
      %vm255 = vcmp.gt.s32.totalorder %v225, %v239
      %vm256 = vcmp.gt.s32.totalorder %v225, %v240
      %vm257 = vcmp.gt.s32.totalorder %v225, %v241
      %vm258 = vcmp.gt.s32.totalorder %v225, %v242
      %v259 = vsub.f32 %v207, %v206
      %v260 = vadd.f32 %v259, 1.0
      %v262 = vrot.slane %v260, 4
      %v264 = vmul.f32 %v260, %v262
      %281 = vrot.lane.b32.xlu0 %v208, 2
      %v282 = vpop.permute.xlu0 %281
      %283 = vrot.lane.b32.xlu0 %v209, 2
      %v284 = vpop.permute.xlu0 %283
      %285 = vrot.lane.b32.xlu0 %v210, 2
      %v286 = vpop.permute.xlu0 %285
      %287 = vrot.lane.b32.xlu0 %v211, 2
      %v288 = vpop.permute.xlu0 %287
      %289 = vrot.lane.b32.xlu0 %v212, 2
      %v290 = vpop.permute.xlu0 %289
      %291 = vrot.lane.b32.xlu0 %v213, 2
      %v292 = vpop.permute.xlu0 %291
      %293 = vrot.lane.b32.xlu0 %v214, 2
      %v294 = vpop.permute.xlu0 %293
      %295 = vrot.lane.b32.xlu0 %v215, 2
      %v296 = vpop.permute.xlu0 %295
      %297 = vrot.lane.b32.xlu0 %v216, 2
      %v298 = vpop.permute.xlu0 %297
      %299 = vrot.lane.b32.xlu0 %v217, 2
      %v300 = vpop.permute.xlu0 %299
      %301 = vrot.lane.b32.xlu0 %v218, 2
      %v302 = vpop.permute.xlu0 %301
      %303 = vrot.lane.b32.xlu0 %v219, 2
      %v304 = vpop.permute.xlu0 %303
      %305 = vrot.lane.b32.xlu0 %v220, 2
      %v306 = vpop.permute.xlu0 %305
      %307 = vrot.lane.b32.xlu0 %v221, 2
      %v308 = vpop.permute.xlu0 %307
      %309 = vrot.lane.b32.xlu0 %v222, 2
      %v310 = vpop.permute.xlu0 %309
      %311 = vrot.lane.b32.xlu0 %v223, 2
      %v312 = vpop.permute.xlu0 %311
      %v329 = vsub.f32 %v208, %v282
      %v330 = vsub.f32 %v209, %v284
      %v331 = vsub.f32 %v210, %v286
      %v332 = vsub.f32 %v211, %v288
      %v333 = vsub.f32 %v212, %v290
      %v334 = vsub.f32 %v213, %v292
      %v335 = vsub.f32 %v214, %v294
      %v336 = vsub.f32 %v215, %v296
      %v337 = vsub.f32 %v216, %v298
      %v338 = vsub.f32 %v217, %v300
      %v339 = vsub.f32 %v218, %v302
      %v340 = vsub.f32 %v219, %v304
      %v341 = vsub.f32 %v220, %v306
      %v342 = vsub.f32 %v221, %v308
      %v343 = vsub.f32 %v222, %v310
      %v344 = vsub.f32 %v223, %v312
      %v345 = vadd.f32 %v329, 1.0
      %v346 = vadd.f32 %v330, 1.0
      %v347 = vadd.f32 %v331, 1.0
      %v348 = vadd.f32 %v332, 1.0
      %v349 = vadd.f32 %v333, 1.0
      %v350 = vadd.f32 %v334, 1.0
      %v351 = vadd.f32 %v335, 1.0
      %v352 = vadd.f32 %v336, 1.0
      %v353 = vadd.f32 %v337, 1.0
      %v354 = vadd.f32 %v338, 1.0
      %v355 = vadd.f32 %v339, 1.0
      %v356 = vadd.f32 %v340, 1.0
      %v357 = vadd.f32 %v341, 1.0
      %v358 = vadd.f32 %v342, 1.0
      %v359 = vadd.f32 %v343, 1.0
      %v360 = vadd.f32 %v344, 1.0
      %377 = vrot.lane.b32.xlu0 %v345, 127
      %v378 = vpop.permute.xlu0 %377
      %379 = vrot.lane.b32.xlu0 %v346, 127
      %v380 = vpop.permute.xlu0 %379
      %381 = vrot.lane.b32.xlu0 %v347, 127
      %v382 = vpop.permute.xlu0 %381
      %383 = vrot.lane.b32.xlu0 %v348, 127
      %v384 = vpop.permute.xlu0 %383
      %385 = vrot.lane.b32.xlu0 %v349, 127
      %v386 = vpop.permute.xlu0 %385
      %387 = vrot.lane.b32.xlu0 %v350, 127
      %v388 = vpop.permute.xlu0 %387
      %389 = vrot.lane.b32.xlu0 %v351, 127
      %v390 = vpop.permute.xlu0 %389
      %391 = vrot.lane.b32.xlu0 %v352, 127
      %v392 = vpop.permute.xlu0 %391
      %393 = vrot.lane.b32.xlu0 %v353, 127
      %v394 = vpop.permute.xlu0 %393
      %395 = vrot.lane.b32.xlu0 %v354, 127
      %v396 = vpop.permute.xlu0 %395
      %397 = vrot.lane.b32.xlu0 %v355, 127
      %v398 = vpop.permute.xlu0 %397
      %399 = vrot.lane.b32.xlu0 %v356, 127
      %v400 = vpop.permute.xlu0 %399
      %401 = vrot.lane.b32.xlu0 %v357, 127
      %v402 = vpop.permute.xlu0 %401
      %403 = vrot.lane.b32.xlu0 %v358, 127
      %v404 = vpop.permute.xlu0 %403
      %405 = vrot.lane.b32.xlu0 %v359, 127
      %v406 = vpop.permute.xlu0 %405
      %407 = vrot.lane.b32.xlu0 %v360, 127
      %v408 = vpop.permute.xlu0 %407
      %v425 = vmul.f32 %v345, %v378
      %v426 = vmul.f32 %v346, %v380
      %v427 = vmul.f32 %v347, %v382
      %v428 = vmul.f32 %v348, %v384
      %v429 = vmul.f32 %v349, %v386
      %v430 = vmul.f32 %v350, %v388
      %v431 = vmul.f32 %v351, %v390
      %v432 = vmul.f32 %v352, %v392
      %v433 = vmul.f32 %v353, %v394
      %v434 = vmul.f32 %v354, %v396
      %v435 = vmul.f32 %v355, %v398
      %v436 = vmul.f32 %v356, %v400
      %v437 = vmul.f32 %v357, %v402
      %v438 = vmul.f32 %v358, %v404
      %v439 = vmul.f32 %v359, %v406
      %v440 = vmul.f32 %v360, %v408
      %441 = vset.pattern.permute.xlu0 2
      %442 = vperm.xlu0 %441, %v208
      %v443 = vpop.permute.xlu0 %442
      %445 = vset.pattern.permute.xlu0 2
      %446 = vperm.xlu0 %445, %v209
      %v447 = vpop.permute.xlu0 %446
      %449 = vset.pattern.permute.xlu0 2
      %450 = vperm.xlu0 %449, %v210
      %v451 = vpop.permute.xlu0 %450
      %453 = vset.pattern.permute.xlu0 2
      %454 = vperm.xlu0 %453, %v211
      %v455 = vpop.permute.xlu0 %454
      %457 = vset.pattern.permute.xlu0 2
      %458 = vperm.xlu0 %457, %v212
      %v459 = vpop.permute.xlu0 %458
      %461 = vset.pattern.permute.xlu0 2
      %462 = vperm.xlu0 %461, %v213
      %v463 = vpop.permute.xlu0 %462
      %465 = vset.pattern.permute.xlu0 2
      %466 = vperm.xlu0 %465, %v214
      %v467 = vpop.permute.xlu0 %466
      %469 = vset.pattern.permute.xlu0 2
      %470 = vperm.xlu0 %469, %v215
      %v471 = vpop.permute.xlu0 %470
      %473 = vset.pattern.permute.xlu0 2
      %474 = vperm.xlu0 %473, %v216
      %v475 = vpop.permute.xlu0 %474
      %477 = vset.pattern.permute.xlu0 2
      %478 = vperm.xlu0 %477, %v217
      %v479 = vpop.permute.xlu0 %478
      %481 = vset.pattern.permute.xlu0 2
      %482 = vperm.xlu0 %481, %v218
      %v483 = vpop.permute.xlu0 %482
      %485 = vset.pattern.permute.xlu0 2
      %486 = vperm.xlu0 %485, %v219
      %v487 = vpop.permute.xlu0 %486
      %489 = vset.pattern.permute.xlu0 2
      %490 = vperm.xlu0 %489, %v220
      %v491 = vpop.permute.xlu0 %490
      %493 = vset.pattern.permute.xlu0 2
      %494 = vperm.xlu0 %493, %v221
      %v495 = vpop.permute.xlu0 %494
      %497 = vset.pattern.permute.xlu0 2
      %498 = vperm.xlu0 %497, %v222
      %v499 = vpop.permute.xlu0 %498
      %501 = vset.pattern.permute.xlu0 2
      %502 = vperm.xlu0 %501, %v223
      %v503 = vpop.permute.xlu0 %502
      %v505 = vlaneseq
      %v506 = vshrl.u32 %v505, 7
      %v507 = vsub.s32 0, %v506
      %v508 = vrot.slane %v207, %v507
      %v509 = vmin.f32 %v443, %v508
      %v510 = vmin.f32 %v447, %v508
      %v511 = vmin.f32 %v451, %v508
      %v512 = vmin.f32 %v455, %v508
      %v513 = vmin.f32 %v459, %v508
      %v514 = vmin.f32 %v463, %v508
      %v515 = vmin.f32 %v467, %v508
      %v516 = vmin.f32 %v471, %v508
      %v517 = vmin.f32 %v475, %v508
      %v518 = vmin.f32 %v479, %v508
      %v519 = vmin.f32 %v483, %v508
      %v520 = vmin.f32 %v487, %v508
      %v521 = vmin.f32 %v491, %v508
      %v522 = vmin.f32 %v495, %v508
      %v523 = vmin.f32 %v499, %v508
      %v524 = vmin.f32 %v503, %v508
      %525 = vset.pattern.permute.xlu0 0
      %526 = vperm.xlu0 %525, %v208
      %v527 = vpop.permute.xlu0 %526
      %529 = vset.pattern.permute.xlu0 0
      %530 = vperm.xlu0 %529, %v209
      %v531 = vpop.permute.xlu0 %530
      %533 = vset.pattern.permute.xlu0 0
      %534 = vperm.xlu0 %533, %v210
      %v535 = vpop.permute.xlu0 %534
      %537 = vset.pattern.permute.xlu0 0
      %538 = vperm.xlu0 %537, %v211
      %v539 = vpop.permute.xlu0 %538
      %541 = vset.pattern.permute.xlu0 0
      %542 = vperm.xlu0 %541, %v212
      %v543 = vpop.permute.xlu0 %542
      %545 = vset.pattern.permute.xlu0 0
      %546 = vperm.xlu0 %545, %v213
      %v547 = vpop.permute.xlu0 %546
      %549 = vset.pattern.permute.xlu0 0
      %550 = vperm.xlu0 %549, %v214
      %v551 = vpop.permute.xlu0 %550
      %553 = vset.pattern.permute.xlu0 0
      %554 = vperm.xlu0 %553, %v215
      %v555 = vpop.permute.xlu0 %554
      %557 = vset.pattern.permute.xlu0 0
      %558 = vperm.xlu0 %557, %v216
      %v559 = vpop.permute.xlu0 %558
      %561 = vset.pattern.permute.xlu0 0
      %562 = vperm.xlu0 %561, %v217
      %v563 = vpop.permute.xlu0 %562
      %565 = vset.pattern.permute.xlu0 0
      %566 = vperm.xlu0 %565, %v218
      %v567 = vpop.permute.xlu0 %566
      %569 = vset.pattern.permute.xlu0 0
      %570 = vperm.xlu0 %569, %v219
      %v571 = vpop.permute.xlu0 %570
      %573 = vset.pattern.permute.xlu0 0
      %574 = vperm.xlu0 %573, %v220
      %v575 = vpop.permute.xlu0 %574
      %577 = vset.pattern.permute.xlu0 0
      %578 = vperm.xlu0 %577, %v221
      %v579 = vpop.permute.xlu0 %578
      %581 = vset.pattern.permute.xlu0 0
      %582 = vperm.xlu0 %581, %v222
      %v583 = vpop.permute.xlu0 %582
      %585 = vset.pattern.permute.xlu0 0
      %586 = vperm.xlu0 %585, %v223
      %v587 = vpop.permute.xlu0 %586
      %v589 = vlaneseq
      %v590 = vshrl.u32 %v589, 7
      %v591 = vsub.s32 0, %v590
      %v592 = vrot.slane %v206, %v591
      %v593 = vmax.f32 %v527, %v592
      %v594 = vmax.f32 %v531, %v592
      %v595 = vmax.f32 %v535, %v592
      %v596 = vmax.f32 %v539, %v592
      %v597 = vmax.f32 %v543, %v592
      %v598 = vmax.f32 %v547, %v592
      %v599 = vmax.f32 %v551, %v592
      %v600 = vmax.f32 %v555, %v592
      %v601 = vmax.f32 %v559, %v592
      %v602 = vmax.f32 %v563, %v592
      %v603 = vmax.f32 %v567, %v592
      %v604 = vmax.f32 %v571, %v592
      %v605 = vmax.f32 %v575, %v592
      %v606 = vmax.f32 %v579, %v592
      %v607 = vmax.f32 %v583, %v592
      %v608 = vmax.f32 %v587, %v592
      %v609 = vsub.f32 %v509, %v593
      %v610 = vsub.f32 %v510, %v594
      %v611 = vsub.f32 %v511, %v595
      %v612 = vsub.f32 %v512, %v596
      %v613 = vsub.f32 %v513, %v597
      %v614 = vsub.f32 %v514, %v598
      %v615 = vsub.f32 %v515, %v599
      %v616 = vsub.f32 %v516, %v600
      %v617 = vsub.f32 %v517, %v601
      %v618 = vsub.f32 %v518, %v602
      %v619 = vsub.f32 %v519, %v603
      %v620 = vsub.f32 %v520, %v604
      %v621 = vsub.f32 %v521, %v605
      %v622 = vsub.f32 %v522, %v606
      %v623 = vsub.f32 %v523, %v607
      %v624 = vsub.f32 %v524, %v608
      %v625 = vadd.f32 %v609, 1.0
      %v626 = vadd.f32 %v610, 1.0
      %v627 = vadd.f32 %v611, 1.0
      %v628 = vadd.f32 %v612, 1.0
      %v629 = vadd.f32 %v613, 1.0
      %v630 = vadd.f32 %v614, 1.0
      %v631 = vadd.f32 %v615, 1.0
      %v632 = vadd.f32 %v616, 1.0
      %v633 = vadd.f32 %v617, 1.0
      %v634 = vadd.f32 %v618, 1.0
      %v635 = vadd.f32 %v619, 1.0
      %v636 = vadd.f32 %v620, 1.0
      %v637 = vadd.f32 %v621, 1.0
      %v638 = vadd.f32 %v622, 1.0
      %v639 = vadd.f32 %v623, 1.0
      %v640 = vadd.f32 %v624, 1.0
      %v641 = vmax.f32 %v625, 0.0
      %v642 = vmax.f32 %v626, 0.0
      %v643 = vmax.f32 %v627, 0.0
      %v644 = vmax.f32 %v628, 0.0
      %v645 = vmax.f32 %v629, 0.0
      %v646 = vmax.f32 %v630, 0.0
      %v647 = vmax.f32 %v631, 0.0
      %v648 = vmax.f32 %v632, 0.0
      %v649 = vmax.f32 %v633, 0.0
      %v650 = vmax.f32 %v634, 0.0
      %v651 = vmax.f32 %v635, 0.0
      %v652 = vmax.f32 %v636, 0.0
      %v653 = vmax.f32 %v637, 0.0
      %v654 = vmax.f32 %v638, 0.0
      %v655 = vmax.f32 %v639, 0.0
      %v656 = vmax.f32 %v640, 0.0
      %657 = vset.pattern.permute.xlu0 3
      %658 = vperm.xlu0 %657, %v208
      %v659 = vpop.permute.xlu0 %658
      %661 = vset.pattern.permute.xlu0 3
      %662 = vperm.xlu0 %661, %v209
      %v663 = vpop.permute.xlu0 %662
      %665 = vset.pattern.permute.xlu0 3
      %666 = vperm.xlu0 %665, %v210
      %v667 = vpop.permute.xlu0 %666
      %669 = vset.pattern.permute.xlu0 3
      %670 = vperm.xlu0 %669, %v211
      %v671 = vpop.permute.xlu0 %670
      %673 = vset.pattern.permute.xlu0 3
      %674 = vperm.xlu0 %673, %v212
      %v675 = vpop.permute.xlu0 %674
      %677 = vset.pattern.permute.xlu0 3
      %678 = vperm.xlu0 %677, %v213
      %v679 = vpop.permute.xlu0 %678
      %681 = vset.pattern.permute.xlu0 3
      %682 = vperm.xlu0 %681, %v214
      %v683 = vpop.permute.xlu0 %682
      %685 = vset.pattern.permute.xlu0 3
      %686 = vperm.xlu0 %685, %v215
      %v687 = vpop.permute.xlu0 %686
      %689 = vset.pattern.permute.xlu0 3
      %690 = vperm.xlu0 %689, %v216
      %v691 = vpop.permute.xlu0 %690
      %693 = vset.pattern.permute.xlu0 3
      %694 = vperm.xlu0 %693, %v217
      %v695 = vpop.permute.xlu0 %694
      %697 = vset.pattern.permute.xlu0 3
      %698 = vperm.xlu0 %697, %v218
      %v699 = vpop.permute.xlu0 %698
      %701 = vset.pattern.permute.xlu0 3
      %702 = vperm.xlu0 %701, %v219
      %v703 = vpop.permute.xlu0 %702
      %705 = vset.pattern.permute.xlu0 3
      %706 = vperm.xlu0 %705, %v220
      %v707 = vpop.permute.xlu0 %706
      %709 = vset.pattern.permute.xlu0 3
      %710 = vperm.xlu0 %709, %v221
      %v711 = vpop.permute.xlu0 %710
      %713 = vset.pattern.permute.xlu0 3
      %714 = vperm.xlu0 %713, %v222
      %v715 = vpop.permute.xlu0 %714
      %717 = vset.pattern.permute.xlu0 3
      %718 = vperm.xlu0 %717, %v223
      %v719 = vpop.permute.xlu0 %718
      %v721 = vlaneseq
      %v722 = vshrl.u32 %v721, 7
      %v723 = vsub.s32 4, %v722
      %v724 = vrot.slane %v207, %v723
      %v725 = vmin.f32 %v659, %v724
      %v726 = vmin.f32 %v663, %v724
      %v727 = vmin.f32 %v667, %v724
      %v728 = vmin.f32 %v671, %v724
      %v729 = vmin.f32 %v675, %v724
      %v730 = vmin.f32 %v679, %v724
      %v731 = vmin.f32 %v683, %v724
      %v732 = vmin.f32 %v687, %v724
      %v733 = vmin.f32 %v691, %v724
      %v734 = vmin.f32 %v695, %v724
      %v735 = vmin.f32 %v699, %v724
      %v736 = vmin.f32 %v703, %v724
      %v737 = vmin.f32 %v707, %v724
      %v738 = vmin.f32 %v711, %v724
      %v739 = vmin.f32 %v715, %v724
      %v740 = vmin.f32 %v719, %v724
      %741 = vset.pattern.permute.xlu0 1
      %742 = vperm.xlu0 %741, %v208
      %v743 = vpop.permute.xlu0 %742
      %745 = vset.pattern.permute.xlu0 1
      %746 = vperm.xlu0 %745, %v209
      %v747 = vpop.permute.xlu0 %746
      %749 = vset.pattern.permute.xlu0 1
      %750 = vperm.xlu0 %749, %v210
      %v751 = vpop.permute.xlu0 %750
      %753 = vset.pattern.permute.xlu0 1
      %754 = vperm.xlu0 %753, %v211
      %v755 = vpop.permute.xlu0 %754
      %757 = vset.pattern.permute.xlu0 1
      %758 = vperm.xlu0 %757, %v212
      %v759 = vpop.permute.xlu0 %758
      %761 = vset.pattern.permute.xlu0 1
      %762 = vperm.xlu0 %761, %v213
      %v763 = vpop.permute.xlu0 %762
      %765 = vset.pattern.permute.xlu0 1
      %766 = vperm.xlu0 %765, %v214
      %v767 = vpop.permute.xlu0 %766
      %769 = vset.pattern.permute.xlu0 1
      %770 = vperm.xlu0 %769, %v215
      %v771 = vpop.permute.xlu0 %770
      %773 = vset.pattern.permute.xlu0 1
      %774 = vperm.xlu0 %773, %v216
      %v775 = vpop.permute.xlu0 %774
      %777 = vset.pattern.permute.xlu0 1
      %778 = vperm.xlu0 %777, %v217
      %v779 = vpop.permute.xlu0 %778
      %781 = vset.pattern.permute.xlu0 1
      %782 = vperm.xlu0 %781, %v218
      %v783 = vpop.permute.xlu0 %782
      %785 = vset.pattern.permute.xlu0 1
      %786 = vperm.xlu0 %785, %v219
      %v787 = vpop.permute.xlu0 %786
      %789 = vset.pattern.permute.xlu0 1
      %790 = vperm.xlu0 %789, %v220
      %v791 = vpop.permute.xlu0 %790
      %793 = vset.pattern.permute.xlu0 1
      %794 = vperm.xlu0 %793, %v221
      %v795 = vpop.permute.xlu0 %794
      %797 = vset.pattern.permute.xlu0 1
      %798 = vperm.xlu0 %797, %v222
      %v799 = vpop.permute.xlu0 %798
      %801 = vset.pattern.permute.xlu0 1
      %802 = vperm.xlu0 %801, %v223
      %v803 = vpop.permute.xlu0 %802
      %v805 = vlaneseq
      %v806 = vshrl.u32 %v805, 7
      %v807 = vsub.s32 4, %v806
      %v808 = vrot.slane %v206, %v807
      %v809 = vmax.f32 %v743, %v808
      %v810 = vmax.f32 %v747, %v808
      %v811 = vmax.f32 %v751, %v808
      %v812 = vmax.f32 %v755, %v808
      %v813 = vmax.f32 %v759, %v808
      %v814 = vmax.f32 %v763, %v808
      %v815 = vmax.f32 %v767, %v808
      %v816 = vmax.f32 %v771, %v808
      %v817 = vmax.f32 %v775, %v808
      %v818 = vmax.f32 %v779, %v808
      %v819 = vmax.f32 %v783, %v808
      %v820 = vmax.f32 %v787, %v808
      %v821 = vmax.f32 %v791, %v808
      %v822 = vmax.f32 %v795, %v808
      %v823 = vmax.f32 %v799, %v808
      %v824 = vmax.f32 %v803, %v808
      %v825 = vsub.f32 %v725, %v809
      %v826 = vsub.f32 %v726, %v810
      %v827 = vsub.f32 %v727, %v811
      %v828 = vsub.f32 %v728, %v812
      %v829 = vsub.f32 %v729, %v813
      %v830 = vsub.f32 %v730, %v814
      %v831 = vsub.f32 %v731, %v815
      %v832 = vsub.f32 %v732, %v816
      %v833 = vsub.f32 %v733, %v817
      %v834 = vsub.f32 %v734, %v818
      %v835 = vsub.f32 %v735, %v819
      %v836 = vsub.f32 %v736, %v820
      %v837 = vsub.f32 %v737, %v821
      %v838 = vsub.f32 %v738, %v822
      %v839 = vsub.f32 %v739, %v823
      %v840 = vsub.f32 %v740, %v824
      %v841 = vadd.f32 %v825, 1.0
      %v842 = vadd.f32 %v826, 1.0
      %v843 = vadd.f32 %v827, 1.0
      %v844 = vadd.f32 %v828, 1.0
      %v845 = vadd.f32 %v829, 1.0
      %v846 = vadd.f32 %v830, 1.0
      %v847 = vadd.f32 %v831, 1.0
      %v848 = vadd.f32 %v832, 1.0
      %v849 = vadd.f32 %v833, 1.0
      %v850 = vadd.f32 %v834, 1.0
      %v851 = vadd.f32 %v835, 1.0
      %v852 = vadd.f32 %v836, 1.0
      %v853 = vadd.f32 %v837, 1.0
      %v854 = vadd.f32 %v838, 1.0
      %v855 = vadd.f32 %v839, 1.0
      %v856 = vadd.f32 %v840, 1.0
      %v857 = vmax.f32 %v841, 0.0
      %v858 = vmax.f32 %v842, 0.0
      %v859 = vmax.f32 %v843, 0.0
      %v860 = vmax.f32 %v844, 0.0
      %v861 = vmax.f32 %v845, 0.0
      %v862 = vmax.f32 %v846, 0.0
      %v863 = vmax.f32 %v847, 0.0
      %v864 = vmax.f32 %v848, 0.0
      %v865 = vmax.f32 %v849, 0.0
      %v866 = vmax.f32 %v850, 0.0
      %v867 = vmax.f32 %v851, 0.0
      %v868 = vmax.f32 %v852, 0.0
      %v869 = vmax.f32 %v853, 0.0
      %v870 = vmax.f32 %v854, 0.0
      %v871 = vmax.f32 %v855, 0.0
      %v872 = vmax.f32 %v856, 0.0
      %v873 = vmul.f32 %v641, %v857
      %v874 = vmul.f32 %v642, %v858
      %v875 = vmul.f32 %v643, %v859
      %v876 = vmul.f32 %v644, %v860
      %v877 = vmul.f32 %v645, %v861
      %v878 = vmul.f32 %v646, %v862
      %v879 = vmul.f32 %v647, %v863
      %v880 = vmul.f32 %v648, %v864
      %v881 = vmul.f32 %v649, %v865
      %v882 = vmul.f32 %v650, %v866
      %v883 = vmul.f32 %v651, %v867
      %v884 = vmul.f32 %v652, %v868
      %v885 = vmul.f32 %v653, %v869
      %v886 = vmul.f32 %v654, %v870
      %v887 = vmul.f32 %v655, %v871
      %v888 = vmul.f32 %v656, %v872
      %v889 = vmul.f32 %v873, 1.7
      %v890 = vmul.f32 %v874, 1.7
      %v891 = vmul.f32 %v875, 1.7
      %v892 = vmul.f32 %v876, 1.7
      %v893 = vmul.f32 %v877, 1.7
      %v894 = vmul.f32 %v878, 1.7
      %v895 = vmul.f32 %v879, 1.7
      %v896 = vmul.f32 %v880, 1.7
      %v897 = vmul.f32 %v881, 1.7
      %v898 = vmul.f32 %v882, 1.7
      %v899 = vmul.f32 %v883, 1.7
      %v900 = vmul.f32 %v884, 1.7
      %v901 = vmul.f32 %v885, 1.7
      %v902 = vmul.f32 %v886, 1.7
      %v903 = vmul.f32 %v887, 1.7
      %v904 = vmul.f32 %v888, 1.7
      %906 = vset.pattern.permute.xlu0 2
      %907 = vperm.xlu0 %906, %v425
      %v908 = vpop.permute.xlu0 %907
      %911 = vset.pattern.permute.xlu0 2
      %912 = vperm.xlu0 %911, %v426
      %v913 = vpop.permute.xlu0 %912
      %916 = vset.pattern.permute.xlu0 2
      %917 = vperm.xlu0 %916, %v427
      %v918 = vpop.permute.xlu0 %917
      %921 = vset.pattern.permute.xlu0 2
      %922 = vperm.xlu0 %921, %v428
      %v923 = vpop.permute.xlu0 %922
      %926 = vset.pattern.permute.xlu0 2
      %927 = vperm.xlu0 %926, %v429
      %v928 = vpop.permute.xlu0 %927
      %931 = vset.pattern.permute.xlu0 2
      %932 = vperm.xlu0 %931, %v430
      %v933 = vpop.permute.xlu0 %932
      %936 = vset.pattern.permute.xlu0 2
      %937 = vperm.xlu0 %936, %v431
      %v938 = vpop.permute.xlu0 %937
      %941 = vset.pattern.permute.xlu0 2
      %942 = vperm.xlu0 %941, %v432
      %v943 = vpop.permute.xlu0 %942
      %946 = vset.pattern.permute.xlu0 2
      %947 = vperm.xlu0 %946, %v433
      %v948 = vpop.permute.xlu0 %947
      %951 = vset.pattern.permute.xlu0 2
      %952 = vperm.xlu0 %951, %v434
      %v953 = vpop.permute.xlu0 %952
      %956 = vset.pattern.permute.xlu0 2
      %957 = vperm.xlu0 %956, %v435
      %v958 = vpop.permute.xlu0 %957
      %961 = vset.pattern.permute.xlu0 2
      %962 = vperm.xlu0 %961, %v436
      %v963 = vpop.permute.xlu0 %962
      %966 = vset.pattern.permute.xlu0 2
      %967 = vperm.xlu0 %966, %v437
      %v968 = vpop.permute.xlu0 %967
      %971 = vset.pattern.permute.xlu0 2
      %972 = vperm.xlu0 %971, %v438
      %v973 = vpop.permute.xlu0 %972
      %976 = vset.pattern.permute.xlu0 2
      %977 = vperm.xlu0 %976, %v439
      %v978 = vpop.permute.xlu0 %977
      %981 = vset.pattern.permute.xlu0 2
      %982 = vperm.xlu0 %981, %v440
      %v983 = vpop.permute.xlu0 %982
      %v985 = vlaneseq
      %v986 = vshrl.u32 %v985, 7
      %v987 = vsub.s32 0, %v986
      %v988 = vrot.slane %v264, %v987
      %v989 = vadd.f32 %v908, %v988
      %v990 = vadd.f32 %v913, %v988
      %v991 = vadd.f32 %v918, %v988
      %v992 = vadd.f32 %v923, %v988
      %v993 = vadd.f32 %v928, %v988
      %v994 = vadd.f32 %v933, %v988
      %v995 = vadd.f32 %v938, %v988
      %v996 = vadd.f32 %v943, %v988
      %v997 = vadd.f32 %v948, %v988
      %v998 = vadd.f32 %v953, %v988
      %v999 = vadd.f32 %v958, %v988
      %v1000 = vadd.f32 %v963, %v988
      %v1001 = vadd.f32 %v968, %v988
      %v1002 = vadd.f32 %v973, %v988
      %v1003 = vadd.f32 %v978, %v988
      %v1004 = vadd.f32 %v983, %v988
      %v1005 = vmul.f32 %v989, 0.7
      %v1006 = vmul.f32 %v990, 0.7
      %v1007 = vmul.f32 %v991, 0.7
      %v1008 = vmul.f32 %v992, 0.7
      %v1009 = vmul.f32 %v993, 0.7
      %v1010 = vmul.f32 %v994, 0.7
      %v1011 = vmul.f32 %v995, 0.7
      %v1012 = vmul.f32 %v996, 0.7
      %v1013 = vmul.f32 %v997, 0.7
      %v1014 = vmul.f32 %v998, 0.7
      %v1015 = vmul.f32 %v999, 0.7
      %v1016 = vmul.f32 %v1000, 0.7
      %v1017 = vmul.f32 %v1001, 0.7
      %v1018 = vmul.f32 %v1002, 0.7
      %v1019 = vmul.f32 %v1003, 0.7
      %v1020 = vmul.f32 %v1004, 0.7
      %vm1021 = vcmp.gt.f32.partialorder %v889, %v1005
      %vm1022 = vcmp.gt.f32.partialorder %v890, %v1006
      %vm1023 = vcmp.gt.f32.partialorder %v891, %v1007
      %vm1024 = vcmp.gt.f32.partialorder %v892, %v1008
      %vm1025 = vcmp.gt.f32.partialorder %v893, %v1009
      %vm1026 = vcmp.gt.f32.partialorder %v894, %v1010
      %vm1027 = vcmp.gt.f32.partialorder %v895, %v1011
      %vm1028 = vcmp.gt.f32.partialorder %v896, %v1012
      %vm1029 = vcmp.gt.f32.partialorder %v897, %v1013
      %vm1030 = vcmp.gt.f32.partialorder %v898, %v1014
      %vm1031 = vcmp.gt.f32.partialorder %v899, %v1015
      %vm1032 = vcmp.gt.f32.partialorder %v900, %v1016
      %vm1033 = vcmp.gt.f32.partialorder %v901, %v1017
      %vm1034 = vcmp.gt.f32.partialorder %v902, %v1018
      %vm1035 = vcmp.gt.f32.partialorder %v903, %v1019
      %vm1036 = vcmp.gt.f32.partialorder %v904, %v1020
      %vm1037 = vmand %vm1021, %vm243
      %vm1038 = vmand %vm1022, %vm244
      %vm1039 = vmand %vm1023, %vm245
      %vm1040 = vmand %vm1024, %vm246
      %vm1041 = vmand %vm1025, %vm247
      %vm1042 = vmand %vm1026, %vm248
      %vm1043 = vmand %vm1027, %vm249
      %vm1044 = vmand %vm1028, %vm250
      %vm1045 = vmand %vm1029, %vm251
      %vm1046 = vmand %vm1030, %vm252
      %vm1047 = vmand %vm1031, %vm253
      %vm1048 = vmand %vm1032, %vm254
      %vm1049 = vmand %vm1033, %vm255
      %vm1050 = vmand %vm1034, %vm256
      %vm1051 = vmand %vm1035, %vm257
      %vm1052 = vmand %vm1036, %vm258
      %v1053 = vsel %vm1037, 1.0, 0.0
      %v1054 = vsel %vm1038, 1.0, 0.0
      %v1055 = vsel %vm1039, 1.0, 0.0
      %v1056 = vsel %vm1040, 1.0, 0.0
      %v1057 = vsel %vm1041, 1.0, 0.0
      %v1058 = vsel %vm1042, 1.0, 0.0
      %v1059 = vsel %vm1043, 1.0, 0.0
      %v1060 = vsel %vm1044, 1.0, 0.0
      %v1061 = vsel %vm1045, 1.0, 0.0
      %v1062 = vsel %vm1046, 1.0, 0.0
      %v1063 = vsel %vm1047, 1.0, 0.0
      %v1064 = vsel %vm1048, 1.0, 0.0
      %v1065 = vsel %vm1049, 1.0, 0.0
      %v1066 = vsel %vm1050, 1.0, 0.0
      %v1067 = vsel %vm1051, 1.0, 0.0
      %v1068 = vsel %vm1052, 1.0, 0.0
      %1069 = vst [vmem:[#allocation2] sm:$0xff] %v1053
      %1070 = vst [vmem:[#allocation2 + $0x8] sm:$0xff] %v1054
      %1071 = vst [vmem:[#allocation2 + $0x10] sm:$0xff] %v1055
      %1072 = vst [vmem:[#allocation2 + $0x18] sm:$0xff] %v1056
      %1073 = vst [vmem:[#allocation2 + $0x20] sm:$0xff] %v1057
      %1074 = vst [vmem:[#allocation2 + $0x28] sm:$0xff] %v1058
      %1075 = vst [vmem:[#allocation2 + $0x30] sm:$0xff] %v1059
      %1076 = vst [vmem:[#allocation2 + $0x38] sm:$0xff] %v1060
      %1077 = vst [vmem:[#allocation2 + $0x40] sm:$0xff] %v1061
      %1078 = vst [vmem:[#allocation2 + $0x48] sm:$0xff] %v1062
      %1079 = vst [vmem:[#allocation2 + $0x50] sm:$0xff] %v1063
      %1080 = vst [vmem:[#allocation2 + $0x58] sm:$0xff] %v1064
      %1081 = vst [vmem:[#allocation2 + $0x60] sm:$0xff] %v1065
      %1082 = vst [vmem:[#allocation2 + $0x68] sm:$0xff] %v1066
      %1083 = vst [vmem:[#allocation2 + $0x70] sm:$0xff] %v1067
      %1084 = vst [vmem:[#allocation2 + $0x78] sm:$0xff] %v1068
      %1085 = vset.pattern.permute.xlu0 6
      %1086 = vperm.xlu0 %1085, %v208
      %v1087 = vpop.permute.xlu0 %1086
      %1089 = vset.pattern.permute.xlu0 6
      %1090 = vperm.xlu0 %1089, %v209
      %v1091 = vpop.permute.xlu0 %1090
      %1093 = vset.pattern.permute.xlu0 6
      %1094 = vperm.xlu0 %1093, %v210
      %v1095 = vpop.permute.xlu0 %1094
      %1097 = vset.pattern.permute.xlu0 6
      %1098 = vperm.xlu0 %1097, %v211
      %v1099 = vpop.permute.xlu0 %1098
      %1101 = vset.pattern.permute.xlu0 6
      %1102 = vperm.xlu0 %1101, %v212
      %v1103 = vpop.permute.xlu0 %1102
      %1105 = vset.pattern.permute.xlu0 6
      %1106 = vperm.xlu0 %1105, %v213
      %v1107 = vpop.permute.xlu0 %1106
      %1109 = vset.pattern.permute.xlu0 6
      %1110 = vperm.xlu0 %1109, %v214
      %v1111 = vpop.permute.xlu0 %1110
      %1113 = vset.pattern.permute.xlu0 6
      %1114 = vperm.xlu0 %1113, %v215
      %v1115 = vpop.permute.xlu0 %1114
      %1117 = vset.pattern.permute.xlu0 6
      %1118 = vperm.xlu0 %1117, %v216
      %v1119 = vpop.permute.xlu0 %1118
      %1121 = vset.pattern.permute.xlu0 6
      %1122 = vperm.xlu0 %1121, %v217
      %v1123 = vpop.permute.xlu0 %1122
      %1125 = vset.pattern.permute.xlu0 6
      %1126 = vperm.xlu0 %1125, %v218
      %v1127 = vpop.permute.xlu0 %1126
      %1129 = vset.pattern.permute.xlu0 6
      %1130 = vperm.xlu0 %1129, %v219
      %v1131 = vpop.permute.xlu0 %1130
      %1133 = vset.pattern.permute.xlu0 6
      %1134 = vperm.xlu0 %1133, %v220
      %v1135 = vpop.permute.xlu0 %1134
      %1137 = vset.pattern.permute.xlu0 6
      %1138 = vperm.xlu0 %1137, %v221
      %v1139 = vpop.permute.xlu0 %1138
      %1141 = vset.pattern.permute.xlu0 6
      %1142 = vperm.xlu0 %1141, %v222
      %v1143 = vpop.permute.xlu0 %1142
      %1145 = vset.pattern.permute.xlu0 6
      %1146 = vperm.xlu0 %1145, %v223
      %v1147 = vpop.permute.xlu0 %1146
      %v1149 = vlaneseq
      %v1150 = vshrl.u32 %v1149, 7
      %v1151 = vsub.s32 1, %v1150
      %v1152 = vrot.slane %v207, %v1151
      %v1153 = vmin.f32 %v1087, %v1152
      %v1154 = vmin.f32 %v1091, %v1152
      %v1155 = vmin.f32 %v1095, %v1152
      %v1156 = vmin.f32 %v1099, %v1152
      %v1157 = vmin.f32 %v1103, %v1152
      %v1158 = vmin.f32 %v1107, %v1152
      %v1159 = vmin.f32 %v1111, %v1152
      %v1160 = vmin.f32 %v1115, %v1152
      %v1161 = vmin.f32 %v1119, %v1152
      %v1162 = vmin.f32 %v1123, %v1152
      %v1163 = vmin.f32 %v1127, %v1152
      %v1164 = vmin.f32 %v1131, %v1152
      %v1165 = vmin.f32 %v1135, %v1152
      %v1166 = vmin.f32 %v1139, %v1152
      %v1167 = vmin.f32 %v1143, %v1152
      %v1168 = vmin.f32 %v1147, %v1152
      %1169 = vset.pattern.permute.xlu0 4
      %1170 = vperm.xlu0 %1169, %v208
      %v1171 = vpop.permute.xlu0 %1170
      %1173 = vset.pattern.permute.xlu0 4
      %1174 = vperm.xlu0 %1173, %v209
      %v1175 = vpop.permute.xlu0 %1174
      %1177 = vset.pattern.permute.xlu0 4
      %1178 = vperm.xlu0 %1177, %v210
      %v1179 = vpop.permute.xlu0 %1178
      %1181 = vset.pattern.permute.xlu0 4
      %1182 = vperm.xlu0 %1181, %v211
      %v1183 = vpop.permute.xlu0 %1182
      %1185 = vset.pattern.permute.xlu0 4
      %1186 = vperm.xlu0 %1185, %v212
      %v1187 = vpop.permute.xlu0 %1186
      %1189 = vset.pattern.permute.xlu0 4
      %1190 = vperm.xlu0 %1189, %v213
      %v1191 = vpop.permute.xlu0 %1190
      %1193 = vset.pattern.permute.xlu0 4
      %1194 = vperm.xlu0 %1193, %v214
      %v1195 = vpop.permute.xlu0 %1194
      %1197 = vset.pattern.permute.xlu0 4
      %1198 = vperm.xlu0 %1197, %v215
      %v1199 = vpop.permute.xlu0 %1198
      %1201 = vset.pattern.permute.xlu0 4
      %1202 = vperm.xlu0 %1201, %v216
      %v1203 = vpop.permute.xlu0 %1202
      %1205 = vset.pattern.permute.xlu0 4
      %1206 = vperm.xlu0 %1205, %v217
      %v1207 = vpop.permute.xlu0 %1206
      %1209 = vset.pattern.permute.xlu0 4
      %1210 = vperm.xlu0 %1209, %v218
      %v1211 = vpop.permute.xlu0 %1210
      %1213 = vset.pattern.permute.xlu0 4
      %1214 = vperm.xlu0 %1213, %v219
      %v1215 = vpop.permute.xlu0 %1214
      %1217 = vset.pattern.permute.xlu0 4
      %1218 = vperm.xlu0 %1217, %v220
      %v1219 = vpop.permute.xlu0 %1218
      %1221 = vset.pattern.permute.xlu0 4
      %1222 = vperm.xlu0 %1221, %v221
      %v1223 = vpop.permute.xlu0 %1222
      %1225 = vset.pattern.permute.xlu0 4
      %1226 = vperm.xlu0 %1225, %v222
      %v1227 = vpop.permute.xlu0 %1226
      %1229 = vset.pattern.permute.xlu0 4
      %1230 = vperm.xlu0 %1229, %v223
      %v1231 = vpop.permute.xlu0 %1230
      %v1233 = vlaneseq
      %v1234 = vshrl.u32 %v1233, 7
      %v1235 = vsub.s32 1, %v1234
      %v1236 = vrot.slane %v206, %v1235
      %v1237 = vmax.f32 %v1171, %v1236
      %v1238 = vmax.f32 %v1175, %v1236
      %v1239 = vmax.f32 %v1179, %v1236
      %v1240 = vmax.f32 %v1183, %v1236
      %v1241 = vmax.f32 %v1187, %v1236
      %v1242 = vmax.f32 %v1191, %v1236
      %v1243 = vmax.f32 %v1195, %v1236
      %v1244 = vmax.f32 %v1199, %v1236
      %v1245 = vmax.f32 %v1203, %v1236
      %v1246 = vmax.f32 %v1207, %v1236
      %v1247 = vmax.f32 %v1211, %v1236
      %v1248 = vmax.f32 %v1215, %v1236
      %v1249 = vmax.f32 %v1219, %v1236
      %v1250 = vmax.f32 %v1223, %v1236
      %v1251 = vmax.f32 %v1227, %v1236
      %v1252 = vmax.f32 %v1231, %v1236
      %v1253 = vsub.f32 %v1153, %v1237
      %v1254 = vsub.f32 %v1154, %v1238
      %v1255 = vsub.f32 %v1155, %v1239
      %v1256 = vsub.f32 %v1156, %v1240
      %v1257 = vsub.f32 %v1157, %v1241
      %v1258 = vsub.f32 %v1158, %v1242
      %v1259 = vsub.f32 %v1159, %v1243
      %v1260 = vsub.f32 %v1160, %v1244
      %v1261 = vsub.f32 %v1161, %v1245
      %v1262 = vsub.f32 %v1162, %v1246
      %v1263 = vsub.f32 %v1163, %v1247
      %v1264 = vsub.f32 %v1164, %v1248
      %v1265 = vsub.f32 %v1165, %v1249
      %v1266 = vsub.f32 %v1166, %v1250
      %v1267 = vsub.f32 %v1167, %v1251
      %v1268 = vsub.f32 %v1168, %v1252
      %v1269 = vadd.f32 %v1253, 1.0
      %v1270 = vadd.f32 %v1254, 1.0
      %v1271 = vadd.f32 %v1255, 1.0
      %v1272 = vadd.f32 %v1256, 1.0
      %v1273 = vadd.f32 %v1257, 1.0
      %v1274 = vadd.f32 %v1258, 1.0
      %v1275 = vadd.f32 %v1259, 1.0
      %v1276 = vadd.f32 %v1260, 1.0
      %v1277 = vadd.f32 %v1261, 1.0
      %v1278 = vadd.f32 %v1262, 1.0
      %v1279 = vadd.f32 %v1263, 1.0
      %v1280 = vadd.f32 %v1264, 1.0
      %v1281 = vadd.f32 %v1265, 1.0
      %v1282 = vadd.f32 %v1266, 1.0
      %v1283 = vadd.f32 %v1267, 1.0
      %v1284 = vadd.f32 %v1268, 1.0
      %v1285 = vmax.f32 %v1269, 0.0
      %v1286 = vmax.f32 %v1270, 0.0
      %v1287 = vmax.f32 %v1271, 0.0
      %v1288 = vmax.f32 %v1272, 0.0
      %v1289 = vmax.f32 %v1273, 0.0
      %v1290 = vmax.f32 %v1274, 0.0
      %v1291 = vmax.f32 %v1275, 0.0
      %v1292 = vmax.f32 %v1276, 0.0
      %v1293 = vmax.f32 %v1277, 0.0
      %v1294 = vmax.f32 %v1278, 0.0
      %v1295 = vmax.f32 %v1279, 0.0
      %v1296 = vmax.f32 %v1280, 0.0
      %v1297 = vmax.f32 %v1281, 0.0
      %v1298 = vmax.f32 %v1282, 0.0
      %v1299 = vmax.f32 %v1283, 0.0
      %v1300 = vmax.f32 %v1284, 0.0
      %1301 = vset.pattern.permute.xlu0 7
      %1302 = vperm.xlu0 %1301, %v208
      %v1303 = vpop.permute.xlu0 %1302
      %1305 = vset.pattern.permute.xlu0 7
      %1306 = vperm.xlu0 %1305, %v209
      %v1307 = vpop.permute.xlu0 %1306
      %1309 = vset.pattern.permute.xlu0 7
      %1310 = vperm.xlu0 %1309, %v210
      %v1311 = vpop.permute.xlu0 %1310
      %1313 = vset.pattern.permute.xlu0 7
      %1314 = vperm.xlu0 %1313, %v211
      %v1315 = vpop.permute.xlu0 %1314
      %1317 = vset.pattern.permute.xlu0 7
      %1318 = vperm.xlu0 %1317, %v212
      %v1319 = vpop.permute.xlu0 %1318
      %1321 = vset.pattern.permute.xlu0 7
      %1322 = vperm.xlu0 %1321, %v213
      %v1323 = vpop.permute.xlu0 %1322
      %1325 = vset.pattern.permute.xlu0 7
      %1326 = vperm.xlu0 %1325, %v214
      %v1327 = vpop.permute.xlu0 %1326
      %1329 = vset.pattern.permute.xlu0 7
      %1330 = vperm.xlu0 %1329, %v215
      %v1331 = vpop.permute.xlu0 %1330
      %1333 = vset.pattern.permute.xlu0 7
      %1334 = vperm.xlu0 %1333, %v216
      %v1335 = vpop.permute.xlu0 %1334
      %1337 = vset.pattern.permute.xlu0 7
      %1338 = vperm.xlu0 %1337, %v217
      %v1339 = vpop.permute.xlu0 %1338
      %1341 = vset.pattern.permute.xlu0 7
      %1342 = vperm.xlu0 %1341, %v218
      %v1343 = vpop.permute.xlu0 %1342
      %1345 = vset.pattern.permute.xlu0 7
      %1346 = vperm.xlu0 %1345, %v219
      %v1347 = vpop.permute.xlu0 %1346
      %1349 = vset.pattern.permute.xlu0 7
      %1350 = vperm.xlu0 %1349, %v220
      %v1351 = vpop.permute.xlu0 %1350
      %1353 = vset.pattern.permute.xlu0 7
      %1354 = vperm.xlu0 %1353, %v221
      %v1355 = vpop.permute.xlu0 %1354
      %1357 = vset.pattern.permute.xlu0 7
      %1358 = vperm.xlu0 %1357, %v222
      %v1359 = vpop.permute.xlu0 %1358
      %1361 = vset.pattern.permute.xlu0 7
      %1362 = vperm.xlu0 %1361, %v223
      %v1363 = vpop.permute.xlu0 %1362
      %v1365 = vlaneseq
      %v1366 = vshrl.u32 %v1365, 7
      %v1367 = vsub.s32 5, %v1366
      %v1368 = vrot.slane %v207, %v1367
      %v1369 = vmin.f32 %v1303, %v1368
      %v1370 = vmin.f32 %v1307, %v1368
      %v1371 = vmin.f32 %v1311, %v1368
      %v1372 = vmin.f32 %v1315, %v1368
      %v1373 = vmin.f32 %v1319, %v1368
      %v1374 = vmin.f32 %v1323, %v1368
      %v1375 = vmin.f32 %v1327, %v1368
      %v1376 = vmin.f32 %v1331, %v1368
      %v1377 = vmin.f32 %v1335, %v1368
      %v1378 = vmin.f32 %v1339, %v1368
      %v1379 = vmin.f32 %v1343, %v1368
      %v1380 = vmin.f32 %v1347, %v1368
      %v1381 = vmin.f32 %v1351, %v1368
      %v1382 = vmin.f32 %v1355, %v1368
      %v1383 = vmin.f32 %v1359, %v1368
      %v1384 = vmin.f32 %v1363, %v1368
      %1385 = vset.pattern.permute.xlu0 5
      %1386 = vperm.xlu0 %1385, %v208
      %v1387 = vpop.permute.xlu0 %1386
      %1389 = vset.pattern.permute.xlu0 5
      %1390 = vperm.xlu0 %1389, %v209
      %v1391 = vpop.permute.xlu0 %1390
      %1393 = vset.pattern.permute.xlu0 5
      %1394 = vperm.xlu0 %1393, %v210
      %v1395 = vpop.permute.xlu0 %1394
      %1397 = vset.pattern.permute.xlu0 5
      %1398 = vperm.xlu0 %1397, %v211
      %v1399 = vpop.permute.xlu0 %1398
      %1401 = vset.pattern.permute.xlu0 5
      %1402 = vperm.xlu0 %1401, %v212
      %v1403 = vpop.permute.xlu0 %1402
      %1405 = vset.pattern.permute.xlu0 5
      %1406 = vperm.xlu0 %1405, %v213
      %v1407 = vpop.permute.xlu0 %1406
      %1409 = vset.pattern.permute.xlu0 5
      %1410 = vperm.xlu0 %1409, %v214
      %v1411 = vpop.permute.xlu0 %1410
      %1413 = vset.pattern.permute.xlu0 5
      %1414 = vperm.xlu0 %1413, %v215
      %v1415 = vpop.permute.xlu0 %1414
      %1417 = vset.pattern.permute.xlu0 5
      %1418 = vperm.xlu0 %1417, %v216
      %v1419 = vpop.permute.xlu0 %1418
      %1421 = vset.pattern.permute.xlu0 5
      %1422 = vperm.xlu0 %1421, %v217
      %v1423 = vpop.permute.xlu0 %1422
      %1425 = vset.pattern.permute.xlu0 5
      %1426 = vperm.xlu0 %1425, %v218
      %v1427 = vpop.permute.xlu0 %1426
      %1429 = vset.pattern.permute.xlu0 5
      %1430 = vperm.xlu0 %1429, %v219
      %v1431 = vpop.permute.xlu0 %1430
      %1433 = vset.pattern.permute.xlu0 5
      %1434 = vperm.xlu0 %1433, %v220
      %v1435 = vpop.permute.xlu0 %1434
      %1437 = vset.pattern.permute.xlu0 5
      %1438 = vperm.xlu0 %1437, %v221
      %v1439 = vpop.permute.xlu0 %1438
      %1441 = vset.pattern.permute.xlu0 5
      %1442 = vperm.xlu0 %1441, %v222
      %v1443 = vpop.permute.xlu0 %1442
      %1445 = vset.pattern.permute.xlu0 5
      %1446 = vperm.xlu0 %1445, %v223
      %v1447 = vpop.permute.xlu0 %1446
      %v1449 = vlaneseq
      %v1450 = vshrl.u32 %v1449, 7
      %v1451 = vsub.s32 5, %v1450
      %v1452 = vrot.slane %v206, %v1451
      %v1453 = vmax.f32 %v1387, %v1452
      %v1454 = vmax.f32 %v1391, %v1452
      %v1455 = vmax.f32 %v1395, %v1452
      %v1456 = vmax.f32 %v1399, %v1452
      %v1457 = vmax.f32 %v1403, %v1452
      %v1458 = vmax.f32 %v1407, %v1452
      %v1459 = vmax.f32 %v1411, %v1452
      %v1460 = vmax.f32 %v1415, %v1452
      %v1461 = vmax.f32 %v1419, %v1452
      %v1462 = vmax.f32 %v1423, %v1452
      %v1463 = vmax.f32 %v1427, %v1452
      %v1464 = vmax.f32 %v1431, %v1452
      %v1465 = vmax.f32 %v1435, %v1452
      %v1466 = vmax.f32 %v1439, %v1452
      %v1467 = vmax.f32 %v1443, %v1452
      %v1468 = vmax.f32 %v1447, %v1452
      %v1469 = vsub.f32 %v1369, %v1453
      %v1470 = vsub.f32 %v1370, %v1454
      %v1471 = vsub.f32 %v1371, %v1455
      %v1472 = vsub.f32 %v1372, %v1456
      %v1473 = vsub.f32 %v1373, %v1457
      %v1474 = vsub.f32 %v1374, %v1458
      %v1475 = vsub.f32 %v1375, %v1459
      %v1476 = vsub.f32 %v1376, %v1460
      %v1477 = vsub.f32 %v1377, %v1461
      %v1478 = vsub.f32 %v1378, %v1462
      %v1479 = vsub.f32 %v1379, %v1463
      %v1480 = vsub.f32 %v1380, %v1464
      %v1481 = vsub.f32 %v1381, %v1465
      %v1482 = vsub.f32 %v1382, %v1466
      %v1483 = vsub.f32 %v1383, %v1467
      %v1484 = vsub.f32 %v1384, %v1468
      %v1485 = vadd.f32 %v1469, 1.0
      %v1486 = vadd.f32 %v1470, 1.0
      %v1487 = vadd.f32 %v1471, 1.0
      %v1488 = vadd.f32 %v1472, 1.0
      %v1489 = vadd.f32 %v1473, 1.0
      %v1490 = vadd.f32 %v1474, 1.0
      %v1491 = vadd.f32 %v1475, 1.0
      %v1492 = vadd.f32 %v1476, 1.0
      %v1493 = vadd.f32 %v1477, 1.0
      %v1494 = vadd.f32 %v1478, 1.0
      %v1495 = vadd.f32 %v1479, 1.0
      %v1496 = vadd.f32 %v1480, 1.0
      %v1497 = vadd.f32 %v1481, 1.0
      %v1498 = vadd.f32 %v1482, 1.0
      %v1499 = vadd.f32 %v1483, 1.0
      %v1500 = vadd.f32 %v1484, 1.0
      %v1501 = vmax.f32 %v1485, 0.0
      %v1502 = vmax.f32 %v1486, 0.0
      %v1503 = vmax.f32 %v1487, 0.0
      %v1504 = vmax.f32 %v1488, 0.0
      %v1505 = vmax.f32 %v1489, 0.0
      %v1506 = vmax.f32 %v1490, 0.0
      %v1507 = vmax.f32 %v1491, 0.0
      %v1508 = vmax.f32 %v1492, 0.0
      %v1509 = vmax.f32 %v1493, 0.0
      %v1510 = vmax.f32 %v1494, 0.0
      %v1511 = vmax.f32 %v1495, 0.0
      %v1512 = vmax.f32 %v1496, 0.0
      %v1513 = vmax.f32 %v1497, 0.0
      %v1514 = vmax.f32 %v1498, 0.0
      %v1515 = vmax.f32 %v1499, 0.0
      %v1516 = vmax.f32 %v1500, 0.0
      %v1517 = vmul.f32 %v1285, %v1501
      %v1518 = vmul.f32 %v1286, %v1502
      %v1519 = vmul.f32 %v1287, %v1503
      %v1520 = vmul.f32 %v1288, %v1504
      %v1521 = vmul.f32 %v1289, %v1505
      %v1522 = vmul.f32 %v1290, %v1506
      %v1523 = vmul.f32 %v1291, %v1507
      %v1524 = vmul.f32 %v1292, %v1508
      %v1525 = vmul.f32 %v1293, %v1509
      %v1526 = vmul.f32 %v1294, %v1510
      %v1527 = vmul.f32 %v1295, %v1511
      %v1528 = vmul.f32 %v1296, %v1512
      %v1529 = vmul.f32 %v1297, %v1513
      %v1530 = vmul.f32 %v1298, %v1514
      %v1531 = vmul.f32 %v1299, %v1515
      %v1532 = vmul.f32 %v1300, %v1516
      %v1533 = vmul.f32 %v1517, 1.7
      %v1534 = vmul.f32 %v1518, 1.7
      %v1535 = vmul.f32 %v1519, 1.7
      %v1536 = vmul.f32 %v1520, 1.7
      %v1537 = vmul.f32 %v1521, 1.7
      %v1538 = vmul.f32 %v1522, 1.7
      %v1539 = vmul.f32 %v1523, 1.7
      %v1540 = vmul.f32 %v1524, 1.7
      %v1541 = vmul.f32 %v1525, 1.7
      %v1542 = vmul.f32 %v1526, 1.7
      %v1543 = vmul.f32 %v1527, 1.7
      %v1544 = vmul.f32 %v1528, 1.7
      %v1545 = vmul.f32 %v1529, 1.7
      %v1546 = vmul.f32 %v1530, 1.7
      %v1547 = vmul.f32 %v1531, 1.7
      %v1548 = vmul.f32 %v1532, 1.7
      %1549 = vset.pattern.permute.xlu0 6
      %1550 = vperm.xlu0 %1549, %v425
      %v1551 = vpop.permute.xlu0 %1550
      %1553 = vset.pattern.permute.xlu0 6
      %1554 = vperm.xlu0 %1553, %v426
      %v1555 = vpop.permute.xlu0 %1554
      %1557 = vset.pattern.permute.xlu0 6
      %1558 = vperm.xlu0 %1557, %v427
      %v1559 = vpop.permute.xlu0 %1558
      %1561 = vset.pattern.permute.xlu0 6
      %1562 = vperm.xlu0 %1561, %v428
      %v1563 = vpop.permute.xlu0 %1562
      %1565 = vset.pattern.permute.xlu0 6
      %1566 = vperm.xlu0 %1565, %v429
      %v1567 = vpop.permute.xlu0 %1566
      %1569 = vset.pattern.permute.xlu0 6
      %1570 = vperm.xlu0 %1569, %v430
      %v1571 = vpop.permute.xlu0 %1570
      %1573 = vset.pattern.permute.xlu0 6
      %1574 = vperm.xlu0 %1573, %v431
      %v1575 = vpop.permute.xlu0 %1574
      %1577 = vset.pattern.permute.xlu0 6
      %1578 = vperm.xlu0 %1577, %v432
      %v1579 = vpop.permute.xlu0 %1578
      %1581 = vset.pattern.permute.xlu0 6
      %1582 = vperm.xlu0 %1581, %v433
      %v1583 = vpop.permute.xlu0 %1582
      %1585 = vset.pattern.permute.xlu0 6
      %1586 = vperm.xlu0 %1585, %v434
      %v1587 = vpop.permute.xlu0 %1586
      %1589 = vset.pattern.permute.xlu0 6
      %1590 = vperm.xlu0 %1589, %v435
      %v1591 = vpop.permute.xlu0 %1590
      %1593 = vset.pattern.permute.xlu0 6
      %1594 = vperm.xlu0 %1593, %v436
      %v1595 = vpop.permute.xlu0 %1594
      %1597 = vset.pattern.permute.xlu0 6
      %1598 = vperm.xlu0 %1597, %v437
      %v1599 = vpop.permute.xlu0 %1598
      %1601 = vset.pattern.permute.xlu0 6
      %1602 = vperm.xlu0 %1601, %v438
      %v1603 = vpop.permute.xlu0 %1602
      %1605 = vset.pattern.permute.xlu0 6
      %1606 = vperm.xlu0 %1605, %v439
      %v1607 = vpop.permute.xlu0 %1606
      %1609 = vset.pattern.permute.xlu0 6
      %1610 = vperm.xlu0 %1609, %v440
      %v1611 = vpop.permute.xlu0 %1610
      %v1613 = vlaneseq
      %v1614 = vshrl.u32 %v1613, 7
      %v1615 = vsub.s32 1, %v1614
      %v1616 = vrot.slane %v264, %v1615
      %v1617 = vadd.f32 %v1551, %v1616
      %v1618 = vadd.f32 %v1555, %v1616
      %v1619 = vadd.f32 %v1559, %v1616
      %v1620 = vadd.f32 %v1563, %v1616
      %v1621 = vadd.f32 %v1567, %v1616
      %v1622 = vadd.f32 %v1571, %v1616
      %v1623 = vadd.f32 %v1575, %v1616
      %v1624 = vadd.f32 %v1579, %v1616
      %v1625 = vadd.f32 %v1583, %v1616
      %v1626 = vadd.f32 %v1587, %v1616
      %v1627 = vadd.f32 %v1591, %v1616
      %v1628 = vadd.f32 %v1595, %v1616
      %v1629 = vadd.f32 %v1599, %v1616
      %v1630 = vadd.f32 %v1603, %v1616
      %v1631 = vadd.f32 %v1607, %v1616
      %v1632 = vadd.f32 %v1611, %v1616
      %v1633 = vmul.f32 %v1617, 0.7
      %v1634 = vmul.f32 %v1618, 0.7
      %v1635 = vmul.f32 %v1619, 0.7
      %v1636 = vmul.f32 %v1620, 0.7
      %v1637 = vmul.f32 %v1621, 0.7
      %v1638 = vmul.f32 %v1622, 0.7
      %v1639 = vmul.f32 %v1623, 0.7
      %v1640 = vmul.f32 %v1624, 0.7
      %v1641 = vmul.f32 %v1625, 0.7
      %v1642 = vmul.f32 %v1626, 0.7
      %v1643 = vmul.f32 %v1627, 0.7
      %v1644 = vmul.f32 %v1628, 0.7
      %v1645 = vmul.f32 %v1629, 0.7
      %v1646 = vmul.f32 %v1630, 0.7
      %v1647 = vmul.f32 %v1631, 0.7
      %v1648 = vmul.f32 %v1632, 0.7
      %vm1649 = vcmp.gt.f32.partialorder %v1533, %v1633
      %vm1650 = vcmp.gt.f32.partialorder %v1534, %v1634
      %vm1651 = vcmp.gt.f32.partialorder %v1535, %v1635
      %vm1652 = vcmp.gt.f32.partialorder %v1536, %v1636
      %vm1653 = vcmp.gt.f32.partialorder %v1537, %v1637
      %vm1654 = vcmp.gt.f32.partialorder %v1538, %v1638
      %vm1655 = vcmp.gt.f32.partialorder %v1539, %v1639
      %vm1656 = vcmp.gt.f32.partialorder %v1540, %v1640
      %vm1657 = vcmp.gt.f32.partialorder %v1541, %v1641
      %vm1658 = vcmp.gt.f32.partialorder %v1542, %v1642
      %vm1659 = vcmp.gt.f32.partialorder %v1543, %v1643
      %vm1660 = vcmp.gt.f32.partialorder %v1544, %v1644
      %vm1661 = vcmp.gt.f32.partialorder %v1545, %v1645
      %vm1662 = vcmp.gt.f32.partialorder %v1546, %v1646
      %vm1663 = vcmp.gt.f32.partialorder %v1547, %v1647
      %vm1664 = vcmp.gt.f32.partialorder %v1548, %v1648
      %vm1665 = vmand %vm1649, %vm243
      %vm1666 = vmand %vm1650, %vm244
      %vm1667 = vmand %vm1651, %vm245
      %vm1668 = vmand %vm1652, %vm246
      %vm1669 = vmand %vm1653, %vm247
      %vm1670 = vmand %vm1654, %vm248
      %vm1671 = vmand %vm1655, %vm249
      %vm1672 = vmand %vm1656, %vm250
      %vm1673 = vmand %vm1657, %vm251
      %vm1674 = vmand %vm1658, %vm252
      %vm1675 = vmand %vm1659, %vm253
      %vm1676 = vmand %vm1660, %vm254
      %vm1677 = vmand %vm1661, %vm255
      %vm1678 = vmand %vm1662, %vm256
      %vm1679 = vmand %vm1663, %vm257
      %vm1680 = vmand %vm1664, %vm258
      %v1681 = vsel %vm1665, 1.0, 0.0
      %v1682 = vsel %vm1666, 1.0, 0.0
      %v1683 = vsel %vm1667, 1.0, 0.0
      %v1684 = vsel %vm1668, 1.0, 0.0
      %v1685 = vsel %vm1669, 1.0, 0.0
      %v1686 = vsel %vm1670, 1.0, 0.0
      %v1687 = vsel %vm1671, 1.0, 0.0
      %v1688 = vsel %vm1672, 1.0, 0.0
      %v1689 = vsel %vm1673, 1.0, 0.0
      %v1690 = vsel %vm1674, 1.0, 0.0
      %v1691 = vsel %vm1675, 1.0, 0.0
      %v1692 = vsel %vm1676, 1.0, 0.0
      %v1693 = vsel %vm1677, 1.0, 0.0
      %v1694 = vsel %vm1678, 1.0, 0.0
      %v1695 = vsel %vm1679, 1.0, 0.0
      %v1696 = vsel %vm1680, 1.0, 0.0
      %s1697 = scalar_lea.vmem [#allocation2], 128
      %1698 = vst [vmem:[%s1697] sm:$0xff] %v1681
      %1699 = vst [vmem:[%s1697 + $0x8] sm:$0xff] %v1682
      %1700 = vst [vmem:[%s1697 + $0x10] sm:$0xff] %v1683
      %1701 = vst [vmem:[%s1697 + $0x18] sm:$0xff] %v1684
      %1702 = vst [vmem:[%s1697 + $0x20] sm:$0xff] %v1685
      %1703 = vst [vmem:[%s1697 + $0x28] sm:$0xff] %v1686
      %1704 = vst [vmem:[%s1697 + $0x30] sm:$0xff] %v1687
      %1705 = vst [vmem:[%s1697 + $0x38] sm:$0xff] %v1688
      %1706 = vst [vmem:[%s1697 + $0x40] sm:$0xff] %v1689
      %1707 = vst [vmem:[%s1697 + $0x48] sm:$0xff] %v1690
      %1708 = vst [vmem:[%s1697 + $0x50] sm:$0xff] %v1691
      %1709 = vst [vmem:[%s1697 + $0x58] sm:$0xff] %v1692
      %1710 = vst [vmem:[%s1697 + $0x60] sm:$0xff] %v1693
      %1711 = vst [vmem:[%s1697 + $0x68] sm:$0xff] %v1694
      %1712 = vst [vmem:[%s1697 + $0x70] sm:$0xff] %v1695
      %1713 = vst [vmem:[%s1697 + $0x78] sm:$0xff] %v1696
      %1714 = vset.pattern.permute.xlu0 10
      %1715 = vperm.xlu0 %1714, %v208
      %v1716 = vpop.permute.xlu0 %1715
      %1718 = vset.pattern.permute.xlu0 10
      %1719 = vperm.xlu0 %1718, %v209
      %v1720 = vpop.permute.xlu0 %1719
      %1722 = vset.pattern.permute.xlu0 10
      %1723 = vperm.xlu0 %1722, %v210
      %v1724 = vpop.permute.xlu0 %1723
      %1726 = vset.pattern.permute.xlu0 10
      %1727 = vperm.xlu0 %1726, %v211
      %v1728 = vpop.permute.xlu0 %1727
      %1730 = vset.pattern.permute.xlu0 10
      %1731 = vperm.xlu0 %1730, %v212
      %v1732 = vpop.permute.xlu0 %1731
      %1734 = vset.pattern.permute.xlu0 10
      %1735 = vperm.xlu0 %1734, %v213
      %v1736 = vpop.permute.xlu0 %1735
      %1738 = vset.pattern.permute.xlu0 10
      %1739 = vperm.xlu0 %1738, %v214
      %v1740 = vpop.permute.xlu0 %1739
      %1742 = vset.pattern.permute.xlu0 10
      %1743 = vperm.xlu0 %1742, %v215
      %v1744 = vpop.permute.xlu0 %1743
      %1746 = vset.pattern.permute.xlu0 10
      %1747 = vperm.xlu0 %1746, %v216
      %v1748 = vpop.permute.xlu0 %1747
      %1750 = vset.pattern.permute.xlu0 10
      %1751 = vperm.xlu0 %1750, %v217
      %v1752 = vpop.permute.xlu0 %1751
      %1754 = vset.pattern.permute.xlu0 10
      %1755 = vperm.xlu0 %1754, %v218
      %v1756 = vpop.permute.xlu0 %1755
      %1758 = vset.pattern.permute.xlu0 10
      %1759 = vperm.xlu0 %1758, %v219
      %v1760 = vpop.permute.xlu0 %1759
      %1762 = vset.pattern.permute.xlu0 10
      %1763 = vperm.xlu0 %1762, %v220
      %v1764 = vpop.permute.xlu0 %1763
      %1766 = vset.pattern.permute.xlu0 10
      %1767 = vperm.xlu0 %1766, %v221
      %v1768 = vpop.permute.xlu0 %1767
      %1770 = vset.pattern.permute.xlu0 10
      %1771 = vperm.xlu0 %1770, %v222
      %v1772 = vpop.permute.xlu0 %1771
      %1774 = vset.pattern.permute.xlu0 10
      %1775 = vperm.xlu0 %1774, %v223
      %v1776 = vpop.permute.xlu0 %1775
      %v1778 = vlaneseq
      %v1779 = vshrl.u32 %v1778, 7
      %v1780 = vsub.s32 2, %v1779
      %v1781 = vrot.slane %v207, %v1780
      %v1782 = vmin.f32 %v1716, %v1781
      %v1783 = vmin.f32 %v1720, %v1781
      %v1784 = vmin.f32 %v1724, %v1781
      %v1785 = vmin.f32 %v1728, %v1781
      %v1786 = vmin.f32 %v1732, %v1781
      %v1787 = vmin.f32 %v1736, %v1781
      %v1788 = vmin.f32 %v1740, %v1781
      %v1789 = vmin.f32 %v1744, %v1781
      %v1790 = vmin.f32 %v1748, %v1781
      %v1791 = vmin.f32 %v1752, %v1781
      %v1792 = vmin.f32 %v1756, %v1781
      %v1793 = vmin.f32 %v1760, %v1781
      %v1794 = vmin.f32 %v1764, %v1781
      %v1795 = vmin.f32 %v1768, %v1781
      %v1796 = vmin.f32 %v1772, %v1781
      %v1797 = vmin.f32 %v1776, %v1781
      %1798 = vset.pattern.permute.xlu0 8
      %1799 = vperm.xlu0 %1798, %v208
      %v1800 = vpop.permute.xlu0 %1799
      %1802 = vset.pattern.permute.xlu0 8
      %1803 = vperm.xlu0 %1802, %v209
      %v1804 = vpop.permute.xlu0 %1803
      %1806 = vset.pattern.permute.xlu0 8
      %1807 = vperm.xlu0 %1806, %v210
      %v1808 = vpop.permute.xlu0 %1807
      %1810 = vset.pattern.permute.xlu0 8
      %1811 = vperm.xlu0 %1810, %v211
      %v1812 = vpop.permute.xlu0 %1811
      %1814 = vset.pattern.permute.xlu0 8
      %1815 = vperm.xlu0 %1814, %v212
      %v1816 = vpop.permute.xlu0 %1815
      %1818 = vset.pattern.permute.xlu0 8
      %1819 = vperm.xlu0 %1818, %v213
      %v1820 = vpop.permute.xlu0 %1819
      %1822 = vset.pattern.permute.xlu0 8
      %1823 = vperm.xlu0 %1822, %v214
      %v1824 = vpop.permute.xlu0 %1823
      %1826 = vset.pattern.permute.xlu0 8
      %1827 = vperm.xlu0 %1826, %v215
      %v1828 = vpop.permute.xlu0 %1827
      %1830 = vset.pattern.permute.xlu0 8
      %1831 = vperm.xlu0 %1830, %v216
      %v1832 = vpop.permute.xlu0 %1831
      %1834 = vset.pattern.permute.xlu0 8
      %1835 = vperm.xlu0 %1834, %v217
      %v1836 = vpop.permute.xlu0 %1835
      %1838 = vset.pattern.permute.xlu0 8
      %1839 = vperm.xlu0 %1838, %v218
      %v1840 = vpop.permute.xlu0 %1839
      %1842 = vset.pattern.permute.xlu0 8
      %1843 = vperm.xlu0 %1842, %v219
      %v1844 = vpop.permute.xlu0 %1843
      %1846 = vset.pattern.permute.xlu0 8
      %1847 = vperm.xlu0 %1846, %v220
      %v1848 = vpop.permute.xlu0 %1847
      %1850 = vset.pattern.permute.xlu0 8
      %1851 = vperm.xlu0 %1850, %v221
      %v1852 = vpop.permute.xlu0 %1851
      %1854 = vset.pattern.permute.xlu0 8
      %1855 = vperm.xlu0 %1854, %v222
      %v1856 = vpop.permute.xlu0 %1855
      %1858 = vset.pattern.permute.xlu0 8
      %1859 = vperm.xlu0 %1858, %v223
      %v1860 = vpop.permute.xlu0 %1859
      %v1862 = vlaneseq
      %v1863 = vshrl.u32 %v1862, 7
      %v1864 = vsub.s32 2, %v1863
      %v1865 = vrot.slane %v206, %v1864
      %v1866 = vmax.f32 %v1800, %v1865
      %v1867 = vmax.f32 %v1804, %v1865
      %v1868 = vmax.f32 %v1808, %v1865
      %v1869 = vmax.f32 %v1812, %v1865
      %v1870 = vmax.f32 %v1816, %v1865
      %v1871 = vmax.f32 %v1820, %v1865
      %v1872 = vmax.f32 %v1824, %v1865
      %v1873 = vmax.f32 %v1828, %v1865
      %v1874 = vmax.f32 %v1832, %v1865
      %v1875 = vmax.f32 %v1836, %v1865
      %v1876 = vmax.f32 %v1840, %v1865
      %v1877 = vmax.f32 %v1844, %v1865
      %v1878 = vmax.f32 %v1848, %v1865
      %v1879 = vmax.f32 %v1852, %v1865
      %v1880 = vmax.f32 %v1856, %v1865
      %v1881 = vmax.f32 %v1860, %v1865
      %v1882 = vsub.f32 %v1782, %v1866
      %v1883 = vsub.f32 %v1783, %v1867
      %v1884 = vsub.f32 %v1784, %v1868
      %v1885 = vsub.f32 %v1785, %v1869
      %v1886 = vsub.f32 %v1786, %v1870
      %v1887 = vsub.f32 %v1787, %v1871
      %v1888 = vsub.f32 %v1788, %v1872
      %v1889 = vsub.f32 %v1789, %v1873
      %v1890 = vsub.f32 %v1790, %v1874
      %v1891 = vsub.f32 %v1791, %v1875
      %v1892 = vsub.f32 %v1792, %v1876
      %v1893 = vsub.f32 %v1793, %v1877
      %v1894 = vsub.f32 %v1794, %v1878
      %v1895 = vsub.f32 %v1795, %v1879
      %v1896 = vsub.f32 %v1796, %v1880
      %v1897 = vsub.f32 %v1797, %v1881
      %v1898 = vadd.f32 %v1882, 1.0
      %v1899 = vadd.f32 %v1883, 1.0
      %v1900 = vadd.f32 %v1884, 1.0
      %v1901 = vadd.f32 %v1885, 1.0
      %v1902 = vadd.f32 %v1886, 1.0
      %v1903 = vadd.f32 %v1887, 1.0
      %v1904 = vadd.f32 %v1888, 1.0
      %v1905 = vadd.f32 %v1889, 1.0
      %v1906 = vadd.f32 %v1890, 1.0
      %v1907 = vadd.f32 %v1891, 1.0
      %v1908 = vadd.f32 %v1892, 1.0
      %v1909 = vadd.f32 %v1893, 1.0
      %v1910 = vadd.f32 %v1894, 1.0
      %v1911 = vadd.f32 %v1895, 1.0
      %v1912 = vadd.f32 %v1896, 1.0
      %v1913 = vadd.f32 %v1897, 1.0
      %v1914 = vmax.f32 %v1898, 0.0
      %v1915 = vmax.f32 %v1899, 0.0
      %v1916 = vmax.f32 %v1900, 0.0
      %v1917 = vmax.f32 %v1901, 0.0
      %v1918 = vmax.f32 %v1902, 0.0
      %v1919 = vmax.f32 %v1903, 0.0
      %v1920 = vmax.f32 %v1904, 0.0
      %v1921 = vmax.f32 %v1905, 0.0
      %v1922 = vmax.f32 %v1906, 0.0
      %v1923 = vmax.f32 %v1907, 0.0
      %v1924 = vmax.f32 %v1908, 0.0
      %v1925 = vmax.f32 %v1909, 0.0
      %v1926 = vmax.f32 %v1910, 0.0
      %v1927 = vmax.f32 %v1911, 0.0
      %v1928 = vmax.f32 %v1912, 0.0
      %v1929 = vmax.f32 %v1913, 0.0
      %1930 = vset.pattern.permute.xlu0 11
      %1931 = vperm.xlu0 %1930, %v208
      %v1932 = vpop.permute.xlu0 %1931
      %1934 = vset.pattern.permute.xlu0 11
      %1935 = vperm.xlu0 %1934, %v209
      %v1936 = vpop.permute.xlu0 %1935
      %1938 = vset.pattern.permute.xlu0 11
      %1939 = vperm.xlu0 %1938, %v210
      %v1940 = vpop.permute.xlu0 %1939
      %1942 = vset.pattern.permute.xlu0 11
      %1943 = vperm.xlu0 %1942, %v211
      %v1944 = vpop.permute.xlu0 %1943
      %1946 = vset.pattern.permute.xlu0 11
      %1947 = vperm.xlu0 %1946, %v212
      %v1948 = vpop.permute.xlu0 %1947
      %1950 = vset.pattern.permute.xlu0 11
      %1951 = vperm.xlu0 %1950, %v213
      %v1952 = vpop.permute.xlu0 %1951
      %1954 = vset.pattern.permute.xlu0 11
      %1955 = vperm.xlu0 %1954, %v214
      %v1956 = vpop.permute.xlu0 %1955
      %1958 = vset.pattern.permute.xlu0 11
      %1959 = vperm.xlu0 %1958, %v215
      %v1960 = vpop.permute.xlu0 %1959
      %1962 = vset.pattern.permute.xlu0 11
      %1963 = vperm.xlu0 %1962, %v216
      %v1964 = vpop.permute.xlu0 %1963
      %1966 = vset.pattern.permute.xlu0 11
      %1967 = vperm.xlu0 %1966, %v217
      %v1968 = vpop.permute.xlu0 %1967
      %1970 = vset.pattern.permute.xlu0 11
      %1971 = vperm.xlu0 %1970, %v218
      %v1972 = vpop.permute.xlu0 %1971
      %1974 = vset.pattern.permute.xlu0 11
      %1975 = vperm.xlu0 %1974, %v219
      %v1976 = vpop.permute.xlu0 %1975
      %1978 = vset.pattern.permute.xlu0 11
      %1979 = vperm.xlu0 %1978, %v220
      %v1980 = vpop.permute.xlu0 %1979
      %1982 = vset.pattern.permute.xlu0 11
      %1983 = vperm.xlu0 %1982, %v221
      %v1984 = vpop.permute.xlu0 %1983
      %1986 = vset.pattern.permute.xlu0 11
      %1987 = vperm.xlu0 %1986, %v222
      %v1988 = vpop.permute.xlu0 %1987
      %1990 = vset.pattern.permute.xlu0 11
      %1991 = vperm.xlu0 %1990, %v223
      %v1992 = vpop.permute.xlu0 %1991
      %v1994 = vlaneseq
      %v1995 = vshrl.u32 %v1994, 7
      %v1996 = vsub.s32 6, %v1995
      %v1997 = vrot.slane %v207, %v1996
      %v1998 = vmin.f32 %v1932, %v1997
      %v1999 = vmin.f32 %v1936, %v1997
      %v2000 = vmin.f32 %v1940, %v1997
      %v2001 = vmin.f32 %v1944, %v1997
      %v2002 = vmin.f32 %v1948, %v1997
      %v2003 = vmin.f32 %v1952, %v1997
      %v2004 = vmin.f32 %v1956, %v1997
      %v2005 = vmin.f32 %v1960, %v1997
      %v2006 = vmin.f32 %v1964, %v1997
      %v2007 = vmin.f32 %v1968, %v1997
      %v2008 = vmin.f32 %v1972, %v1997
      %v2009 = vmin.f32 %v1976, %v1997
      %v2010 = vmin.f32 %v1980, %v1997
      %v2011 = vmin.f32 %v1984, %v1997
      %v2012 = vmin.f32 %v1988, %v1997
      %v2013 = vmin.f32 %v1992, %v1997
      %2014 = vset.pattern.permute.xlu0 9
      %2015 = vperm.xlu0 %2014, %v208
      %v2016 = vpop.permute.xlu0 %2015
      %2018 = vset.pattern.permute.xlu0 9
      %2019 = vperm.xlu0 %2018, %v209
      %v2020 = vpop.permute.xlu0 %2019
      %2022 = vset.pattern.permute.xlu0 9
      %2023 = vperm.xlu0 %2022, %v210
      %v2024 = vpop.permute.xlu0 %2023
      %2026 = vset.pattern.permute.xlu0 9
      %2027 = vperm.xlu0 %2026, %v211
      %v2028 = vpop.permute.xlu0 %2027
      %2030 = vset.pattern.permute.xlu0 9
      %2031 = vperm.xlu0 %2030, %v212
      %v2032 = vpop.permute.xlu0 %2031
      %2034 = vset.pattern.permute.xlu0 9
      %2035 = vperm.xlu0 %2034, %v213
      %v2036 = vpop.permute.xlu0 %2035
      %2038 = vset.pattern.permute.xlu0 9
      %2039 = vperm.xlu0 %2038, %v214
      %v2040 = vpop.permute.xlu0 %2039
      %2042 = vset.pattern.permute.xlu0 9
      %2043 = vperm.xlu0 %2042, %v215
      %v2044 = vpop.permute.xlu0 %2043
      %2046 = vset.pattern.permute.xlu0 9
      %2047 = vperm.xlu0 %2046, %v216
      %v2048 = vpop.permute.xlu0 %2047
      %2050 = vset.pattern.permute.xlu0 9
      %2051 = vperm.xlu0 %2050, %v217
      %v2052 = vpop.permute.xlu0 %2051
      %2054 = vset.pattern.permute.xlu0 9
      %2055 = vperm.xlu0 %2054, %v218
      %v2056 = vpop.permute.xlu0 %2055
      %2058 = vset.pattern.permute.xlu0 9
      %2059 = vperm.xlu0 %2058, %v219
      %v2060 = vpop.permute.xlu0 %2059
      %2062 = vset.pattern.permute.xlu0 9
      %2063 = vperm.xlu0 %2062, %v220
      %v2064 = vpop.permute.xlu0 %2063
      %2066 = vset.pattern.permute.xlu0 9
      %2067 = vperm.xlu0 %2066, %v221
      %v2068 = vpop.permute.xlu0 %2067
      %2070 = vset.pattern.permute.xlu0 9
      %2071 = vperm.xlu0 %2070, %v222
      %v2072 = vpop.permute.xlu0 %2071
      %2074 = vset.pattern.permute.xlu0 9
      %2075 = vperm.xlu0 %2074, %v223
      %v2076 = vpop.permute.xlu0 %2075
      %v2078 = vlaneseq
      %v2079 = vshrl.u32 %v2078, 7
      %v2080 = vsub.s32 6, %v2079
      %v2081 = vrot.slane %v206, %v2080
      %v2082 = vmax.f32 %v2016, %v2081
      %v2083 = vmax.f32 %v2020, %v2081
      %v2084 = vmax.f32 %v2024, %v2081
      %v2085 = vmax.f32 %v2028, %v2081
      %v2086 = vmax.f32 %v2032, %v2081
      %v2087 = vmax.f32 %v2036, %v2081
      %v2088 = vmax.f32 %v2040, %v2081
      %v2089 = vmax.f32 %v2044, %v2081
      %v2090 = vmax.f32 %v2048, %v2081
      %v2091 = vmax.f32 %v2052, %v2081
      %v2092 = vmax.f32 %v2056, %v2081
      %v2093 = vmax.f32 %v2060, %v2081
      %v2094 = vmax.f32 %v2064, %v2081
      %v2095 = vmax.f32 %v2068, %v2081
      %v2096 = vmax.f32 %v2072, %v2081
      %v2097 = vmax.f32 %v2076, %v2081
      %v2098 = vsub.f32 %v1998, %v2082
      %v2099 = vsub.f32 %v1999, %v2083
      %v2100 = vsub.f32 %v2000, %v2084
      %v2101 = vsub.f32 %v2001, %v2085
      %v2102 = vsub.f32 %v2002, %v2086
      %v2103 = vsub.f32 %v2003, %v2087
      %v2104 = vsub.f32 %v2004, %v2088
      %v2105 = vsub.f32 %v2005, %v2089
      %v2106 = vsub.f32 %v2006, %v2090
      %v2107 = vsub.f32 %v2007, %v2091
      %v2108 = vsub.f32 %v2008, %v2092
      %v2109 = vsub.f32 %v2009, %v2093
      %v2110 = vsub.f32 %v2010, %v2094
      %v2111 = vsub.f32 %v2011, %v2095
      %v2112 = vsub.f32 %v2012, %v2096
      %v2113 = vsub.f32 %v2013, %v2097
      %v2114 = vadd.f32 %v2098, 1.0
      %v2115 = vadd.f32 %v2099, 1.0
      %v2116 = vadd.f32 %v2100, 1.0
      %v2117 = vadd.f32 %v2101, 1.0
      %v2118 = vadd.f32 %v2102, 1.0
      %v2119 = vadd.f32 %v2103, 1.0
      %v2120 = vadd.f32 %v2104, 1.0
      %v2121 = vadd.f32 %v2105, 1.0
      %v2122 = vadd.f32 %v2106, 1.0
      %v2123 = vadd.f32 %v2107, 1.0
      %v2124 = vadd.f32 %v2108, 1.0
      %v2125 = vadd.f32 %v2109, 1.0
      %v2126 = vadd.f32 %v2110, 1.0
      %v2127 = vadd.f32 %v2111, 1.0
      %v2128 = vadd.f32 %v2112, 1.0
      %v2129 = vadd.f32 %v2113, 1.0
      %v2130 = vmax.f32 %v2114, 0.0
      %v2131 = vmax.f32 %v2115, 0.0
      %v2132 = vmax.f32 %v2116, 0.0
      %v2133 = vmax.f32 %v2117, 0.0
      %v2134 = vmax.f32 %v2118, 0.0
      %v2135 = vmax.f32 %v2119, 0.0
      %v2136 = vmax.f32 %v2120, 0.0
      %v2137 = vmax.f32 %v2121, 0.0
      %v2138 = vmax.f32 %v2122, 0.0
      %v2139 = vmax.f32 %v2123, 0.0
      %v2140 = vmax.f32 %v2124, 0.0
      %v2141 = vmax.f32 %v2125, 0.0
      %v2142 = vmax.f32 %v2126, 0.0
      %v2143 = vmax.f32 %v2127, 0.0
      %v2144 = vmax.f32 %v2128, 0.0
      %v2145 = vmax.f32 %v2129, 0.0
      %v2146 = vmul.f32 %v1914, %v2130
      %v2147 = vmul.f32 %v1915, %v2131
      %v2148 = vmul.f32 %v1916, %v2132
      %v2149 = vmul.f32 %v1917, %v2133
      %v2150 = vmul.f32 %v1918, %v2134
      %v2151 = vmul.f32 %v1919, %v2135
      %v2152 = vmul.f32 %v1920, %v2136
      %v2153 = vmul.f32 %v1921, %v2137
      %v2154 = vmul.f32 %v1922, %v2138
      %v2155 = vmul.f32 %v1923, %v2139
      %v2156 = vmul.f32 %v1924, %v2140
      %v2157 = vmul.f32 %v1925, %v2141
      %v2158 = vmul.f32 %v1926, %v2142
      %v2159 = vmul.f32 %v1927, %v2143
      %v2160 = vmul.f32 %v1928, %v2144
      %v2161 = vmul.f32 %v1929, %v2145
      %v2162 = vmul.f32 %v2146, 1.7
      %v2163 = vmul.f32 %v2147, 1.7
      %v2164 = vmul.f32 %v2148, 1.7
      %v2165 = vmul.f32 %v2149, 1.7
      %v2166 = vmul.f32 %v2150, 1.7
      %v2167 = vmul.f32 %v2151, 1.7
      %v2168 = vmul.f32 %v2152, 1.7
      %v2169 = vmul.f32 %v2153, 1.7
      %v2170 = vmul.f32 %v2154, 1.7
      %v2171 = vmul.f32 %v2155, 1.7
      %v2172 = vmul.f32 %v2156, 1.7
      %v2173 = vmul.f32 %v2157, 1.7
      %v2174 = vmul.f32 %v2158, 1.7
      %v2175 = vmul.f32 %v2159, 1.7
      %v2176 = vmul.f32 %v2160, 1.7
      %v2177 = vmul.f32 %v2161, 1.7
      %2178 = vset.pattern.permute.xlu0 10
      %2179 = vperm.xlu0 %2178, %v425
      %v2180 = vpop.permute.xlu0 %2179
      %2182 = vset.pattern.permute.xlu0 10
      %2183 = vperm.xlu0 %2182, %v426
      %v2184 = vpop.permute.xlu0 %2183
      %2186 = vset.pattern.permute.xlu0 10
      %2187 = vperm.xlu0 %2186, %v427
      %v2188 = vpop.permute.xlu0 %2187
      %2190 = vset.pattern.permute.xlu0 10
      %2191 = vperm.xlu0 %2190, %v428
      %v2192 = vpop.permute.xlu0 %2191
      %2194 = vset.pattern.permute.xlu0 10
      %2195 = vperm.xlu0 %2194, %v429
      %v2196 = vpop.permute.xlu0 %2195
      %2198 = vset.pattern.permute.xlu0 10
      %2199 = vperm.xlu0 %2198, %v430
      %v2200 = vpop.permute.xlu0 %2199
      %2202 = vset.pattern.permute.xlu0 10
      %2203 = vperm.xlu0 %2202, %v431
      %v2204 = vpop.permute.xlu0 %2203
      %2206 = vset.pattern.permute.xlu0 10
      %2207 = vperm.xlu0 %2206, %v432
      %v2208 = vpop.permute.xlu0 %2207
      %2210 = vset.pattern.permute.xlu0 10
      %2211 = vperm.xlu0 %2210, %v433
      %v2212 = vpop.permute.xlu0 %2211
      %2214 = vset.pattern.permute.xlu0 10
      %2215 = vperm.xlu0 %2214, %v434
      %v2216 = vpop.permute.xlu0 %2215
      %2218 = vset.pattern.permute.xlu0 10
      %2219 = vperm.xlu0 %2218, %v435
      %v2220 = vpop.permute.xlu0 %2219
      %2222 = vset.pattern.permute.xlu0 10
      %2223 = vperm.xlu0 %2222, %v436
      %v2224 = vpop.permute.xlu0 %2223
      %2226 = vset.pattern.permute.xlu0 10
      %2227 = vperm.xlu0 %2226, %v437
      %v2228 = vpop.permute.xlu0 %2227
      %2230 = vset.pattern.permute.xlu0 10
      %2231 = vperm.xlu0 %2230, %v438
      %v2232 = vpop.permute.xlu0 %2231
      %2234 = vset.pattern.permute.xlu0 10
      %2235 = vperm.xlu0 %2234, %v439
      %v2236 = vpop.permute.xlu0 %2235
      %2238 = vset.pattern.permute.xlu0 10
      %2239 = vperm.xlu0 %2238, %v440
      %v2240 = vpop.permute.xlu0 %2239
      %v2242 = vlaneseq
      %v2243 = vshrl.u32 %v2242, 7
      %v2244 = vsub.s32 2, %v2243
      %v2245 = vrot.slane %v264, %v2244
      %v2246 = vadd.f32 %v2180, %v2245
      %v2247 = vadd.f32 %v2184, %v2245
      %v2248 = vadd.f32 %v2188, %v2245
      %v2249 = vadd.f32 %v2192, %v2245
      %v2250 = vadd.f32 %v2196, %v2245
      %v2251 = vadd.f32 %v2200, %v2245
      %v2252 = vadd.f32 %v2204, %v2245
      %v2253 = vadd.f32 %v2208, %v2245
      %v2254 = vadd.f32 %v2212, %v2245
      %v2255 = vadd.f32 %v2216, %v2245
      %v2256 = vadd.f32 %v2220, %v2245
      %v2257 = vadd.f32 %v2224, %v2245
      %v2258 = vadd.f32 %v2228, %v2245
      %v2259 = vadd.f32 %v2232, %v2245
      %v2260 = vadd.f32 %v2236, %v2245
      %v2261 = vadd.f32 %v2240, %v2245
      %v2262 = vmul.f32 %v2246, 0.7
      %v2263 = vmul.f32 %v2247, 0.7
      %v2264 = vmul.f32 %v2248, 0.7
      %v2265 = vmul.f32 %v2249, 0.7
      %v2266 = vmul.f32 %v2250, 0.7
      %v2267 = vmul.f32 %v2251, 0.7
      %v2268 = vmul.f32 %v2252, 0.7
      %v2269 = vmul.f32 %v2253, 0.7
      %v2270 = vmul.f32 %v2254, 0.7
      %v2271 = vmul.f32 %v2255, 0.7
      %v2272 = vmul.f32 %v2256, 0.7
      %v2273 = vmul.f32 %v2257, 0.7
      %v2274 = vmul.f32 %v2258, 0.7
      %v2275 = vmul.f32 %v2259, 0.7
      %v2276 = vmul.f32 %v2260, 0.7
      %v2277 = vmul.f32 %v2261, 0.7
      %vm2278 = vcmp.gt.f32.partialorder %v2162, %v2262
      %vm2279 = vcmp.gt.f32.partialorder %v2163, %v2263
      %vm2280 = vcmp.gt.f32.partialorder %v2164, %v2264
      %vm2281 = vcmp.gt.f32.partialorder %v2165, %v2265
      %vm2282 = vcmp.gt.f32.partialorder %v2166, %v2266
      %vm2283 = vcmp.gt.f32.partialorder %v2167, %v2267
      %vm2284 = vcmp.gt.f32.partialorder %v2168, %v2268
      %vm2285 = vcmp.gt.f32.partialorder %v2169, %v2269
      %vm2286 = vcmp.gt.f32.partialorder %v2170, %v2270
      %vm2287 = vcmp.gt.f32.partialorder %v2171, %v2271
      %vm2288 = vcmp.gt.f32.partialorder %v2172, %v2272
      %vm2289 = vcmp.gt.f32.partialorder %v2173, %v2273
      %vm2290 = vcmp.gt.f32.partialorder %v2174, %v2274
      %vm2291 = vcmp.gt.f32.partialorder %v2175, %v2275
      %vm2292 = vcmp.gt.f32.partialorder %v2176, %v2276
      %vm2293 = vcmp.gt.f32.partialorder %v2177, %v2277
      %vm2294 = vmand %vm2278, %vm243
      %vm2295 = vmand %vm2279, %vm244
      %vm2296 = vmand %vm2280, %vm245
      %vm2297 = vmand %vm2281, %vm246
      %vm2298 = vmand %vm2282, %vm247
      %vm2299 = vmand %vm2283, %vm248
      %vm2300 = vmand %vm2284, %vm249
      %vm2301 = vmand %vm2285, %vm250
      %vm2302 = vmand %vm2286, %vm251
      %vm2303 = vmand %vm2287, %vm252
      %vm2304 = vmand %vm2288, %vm253
      %vm2305 = vmand %vm2289, %vm254
      %vm2306 = vmand %vm2290, %vm255
      %vm2307 = vmand %vm2291, %vm256
      %vm2308 = vmand %vm2292, %vm257
      %vm2309 = vmand %vm2293, %vm258
      %v2310 = vsel %vm2294, 1.0, 0.0
      %v2311 = vsel %vm2295, 1.0, 0.0
      %v2312 = vsel %vm2296, 1.0, 0.0
      %v2313 = vsel %vm2297, 1.0, 0.0
      %v2314 = vsel %vm2298, 1.0, 0.0
      %v2315 = vsel %vm2299, 1.0, 0.0
      %v2316 = vsel %vm2300, 1.0, 0.0
      %v2317 = vsel %vm2301, 1.0, 0.0
      %v2318 = vsel %vm2302, 1.0, 0.0
      %v2319 = vsel %vm2303, 1.0, 0.0
      %v2320 = vsel %vm2304, 1.0, 0.0
      %v2321 = vsel %vm2305, 1.0, 0.0
      %v2322 = vsel %vm2306, 1.0, 0.0
      %v2323 = vsel %vm2307, 1.0, 0.0
      %v2324 = vsel %vm2308, 1.0, 0.0
      %v2325 = vsel %vm2309, 1.0, 0.0
      %s2326 = scalar_lea.vmem [#allocation2], 256
      %2327 = vst [vmem:[%s2326] sm:$0xff] %v2310
      %2328 = vst [vmem:[%s2326 + $0x8] sm:$0xff] %v2311
      %2329 = vst [vmem:[%s2326 + $0x10] sm:$0xff] %v2312
      %2330 = vst [vmem:[%s2326 + $0x18] sm:$0xff] %v2313
      %2331 = vst [vmem:[%s2326 + $0x20] sm:$0xff] %v2314
      %2332 = vst [vmem:[%s2326 + $0x28] sm:$0xff] %v2315
      %2333 = vst [vmem:[%s2326 + $0x30] sm:$0xff] %v2316
      %2334 = vst [vmem:[%s2326 + $0x38] sm:$0xff] %v2317
      %2335 = vst [vmem:[%s2326 + $0x40] sm:$0xff] %v2318
      %2336 = vst [vmem:[%s2326 + $0x48] sm:$0xff] %v2319
      %2337 = vst [vmem:[%s2326 + $0x50] sm:$0xff] %v2320
      %2338 = vst [vmem:[%s2326 + $0x58] sm:$0xff] %v2321
      %2339 = vst [vmem:[%s2326 + $0x60] sm:$0xff] %v2322
      %2340 = vst [vmem:[%s2326 + $0x68] sm:$0xff] %v2323
      %2341 = vst [vmem:[%s2326 + $0x70] sm:$0xff] %v2324
      %2342 = vst [vmem:[%s2326 + $0x78] sm:$0xff] %v2325
      %2343 = vset.pattern.permute.xlu0 14
      %2344 = vperm.xlu0 %2343, %v208
      %v2345 = vpop.permute.xlu0 %2344
      %2347 = vset.pattern.permute.xlu0 14
      %2348 = vperm.xlu0 %2347, %v209
      %v2349 = vpop.permute.xlu0 %2348
      %2351 = vset.pattern.permute.xlu0 14
      %2352 = vperm.xlu0 %2351, %v210
      %v2353 = vpop.permute.xlu0 %2352
      %2355 = vset.pattern.permute.xlu0 14
      %2356 = vperm.xlu0 %2355, %v211
      %v2357 = vpop.permute.xlu0 %2356
      %2359 = vset.pattern.permute.xlu0 14
      %2360 = vperm.xlu0 %2359, %v212
      %v2361 = vpop.permute.xlu0 %2360
      %2363 = vset.pattern.permute.xlu0 14
      %2364 = vperm.xlu0 %2363, %v213
      %v2365 = vpop.permute.xlu0 %2364
      %2367 = vset.pattern.permute.xlu0 14
      %2368 = vperm.xlu0 %2367, %v214
      %v2369 = vpop.permute.xlu0 %2368
      %2371 = vset.pattern.permute.xlu0 14
      %2372 = vperm.xlu0 %2371, %v215
      %v2373 = vpop.permute.xlu0 %2372
      %2375 = vset.pattern.permute.xlu0 14
      %2376 = vperm.xlu0 %2375, %v216
      %v2377 = vpop.permute.xlu0 %2376
      %2379 = vset.pattern.permute.xlu0 14
      %2380 = vperm.xlu0 %2379, %v217
      %v2381 = vpop.permute.xlu0 %2380
      %2383 = vset.pattern.permute.xlu0 14
      %2384 = vperm.xlu0 %2383, %v218
      %v2385 = vpop.permute.xlu0 %2384
      %2387 = vset.pattern.permute.xlu0 14
      %2388 = vperm.xlu0 %2387, %v219
      %v2389 = vpop.permute.xlu0 %2388
      %2391 = vset.pattern.permute.xlu0 14
      %2392 = vperm.xlu0 %2391, %v220
      %v2393 = vpop.permute.xlu0 %2392
      %2395 = vset.pattern.permute.xlu0 14
      %2396 = vperm.xlu0 %2395, %v221
      %v2397 = vpop.permute.xlu0 %2396
      %2399 = vset.pattern.permute.xlu0 14
      %2400 = vperm.xlu0 %2399, %v222
      %v2401 = vpop.permute.xlu0 %2400
      %2403 = vset.pattern.permute.xlu0 14
      %2404 = vperm.xlu0 %2403, %v223
      %v2405 = vpop.permute.xlu0 %2404
      %v2407 = vlaneseq
      %v2408 = vshrl.u32 %v2407, 7
      %v2409 = vsub.s32 3, %v2408
      %v2410 = vrot.slane %v207, %v2409
      %v2411 = vmin.f32 %v2345, %v2410
      %v2412 = vmin.f32 %v2349, %v2410
      %v2413 = vmin.f32 %v2353, %v2410
      %v2414 = vmin.f32 %v2357, %v2410
      %v2415 = vmin.f32 %v2361, %v2410
      %v2416 = vmin.f32 %v2365, %v2410
      %v2417 = vmin.f32 %v2369, %v2410
      %v2418 = vmin.f32 %v2373, %v2410
      %v2419 = vmin.f32 %v2377, %v2410
      %v2420 = vmin.f32 %v2381, %v2410
      %v2421 = vmin.f32 %v2385, %v2410
      %v2422 = vmin.f32 %v2389, %v2410
      %v2423 = vmin.f32 %v2393, %v2410
      %v2424 = vmin.f32 %v2397, %v2410
      %v2425 = vmin.f32 %v2401, %v2410
      %v2426 = vmin.f32 %v2405, %v2410
      %2427 = vset.pattern.permute.xlu0 12
      %2428 = vperm.xlu0 %2427, %v208
      %v2429 = vpop.permute.xlu0 %2428
      %2431 = vset.pattern.permute.xlu0 12
      %2432 = vperm.xlu0 %2431, %v209
      %v2433 = vpop.permute.xlu0 %2432
      %2435 = vset.pattern.permute.xlu0 12
      %2436 = vperm.xlu0 %2435, %v210
      %v2437 = vpop.permute.xlu0 %2436
      %2439 = vset.pattern.permute.xlu0 12
      %2440 = vperm.xlu0 %2439, %v211
      %v2441 = vpop.permute.xlu0 %2440
      %2443 = vset.pattern.permute.xlu0 12
      %2444 = vperm.xlu0 %2443, %v212
      %v2445 = vpop.permute.xlu0 %2444
      %2447 = vset.pattern.permute.xlu0 12
      %2448 = vperm.xlu0 %2447, %v213
      %v2449 = vpop.permute.xlu0 %2448
      %2451 = vset.pattern.permute.xlu0 12
      %2452 = vperm.xlu0 %2451, %v214
      %v2453 = vpop.permute.xlu0 %2452
      %2455 = vset.pattern.permute.xlu0 12
      %2456 = vperm.xlu0 %2455, %v215
      %v2457 = vpop.permute.xlu0 %2456
      %2459 = vset.pattern.permute.xlu0 12
      %2460 = vperm.xlu0 %2459, %v216
      %v2461 = vpop.permute.xlu0 %2460
      %2463 = vset.pattern.permute.xlu0 12
      %2464 = vperm.xlu0 %2463, %v217
      %v2465 = vpop.permute.xlu0 %2464
      %2467 = vset.pattern.permute.xlu0 12
      %2468 = vperm.xlu0 %2467, %v218
      %v2469 = vpop.permute.xlu0 %2468
      %2471 = vset.pattern.permute.xlu0 12
      %2472 = vperm.xlu0 %2471, %v219
      %v2473 = vpop.permute.xlu0 %2472
      %2475 = vset.pattern.permute.xlu0 12
      %2476 = vperm.xlu0 %2475, %v220
      %v2477 = vpop.permute.xlu0 %2476
      %2479 = vset.pattern.permute.xlu0 12
      %2480 = vperm.xlu0 %2479, %v221
      %v2481 = vpop.permute.xlu0 %2480
      %2483 = vset.pattern.permute.xlu0 12
      %2484 = vperm.xlu0 %2483, %v222
      %v2485 = vpop.permute.xlu0 %2484
      %2487 = vset.pattern.permute.xlu0 12
      %2488 = vperm.xlu0 %2487, %v223
      %v2489 = vpop.permute.xlu0 %2488
      %v2491 = vlaneseq
      %v2492 = vshrl.u32 %v2491, 7
      %v2493 = vsub.s32 3, %v2492
      %v2494 = vrot.slane %v206, %v2493
      %v2495 = vmax.f32 %v2429, %v2494
      %v2496 = vmax.f32 %v2433, %v2494
      %v2497 = vmax.f32 %v2437, %v2494
      %v2498 = vmax.f32 %v2441, %v2494
      %v2499 = vmax.f32 %v2445, %v2494
      %v2500 = vmax.f32 %v2449, %v2494
      %v2501 = vmax.f32 %v2453, %v2494
      %v2502 = vmax.f32 %v2457, %v2494
      %v2503 = vmax.f32 %v2461, %v2494
      %v2504 = vmax.f32 %v2465, %v2494
      %v2505 = vmax.f32 %v2469, %v2494
      %v2506 = vmax.f32 %v2473, %v2494
      %v2507 = vmax.f32 %v2477, %v2494
      %v2508 = vmax.f32 %v2481, %v2494
      %v2509 = vmax.f32 %v2485, %v2494
      %v2510 = vmax.f32 %v2489, %v2494
      %v2511 = vsub.f32 %v2411, %v2495
      %v2512 = vsub.f32 %v2412, %v2496
      %v2513 = vsub.f32 %v2413, %v2497
      %v2514 = vsub.f32 %v2414, %v2498
      %v2515 = vsub.f32 %v2415, %v2499
      %v2516 = vsub.f32 %v2416, %v2500
      %v2517 = vsub.f32 %v2417, %v2501
      %v2518 = vsub.f32 %v2418, %v2502
      %v2519 = vsub.f32 %v2419, %v2503
      %v2520 = vsub.f32 %v2420, %v2504
      %v2521 = vsub.f32 %v2421, %v2505
      %v2522 = vsub.f32 %v2422, %v2506
      %v2523 = vsub.f32 %v2423, %v2507
      %v2524 = vsub.f32 %v2424, %v2508
      %v2525 = vsub.f32 %v2425, %v2509
      %v2526 = vsub.f32 %v2426, %v2510
      %v2527 = vadd.f32 %v2511, 1.0
      %v2528 = vadd.f32 %v2512, 1.0
      %v2529 = vadd.f32 %v2513, 1.0
      %v2530 = vadd.f32 %v2514, 1.0
      %v2531 = vadd.f32 %v2515, 1.0
      %v2532 = vadd.f32 %v2516, 1.0
      %v2533 = vadd.f32 %v2517, 1.0
      %v2534 = vadd.f32 %v2518, 1.0
      %v2535 = vadd.f32 %v2519, 1.0
      %v2536 = vadd.f32 %v2520, 1.0
      %v2537 = vadd.f32 %v2521, 1.0
      %v2538 = vadd.f32 %v2522, 1.0
      %v2539 = vadd.f32 %v2523, 1.0
      %v2540 = vadd.f32 %v2524, 1.0
      %v2541 = vadd.f32 %v2525, 1.0
      %v2542 = vadd.f32 %v2526, 1.0
      %v2543 = vmax.f32 %v2527, 0.0
      %v2544 = vmax.f32 %v2528, 0.0
      %v2545 = vmax.f32 %v2529, 0.0
      %v2546 = vmax.f32 %v2530, 0.0
      %v2547 = vmax.f32 %v2531, 0.0
      %v2548 = vmax.f32 %v2532, 0.0
      %v2549 = vmax.f32 %v2533, 0.0
      %v2550 = vmax.f32 %v2534, 0.0
      %v2551 = vmax.f32 %v2535, 0.0
      %v2552 = vmax.f32 %v2536, 0.0
      %v2553 = vmax.f32 %v2537, 0.0
      %v2554 = vmax.f32 %v2538, 0.0
      %v2555 = vmax.f32 %v2539, 0.0
      %v2556 = vmax.f32 %v2540, 0.0
      %v2557 = vmax.f32 %v2541, 0.0
      %v2558 = vmax.f32 %v2542, 0.0
      %2559 = vset.pattern.permute.xlu0 15
      %2560 = vperm.xlu0 %2559, %v208
      %v2561 = vpop.permute.xlu0 %2560
      %2563 = vset.pattern.permute.xlu0 15
      %2564 = vperm.xlu0 %2563, %v209
      %v2565 = vpop.permute.xlu0 %2564
      %2567 = vset.pattern.permute.xlu0 15
      %2568 = vperm.xlu0 %2567, %v210
      %v2569 = vpop.permute.xlu0 %2568
      %2571 = vset.pattern.permute.xlu0 15
      %2572 = vperm.xlu0 %2571, %v211
      %v2573 = vpop.permute.xlu0 %2572
      %2575 = vset.pattern.permute.xlu0 15
      %2576 = vperm.xlu0 %2575, %v212
      %v2577 = vpop.permute.xlu0 %2576
      %2579 = vset.pattern.permute.xlu0 15
      %2580 = vperm.xlu0 %2579, %v213
      %v2581 = vpop.permute.xlu0 %2580
      %2583 = vset.pattern.permute.xlu0 15
      %2584 = vperm.xlu0 %2583, %v214
      %v2585 = vpop.permute.xlu0 %2584
      %2587 = vset.pattern.permute.xlu0 15
      %2588 = vperm.xlu0 %2587, %v215
      %v2589 = vpop.permute.xlu0 %2588
      %2591 = vset.pattern.permute.xlu0 15
      %2592 = vperm.xlu0 %2591, %v216
      %v2593 = vpop.permute.xlu0 %2592
      %2595 = vset.pattern.permute.xlu0 15
      %2596 = vperm.xlu0 %2595, %v217
      %v2597 = vpop.permute.xlu0 %2596
      %2599 = vset.pattern.permute.xlu0 15
      %2600 = vperm.xlu0 %2599, %v218
      %v2601 = vpop.permute.xlu0 %2600
      %2603 = vset.pattern.permute.xlu0 15
      %2604 = vperm.xlu0 %2603, %v219
      %v2605 = vpop.permute.xlu0 %2604
      %2607 = vset.pattern.permute.xlu0 15
      %2608 = vperm.xlu0 %2607, %v220
      %v2609 = vpop.permute.xlu0 %2608
      %2611 = vset.pattern.permute.xlu0 15
      %2612 = vperm.xlu0 %2611, %v221
      %v2613 = vpop.permute.xlu0 %2612
      %2615 = vset.pattern.permute.xlu0 15
      %2616 = vperm.xlu0 %2615, %v222
      %v2617 = vpop.permute.xlu0 %2616
      %2619 = vset.pattern.permute.xlu0 15
      %2620 = vperm.xlu0 %2619, %v223
      %v2621 = vpop.permute.xlu0 %2620
      %v2623 = vlaneseq
      %v2624 = vshrl.u32 %v2623, 7
      %v2625 = vsub.s32 7, %v2624
      %v2626 = vrot.slane %v207, %v2625
      %v2627 = vmin.f32 %v2561, %v2626
      %v2628 = vmin.f32 %v2565, %v2626
      %v2629 = vmin.f32 %v2569, %v2626
      %v2630 = vmin.f32 %v2573, %v2626
      %v2631 = vmin.f32 %v2577, %v2626
      %v2632 = vmin.f32 %v2581, %v2626
      %v2633 = vmin.f32 %v2585, %v2626
      %v2634 = vmin.f32 %v2589, %v2626
      %v2635 = vmin.f32 %v2593, %v2626
      %v2636 = vmin.f32 %v2597, %v2626
      %v2637 = vmin.f32 %v2601, %v2626
      %v2638 = vmin.f32 %v2605, %v2626
      %v2639 = vmin.f32 %v2609, %v2626
      %v2640 = vmin.f32 %v2613, %v2626
      %v2641 = vmin.f32 %v2617, %v2626
      %v2642 = vmin.f32 %v2621, %v2626
      %2643 = vset.pattern.permute.xlu0 13
      %2644 = vperm.xlu0 %2643, %v208
      %v2645 = vpop.permute.xlu0 %2644
      %2647 = vset.pattern.permute.xlu0 13
      %2648 = vperm.xlu0 %2647, %v209
      %v2649 = vpop.permute.xlu0 %2648
      %2651 = vset.pattern.permute.xlu0 13
      %2652 = vperm.xlu0 %2651, %v210
      %v2653 = vpop.permute.xlu0 %2652
      %2655 = vset.pattern.permute.xlu0 13
      %2656 = vperm.xlu0 %2655, %v211
      %v2657 = vpop.permute.xlu0 %2656
      %2659 = vset.pattern.permute.xlu0 13
      %2660 = vperm.xlu0 %2659, %v212
      %v2661 = vpop.permute.xlu0 %2660
      %2663 = vset.pattern.permute.xlu0 13
      %2664 = vperm.xlu0 %2663, %v213
      %v2665 = vpop.permute.xlu0 %2664
      %2667 = vset.pattern.permute.xlu0 13
      %2668 = vperm.xlu0 %2667, %v214
      %v2669 = vpop.permute.xlu0 %2668
      %2671 = vset.pattern.permute.xlu0 13
      %2672 = vperm.xlu0 %2671, %v215
      %v2673 = vpop.permute.xlu0 %2672
      %2675 = vset.pattern.permute.xlu0 13
      %2676 = vperm.xlu0 %2675, %v216
      %v2677 = vpop.permute.xlu0 %2676
      %2679 = vset.pattern.permute.xlu0 13
      %2680 = vperm.xlu0 %2679, %v217
      %v2681 = vpop.permute.xlu0 %2680
      %2683 = vset.pattern.permute.xlu0 13
      %2684 = vperm.xlu0 %2683, %v218
      %v2685 = vpop.permute.xlu0 %2684
      %2687 = vset.pattern.permute.xlu0 13
      %2688 = vperm.xlu0 %2687, %v219
      %v2689 = vpop.permute.xlu0 %2688
      %2691 = vset.pattern.permute.xlu0 13
      %2692 = vperm.xlu0 %2691, %v220
      %v2693 = vpop.permute.xlu0 %2692
      %2695 = vset.pattern.permute.xlu0 13
      %2696 = vperm.xlu0 %2695, %v221
      %v2697 = vpop.permute.xlu0 %2696
      %2699 = vset.pattern.permute.xlu0 13
      %2700 = vperm.xlu0 %2699, %v222
      %v2701 = vpop.permute.xlu0 %2700
      %2703 = vset.pattern.permute.xlu0 13
      %2704 = vperm.xlu0 %2703, %v223
      %v2705 = vpop.permute.xlu0 %2704
      %v2707 = vlaneseq
      %v2708 = vshrl.u32 %v2707, 7
      %v2709 = vsub.s32 7, %v2708
      %v2710 = vrot.slane %v206, %v2709
      %v2711 = vmax.f32 %v2645, %v2710
      %v2712 = vmax.f32 %v2649, %v2710
      %v2713 = vmax.f32 %v2653, %v2710
      %v2714 = vmax.f32 %v2657, %v2710
      %v2715 = vmax.f32 %v2661, %v2710
      %v2716 = vmax.f32 %v2665, %v2710
      %v2717 = vmax.f32 %v2669, %v2710
      %v2718 = vmax.f32 %v2673, %v2710
      %v2719 = vmax.f32 %v2677, %v2710
      %v2720 = vmax.f32 %v2681, %v2710
      %v2721 = vmax.f32 %v2685, %v2710
      %v2722 = vmax.f32 %v2689, %v2710
      %v2723 = vmax.f32 %v2693, %v2710
      %v2724 = vmax.f32 %v2697, %v2710
      %v2725 = vmax.f32 %v2701, %v2710
      %v2726 = vmax.f32 %v2705, %v2710
      %v2727 = vsub.f32 %v2627, %v2711
      %v2728 = vsub.f32 %v2628, %v2712
      %v2729 = vsub.f32 %v2629, %v2713
      %v2730 = vsub.f32 %v2630, %v2714
      %v2731 = vsub.f32 %v2631, %v2715
      %v2732 = vsub.f32 %v2632, %v2716
      %v2733 = vsub.f32 %v2633, %v2717
      %v2734 = vsub.f32 %v2634, %v2718
      %v2735 = vsub.f32 %v2635, %v2719
      %v2736 = vsub.f32 %v2636, %v2720
      %v2737 = vsub.f32 %v2637, %v2721
      %v2738 = vsub.f32 %v2638, %v2722
      %v2739 = vsub.f32 %v2639, %v2723
      %v2740 = vsub.f32 %v2640, %v2724
      %v2741 = vsub.f32 %v2641, %v2725
      %v2742 = vsub.f32 %v2642, %v2726
      %v2743 = vadd.f32 %v2727, 1.0
      %v2744 = vadd.f32 %v2728, 1.0
      %v2745 = vadd.f32 %v2729, 1.0
      %v2746 = vadd.f32 %v2730, 1.0
      %v2747 = vadd.f32 %v2731, 1.0
      %v2748 = vadd.f32 %v2732, 1.0
      %v2749 = vadd.f32 %v2733, 1.0
      %v2750 = vadd.f32 %v2734, 1.0
      %v2751 = vadd.f32 %v2735, 1.0
      %v2752 = vadd.f32 %v2736, 1.0
      %v2753 = vadd.f32 %v2737, 1.0
      %v2754 = vadd.f32 %v2738, 1.0
      %v2755 = vadd.f32 %v2739, 1.0
      %v2756 = vadd.f32 %v2740, 1.0
      %v2757 = vadd.f32 %v2741, 1.0
      %v2758 = vadd.f32 %v2742, 1.0
      %v2759 = vmax.f32 %v2743, 0.0
      %v2760 = vmax.f32 %v2744, 0.0
      %v2761 = vmax.f32 %v2745, 0.0
      %v2762 = vmax.f32 %v2746, 0.0
      %v2763 = vmax.f32 %v2747, 0.0
      %v2764 = vmax.f32 %v2748, 0.0
      %v2765 = vmax.f32 %v2749, 0.0
      %v2766 = vmax.f32 %v2750, 0.0
      %v2767 = vmax.f32 %v2751, 0.0
      %v2768 = vmax.f32 %v2752, 0.0
      %v2769 = vmax.f32 %v2753, 0.0
      %v2770 = vmax.f32 %v2754, 0.0
      %v2771 = vmax.f32 %v2755, 0.0
      %v2772 = vmax.f32 %v2756, 0.0
      %v2773 = vmax.f32 %v2757, 0.0
      %v2774 = vmax.f32 %v2758, 0.0
      %v2775 = vmul.f32 %v2543, %v2759
      %v2776 = vmul.f32 %v2544, %v2760
      %v2777 = vmul.f32 %v2545, %v2761
      %v2778 = vmul.f32 %v2546, %v2762
      %v2779 = vmul.f32 %v2547, %v2763
      %v2780 = vmul.f32 %v2548, %v2764
      %v2781 = vmul.f32 %v2549, %v2765
      %v2782 = vmul.f32 %v2550, %v2766
      %v2783 = vmul.f32 %v2551, %v2767
      %v2784 = vmul.f32 %v2552, %v2768
      %v2785 = vmul.f32 %v2553, %v2769
      %v2786 = vmul.f32 %v2554, %v2770
      %v2787 = vmul.f32 %v2555, %v2771
      %v2788 = vmul.f32 %v2556, %v2772
      %v2789 = vmul.f32 %v2557, %v2773
      %v2790 = vmul.f32 %v2558, %v2774
      %v2791 = vmul.f32 %v2775, 1.7
      %v2792 = vmul.f32 %v2776, 1.7
      %v2793 = vmul.f32 %v2777, 1.7
      %v2794 = vmul.f32 %v2778, 1.7
      %v2795 = vmul.f32 %v2779, 1.7
      %v2796 = vmul.f32 %v2780, 1.7
      %v2797 = vmul.f32 %v2781, 1.7
      %v2798 = vmul.f32 %v2782, 1.7
      %v2799 = vmul.f32 %v2783, 1.7
      %v2800 = vmul.f32 %v2784, 1.7
      %v2801 = vmul.f32 %v2785, 1.7
      %v2802 = vmul.f32 %v2786, 1.7
      %v2803 = vmul.f32 %v2787, 1.7
      %v2804 = vmul.f32 %v2788, 1.7
      %v2805 = vmul.f32 %v2789, 1.7
      %v2806 = vmul.f32 %v2790, 1.7
      %2807 = vset.pattern.permute.xlu0 14
      %2808 = vperm.xlu0 %2807, %v425
      %v2809 = vpop.permute.xlu0 %2808
      %2811 = vset.pattern.permute.xlu0 14
      %2812 = vperm.xlu0 %2811, %v426
      %v2813 = vpop.permute.xlu0 %2812
      %2815 = vset.pattern.permute.xlu0 14
      %2816 = vperm.xlu0 %2815, %v427
      %v2817 = vpop.permute.xlu0 %2816
      %2819 = vset.pattern.permute.xlu0 14
      %2820 = vperm.xlu0 %2819, %v428
      %v2821 = vpop.permute.xlu0 %2820
      %2823 = vset.pattern.permute.xlu0 14
      %2824 = vperm.xlu0 %2823, %v429
      %v2825 = vpop.permute.xlu0 %2824
      %2827 = vset.pattern.permute.xlu0 14
      %2828 = vperm.xlu0 %2827, %v430
      %v2829 = vpop.permute.xlu0 %2828
      %2831 = vset.pattern.permute.xlu0 14
      %2832 = vperm.xlu0 %2831, %v431
      %v2833 = vpop.permute.xlu0 %2832
      %2835 = vset.pattern.permute.xlu0 14
      %2836 = vperm.xlu0 %2835, %v432
      %v2837 = vpop.permute.xlu0 %2836
      %2839 = vset.pattern.permute.xlu0 14
      %2840 = vperm.xlu0 %2839, %v433
      %v2841 = vpop.permute.xlu0 %2840
      %2843 = vset.pattern.permute.xlu0 14
      %2844 = vperm.xlu0 %2843, %v434
      %v2845 = vpop.permute.xlu0 %2844
      %2847 = vset.pattern.permute.xlu0 14
      %2848 = vperm.xlu0 %2847, %v435
      %v2849 = vpop.permute.xlu0 %2848
      %2851 = vset.pattern.permute.xlu0 14
      %2852 = vperm.xlu0 %2851, %v436
      %v2853 = vpop.permute.xlu0 %2852
      %2855 = vset.pattern.permute.xlu0 14
      %2856 = vperm.xlu0 %2855, %v437
      %v2857 = vpop.permute.xlu0 %2856
      %2859 = vset.pattern.permute.xlu0 14
      %2860 = vperm.xlu0 %2859, %v438
      %v2861 = vpop.permute.xlu0 %2860
      %2863 = vset.pattern.permute.xlu0 14
      %2864 = vperm.xlu0 %2863, %v439
      %v2865 = vpop.permute.xlu0 %2864
      %2867 = vset.pattern.permute.xlu0 14
      %2868 = vperm.xlu0 %2867, %v440
      %v2869 = vpop.permute.xlu0 %2868
      %v2871 = vlaneseq
      %v2872 = vshrl.u32 %v2871, 7
      %v2873 = vsub.s32 3, %v2872
      %v2874 = vrot.slane %v264, %v2873
      %v2875 = vadd.f32 %v2809, %v2874
      %v2876 = vadd.f32 %v2813, %v2874
      %v2877 = vadd.f32 %v2817, %v2874
      %v2878 = vadd.f32 %v2821, %v2874
      %v2879 = vadd.f32 %v2825, %v2874
      %v2880 = vadd.f32 %v2829, %v2874
      %v2881 = vadd.f32 %v2833, %v2874
      %v2882 = vadd.f32 %v2837, %v2874
      %v2883 = vadd.f32 %v2841, %v2874
      %v2884 = vadd.f32 %v2845, %v2874
      %v2885 = vadd.f32 %v2849, %v2874
      %v2886 = vadd.f32 %v2853, %v2874
      %v2887 = vadd.f32 %v2857, %v2874
      %v2888 = vadd.f32 %v2861, %v2874
      %v2889 = vadd.f32 %v2865, %v2874
      %v2890 = vadd.f32 %v2869, %v2874
      %v2891 = vmul.f32 %v2875, 0.7
      %v2892 = vmul.f32 %v2876, 0.7
      %v2893 = vmul.f32 %v2877, 0.7
      %v2894 = vmul.f32 %v2878, 0.7
      %v2895 = vmul.f32 %v2879, 0.7
      %v2896 = vmul.f32 %v2880, 0.7
      %v2897 = vmul.f32 %v2881, 0.7
      %v2898 = vmul.f32 %v2882, 0.7
      %v2899 = vmul.f32 %v2883, 0.7
      %v2900 = vmul.f32 %v2884, 0.7
      %v2901 = vmul.f32 %v2885, 0.7
      %v2902 = vmul.f32 %v2886, 0.7
      %v2903 = vmul.f32 %v2887, 0.7
      %v2904 = vmul.f32 %v2888, 0.7
      %v2905 = vmul.f32 %v2889, 0.7
      %v2906 = vmul.f32 %v2890, 0.7
      %vm2907 = vcmp.gt.f32.partialorder %v2791, %v2891
      %vm2908 = vcmp.gt.f32.partialorder %v2792, %v2892
      %vm2909 = vcmp.gt.f32.partialorder %v2793, %v2893
      %vm2910 = vcmp.gt.f32.partialorder %v2794, %v2894
      %vm2911 = vcmp.gt.f32.partialorder %v2795, %v2895
      %vm2912 = vcmp.gt.f32.partialorder %v2796, %v2896
      %vm2913 = vcmp.gt.f32.partialorder %v2797, %v2897
      %vm2914 = vcmp.gt.f32.partialorder %v2798, %v2898
      %vm2915 = vcmp.gt.f32.partialorder %v2799, %v2899
      %vm2916 = vcmp.gt.f32.partialorder %v2800, %v2900
      %vm2917 = vcmp.gt.f32.partialorder %v2801, %v2901
      %vm2918 = vcmp.gt.f32.partialorder %v2802, %v2902
      %vm2919 = vcmp.gt.f32.partialorder %v2803, %v2903
      %vm2920 = vcmp.gt.f32.partialorder %v2804, %v2904
      %vm2921 = vcmp.gt.f32.partialorder %v2805, %v2905
      %vm2922 = vcmp.gt.f32.partialorder %v2806, %v2906
      %vm2923 = vmand %vm2907, %vm243
      %vm2924 = vmand %vm2908, %vm244
      %vm2925 = vmand %vm2909, %vm245
      %vm2926 = vmand %vm2910, %vm246
      %vm2927 = vmand %vm2911, %vm247
      %vm2928 = vmand %vm2912, %vm248
      %vm2929 = vmand %vm2913, %vm249
      %vm2930 = vmand %vm2914, %vm250
      %vm2931 = vmand %vm2915, %vm251
      %vm2932 = vmand %vm2916, %vm252
      %vm2933 = vmand %vm2917, %vm253
      %vm2934 = vmand %vm2918, %vm254
      %vm2935 = vmand %vm2919, %vm255
      %vm2936 = vmand %vm2920, %vm256
      %vm2937 = vmand %vm2921, %vm257
      %vm2938 = vmand %vm2922, %vm258
      %v2939 = vsel %vm2923, 1.0, 0.0
      %v2940 = vsel %vm2924, 1.0, 0.0
      %v2941 = vsel %vm2925, 1.0, 0.0
      %v2942 = vsel %vm2926, 1.0, 0.0
      %v2943 = vsel %vm2927, 1.0, 0.0
      %v2944 = vsel %vm2928, 1.0, 0.0
      %v2945 = vsel %vm2929, 1.0, 0.0
      %v2946 = vsel %vm2930, 1.0, 0.0
      %v2947 = vsel %vm2931, 1.0, 0.0
      %v2948 = vsel %vm2932, 1.0, 0.0
      %v2949 = vsel %vm2933, 1.0, 0.0
      %v2950 = vsel %vm2934, 1.0, 0.0
      %v2951 = vsel %vm2935, 1.0, 0.0
      %v2952 = vsel %vm2936, 1.0, 0.0
      %v2953 = vsel %vm2937, 1.0, 0.0
      %v2954 = vsel %vm2938, 1.0, 0.0
      %s2955 = scalar_lea.vmem [#allocation2], 384
      %2956 = vst [vmem:[%s2955] sm:$0xff] %v2939
      %2957 = vst [vmem:[%s2955 + $0x8] sm:$0xff] %v2940
      %2958 = vst [vmem:[%s2955 + $0x10] sm:$0xff] %v2941
      %2959 = vst [vmem:[%s2955 + $0x18] sm:$0xff] %v2942
      %2960 = vst [vmem:[%s2955 + $0x20] sm:$0xff] %v2943
      %2961 = vst [vmem:[%s2955 + $0x28] sm:$0xff] %v2944
      %2962 = vst [vmem:[%s2955 + $0x30] sm:$0xff] %v2945
      %2963 = vst [vmem:[%s2955 + $0x38] sm:$0xff] %v2946
      %2964 = vst [vmem:[%s2955 + $0x40] sm:$0xff] %v2947
      %2965 = vst [vmem:[%s2955 + $0x48] sm:$0xff] %v2948
      %2966 = vst [vmem:[%s2955 + $0x50] sm:$0xff] %v2949
      %2967 = vst [vmem:[%s2955 + $0x58] sm:$0xff] %v2950
      %2968 = vst [vmem:[%s2955 + $0x60] sm:$0xff] %v2951
      %2969 = vst [vmem:[%s2955 + $0x68] sm:$0xff] %v2952
      %2970 = vst [vmem:[%s2955 + $0x70] sm:$0xff] %v2953
      %2971 = vst [vmem:[%s2955 + $0x78] sm:$0xff] %v2954
      %v2972 = vld [vmem:[%s196] sm:$0xf]
      %v2973 = vld [vmem:[#allocation2] sm:$0xff]
      %v2974 = vld [vmem:[#allocation2 + $0x80] sm:$0xff]
      %v2975 = vld [vmem:[#allocation2 + $0x100] sm:$0xff]
      %v2976 = vld [vmem:[#allocation2 + $0x180] sm:$0xff]
      %2978 = vset.pattern.permute.xlu0 0
      %2979 = vperm.xlu0 %2978, %v2972
      %v2980 = vpop.permute.xlu0 %2979
      %v2986 = vrot.slane %v2974, 7
      %vm2987 = vcmask 1041409
      %v2988 = vsel %vm2987, %v2986, %v2973
      %v2989 = vrot.slane %v2975, 6
      %vm2990 = vcmask 1042434
      %v2991 = vsel %vm2990, %v2989, %v2988
      %v2992 = vrot.slane %v2976, 5
      %vm2993 = vcmask 1043459
      %v2994 = vsel %vm2993, %v2992, %v2991
      %v2996 = vmul.f32 %v2980, %v2994
      %v2997 = vsub.f32 1.0, %v2996
      %v2998 = vmul.f32 %v2972, %v2997
      %3000 = vset.pattern.permute.xlu0 1
      %3001 = vperm.xlu0 %3000, %v2998
      %v3002 = vpop.permute.xlu0 %3001
      %v3004 = vrot.slane %v2973, 1
      %v3005 = vsel %vm2987, %v2974, %v3004
      %v3006 = vrot.slane %v2975, 7
      %v3007 = vsel %vm2990, %v3006, %v3005
      %v3008 = vrot.slane %v2976, 6
      %v3009 = vsel %vm2993, %v3008, %v3007
      %v3011 = vmul.f32 %v3002, %v3009
      %v3012 = vsub.f32 1.0, %v3011
      %v3013 = vmul.f32 %v2998, %v3012
      %3015 = vset.pattern.permute.xlu0 2
      %3016 = vperm.xlu0 %3015, %v3013
      %v3017 = vpop.permute.xlu0 %3016
      %v3019 = vrot.slane %v2973, 2
      %v3020 = vrot.slane %v2974, 1
      %v3021 = vsel %vm2987, %v3020, %v3019
      %v3022 = vsel %vm2990, %v2975, %v3021
      %v3023 = vrot.slane %v2976, 7
      %v3024 = vsel %vm2993, %v3023, %v3022
      %v3026 = vmul.f32 %v3017, %v3024
      %v3027 = vsub.f32 1.0, %v3026
      %v3028 = vmul.f32 %v3013, %v3027
      %3030 = vset.pattern.permute.xlu0 3
      %3031 = vperm.xlu0 %3030, %v3028
      %v3032 = vpop.permute.xlu0 %3031
      %v3034 = vrot.slane %v2973, 3
      %v3035 = vrot.slane %v2974, 2
      %v3036 = vsel %vm2987, %v3035, %v3034
      %v3037 = vrot.slane %v2975, 1
      %v3038 = vsel %vm2990, %v3037, %v3036
      %v3039 = vsel %vm2993, %v2976, %v3038
      %v3041 = vmul.f32 %v3032, %v3039
      %v3042 = vsub.f32 1.0, %v3041
      %v3043 = vmul.f32 %v3028, %v3042
      %3045 = vset.pattern.permute.xlu0 4
      %3046 = vperm.xlu0 %3045, %v3043
      %v3047 = vpop.permute.xlu0 %3046
      %v3049 = vrot.slane %v2973, 4
      %v3050 = vrot.slane %v2974, 3
      %v3051 = vsel %vm2987, %v3050, %v3049
      %v3052 = vrot.slane %v2975, 2
      %v3053 = vsel %vm2990, %v3052, %v3051
      %v3054 = vrot.slane %v2976, 1
      %v3055 = vsel %vm2993, %v3054, %v3053
      %v3057 = vmul.f32 %v3047, %v3055
      %v3058 = vsub.f32 1.0, %v3057
      %v3059 = vmul.f32 %v3043, %v3058
      %3061 = vset.pattern.permute.xlu0 5
      %3062 = vperm.xlu0 %3061, %v3059
      %v3063 = vpop.permute.xlu0 %3062
      %v3065 = vrot.slane %v2973, 5
      %v3066 = vrot.slane %v2974, 4
      %v3067 = vsel %vm2987, %v3066, %v3065
      %v3068 = vrot.slane %v2975, 3
      %v3069 = vsel %vm2990, %v3068, %v3067
      %v3070 = vrot.slane %v2976, 2
      %v3071 = vsel %vm2993, %v3070, %v3069
      %v3073 = vmul.f32 %v3063, %v3071
      %v3074 = vsub.f32 1.0, %v3073
      %v3075 = vmul.f32 %v3059, %v3074
      %3077 = vset.pattern.permute.xlu0 6
      %3078 = vperm.xlu0 %3077, %v3075
      %v3079 = vpop.permute.xlu0 %3078
      %v3081 = vrot.slane %v2973, 6
      %v3082 = vrot.slane %v2974, 5
      %v3083 = vsel %vm2987, %v3082, %v3081
      %v3084 = vrot.slane %v2975, 4
      %v3085 = vsel %vm2990, %v3084, %v3083
      %v3086 = vrot.slane %v2976, 3
      %v3087 = vsel %vm2993, %v3086, %v3085
      %v3089 = vmul.f32 %v3079, %v3087
      %v3090 = vsub.f32 1.0, %v3089
      %v3091 = vmul.f32 %v3075, %v3090
      %3093 = vset.pattern.permute.xlu0 7
      %3094 = vperm.xlu0 %3093, %v3091
      %v3095 = vpop.permute.xlu0 %3094
      %v3097 = vrot.slane %v2973, 7
      %v3098 = vrot.slane %v2974, 6
      %v3099 = vsel %vm2987, %v3098, %v3097
      %v3100 = vrot.slane %v2975, 5
      %v3101 = vsel %vm2990, %v3100, %v3099
      %v3102 = vrot.slane %v2976, 4
      %v3103 = vsel %vm2993, %v3102, %v3101
      %v3105 = vmul.f32 %v3095, %v3103
      %v3106 = vsub.f32 1.0, %v3105
      %v3107 = vmul.f32 %v3091, %v3106
      %3109 = vset.pattern.permute.xlu0 0
      %3110 = vperm.xlu0 %3109, %v3107
      %v3111 = vpop.permute.xlu0 %3110
      %v3113 = vmul.f32 %v3111, %v2994
      %3114 = vset.pattern.permute.xlu0 1
      %3115 = vperm.xlu0 %3114, %v3107
      %v3116 = vpop.permute.xlu0 %3115
      %v3118 = vmul.f32 %v3116, %v3009
      %3119 = vset.pattern.permute.xlu0 2
      %3120 = vperm.xlu0 %3119, %v3107
      %v3121 = vpop.permute.xlu0 %3120
      %v3123 = vmul.f32 %v3121, %v3024
      %3124 = vset.pattern.permute.xlu0 3
      %3125 = vperm.xlu0 %3124, %v3107
      %v3126 = vpop.permute.xlu0 %3125
      %v3128 = vmul.f32 %v3126, %v3039
      %3129 = vset.pattern.permute.xlu0 4
      %3130 = vperm.xlu0 %3129, %v3107
      %v3131 = vpop.permute.xlu0 %3130
      %v3133 = vmul.f32 %v3131, %v3055
      %3134 = vset.pattern.permute.xlu0 5
      %3135 = vperm.xlu0 %3134, %v3107
      %v3136 = vpop.permute.xlu0 %3135
      %v3138 = vmul.f32 %v3136, %v3071
      %3139 = vset.pattern.permute.xlu0 6
      %3140 = vperm.xlu0 %3139, %v3107
      %v3141 = vpop.permute.xlu0 %3140
      %v3143 = vmul.f32 %v3141, %v3087
      %3144 = vset.pattern.permute.xlu0 7
      %3145 = vperm.xlu0 %3144, %v3107
      %v3146 = vpop.permute.xlu0 %3145
      %v3148 = vmul.f32 %v3146, %v3103
      %v3149 = vmax.f32 %v3113, %v3118
      %v3150 = vmax.f32 %v3123, %v3128
      %v3151 = vmax.f32 %v3133, %v3138
      %v3152 = vmax.f32 %v3143, %v3148
      %v3153 = vmax.f32 %v3149, %v3150
      %v3154 = vmax.f32 %v3151, %v3152
      %v3155 = vmax.f32 %v3153, %v3154
      %v3156 = vsub.f32 1.0, %v3155
      %v3157 = vmul.f32 %v2972, %v3156
      %v3158 = vld [vmem:[#allocation2 + $0x8] sm:$0xff]
      %v3159 = vld [vmem:[#allocation2 + $0x88] sm:$0xff]
      %v3160 = vld [vmem:[#allocation2 + $0x108] sm:$0xff]
      %v3161 = vld [vmem:[#allocation2 + $0x188] sm:$0xff]
      %3163 = vset.pattern.permute.xlu0 8
      %3164 = vperm.xlu0 %3163, %v3157
      %v3165 = vpop.permute.xlu0 %3164
      %v3171 = vrot.slane %v3159, 7
      %v3172 = vsel %vm2987, %v3171, %v3158
      %v3173 = vrot.slane %v3160, 6
      %v3174 = vsel %vm2990, %v3173, %v3172
      %v3175 = vrot.slane %v3161, 5
      %v3176 = vsel %vm2993, %v3175, %v3174
      %3177 = vrot.lane.b32.xlu0 %v3176, 120
      %v3178 = vpop.permute.xlu0 %3177
      %v3180 = vmul.f32 %v3165, %v3178
      %v3181 = vsub.f32 1.0, %v3180
      %3183 = vrot.lane.b32.xlu0 %v3181, 8
      %v3184 = vpop.permute.xlu0 %3183
      %v3186 = vmul.f32 %v3157, %v3184
      %3188 = vset.pattern.permute.xlu0 9
      %3189 = vperm.xlu0 %3188, %v3186
      %v3190 = vpop.permute.xlu0 %3189
      %v3192 = vrot.slane %v3158, 1
      %v3193 = vsel %vm2987, %v3159, %v3192
      %v3194 = vrot.slane %v3160, 7
      %v3195 = vsel %vm2990, %v3194, %v3193
      %v3196 = vrot.slane %v3161, 6
      %v3197 = vsel %vm2993, %v3196, %v3195
      %3198 = vrot.lane.b32.xlu0 %v3197, 120
      %v3199 = vpop.permute.xlu0 %3198
      %v3201 = vmul.f32 %v3190, %v3199
      %v3202 = vsub.f32 1.0, %v3201
      %3204 = vrot.lane.b32.xlu0 %v3202, 8
      %v3205 = vpop.permute.xlu0 %3204
      %v3207 = vmul.f32 %v3186, %v3205
      %3209 = vset.pattern.permute.xlu0 10
      %3210 = vperm.xlu0 %3209, %v3207
      %v3211 = vpop.permute.xlu0 %3210
      %v3213 = vrot.slane %v3158, 2
      %v3214 = vrot.slane %v3159, 1
      %v3215 = vsel %vm2987, %v3214, %v3213
      %v3216 = vsel %vm2990, %v3160, %v3215
      %v3217 = vrot.slane %v3161, 7
      %v3218 = vsel %vm2993, %v3217, %v3216
      %3219 = vrot.lane.b32.xlu0 %v3218, 120
      %v3220 = vpop.permute.xlu0 %3219
      %v3222 = vmul.f32 %v3211, %v3220
      %v3223 = vsub.f32 1.0, %v3222
      %3225 = vrot.lane.b32.xlu0 %v3223, 8
      %v3226 = vpop.permute.xlu0 %3225
      %v3228 = vmul.f32 %v3207, %v3226
      %3230 = vset.pattern.permute.xlu0 11
      %3231 = vperm.xlu0 %3230, %v3228
      %v3232 = vpop.permute.xlu0 %3231
      %v3234 = vrot.slane %v3158, 3
      %v3235 = vrot.slane %v3159, 2
      %v3236 = vsel %vm2987, %v3235, %v3234
      %v3237 = vrot.slane %v3160, 1
      %v3238 = vsel %vm2990, %v3237, %v3236
      %v3239 = vsel %vm2993, %v3161, %v3238
      %3240 = vrot.lane.b32.xlu0 %v3239, 120
      %v3241 = vpop.permute.xlu0 %3240
      %v3243 = vmul.f32 %v3232, %v3241
      %v3244 = vsub.f32 1.0, %v3243
      %3246 = vrot.lane.b32.xlu0 %v3244, 8
      %v3247 = vpop.permute.xlu0 %3246
      %v3249 = vmul.f32 %v3228, %v3247
      %3251 = vset.pattern.permute.xlu0 12
      %3252 = vperm.xlu0 %3251, %v3249
      %v3253 = vpop.permute.xlu0 %3252
      %v3255 = vrot.slane %v3158, 4
      %v3256 = vrot.slane %v3159, 3
      %v3257 = vsel %vm2987, %v3256, %v3255
      %v3258 = vrot.slane %v3160, 2
      %v3259 = vsel %vm2990, %v3258, %v3257
      %v3260 = vrot.slane %v3161, 1
      %v3261 = vsel %vm2993, %v3260, %v3259
      %3262 = vrot.lane.b32.xlu0 %v3261, 120
      %v3263 = vpop.permute.xlu0 %3262
      %v3265 = vmul.f32 %v3253, %v3263
      %v3266 = vsub.f32 1.0, %v3265
      %3268 = vrot.lane.b32.xlu0 %v3266, 8
      %v3269 = vpop.permute.xlu0 %3268
      %v3271 = vmul.f32 %v3249, %v3269
      %3273 = vset.pattern.permute.xlu0 13
      %3274 = vperm.xlu0 %3273, %v3271
      %v3275 = vpop.permute.xlu0 %3274
      %v3277 = vrot.slane %v3158, 5
      %v3278 = vrot.slane %v3159, 4
      %v3279 = vsel %vm2987, %v3278, %v3277
      %v3280 = vrot.slane %v3160, 3
      %v3281 = vsel %vm2990, %v3280, %v3279
      %v3282 = vrot.slane %v3161, 2
      %v3283 = vsel %vm2993, %v3282, %v3281
      %3284 = vrot.lane.b32.xlu0 %v3283, 120
      %v3285 = vpop.permute.xlu0 %3284
      %v3287 = vmul.f32 %v3275, %v3285
      %v3288 = vsub.f32 1.0, %v3287
      %3290 = vrot.lane.b32.xlu0 %v3288, 8
      %v3291 = vpop.permute.xlu0 %3290
      %v3293 = vmul.f32 %v3271, %v3291
      %3295 = vset.pattern.permute.xlu0 14
      %3296 = vperm.xlu0 %3295, %v3293
      %v3297 = vpop.permute.xlu0 %3296
      %v3299 = vrot.slane %v3158, 6
      %v3300 = vrot.slane %v3159, 5
      %v3301 = vsel %vm2987, %v3300, %v3299
      %v3302 = vrot.slane %v3160, 4
      %v3303 = vsel %vm2990, %v3302, %v3301
      %v3304 = vrot.slane %v3161, 3
      %v3305 = vsel %vm2993, %v3304, %v3303
      %3306 = vrot.lane.b32.xlu0 %v3305, 120
      %v3307 = vpop.permute.xlu0 %3306
      %v3309 = vmul.f32 %v3297, %v3307
      %v3310 = vsub.f32 1.0, %v3309
      %3312 = vrot.lane.b32.xlu0 %v3310, 8
      %v3313 = vpop.permute.xlu0 %3312
      %v3315 = vmul.f32 %v3293, %v3313
      %3317 = vset.pattern.permute.xlu0 15
      %3318 = vperm.xlu0 %3317, %v3315
      %v3319 = vpop.permute.xlu0 %3318
      %v3321 = vrot.slane %v3158, 7
      %v3322 = vrot.slane %v3159, 6
      %v3323 = vsel %vm2987, %v3322, %v3321
      %v3324 = vrot.slane %v3160, 5
      %v3325 = vsel %vm2990, %v3324, %v3323
      %v3326 = vrot.slane %v3161, 4
      %v3327 = vsel %vm2993, %v3326, %v3325
      %3328 = vrot.lane.b32.xlu0 %v3327, 120
      %v3329 = vpop.permute.xlu0 %3328
      %v3331 = vmul.f32 %v3319, %v3329
      %v3332 = vsub.f32 1.0, %v3331
      %3334 = vrot.lane.b32.xlu0 %v3332, 8
      %v3335 = vpop.permute.xlu0 %3334
      %v3337 = vmul.f32 %v3315, %v3335
      %3339 = vset.pattern.permute.xlu0 8
      %3340 = vperm.xlu0 %3339, %v3337
      %v3341 = vpop.permute.xlu0 %3340
      %v3344 = vmul.f32 %v3341, %v3176
      %3345 = vset.pattern.permute.xlu0 9
      %3346 = vperm.xlu0 %3345, %v3337
      %v3347 = vpop.permute.xlu0 %3346
      %v3350 = vmul.f32 %v3347, %v3197
      %3351 = vset.pattern.permute.xlu0 10
      %3352 = vperm.xlu0 %3351, %v3337
      %v3353 = vpop.permute.xlu0 %3352
      %v3356 = vmul.f32 %v3353, %v3218
      %3357 = vset.pattern.permute.xlu0 11
      %3358 = vperm.xlu0 %3357, %v3337
      %v3359 = vpop.permute.xlu0 %3358
      %v3362 = vmul.f32 %v3359, %v3239
      %3363 = vset.pattern.permute.xlu0 12
      %3364 = vperm.xlu0 %3363, %v3337
      %v3365 = vpop.permute.xlu0 %3364
      %v3368 = vmul.f32 %v3365, %v3261
      %3369 = vset.pattern.permute.xlu0 13
      %3370 = vperm.xlu0 %3369, %v3337
      %v3371 = vpop.permute.xlu0 %3370
      %v3374 = vmul.f32 %v3371, %v3283
      %3375 = vset.pattern.permute.xlu0 14
      %3376 = vperm.xlu0 %3375, %v3337
      %v3377 = vpop.permute.xlu0 %3376
      %v3380 = vmul.f32 %v3377, %v3305
      %3381 = vset.pattern.permute.xlu0 15
      %3382 = vperm.xlu0 %3381, %v3337
      %v3383 = vpop.permute.xlu0 %3382
      %v3386 = vmul.f32 %v3383, %v3327
      %v3387 = vmax.f32 %v3344, %v3350
      %v3388 = vmax.f32 %v3356, %v3362
      %v3389 = vmax.f32 %v3368, %v3374
      %v3390 = vmax.f32 %v3380, %v3386
      %v3391 = vmax.f32 %v3387, %v3388
      %v3392 = vmax.f32 %v3389, %v3390
      %v3393 = vmax.f32 %v3391, %v3392
      %v3394 = vsub.f32 1.0, %v3393
      %v3395 = vmul.f32 %v3157, %v3394
      %v3396 = vld [vmem:[#allocation2 + $0x10] sm:$0xff]
      %v3397 = vld [vmem:[#allocation2 + $0x90] sm:$0xff]
      %v3398 = vld [vmem:[#allocation2 + $0x110] sm:$0xff]
      %v3399 = vld [vmem:[#allocation2 + $0x190] sm:$0xff]
      %3401 = vset.pattern.permute.xlu0 16
      %3402 = vperm.xlu0 %3401, %v3395
      %v3403 = vpop.permute.xlu0 %3402
      %v3409 = vrot.slane %v3397, 7
      %v3410 = vsel %vm2987, %v3409, %v3396
      %v3411 = vrot.slane %v3398, 6
      %v3412 = vsel %vm2990, %v3411, %v3410
      %v3413 = vrot.slane %v3399, 5
      %v3414 = vsel %vm2993, %v3413, %v3412
      %3415 = vrot.lane.b32.xlu0 %v3414, 112
      %v3416 = vpop.permute.xlu0 %3415
      %v3418 = vmul.f32 %v3403, %v3416
      %v3419 = vsub.f32 1.0, %v3418
      %3421 = vrot.lane.b32.xlu0 %v3419, 16
      %v3422 = vpop.permute.xlu0 %3421
      %v3424 = vmul.f32 %v3395, %v3422
      %3426 = vset.pattern.permute.xlu0 17
      %3427 = vperm.xlu0 %3426, %v3424
      %v3428 = vpop.permute.xlu0 %3427
      %v3430 = vrot.slane %v3396, 1
      %v3431 = vsel %vm2987, %v3397, %v3430
      %v3432 = vrot.slane %v3398, 7
      %v3433 = vsel %vm2990, %v3432, %v3431
      %v3434 = vrot.slane %v3399, 6
      %v3435 = vsel %vm2993, %v3434, %v3433
      %3436 = vrot.lane.b32.xlu0 %v3435, 112
      %v3437 = vpop.permute.xlu0 %3436
      %v3439 = vmul.f32 %v3428, %v3437
      %v3440 = vsub.f32 1.0, %v3439
      %3442 = vrot.lane.b32.xlu0 %v3440, 16
      %v3443 = vpop.permute.xlu0 %3442
      %v3445 = vmul.f32 %v3424, %v3443
      %3447 = vset.pattern.permute.xlu0 18
      %3448 = vperm.xlu0 %3447, %v3445
      %v3449 = vpop.permute.xlu0 %3448
      %v3451 = vrot.slane %v3396, 2
      %v3452 = vrot.slane %v3397, 1
      %v3453 = vsel %vm2987, %v3452, %v3451
      %v3454 = vsel %vm2990, %v3398, %v3453
      %v3455 = vrot.slane %v3399, 7
      %v3456 = vsel %vm2993, %v3455, %v3454
      %3457 = vrot.lane.b32.xlu0 %v3456, 112
      %v3458 = vpop.permute.xlu0 %3457
      %v3460 = vmul.f32 %v3449, %v3458
      %v3461 = vsub.f32 1.0, %v3460
      %3463 = vrot.lane.b32.xlu0 %v3461, 16
      %v3464 = vpop.permute.xlu0 %3463
      %v3466 = vmul.f32 %v3445, %v3464
      %3468 = vset.pattern.permute.xlu0 19
      %3469 = vperm.xlu0 %3468, %v3466
      %v3470 = vpop.permute.xlu0 %3469
      %v3472 = vrot.slane %v3396, 3
      %v3473 = vrot.slane %v3397, 2
      %v3474 = vsel %vm2987, %v3473, %v3472
      %v3475 = vrot.slane %v3398, 1
      %v3476 = vsel %vm2990, %v3475, %v3474
      %v3477 = vsel %vm2993, %v3399, %v3476
      %3478 = vrot.lane.b32.xlu0 %v3477, 112
      %v3479 = vpop.permute.xlu0 %3478
      %v3481 = vmul.f32 %v3470, %v3479
      %v3482 = vsub.f32 1.0, %v3481
      %3484 = vrot.lane.b32.xlu0 %v3482, 16
      %v3485 = vpop.permute.xlu0 %3484
      %v3487 = vmul.f32 %v3466, %v3485
      %3489 = vset.pattern.permute.xlu0 20
      %3490 = vperm.xlu0 %3489, %v3487
      %v3491 = vpop.permute.xlu0 %3490
      %v3493 = vrot.slane %v3396, 4
      %v3494 = vrot.slane %v3397, 3
      %v3495 = vsel %vm2987, %v3494, %v3493
      %v3496 = vrot.slane %v3398, 2
      %v3497 = vsel %vm2990, %v3496, %v3495
      %v3498 = vrot.slane %v3399, 1
      %v3499 = vsel %vm2993, %v3498, %v3497
      %3500 = vrot.lane.b32.xlu0 %v3499, 112
      %v3501 = vpop.permute.xlu0 %3500
      %v3503 = vmul.f32 %v3491, %v3501
      %v3504 = vsub.f32 1.0, %v3503
      %3506 = vrot.lane.b32.xlu0 %v3504, 16
      %v3507 = vpop.permute.xlu0 %3506
      %v3509 = vmul.f32 %v3487, %v3507
      %3511 = vset.pattern.permute.xlu0 21
      %3512 = vperm.xlu0 %3511, %v3509
      %v3513 = vpop.permute.xlu0 %3512
      %v3515 = vrot.slane %v3396, 5
      %v3516 = vrot.slane %v3397, 4
      %v3517 = vsel %vm2987, %v3516, %v3515
      %v3518 = vrot.slane %v3398, 3
      %v3519 = vsel %vm2990, %v3518, %v3517
      %v3520 = vrot.slane %v3399, 2
      %v3521 = vsel %vm2993, %v3520, %v3519
      %3522 = vrot.lane.b32.xlu0 %v3521, 112
      %v3523 = vpop.permute.xlu0 %3522
      %v3525 = vmul.f32 %v3513, %v3523
      %v3526 = vsub.f32 1.0, %v3525
      %3528 = vrot.lane.b32.xlu0 %v3526, 16
      %v3529 = vpop.permute.xlu0 %3528
      %v3531 = vmul.f32 %v3509, %v3529
      %3533 = vset.pattern.permute.xlu0 22
      %3534 = vperm.xlu0 %3533, %v3531
      %v3535 = vpop.permute.xlu0 %3534
      %v3537 = vrot.slane %v3396, 6
      %v3538 = vrot.slane %v3397, 5
      %v3539 = vsel %vm2987, %v3538, %v3537
      %v3540 = vrot.slane %v3398, 4
      %v3541 = vsel %vm2990, %v3540, %v3539
      %v3542 = vrot.slane %v3399, 3
      %v3543 = vsel %vm2993, %v3542, %v3541
      %3544 = vrot.lane.b32.xlu0 %v3543, 112
      %v3545 = vpop.permute.xlu0 %3544
      %v3547 = vmul.f32 %v3535, %v3545
      %v3548 = vsub.f32 1.0, %v3547
      %3550 = vrot.lane.b32.xlu0 %v3548, 16
      %v3551 = vpop.permute.xlu0 %3550
      %v3553 = vmul.f32 %v3531, %v3551
      %3555 = vset.pattern.permute.xlu0 23
      %3556 = vperm.xlu0 %3555, %v3553
      %v3557 = vpop.permute.xlu0 %3556
      %v3559 = vrot.slane %v3396, 7
      %v3560 = vrot.slane %v3397, 6
      %v3561 = vsel %vm2987, %v3560, %v3559
      %v3562 = vrot.slane %v3398, 5
      %v3563 = vsel %vm2990, %v3562, %v3561
      %v3564 = vrot.slane %v3399, 4
      %v3565 = vsel %vm2993, %v3564, %v3563
      %3566 = vrot.lane.b32.xlu0 %v3565, 112
      %v3567 = vpop.permute.xlu0 %3566
      %v3569 = vmul.f32 %v3557, %v3567
      %v3570 = vsub.f32 1.0, %v3569
      %3572 = vrot.lane.b32.xlu0 %v3570, 16
      %v3573 = vpop.permute.xlu0 %3572
      %v3575 = vmul.f32 %v3553, %v3573
      %3577 = vset.pattern.permute.xlu0 16
      %3578 = vperm.xlu0 %3577, %v3575
      %v3579 = vpop.permute.xlu0 %3578
      %v3582 = vmul.f32 %v3579, %v3414
      %3583 = vset.pattern.permute.xlu0 17
      %3584 = vperm.xlu0 %3583, %v3575
      %v3585 = vpop.permute.xlu0 %3584
      %v3588 = vmul.f32 %v3585, %v3435
      %3589 = vset.pattern.permute.xlu0 18
      %3590 = vperm.xlu0 %3589, %v3575
      %v3591 = vpop.permute.xlu0 %3590
      %v3594 = vmul.f32 %v3591, %v3456
      %3595 = vset.pattern.permute.xlu0 19
      %3596 = vperm.xlu0 %3595, %v3575
      %v3597 = vpop.permute.xlu0 %3596
      %v3600 = vmul.f32 %v3597, %v3477
      %3601 = vset.pattern.permute.xlu0 20
      %3602 = vperm.xlu0 %3601, %v3575
      %v3603 = vpop.permute.xlu0 %3602
      %v3606 = vmul.f32 %v3603, %v3499
      %3607 = vset.pattern.permute.xlu0 21
      %3608 = vperm.xlu0 %3607, %v3575
      %v3609 = vpop.permute.xlu0 %3608
      %v3612 = vmul.f32 %v3609, %v3521
      %3613 = vset.pattern.permute.xlu0 22
      %3614 = vperm.xlu0 %3613, %v3575
      %v3615 = vpop.permute.xlu0 %3614
      %v3618 = vmul.f32 %v3615, %v3543
      %3619 = vset.pattern.permute.xlu0 23
      %3620 = vperm.xlu0 %3619, %v3575
      %v3621 = vpop.permute.xlu0 %3620
      %v3624 = vmul.f32 %v3621, %v3565
      %v3625 = vmax.f32 %v3582, %v3588
      %v3626 = vmax.f32 %v3594, %v3600
      %v3627 = vmax.f32 %v3606, %v3612
      %v3628 = vmax.f32 %v3618, %v3624
      %v3629 = vmax.f32 %v3625, %v3626
      %v3630 = vmax.f32 %v3627, %v3628
      %v3631 = vmax.f32 %v3629, %v3630
      %v3632 = vsub.f32 1.0, %v3631
      %v3633 = vmul.f32 %v3395, %v3632
      %v3634 = vld [vmem:[#allocation2 + $0x18] sm:$0xff]
      %v3635 = vld [vmem:[#allocation2 + $0x98] sm:$0xff]
      %v3636 = vld [vmem:[#allocation2 + $0x118] sm:$0xff]
      %v3637 = vld [vmem:[#allocation2 + $0x198] sm:$0xff]
      %3639 = vset.pattern.permute.xlu0 24
      %3640 = vperm.xlu0 %3639, %v3633
      %v3641 = vpop.permute.xlu0 %3640
      %v3647 = vrot.slane %v3635, 7
      %v3648 = vsel %vm2987, %v3647, %v3634
      %v3649 = vrot.slane %v3636, 6
      %v3650 = vsel %vm2990, %v3649, %v3648
      %v3651 = vrot.slane %v3637, 5
      %v3652 = vsel %vm2993, %v3651, %v3650
      %3653 = vrot.lane.b32.xlu0 %v3652, 104
      %v3654 = vpop.permute.xlu0 %3653
      %v3656 = vmul.f32 %v3641, %v3654
      %v3657 = vsub.f32 1.0, %v3656
      %3659 = vrot.lane.b32.xlu0 %v3657, 24
      %v3660 = vpop.permute.xlu0 %3659
      %v3662 = vmul.f32 %v3633, %v3660
      %3664 = vset.pattern.permute.xlu0 25
      %3665 = vperm.xlu0 %3664, %v3662
      %v3666 = vpop.permute.xlu0 %3665
      %v3668 = vrot.slane %v3634, 1
      %v3669 = vsel %vm2987, %v3635, %v3668
      %v3670 = vrot.slane %v3636, 7
      %v3671 = vsel %vm2990, %v3670, %v3669
      %v3672 = vrot.slane %v3637, 6
      %v3673 = vsel %vm2993, %v3672, %v3671
      %3674 = vrot.lane.b32.xlu0 %v3673, 104
      %v3675 = vpop.permute.xlu0 %3674
      %v3677 = vmul.f32 %v3666, %v3675
      %v3678 = vsub.f32 1.0, %v3677
      %3680 = vrot.lane.b32.xlu0 %v3678, 24
      %v3681 = vpop.permute.xlu0 %3680
      %v3683 = vmul.f32 %v3662, %v3681
      %3685 = vset.pattern.permute.xlu0 26
      %3686 = vperm.xlu0 %3685, %v3683
      %v3687 = vpop.permute.xlu0 %3686
      %v3689 = vrot.slane %v3634, 2
      %v3690 = vrot.slane %v3635, 1
      %v3691 = vsel %vm2987, %v3690, %v3689
      %v3692 = vsel %vm2990, %v3636, %v3691
      %v3693 = vrot.slane %v3637, 7
      %v3694 = vsel %vm2993, %v3693, %v3692
      %3695 = vrot.lane.b32.xlu0 %v3694, 104
      %v3696 = vpop.permute.xlu0 %3695
      %v3698 = vmul.f32 %v3687, %v3696
      %v3699 = vsub.f32 1.0, %v3698
      %3701 = vrot.lane.b32.xlu0 %v3699, 24
      %v3702 = vpop.permute.xlu0 %3701
      %v3704 = vmul.f32 %v3683, %v3702
      %3706 = vset.pattern.permute.xlu0 27
      %3707 = vperm.xlu0 %3706, %v3704
      %v3708 = vpop.permute.xlu0 %3707
      %v3710 = vrot.slane %v3634, 3
      %v3711 = vrot.slane %v3635, 2
      %v3712 = vsel %vm2987, %v3711, %v3710
      %v3713 = vrot.slane %v3636, 1
      %v3714 = vsel %vm2990, %v3713, %v3712
      %v3715 = vsel %vm2993, %v3637, %v3714
      %3716 = vrot.lane.b32.xlu0 %v3715, 104
      %v3717 = vpop.permute.xlu0 %3716
      %v3719 = vmul.f32 %v3708, %v3717
      %v3720 = vsub.f32 1.0, %v3719
      %3722 = vrot.lane.b32.xlu0 %v3720, 24
      %v3723 = vpop.permute.xlu0 %3722
      %v3725 = vmul.f32 %v3704, %v3723
      %3727 = vset.pattern.permute.xlu0 28
      %3728 = vperm.xlu0 %3727, %v3725
      %v3729 = vpop.permute.xlu0 %3728
      %v3731 = vrot.slane %v3634, 4
      %v3732 = vrot.slane %v3635, 3
      %v3733 = vsel %vm2987, %v3732, %v3731
      %v3734 = vrot.slane %v3636, 2
      %v3735 = vsel %vm2990, %v3734, %v3733
      %v3736 = vrot.slane %v3637, 1
      %v3737 = vsel %vm2993, %v3736, %v3735
      %3738 = vrot.lane.b32.xlu0 %v3737, 104
      %v3739 = vpop.permute.xlu0 %3738
      %v3741 = vmul.f32 %v3729, %v3739
      %v3742 = vsub.f32 1.0, %v3741
      %3744 = vrot.lane.b32.xlu0 %v3742, 24
      %v3745 = vpop.permute.xlu0 %3744
      %v3747 = vmul.f32 %v3725, %v3745
      %3749 = vset.pattern.permute.xlu0 29
      %3750 = vperm.xlu0 %3749, %v3747
      %v3751 = vpop.permute.xlu0 %3750
      %v3753 = vrot.slane %v3634, 5
      %v3754 = vrot.slane %v3635, 4
      %v3755 = vsel %vm2987, %v3754, %v3753
      %v3756 = vrot.slane %v3636, 3
      %v3757 = vsel %vm2990, %v3756, %v3755
      %v3758 = vrot.slane %v3637, 2
      %v3759 = vsel %vm2993, %v3758, %v3757
      %3760 = vrot.lane.b32.xlu0 %v3759, 104
      %v3761 = vpop.permute.xlu0 %3760
      %v3763 = vmul.f32 %v3751, %v3761
      %v3764 = vsub.f32 1.0, %v3763
      %3766 = vrot.lane.b32.xlu0 %v3764, 24
      %v3767 = vpop.permute.xlu0 %3766
      %v3769 = vmul.f32 %v3747, %v3767
      %3771 = vset.pattern.permute.xlu0 30
      %3772 = vperm.xlu0 %3771, %v3769
      %v3773 = vpop.permute.xlu0 %3772
      %v3775 = vrot.slane %v3634, 6
      %v3776 = vrot.slane %v3635, 5
      %v3777 = vsel %vm2987, %v3776, %v3775
      %v3778 = vrot.slane %v3636, 4
      %v3779 = vsel %vm2990, %v3778, %v3777
      %v3780 = vrot.slane %v3637, 3
      %v3781 = vsel %vm2993, %v3780, %v3779
      %3782 = vrot.lane.b32.xlu0 %v3781, 104
      %v3783 = vpop.permute.xlu0 %3782
      %v3785 = vmul.f32 %v3773, %v3783
      %v3786 = vsub.f32 1.0, %v3785
      %3788 = vrot.lane.b32.xlu0 %v3786, 24
      %v3789 = vpop.permute.xlu0 %3788
      %v3791 = vmul.f32 %v3769, %v3789
      %3793 = vset.pattern.permute.xlu0 31
      %3794 = vperm.xlu0 %3793, %v3791
      %v3795 = vpop.permute.xlu0 %3794
      %v3797 = vrot.slane %v3634, 7
      %v3798 = vrot.slane %v3635, 6
      %v3799 = vsel %vm2987, %v3798, %v3797
      %v3800 = vrot.slane %v3636, 5
      %v3801 = vsel %vm2990, %v3800, %v3799
      %v3802 = vrot.slane %v3637, 4
      %v3803 = vsel %vm2993, %v3802, %v3801
      %3804 = vrot.lane.b32.xlu0 %v3803, 104
      %v3805 = vpop.permute.xlu0 %3804
      %v3807 = vmul.f32 %v3795, %v3805
      %v3808 = vsub.f32 1.0, %v3807
      %3810 = vrot.lane.b32.xlu0 %v3808, 24
      %v3811 = vpop.permute.xlu0 %3810
      %v3813 = vmul.f32 %v3791, %v3811
      %3815 = vset.pattern.permute.xlu0 24
      %3816 = vperm.xlu0 %3815, %v3813
      %v3817 = vpop.permute.xlu0 %3816
      %v3820 = vmul.f32 %v3817, %v3652
      %3821 = vset.pattern.permute.xlu0 25
      %3822 = vperm.xlu0 %3821, %v3813
      %v3823 = vpop.permute.xlu0 %3822
      %v3826 = vmul.f32 %v3823, %v3673
      %3827 = vset.pattern.permute.xlu0 26
      %3828 = vperm.xlu0 %3827, %v3813
      %v3829 = vpop.permute.xlu0 %3828
      %v3832 = vmul.f32 %v3829, %v3694
      %3833 = vset.pattern.permute.xlu0 27
      %3834 = vperm.xlu0 %3833, %v3813
      %v3835 = vpop.permute.xlu0 %3834
      %v3838 = vmul.f32 %v3835, %v3715
      %3839 = vset.pattern.permute.xlu0 28
      %3840 = vperm.xlu0 %3839, %v3813
      %v3841 = vpop.permute.xlu0 %3840
      %v3844 = vmul.f32 %v3841, %v3737
      %3845 = vset.pattern.permute.xlu0 29
      %3846 = vperm.xlu0 %3845, %v3813
      %v3847 = vpop.permute.xlu0 %3846
      %v3850 = vmul.f32 %v3847, %v3759
      %3851 = vset.pattern.permute.xlu0 30
      %3852 = vperm.xlu0 %3851, %v3813
      %v3853 = vpop.permute.xlu0 %3852
      %v3856 = vmul.f32 %v3853, %v3781
      %3857 = vset.pattern.permute.xlu0 31
      %3858 = vperm.xlu0 %3857, %v3813
      %v3859 = vpop.permute.xlu0 %3858
      %v3862 = vmul.f32 %v3859, %v3803
      %v3863 = vmax.f32 %v3820, %v3826
      %v3864 = vmax.f32 %v3832, %v3838
      %v3865 = vmax.f32 %v3844, %v3850
      %v3866 = vmax.f32 %v3856, %v3862
      %v3867 = vmax.f32 %v3863, %v3864
      %v3868 = vmax.f32 %v3865, %v3866
      %v3869 = vmax.f32 %v3867, %v3868
      %v3870 = vsub.f32 1.0, %v3869
      %v3871 = vmul.f32 %v3633, %v3870
      %v3872 = vld [vmem:[#allocation2 + $0x20] sm:$0xff]
      %v3873 = vld [vmem:[#allocation2 + $0xa0] sm:$0xff]
      %v3874 = vld [vmem:[#allocation2 + $0x120] sm:$0xff]
      %v3875 = vld [vmem:[#allocation2 + $0x1a0] sm:$0xff]
      %3877 = vset.pattern.permute.xlu0 32
      %3878 = vperm.xlu0 %3877, %v3871
      %v3879 = vpop.permute.xlu0 %3878
      %v3885 = vrot.slane %v3873, 7
      %v3886 = vsel %vm2987, %v3885, %v3872
      %v3887 = vrot.slane %v3874, 6
      %v3888 = vsel %vm2990, %v3887, %v3886
      %v3889 = vrot.slane %v3875, 5
      %v3890 = vsel %vm2993, %v3889, %v3888
      %3891 = vrot.lane.b32.xlu0 %v3890, 96
      %v3892 = vpop.permute.xlu0 %3891
      %v3894 = vmul.f32 %v3879, %v3892
      %v3895 = vsub.f32 1.0, %v3894
      %3897 = vrot.lane.b32.xlu0 %v3895, 32
      %v3898 = vpop.permute.xlu0 %3897
      %v3900 = vmul.f32 %v3871, %v3898
      %3902 = vset.pattern.permute.xlu0 33
      %3903 = vperm.xlu0 %3902, %v3900
      %v3904 = vpop.permute.xlu0 %3903
      %v3906 = vrot.slane %v3872, 1
      %v3907 = vsel %vm2987, %v3873, %v3906
      %v3908 = vrot.slane %v3874, 7
      %v3909 = vsel %vm2990, %v3908, %v3907
      %v3910 = vrot.slane %v3875, 6
      %v3911 = vsel %vm2993, %v3910, %v3909
      %3912 = vrot.lane.b32.xlu0 %v3911, 96
      %v3913 = vpop.permute.xlu0 %3912
      %v3915 = vmul.f32 %v3904, %v3913
      %v3916 = vsub.f32 1.0, %v3915
      %3918 = vrot.lane.b32.xlu0 %v3916, 32
      %v3919 = vpop.permute.xlu0 %3918
      %v3921 = vmul.f32 %v3900, %v3919
      %3923 = vset.pattern.permute.xlu0 34
      %3924 = vperm.xlu0 %3923, %v3921
      %v3925 = vpop.permute.xlu0 %3924
      %v3927 = vrot.slane %v3872, 2
      %v3928 = vrot.slane %v3873, 1
      %v3929 = vsel %vm2987, %v3928, %v3927
      %v3930 = vsel %vm2990, %v3874, %v3929
      %v3931 = vrot.slane %v3875, 7
      %v3932 = vsel %vm2993, %v3931, %v3930
      %3933 = vrot.lane.b32.xlu0 %v3932, 96
      %v3934 = vpop.permute.xlu0 %3933
      %v3936 = vmul.f32 %v3925, %v3934
      %v3937 = vsub.f32 1.0, %v3936
      %3939 = vrot.lane.b32.xlu0 %v3937, 32
      %v3940 = vpop.permute.xlu0 %3939
      %v3942 = vmul.f32 %v3921, %v3940
      %3944 = vset.pattern.permute.xlu0 35
      %3945 = vperm.xlu0 %3944, %v3942
      %v3946 = vpop.permute.xlu0 %3945
      %v3948 = vrot.slane %v3872, 3
      %v3949 = vrot.slane %v3873, 2
      %v3950 = vsel %vm2987, %v3949, %v3948
      %v3951 = vrot.slane %v3874, 1
      %v3952 = vsel %vm2990, %v3951, %v3950
      %v3953 = vsel %vm2993, %v3875, %v3952
      %3954 = vrot.lane.b32.xlu0 %v3953, 96
      %v3955 = vpop.permute.xlu0 %3954
      %v3957 = vmul.f32 %v3946, %v3955
      %v3958 = vsub.f32 1.0, %v3957
      %3960 = vrot.lane.b32.xlu0 %v3958, 32
      %v3961 = vpop.permute.xlu0 %3960
      %v3963 = vmul.f32 %v3942, %v3961
      %3965 = vset.pattern.permute.xlu0 36
      %3966 = vperm.xlu0 %3965, %v3963
      %v3967 = vpop.permute.xlu0 %3966
      %v3969 = vrot.slane %v3872, 4
      %v3970 = vrot.slane %v3873, 3
      %v3971 = vsel %vm2987, %v3970, %v3969
      %v3972 = vrot.slane %v3874, 2
      %v3973 = vsel %vm2990, %v3972, %v3971
      %v3974 = vrot.slane %v3875, 1
      %v3975 = vsel %vm2993, %v3974, %v3973
      %3976 = vrot.lane.b32.xlu0 %v3975, 96
      %v3977 = vpop.permute.xlu0 %3976
      %v3979 = vmul.f32 %v3967, %v3977
      %v3980 = vsub.f32 1.0, %v3979
      %3982 = vrot.lane.b32.xlu0 %v3980, 32
      %v3983 = vpop.permute.xlu0 %3982
      %v3985 = vmul.f32 %v3963, %v3983
      %3987 = vset.pattern.permute.xlu0 37
      %3988 = vperm.xlu0 %3987, %v3985
      %v3989 = vpop.permute.xlu0 %3988
      %v3991 = vrot.slane %v3872, 5
      %v3992 = vrot.slane %v3873, 4
      %v3993 = vsel %vm2987, %v3992, %v3991
      %v3994 = vrot.slane %v3874, 3
      %v3995 = vsel %vm2990, %v3994, %v3993
      %v3996 = vrot.slane %v3875, 2
      %v3997 = vsel %vm2993, %v3996, %v3995
      %3998 = vrot.lane.b32.xlu0 %v3997, 96
      %v3999 = vpop.permute.xlu0 %3998
      %v4001 = vmul.f32 %v3989, %v3999
      %v4002 = vsub.f32 1.0, %v4001
      %4004 = vrot.lane.b32.xlu0 %v4002, 32
      %v4005 = vpop.permute.xlu0 %4004
      %v4007 = vmul.f32 %v3985, %v4005
      %4009 = vset.pattern.permute.xlu0 38
      %4010 = vperm.xlu0 %4009, %v4007
      %v4011 = vpop.permute.xlu0 %4010
      %v4013 = vrot.slane %v3872, 6
      %v4014 = vrot.slane %v3873, 5
      %v4015 = vsel %vm2987, %v4014, %v4013
      %v4016 = vrot.slane %v3874, 4
      %v4017 = vsel %vm2990, %v4016, %v4015
      %v4018 = vrot.slane %v3875, 3
      %v4019 = vsel %vm2993, %v4018, %v4017
      %4020 = vrot.lane.b32.xlu0 %v4019, 96
      %v4021 = vpop.permute.xlu0 %4020
      %v4023 = vmul.f32 %v4011, %v4021
      %v4024 = vsub.f32 1.0, %v4023
      %4026 = vrot.lane.b32.xlu0 %v4024, 32
      %v4027 = vpop.permute.xlu0 %4026
      %v4029 = vmul.f32 %v4007, %v4027
      %4031 = vset.pattern.permute.xlu0 39
      %4032 = vperm.xlu0 %4031, %v4029
      %v4033 = vpop.permute.xlu0 %4032
      %v4035 = vrot.slane %v3872, 7
      %v4036 = vrot.slane %v3873, 6
      %v4037 = vsel %vm2987, %v4036, %v4035
      %v4038 = vrot.slane %v3874, 5
      %v4039 = vsel %vm2990, %v4038, %v4037
      %v4040 = vrot.slane %v3875, 4
      %v4041 = vsel %vm2993, %v4040, %v4039
      %4042 = vrot.lane.b32.xlu0 %v4041, 96
      %v4043 = vpop.permute.xlu0 %4042
      %v4045 = vmul.f32 %v4033, %v4043
      %v4046 = vsub.f32 1.0, %v4045
      %4048 = vrot.lane.b32.xlu0 %v4046, 32
      %v4049 = vpop.permute.xlu0 %4048
      %v4051 = vmul.f32 %v4029, %v4049
      %4053 = vset.pattern.permute.xlu0 32
      %4054 = vperm.xlu0 %4053, %v4051
      %v4055 = vpop.permute.xlu0 %4054
      %v4058 = vmul.f32 %v4055, %v3890
      %4059 = vset.pattern.permute.xlu0 33
      %4060 = vperm.xlu0 %4059, %v4051
      %v4061 = vpop.permute.xlu0 %4060
      %v4064 = vmul.f32 %v4061, %v3911
      %4065 = vset.pattern.permute.xlu0 34
      %4066 = vperm.xlu0 %4065, %v4051
      %v4067 = vpop.permute.xlu0 %4066
      %v4070 = vmul.f32 %v4067, %v3932
      %4071 = vset.pattern.permute.xlu0 35
      %4072 = vperm.xlu0 %4071, %v4051
      %v4073 = vpop.permute.xlu0 %4072
      %v4076 = vmul.f32 %v4073, %v3953
      %4077 = vset.pattern.permute.xlu0 36
      %4078 = vperm.xlu0 %4077, %v4051
      %v4079 = vpop.permute.xlu0 %4078
      %v4082 = vmul.f32 %v4079, %v3975
      %4083 = vset.pattern.permute.xlu0 37
      %4084 = vperm.xlu0 %4083, %v4051
      %v4085 = vpop.permute.xlu0 %4084
      %v4088 = vmul.f32 %v4085, %v3997
      %4089 = vset.pattern.permute.xlu0 38
      %4090 = vperm.xlu0 %4089, %v4051
      %v4091 = vpop.permute.xlu0 %4090
      %v4094 = vmul.f32 %v4091, %v4019
      %4095 = vset.pattern.permute.xlu0 39
      %4096 = vperm.xlu0 %4095, %v4051
      %v4097 = vpop.permute.xlu0 %4096
      %v4100 = vmul.f32 %v4097, %v4041
      %v4101 = vmax.f32 %v4058, %v4064
      %v4102 = vmax.f32 %v4070, %v4076
      %v4103 = vmax.f32 %v4082, %v4088
      %v4104 = vmax.f32 %v4094, %v4100
      %v4105 = vmax.f32 %v4101, %v4102
      %v4106 = vmax.f32 %v4103, %v4104
      %v4107 = vmax.f32 %v4105, %v4106
      %v4108 = vsub.f32 1.0, %v4107
      %v4109 = vmul.f32 %v3871, %v4108
      %v4110 = vld [vmem:[#allocation2 + $0x28] sm:$0xff]
      %v4111 = vld [vmem:[#allocation2 + $0xa8] sm:$0xff]
      %v4112 = vld [vmem:[#allocation2 + $0x128] sm:$0xff]
      %v4113 = vld [vmem:[#allocation2 + $0x1a8] sm:$0xff]
      %4115 = vset.pattern.permute.xlu0 40
      %4116 = vperm.xlu0 %4115, %v4109
      %v4117 = vpop.permute.xlu0 %4116
      %v4123 = vrot.slane %v4111, 7
      %v4124 = vsel %vm2987, %v4123, %v4110
      %v4125 = vrot.slane %v4112, 6
      %v4126 = vsel %vm2990, %v4125, %v4124
      %v4127 = vrot.slane %v4113, 5
      %v4128 = vsel %vm2993, %v4127, %v4126
      %4129 = vrot.lane.b32.xlu0 %v4128, 88
      %v4130 = vpop.permute.xlu0 %4129
      %v4132 = vmul.f32 %v4117, %v4130
      %v4133 = vsub.f32 1.0, %v4132
      %4135 = vrot.lane.b32.xlu0 %v4133, 40
      %v4136 = vpop.permute.xlu0 %4135
      %v4138 = vmul.f32 %v4109, %v4136
      %4140 = vset.pattern.permute.xlu0 41
      %4141 = vperm.xlu0 %4140, %v4138
      %v4142 = vpop.permute.xlu0 %4141
      %v4144 = vrot.slane %v4110, 1
      %v4145 = vsel %vm2987, %v4111, %v4144
      %v4146 = vrot.slane %v4112, 7
      %v4147 = vsel %vm2990, %v4146, %v4145
      %v4148 = vrot.slane %v4113, 6
      %v4149 = vsel %vm2993, %v4148, %v4147
      %4150 = vrot.lane.b32.xlu0 %v4149, 88
      %v4151 = vpop.permute.xlu0 %4150
      %v4153 = vmul.f32 %v4142, %v4151
      %v4154 = vsub.f32 1.0, %v4153
      %4156 = vrot.lane.b32.xlu0 %v4154, 40
      %v4157 = vpop.permute.xlu0 %4156
      %v4159 = vmul.f32 %v4138, %v4157
      %4161 = vset.pattern.permute.xlu0 42
      %4162 = vperm.xlu0 %4161, %v4159
      %v4163 = vpop.permute.xlu0 %4162
      %v4165 = vrot.slane %v4110, 2
      %v4166 = vrot.slane %v4111, 1
      %v4167 = vsel %vm2987, %v4166, %v4165
      %v4168 = vsel %vm2990, %v4112, %v4167
      %v4169 = vrot.slane %v4113, 7
      %v4170 = vsel %vm2993, %v4169, %v4168
      %4171 = vrot.lane.b32.xlu0 %v4170, 88
      %v4172 = vpop.permute.xlu0 %4171
      %v4174 = vmul.f32 %v4163, %v4172
      %v4175 = vsub.f32 1.0, %v4174
      %4177 = vrot.lane.b32.xlu0 %v4175, 40
      %v4178 = vpop.permute.xlu0 %4177
      %v4180 = vmul.f32 %v4159, %v4178
      %4182 = vset.pattern.permute.xlu0 43
      %4183 = vperm.xlu0 %4182, %v4180
      %v4184 = vpop.permute.xlu0 %4183
      %v4186 = vrot.slane %v4110, 3
      %v4187 = vrot.slane %v4111, 2
      %v4188 = vsel %vm2987, %v4187, %v4186
      %v4189 = vrot.slane %v4112, 1
      %v4190 = vsel %vm2990, %v4189, %v4188
      %v4191 = vsel %vm2993, %v4113, %v4190
      %4192 = vrot.lane.b32.xlu0 %v4191, 88
      %v4193 = vpop.permute.xlu0 %4192
      %v4195 = vmul.f32 %v4184, %v4193
      %v4196 = vsub.f32 1.0, %v4195
      %4198 = vrot.lane.b32.xlu0 %v4196, 40
      %v4199 = vpop.permute.xlu0 %4198
      %v4201 = vmul.f32 %v4180, %v4199
      %4203 = vset.pattern.permute.xlu0 44
      %4204 = vperm.xlu0 %4203, %v4201
      %v4205 = vpop.permute.xlu0 %4204
      %v4207 = vrot.slane %v4110, 4
      %v4208 = vrot.slane %v4111, 3
      %v4209 = vsel %vm2987, %v4208, %v4207
      %v4210 = vrot.slane %v4112, 2
      %v4211 = vsel %vm2990, %v4210, %v4209
      %v4212 = vrot.slane %v4113, 1
      %v4213 = vsel %vm2993, %v4212, %v4211
      %4214 = vrot.lane.b32.xlu0 %v4213, 88
      %v4215 = vpop.permute.xlu0 %4214
      %v4217 = vmul.f32 %v4205, %v4215
      %v4218 = vsub.f32 1.0, %v4217
      %4220 = vrot.lane.b32.xlu0 %v4218, 40
      %v4221 = vpop.permute.xlu0 %4220
      %v4223 = vmul.f32 %v4201, %v4221
      %4225 = vset.pattern.permute.xlu0 45
      %4226 = vperm.xlu0 %4225, %v4223
      %v4227 = vpop.permute.xlu0 %4226
      %v4229 = vrot.slane %v4110, 5
      %v4230 = vrot.slane %v4111, 4
      %v4231 = vsel %vm2987, %v4230, %v4229
      %v4232 = vrot.slane %v4112, 3
      %v4233 = vsel %vm2990, %v4232, %v4231
      %v4234 = vrot.slane %v4113, 2
      %v4235 = vsel %vm2993, %v4234, %v4233
      %4236 = vrot.lane.b32.xlu0 %v4235, 88
      %v4237 = vpop.permute.xlu0 %4236
      %v4239 = vmul.f32 %v4227, %v4237
      %v4240 = vsub.f32 1.0, %v4239
      %4242 = vrot.lane.b32.xlu0 %v4240, 40
      %v4243 = vpop.permute.xlu0 %4242
      %v4245 = vmul.f32 %v4223, %v4243
      %4247 = vset.pattern.permute.xlu0 46
      %4248 = vperm.xlu0 %4247, %v4245
      %v4249 = vpop.permute.xlu0 %4248
      %v4251 = vrot.slane %v4110, 6
      %v4252 = vrot.slane %v4111, 5
      %v4253 = vsel %vm2987, %v4252, %v4251
      %v4254 = vrot.slane %v4112, 4
      %v4255 = vsel %vm2990, %v4254, %v4253
      %v4256 = vrot.slane %v4113, 3
      %v4257 = vsel %vm2993, %v4256, %v4255
      %4258 = vrot.lane.b32.xlu0 %v4257, 88
      %v4259 = vpop.permute.xlu0 %4258
      %v4261 = vmul.f32 %v4249, %v4259
      %v4262 = vsub.f32 1.0, %v4261
      %4264 = vrot.lane.b32.xlu0 %v4262, 40
      %v4265 = vpop.permute.xlu0 %4264
      %v4267 = vmul.f32 %v4245, %v4265
      %4269 = vset.pattern.permute.xlu0 47
      %4270 = vperm.xlu0 %4269, %v4267
      %v4271 = vpop.permute.xlu0 %4270
      %v4273 = vrot.slane %v4110, 7
      %v4274 = vrot.slane %v4111, 6
      %v4275 = vsel %vm2987, %v4274, %v4273
      %v4276 = vrot.slane %v4112, 5
      %v4277 = vsel %vm2990, %v4276, %v4275
      %v4278 = vrot.slane %v4113, 4
      %v4279 = vsel %vm2993, %v4278, %v4277
      %4280 = vrot.lane.b32.xlu0 %v4279, 88
      %v4281 = vpop.permute.xlu0 %4280
      %v4283 = vmul.f32 %v4271, %v4281
      %v4284 = vsub.f32 1.0, %v4283
      %4286 = vrot.lane.b32.xlu0 %v4284, 40
      %v4287 = vpop.permute.xlu0 %4286
      %v4289 = vmul.f32 %v4267, %v4287
      %4291 = vset.pattern.permute.xlu0 40
      %4292 = vperm.xlu0 %4291, %v4289
      %v4293 = vpop.permute.xlu0 %4292
      %v4296 = vmul.f32 %v4293, %v4128
      %4297 = vset.pattern.permute.xlu0 41
      %4298 = vperm.xlu0 %4297, %v4289
      %v4299 = vpop.permute.xlu0 %4298
      %v4302 = vmul.f32 %v4299, %v4149
      %4303 = vset.pattern.permute.xlu0 42
      %4304 = vperm.xlu0 %4303, %v4289
      %v4305 = vpop.permute.xlu0 %4304
      %v4308 = vmul.f32 %v4305, %v4170
      %4309 = vset.pattern.permute.xlu0 43
      %4310 = vperm.xlu0 %4309, %v4289
      %v4311 = vpop.permute.xlu0 %4310
      %v4314 = vmul.f32 %v4311, %v4191
      %4315 = vset.pattern.permute.xlu0 44
      %4316 = vperm.xlu0 %4315, %v4289
      %v4317 = vpop.permute.xlu0 %4316
      %v4320 = vmul.f32 %v4317, %v4213
      %4321 = vset.pattern.permute.xlu0 45
      %4322 = vperm.xlu0 %4321, %v4289
      %v4323 = vpop.permute.xlu0 %4322
      %v4326 = vmul.f32 %v4323, %v4235
      %4327 = vset.pattern.permute.xlu0 46
      %4328 = vperm.xlu0 %4327, %v4289
      %v4329 = vpop.permute.xlu0 %4328
      %v4332 = vmul.f32 %v4329, %v4257
      %4333 = vset.pattern.permute.xlu0 47
      %4334 = vperm.xlu0 %4333, %v4289
      %v4335 = vpop.permute.xlu0 %4334
      %v4338 = vmul.f32 %v4335, %v4279
      %v4339 = vmax.f32 %v4296, %v4302
      %v4340 = vmax.f32 %v4308, %v4314
      %v4341 = vmax.f32 %v4320, %v4326
      %v4342 = vmax.f32 %v4332, %v4338
      %v4343 = vmax.f32 %v4339, %v4340
      %v4344 = vmax.f32 %v4341, %v4342
      %v4345 = vmax.f32 %v4343, %v4344
      %v4346 = vsub.f32 1.0, %v4345
      %v4347 = vmul.f32 %v4109, %v4346
      %v4348 = vld [vmem:[#allocation2 + $0x30] sm:$0xff]
      %v4349 = vld [vmem:[#allocation2 + $0xb0] sm:$0xff]
      %v4350 = vld [vmem:[#allocation2 + $0x130] sm:$0xff]
      %v4351 = vld [vmem:[#allocation2 + $0x1b0] sm:$0xff]
      %4353 = vset.pattern.permute.xlu0 48
      %4354 = vperm.xlu0 %4353, %v4347
      %v4355 = vpop.permute.xlu0 %4354
      %v4361 = vrot.slane %v4349, 7
      %v4362 = vsel %vm2987, %v4361, %v4348
      %v4363 = vrot.slane %v4350, 6
      %v4364 = vsel %vm2990, %v4363, %v4362
      %v4365 = vrot.slane %v4351, 5
      %v4366 = vsel %vm2993, %v4365, %v4364
      %4367 = vrot.lane.b32.xlu0 %v4366, 80
      %v4368 = vpop.permute.xlu0 %4367
      %v4370 = vmul.f32 %v4355, %v4368
      %v4371 = vsub.f32 1.0, %v4370
      %4373 = vrot.lane.b32.xlu0 %v4371, 48
      %v4374 = vpop.permute.xlu0 %4373
      %v4376 = vmul.f32 %v4347, %v4374
      %4378 = vset.pattern.permute.xlu0 49
      %4379 = vperm.xlu0 %4378, %v4376
      %v4380 = vpop.permute.xlu0 %4379
      %v4382 = vrot.slane %v4348, 1
      %v4383 = vsel %vm2987, %v4349, %v4382
      %v4384 = vrot.slane %v4350, 7
      %v4385 = vsel %vm2990, %v4384, %v4383
      %v4386 = vrot.slane %v4351, 6
      %v4387 = vsel %vm2993, %v4386, %v4385
      %4388 = vrot.lane.b32.xlu0 %v4387, 80
      %v4389 = vpop.permute.xlu0 %4388
      %v4391 = vmul.f32 %v4380, %v4389
      %v4392 = vsub.f32 1.0, %v4391
      %4394 = vrot.lane.b32.xlu0 %v4392, 48
      %v4395 = vpop.permute.xlu0 %4394
      %v4397 = vmul.f32 %v4376, %v4395
      %4399 = vset.pattern.permute.xlu0 50
      %4400 = vperm.xlu0 %4399, %v4397
      %v4401 = vpop.permute.xlu0 %4400
      %v4403 = vrot.slane %v4348, 2
      %v4404 = vrot.slane %v4349, 1
      %v4405 = vsel %vm2987, %v4404, %v4403
      %v4406 = vsel %vm2990, %v4350, %v4405
      %v4407 = vrot.slane %v4351, 7
      %v4408 = vsel %vm2993, %v4407, %v4406
      %4409 = vrot.lane.b32.xlu0 %v4408, 80
      %v4410 = vpop.permute.xlu0 %4409
      %v4412 = vmul.f32 %v4401, %v4410
      %v4413 = vsub.f32 1.0, %v4412
      %4415 = vrot.lane.b32.xlu0 %v4413, 48
      %v4416 = vpop.permute.xlu0 %4415
      %v4418 = vmul.f32 %v4397, %v4416
      %4420 = vset.pattern.permute.xlu0 51
      %4421 = vperm.xlu0 %4420, %v4418
      %v4422 = vpop.permute.xlu0 %4421
      %v4424 = vrot.slane %v4348, 3
      %v4425 = vrot.slane %v4349, 2
      %v4426 = vsel %vm2987, %v4425, %v4424
      %v4427 = vrot.slane %v4350, 1
      %v4428 = vsel %vm2990, %v4427, %v4426
      %v4429 = vsel %vm2993, %v4351, %v4428
      %4430 = vrot.lane.b32.xlu0 %v4429, 80
      %v4431 = vpop.permute.xlu0 %4430
      %v4433 = vmul.f32 %v4422, %v4431
      %v4434 = vsub.f32 1.0, %v4433
      %4436 = vrot.lane.b32.xlu0 %v4434, 48
      %v4437 = vpop.permute.xlu0 %4436
      %v4439 = vmul.f32 %v4418, %v4437
      %4441 = vset.pattern.permute.xlu0 52
      %4442 = vperm.xlu0 %4441, %v4439
      %v4443 = vpop.permute.xlu0 %4442
      %v4445 = vrot.slane %v4348, 4
      %v4446 = vrot.slane %v4349, 3
      %v4447 = vsel %vm2987, %v4446, %v4445
      %v4448 = vrot.slane %v4350, 2
      %v4449 = vsel %vm2990, %v4448, %v4447
      %v4450 = vrot.slane %v4351, 1
      %v4451 = vsel %vm2993, %v4450, %v4449
      %4452 = vrot.lane.b32.xlu0 %v4451, 80
      %v4453 = vpop.permute.xlu0 %4452
      %v4455 = vmul.f32 %v4443, %v4453
      %v4456 = vsub.f32 1.0, %v4455
      %4458 = vrot.lane.b32.xlu0 %v4456, 48
      %v4459 = vpop.permute.xlu0 %4458
      %v4461 = vmul.f32 %v4439, %v4459
      %4463 = vset.pattern.permute.xlu0 53
      %4464 = vperm.xlu0 %4463, %v4461
      %v4465 = vpop.permute.xlu0 %4464
      %v4467 = vrot.slane %v4348, 5
      %v4468 = vrot.slane %v4349, 4
      %v4469 = vsel %vm2987, %v4468, %v4467
      %v4470 = vrot.slane %v4350, 3
      %v4471 = vsel %vm2990, %v4470, %v4469
      %v4472 = vrot.slane %v4351, 2
      %v4473 = vsel %vm2993, %v4472, %v4471
      %4474 = vrot.lane.b32.xlu0 %v4473, 80
      %v4475 = vpop.permute.xlu0 %4474
      %v4477 = vmul.f32 %v4465, %v4475
      %v4478 = vsub.f32 1.0, %v4477
      %4480 = vrot.lane.b32.xlu0 %v4478, 48
      %v4481 = vpop.permute.xlu0 %4480
      %v4483 = vmul.f32 %v4461, %v4481
      %4485 = vset.pattern.permute.xlu0 54
      %4486 = vperm.xlu0 %4485, %v4483
      %v4487 = vpop.permute.xlu0 %4486
      %v4489 = vrot.slane %v4348, 6
      %v4490 = vrot.slane %v4349, 5
      %v4491 = vsel %vm2987, %v4490, %v4489
      %v4492 = vrot.slane %v4350, 4
      %v4493 = vsel %vm2990, %v4492, %v4491
      %v4494 = vrot.slane %v4351, 3
      %v4495 = vsel %vm2993, %v4494, %v4493
      %4496 = vrot.lane.b32.xlu0 %v4495, 80
      %v4497 = vpop.permute.xlu0 %4496
      %v4499 = vmul.f32 %v4487, %v4497
      %v4500 = vsub.f32 1.0, %v4499
      %4502 = vrot.lane.b32.xlu0 %v4500, 48
      %v4503 = vpop.permute.xlu0 %4502
      %v4505 = vmul.f32 %v4483, %v4503
      %4507 = vset.pattern.permute.xlu0 55
      %4508 = vperm.xlu0 %4507, %v4505
      %v4509 = vpop.permute.xlu0 %4508
      %v4511 = vrot.slane %v4348, 7
      %v4512 = vrot.slane %v4349, 6
      %v4513 = vsel %vm2987, %v4512, %v4511
      %v4514 = vrot.slane %v4350, 5
      %v4515 = vsel %vm2990, %v4514, %v4513
      %v4516 = vrot.slane %v4351, 4
      %v4517 = vsel %vm2993, %v4516, %v4515
      %4518 = vrot.lane.b32.xlu0 %v4517, 80
      %v4519 = vpop.permute.xlu0 %4518
      %v4521 = vmul.f32 %v4509, %v4519
      %v4522 = vsub.f32 1.0, %v4521
      %4524 = vrot.lane.b32.xlu0 %v4522, 48
      %v4525 = vpop.permute.xlu0 %4524
      %v4527 = vmul.f32 %v4505, %v4525
      %4529 = vset.pattern.permute.xlu0 48
      %4530 = vperm.xlu0 %4529, %v4527
      %v4531 = vpop.permute.xlu0 %4530
      %v4534 = vmul.f32 %v4531, %v4366
      %4535 = vset.pattern.permute.xlu0 49
      %4536 = vperm.xlu0 %4535, %v4527
      %v4537 = vpop.permute.xlu0 %4536
      %v4540 = vmul.f32 %v4537, %v4387
      %4541 = vset.pattern.permute.xlu0 50
      %4542 = vperm.xlu0 %4541, %v4527
      %v4543 = vpop.permute.xlu0 %4542
      %v4546 = vmul.f32 %v4543, %v4408
      %4547 = vset.pattern.permute.xlu0 51
      %4548 = vperm.xlu0 %4547, %v4527
      %v4549 = vpop.permute.xlu0 %4548
      %v4552 = vmul.f32 %v4549, %v4429
      %4553 = vset.pattern.permute.xlu0 52
      %4554 = vperm.xlu0 %4553, %v4527
      %v4555 = vpop.permute.xlu0 %4554
      %v4558 = vmul.f32 %v4555, %v4451
      %4559 = vset.pattern.permute.xlu0 53
      %4560 = vperm.xlu0 %4559, %v4527
      %v4561 = vpop.permute.xlu0 %4560
      %v4564 = vmul.f32 %v4561, %v4473
      %4565 = vset.pattern.permute.xlu0 54
      %4566 = vperm.xlu0 %4565, %v4527
      %v4567 = vpop.permute.xlu0 %4566
      %v4570 = vmul.f32 %v4567, %v4495
      %4571 = vset.pattern.permute.xlu0 55
      %4572 = vperm.xlu0 %4571, %v4527
      %v4573 = vpop.permute.xlu0 %4572
      %v4576 = vmul.f32 %v4573, %v4517
      %v4577 = vmax.f32 %v4534, %v4540
      %v4578 = vmax.f32 %v4546, %v4552
      %v4579 = vmax.f32 %v4558, %v4564
      %v4580 = vmax.f32 %v4570, %v4576
      %v4581 = vmax.f32 %v4577, %v4578
      %v4582 = vmax.f32 %v4579, %v4580
      %v4583 = vmax.f32 %v4581, %v4582
      %v4584 = vsub.f32 1.0, %v4583
      %v4585 = vmul.f32 %v4347, %v4584
      %v4586 = vld [vmem:[#allocation2 + $0x38] sm:$0xff]
      %v4587 = vld [vmem:[#allocation2 + $0xb8] sm:$0xff]
      %v4588 = vld [vmem:[#allocation2 + $0x138] sm:$0xff]
      %v4589 = vld [vmem:[#allocation2 + $0x1b8] sm:$0xff]
      %4591 = vset.pattern.permute.xlu0 56
      %4592 = vperm.xlu0 %4591, %v4585
      %v4593 = vpop.permute.xlu0 %4592
      %v4599 = vrot.slane %v4587, 7
      %v4600 = vsel %vm2987, %v4599, %v4586
      %v4601 = vrot.slane %v4588, 6
      %v4602 = vsel %vm2990, %v4601, %v4600
      %v4603 = vrot.slane %v4589, 5
      %v4604 = vsel %vm2993, %v4603, %v4602
      %4605 = vrot.lane.b32.xlu0 %v4604, 72
      %v4606 = vpop.permute.xlu0 %4605
      %v4608 = vmul.f32 %v4593, %v4606
      %v4609 = vsub.f32 1.0, %v4608
      %4611 = vrot.lane.b32.xlu0 %v4609, 56
      %v4612 = vpop.permute.xlu0 %4611
      %v4614 = vmul.f32 %v4585, %v4612
      %4616 = vset.pattern.permute.xlu0 57
      %4617 = vperm.xlu0 %4616, %v4614
      %v4618 = vpop.permute.xlu0 %4617
      %v4620 = vrot.slane %v4586, 1
      %v4621 = vsel %vm2987, %v4587, %v4620
      %v4622 = vrot.slane %v4588, 7
      %v4623 = vsel %vm2990, %v4622, %v4621
      %v4624 = vrot.slane %v4589, 6
      %v4625 = vsel %vm2993, %v4624, %v4623
      %4626 = vrot.lane.b32.xlu0 %v4625, 72
      %v4627 = vpop.permute.xlu0 %4626
      %v4629 = vmul.f32 %v4618, %v4627
      %v4630 = vsub.f32 1.0, %v4629
      %4632 = vrot.lane.b32.xlu0 %v4630, 56
      %v4633 = vpop.permute.xlu0 %4632
      %v4635 = vmul.f32 %v4614, %v4633
      %4637 = vset.pattern.permute.xlu0 58
      %4638 = vperm.xlu0 %4637, %v4635
      %v4639 = vpop.permute.xlu0 %4638
      %v4641 = vrot.slane %v4586, 2
      %v4642 = vrot.slane %v4587, 1
      %v4643 = vsel %vm2987, %v4642, %v4641
      %v4644 = vsel %vm2990, %v4588, %v4643
      %v4645 = vrot.slane %v4589, 7
      %v4646 = vsel %vm2993, %v4645, %v4644
      %4647 = vrot.lane.b32.xlu0 %v4646, 72
      %v4648 = vpop.permute.xlu0 %4647
      %v4650 = vmul.f32 %v4639, %v4648
      %v4651 = vsub.f32 1.0, %v4650
      %4653 = vrot.lane.b32.xlu0 %v4651, 56
      %v4654 = vpop.permute.xlu0 %4653
      %v4656 = vmul.f32 %v4635, %v4654
      %4658 = vset.pattern.permute.xlu0 59
      %4659 = vperm.xlu0 %4658, %v4656
      %v4660 = vpop.permute.xlu0 %4659
      %v4662 = vrot.slane %v4586, 3
      %v4663 = vrot.slane %v4587, 2
      %v4664 = vsel %vm2987, %v4663, %v4662
      %v4665 = vrot.slane %v4588, 1
      %v4666 = vsel %vm2990, %v4665, %v4664
      %v4667 = vsel %vm2993, %v4589, %v4666
      %4668 = vrot.lane.b32.xlu0 %v4667, 72
      %v4669 = vpop.permute.xlu0 %4668
      %v4671 = vmul.f32 %v4660, %v4669
      %v4672 = vsub.f32 1.0, %v4671
      %4674 = vrot.lane.b32.xlu0 %v4672, 56
      %v4675 = vpop.permute.xlu0 %4674
      %v4677 = vmul.f32 %v4656, %v4675
      %4679 = vset.pattern.permute.xlu0 60
      %4680 = vperm.xlu0 %4679, %v4677
      %v4681 = vpop.permute.xlu0 %4680
      %v4683 = vrot.slane %v4586, 4
      %v4684 = vrot.slane %v4587, 3
      %v4685 = vsel %vm2987, %v4684, %v4683
      %v4686 = vrot.slane %v4588, 2
      %v4687 = vsel %vm2990, %v4686, %v4685
      %v4688 = vrot.slane %v4589, 1
      %v4689 = vsel %vm2993, %v4688, %v4687
      %4690 = vrot.lane.b32.xlu0 %v4689, 72
      %v4691 = vpop.permute.xlu0 %4690
      %v4693 = vmul.f32 %v4681, %v4691
      %v4694 = vsub.f32 1.0, %v4693
      %4696 = vrot.lane.b32.xlu0 %v4694, 56
      %v4697 = vpop.permute.xlu0 %4696
      %v4699 = vmul.f32 %v4677, %v4697
      %4701 = vset.pattern.permute.xlu0 61
      %4702 = vperm.xlu0 %4701, %v4699
      %v4703 = vpop.permute.xlu0 %4702
      %v4705 = vrot.slane %v4586, 5
      %v4706 = vrot.slane %v4587, 4
      %v4707 = vsel %vm2987, %v4706, %v4705
      %v4708 = vrot.slane %v4588, 3
      %v4709 = vsel %vm2990, %v4708, %v4707
      %v4710 = vrot.slane %v4589, 2
      %v4711 = vsel %vm2993, %v4710, %v4709
      %4712 = vrot.lane.b32.xlu0 %v4711, 72
      %v4713 = vpop.permute.xlu0 %4712
      %v4715 = vmul.f32 %v4703, %v4713
      %v4716 = vsub.f32 1.0, %v4715
      %4718 = vrot.lane.b32.xlu0 %v4716, 56
      %v4719 = vpop.permute.xlu0 %4718
      %v4721 = vmul.f32 %v4699, %v4719
      %4723 = vset.pattern.permute.xlu0 62
      %4724 = vperm.xlu0 %4723, %v4721
      %v4725 = vpop.permute.xlu0 %4724
      %v4727 = vrot.slane %v4586, 6
      %v4728 = vrot.slane %v4587, 5
      %v4729 = vsel %vm2987, %v4728, %v4727
      %v4730 = vrot.slane %v4588, 4
      %v4731 = vsel %vm2990, %v4730, %v4729
      %v4732 = vrot.slane %v4589, 3
      %v4733 = vsel %vm2993, %v4732, %v4731
      %4734 = vrot.lane.b32.xlu0 %v4733, 72
      %v4735 = vpop.permute.xlu0 %4734
      %v4737 = vmul.f32 %v4725, %v4735
      %v4738 = vsub.f32 1.0, %v4737
      %4740 = vrot.lane.b32.xlu0 %v4738, 56
      %v4741 = vpop.permute.xlu0 %4740
      %v4743 = vmul.f32 %v4721, %v4741
      %4745 = vset.pattern.permute.xlu0 63
      %4746 = vperm.xlu0 %4745, %v4743
      %v4747 = vpop.permute.xlu0 %4746
      %v4749 = vrot.slane %v4586, 7
      %v4750 = vrot.slane %v4587, 6
      %v4751 = vsel %vm2987, %v4750, %v4749
      %v4752 = vrot.slane %v4588, 5
      %v4753 = vsel %vm2990, %v4752, %v4751
      %v4754 = vrot.slane %v4589, 4
      %v4755 = vsel %vm2993, %v4754, %v4753
      %4756 = vrot.lane.b32.xlu0 %v4755, 72
      %v4757 = vpop.permute.xlu0 %4756
      %v4759 = vmul.f32 %v4747, %v4757
      %v4760 = vsub.f32 1.0, %v4759
      %4762 = vrot.lane.b32.xlu0 %v4760, 56
      %v4763 = vpop.permute.xlu0 %4762
      %v4765 = vmul.f32 %v4743, %v4763
      %4767 = vset.pattern.permute.xlu0 56
      %4768 = vperm.xlu0 %4767, %v4765
      %v4769 = vpop.permute.xlu0 %4768
      %v4772 = vmul.f32 %v4769, %v4604
      %4773 = vset.pattern.permute.xlu0 57
      %4774 = vperm.xlu0 %4773, %v4765
      %v4775 = vpop.permute.xlu0 %4774
      %v4778 = vmul.f32 %v4775, %v4625
      %4779 = vset.pattern.permute.xlu0 58
      %4780 = vperm.xlu0 %4779, %v4765
      %v4781 = vpop.permute.xlu0 %4780
      %v4784 = vmul.f32 %v4781, %v4646
      %4785 = vset.pattern.permute.xlu0 59
      %4786 = vperm.xlu0 %4785, %v4765
      %v4787 = vpop.permute.xlu0 %4786
      %v4790 = vmul.f32 %v4787, %v4667
      %4791 = vset.pattern.permute.xlu0 60
      %4792 = vperm.xlu0 %4791, %v4765
      %v4793 = vpop.permute.xlu0 %4792
      %v4796 = vmul.f32 %v4793, %v4689
      %4797 = vset.pattern.permute.xlu0 61
      %4798 = vperm.xlu0 %4797, %v4765
      %v4799 = vpop.permute.xlu0 %4798
      %v4802 = vmul.f32 %v4799, %v4711
      %4803 = vset.pattern.permute.xlu0 62
      %4804 = vperm.xlu0 %4803, %v4765
      %v4805 = vpop.permute.xlu0 %4804
      %v4808 = vmul.f32 %v4805, %v4733
      %4809 = vset.pattern.permute.xlu0 63
      %4810 = vperm.xlu0 %4809, %v4765
      %v4811 = vpop.permute.xlu0 %4810
      %v4814 = vmul.f32 %v4811, %v4755
      %v4815 = vmax.f32 %v4772, %v4778
      %v4816 = vmax.f32 %v4784, %v4790
      %v4817 = vmax.f32 %v4796, %v4802
      %v4818 = vmax.f32 %v4808, %v4814
      %v4819 = vmax.f32 %v4815, %v4816
      %v4820 = vmax.f32 %v4817, %v4818
      %v4821 = vmax.f32 %v4819, %v4820
      %v4822 = vsub.f32 1.0, %v4821
      %v4823 = vmul.f32 %v4585, %v4822
      %v4824 = vld [vmem:[#allocation2 + $0x40] sm:$0xff]
      %v4825 = vld [vmem:[#allocation2 + $0xc0] sm:$0xff]
      %v4826 = vld [vmem:[#allocation2 + $0x140] sm:$0xff]
      %v4827 = vld [vmem:[#allocation2 + $0x1c0] sm:$0xff]
      %4829 = vset.pattern.permute.xlu0 64
      %4830 = vperm.xlu0 %4829, %v4823
      %v4831 = vpop.permute.xlu0 %4830
      %v4837 = vrot.slane %v4825, 7
      %v4838 = vsel %vm2987, %v4837, %v4824
      %v4839 = vrot.slane %v4826, 6
      %v4840 = vsel %vm2990, %v4839, %v4838
      %v4841 = vrot.slane %v4827, 5
      %v4842 = vsel %vm2993, %v4841, %v4840
      %4843 = vrot.lane.b32.xlu0 %v4842, 64
      %v4844 = vpop.permute.xlu0 %4843
      %v4846 = vmul.f32 %v4831, %v4844
      %v4847 = vsub.f32 1.0, %v4846
      %4849 = vrot.lane.b32.xlu0 %v4847, 64
      %v4850 = vpop.permute.xlu0 %4849
      %v4852 = vmul.f32 %v4823, %v4850
      %4854 = vset.pattern.permute.xlu0 65
      %4855 = vperm.xlu0 %4854, %v4852
      %v4856 = vpop.permute.xlu0 %4855
      %v4858 = vrot.slane %v4824, 1
      %v4859 = vsel %vm2987, %v4825, %v4858
      %v4860 = vrot.slane %v4826, 7
      %v4861 = vsel %vm2990, %v4860, %v4859
      %v4862 = vrot.slane %v4827, 6
      %v4863 = vsel %vm2993, %v4862, %v4861
      %4864 = vrot.lane.b32.xlu0 %v4863, 64
      %v4865 = vpop.permute.xlu0 %4864
      %v4867 = vmul.f32 %v4856, %v4865
      %v4868 = vsub.f32 1.0, %v4867
      %4870 = vrot.lane.b32.xlu0 %v4868, 64
      %v4871 = vpop.permute.xlu0 %4870
      %v4873 = vmul.f32 %v4852, %v4871
      %4875 = vset.pattern.permute.xlu0 66
      %4876 = vperm.xlu0 %4875, %v4873
      %v4877 = vpop.permute.xlu0 %4876
      %v4879 = vrot.slane %v4824, 2
      %v4880 = vrot.slane %v4825, 1
      %v4881 = vsel %vm2987, %v4880, %v4879
      %v4882 = vsel %vm2990, %v4826, %v4881
      %v4883 = vrot.slane %v4827, 7
      %v4884 = vsel %vm2993, %v4883, %v4882
      %4885 = vrot.lane.b32.xlu0 %v4884, 64
      %v4886 = vpop.permute.xlu0 %4885
      %v4888 = vmul.f32 %v4877, %v4886
      %v4889 = vsub.f32 1.0, %v4888
      %4891 = vrot.lane.b32.xlu0 %v4889, 64
      %v4892 = vpop.permute.xlu0 %4891
      %v4894 = vmul.f32 %v4873, %v4892
      %4896 = vset.pattern.permute.xlu0 67
      %4897 = vperm.xlu0 %4896, %v4894
      %v4898 = vpop.permute.xlu0 %4897
      %v4900 = vrot.slane %v4824, 3
      %v4901 = vrot.slane %v4825, 2
      %v4902 = vsel %vm2987, %v4901, %v4900
      %v4903 = vrot.slane %v4826, 1
      %v4904 = vsel %vm2990, %v4903, %v4902
      %v4905 = vsel %vm2993, %v4827, %v4904
      %4906 = vrot.lane.b32.xlu0 %v4905, 64
      %v4907 = vpop.permute.xlu0 %4906
      %v4909 = vmul.f32 %v4898, %v4907
      %v4910 = vsub.f32 1.0, %v4909
      %4912 = vrot.lane.b32.xlu0 %v4910, 64
      %v4913 = vpop.permute.xlu0 %4912
      %v4915 = vmul.f32 %v4894, %v4913
      %4917 = vset.pattern.permute.xlu0 68
      %4918 = vperm.xlu0 %4917, %v4915
      %v4919 = vpop.permute.xlu0 %4918
      %v4921 = vrot.slane %v4824, 4
      %v4922 = vrot.slane %v4825, 3
      %v4923 = vsel %vm2987, %v4922, %v4921
      %v4924 = vrot.slane %v4826, 2
      %v4925 = vsel %vm2990, %v4924, %v4923
      %v4926 = vrot.slane %v4827, 1
      %v4927 = vsel %vm2993, %v4926, %v4925
      %4928 = vrot.lane.b32.xlu0 %v4927, 64
      %v4929 = vpop.permute.xlu0 %4928
      %v4931 = vmul.f32 %v4919, %v4929
      %v4932 = vsub.f32 1.0, %v4931
      %4934 = vrot.lane.b32.xlu0 %v4932, 64
      %v4935 = vpop.permute.xlu0 %4934
      %v4937 = vmul.f32 %v4915, %v4935
      %4939 = vset.pattern.permute.xlu0 69
      %4940 = vperm.xlu0 %4939, %v4937
      %v4941 = vpop.permute.xlu0 %4940
      %v4943 = vrot.slane %v4824, 5
      %v4944 = vrot.slane %v4825, 4
      %v4945 = vsel %vm2987, %v4944, %v4943
      %v4946 = vrot.slane %v4826, 3
      %v4947 = vsel %vm2990, %v4946, %v4945
      %v4948 = vrot.slane %v4827, 2
      %v4949 = vsel %vm2993, %v4948, %v4947
      %4950 = vrot.lane.b32.xlu0 %v4949, 64
      %v4951 = vpop.permute.xlu0 %4950
      %v4953 = vmul.f32 %v4941, %v4951
      %v4954 = vsub.f32 1.0, %v4953
      %4956 = vrot.lane.b32.xlu0 %v4954, 64
      %v4957 = vpop.permute.xlu0 %4956
      %v4959 = vmul.f32 %v4937, %v4957
      %4961 = vset.pattern.permute.xlu0 70
      %4962 = vperm.xlu0 %4961, %v4959
      %v4963 = vpop.permute.xlu0 %4962
      %v4965 = vrot.slane %v4824, 6
      %v4966 = vrot.slane %v4825, 5
      %v4967 = vsel %vm2987, %v4966, %v4965
      %v4968 = vrot.slane %v4826, 4
      %v4969 = vsel %vm2990, %v4968, %v4967
      %v4970 = vrot.slane %v4827, 3
      %v4971 = vsel %vm2993, %v4970, %v4969
      %4972 = vrot.lane.b32.xlu0 %v4971, 64
      %v4973 = vpop.permute.xlu0 %4972
      %v4975 = vmul.f32 %v4963, %v4973
      %v4976 = vsub.f32 1.0, %v4975
      %4978 = vrot.lane.b32.xlu0 %v4976, 64
      %v4979 = vpop.permute.xlu0 %4978
      %v4981 = vmul.f32 %v4959, %v4979
      %4983 = vset.pattern.permute.xlu0 71
      %4984 = vperm.xlu0 %4983, %v4981
      %v4985 = vpop.permute.xlu0 %4984
      %v4987 = vrot.slane %v4824, 7
      %v4988 = vrot.slane %v4825, 6
      %v4989 = vsel %vm2987, %v4988, %v4987
      %v4990 = vrot.slane %v4826, 5
      %v4991 = vsel %vm2990, %v4990, %v4989
      %v4992 = vrot.slane %v4827, 4
      %v4993 = vsel %vm2993, %v4992, %v4991
      %4994 = vrot.lane.b32.xlu0 %v4993, 64
      %v4995 = vpop.permute.xlu0 %4994
      %v4997 = vmul.f32 %v4985, %v4995
      %v4998 = vsub.f32 1.0, %v4997
      %5000 = vrot.lane.b32.xlu0 %v4998, 64
      %v5001 = vpop.permute.xlu0 %5000
      %v5003 = vmul.f32 %v4981, %v5001
      %5005 = vset.pattern.permute.xlu0 64
      %5006 = vperm.xlu0 %5005, %v5003
      %v5007 = vpop.permute.xlu0 %5006
      %v5010 = vmul.f32 %v5007, %v4842
      %5011 = vset.pattern.permute.xlu0 65
      %5012 = vperm.xlu0 %5011, %v5003
      %v5013 = vpop.permute.xlu0 %5012
      %v5016 = vmul.f32 %v5013, %v4863
      %5017 = vset.pattern.permute.xlu0 66
      %5018 = vperm.xlu0 %5017, %v5003
      %v5019 = vpop.permute.xlu0 %5018
      %v5022 = vmul.f32 %v5019, %v4884
      %5023 = vset.pattern.permute.xlu0 67
      %5024 = vperm.xlu0 %5023, %v5003
      %v5025 = vpop.permute.xlu0 %5024
      %v5028 = vmul.f32 %v5025, %v4905
      %5029 = vset.pattern.permute.xlu0 68
      %5030 = vperm.xlu0 %5029, %v5003
      %v5031 = vpop.permute.xlu0 %5030
      %v5034 = vmul.f32 %v5031, %v4927
      %5035 = vset.pattern.permute.xlu0 69
      %5036 = vperm.xlu0 %5035, %v5003
      %v5037 = vpop.permute.xlu0 %5036
      %v5040 = vmul.f32 %v5037, %v4949
      %5041 = vset.pattern.permute.xlu0 70
      %5042 = vperm.xlu0 %5041, %v5003
      %v5043 = vpop.permute.xlu0 %5042
      %v5046 = vmul.f32 %v5043, %v4971
      %5047 = vset.pattern.permute.xlu0 71
      %5048 = vperm.xlu0 %5047, %v5003
      %v5049 = vpop.permute.xlu0 %5048
      %v5052 = vmul.f32 %v5049, %v4993
      %v5053 = vmax.f32 %v5010, %v5016
      %v5054 = vmax.f32 %v5022, %v5028
      %v5055 = vmax.f32 %v5034, %v5040
      %v5056 = vmax.f32 %v5046, %v5052
      %v5057 = vmax.f32 %v5053, %v5054
      %v5058 = vmax.f32 %v5055, %v5056
      %v5059 = vmax.f32 %v5057, %v5058
      %v5060 = vsub.f32 1.0, %v5059
      %v5061 = vmul.f32 %v4823, %v5060
      %v5062 = vld [vmem:[#allocation2 + $0x48] sm:$0xff]
      %v5063 = vld [vmem:[#allocation2 + $0xc8] sm:$0xff]
      %v5064 = vld [vmem:[#allocation2 + $0x148] sm:$0xff]
      %v5065 = vld [vmem:[#allocation2 + $0x1c8] sm:$0xff]
      %5067 = vset.pattern.permute.xlu0 72
      %5068 = vperm.xlu0 %5067, %v5061
      %v5069 = vpop.permute.xlu0 %5068
      %v5075 = vrot.slane %v5063, 7
      %v5076 = vsel %vm2987, %v5075, %v5062
      %v5077 = vrot.slane %v5064, 6
      %v5078 = vsel %vm2990, %v5077, %v5076
      %v5079 = vrot.slane %v5065, 5
      %v5080 = vsel %vm2993, %v5079, %v5078
      %5081 = vrot.lane.b32.xlu0 %v5080, 56
      %v5082 = vpop.permute.xlu0 %5081
      %v5084 = vmul.f32 %v5069, %v5082
      %v5085 = vsub.f32 1.0, %v5084
      %5087 = vrot.lane.b32.xlu0 %v5085, 72
      %v5088 = vpop.permute.xlu0 %5087
      %v5090 = vmul.f32 %v5061, %v5088
      %5092 = vset.pattern.permute.xlu0 73
      %5093 = vperm.xlu0 %5092, %v5090
      %v5094 = vpop.permute.xlu0 %5093
      %v5096 = vrot.slane %v5062, 1
      %v5097 = vsel %vm2987, %v5063, %v5096
      %v5098 = vrot.slane %v5064, 7
      %v5099 = vsel %vm2990, %v5098, %v5097
      %v5100 = vrot.slane %v5065, 6
      %v5101 = vsel %vm2993, %v5100, %v5099
      %5102 = vrot.lane.b32.xlu0 %v5101, 56
      %v5103 = vpop.permute.xlu0 %5102
      %v5105 = vmul.f32 %v5094, %v5103
      %v5106 = vsub.f32 1.0, %v5105
      %5108 = vrot.lane.b32.xlu0 %v5106, 72
      %v5109 = vpop.permute.xlu0 %5108
      %v5111 = vmul.f32 %v5090, %v5109
      %5113 = vset.pattern.permute.xlu0 74
      %5114 = vperm.xlu0 %5113, %v5111
      %v5115 = vpop.permute.xlu0 %5114
      %v5117 = vrot.slane %v5062, 2
      %v5118 = vrot.slane %v5063, 1
      %v5119 = vsel %vm2987, %v5118, %v5117
      %v5120 = vsel %vm2990, %v5064, %v5119
      %v5121 = vrot.slane %v5065, 7
      %v5122 = vsel %vm2993, %v5121, %v5120
      %5123 = vrot.lane.b32.xlu0 %v5122, 56
      %v5124 = vpop.permute.xlu0 %5123
      %v5126 = vmul.f32 %v5115, %v5124
      %v5127 = vsub.f32 1.0, %v5126
      %5129 = vrot.lane.b32.xlu0 %v5127, 72
      %v5130 = vpop.permute.xlu0 %5129
      %v5132 = vmul.f32 %v5111, %v5130
      %5134 = vset.pattern.permute.xlu0 75
      %5135 = vperm.xlu0 %5134, %v5132
      %v5136 = vpop.permute.xlu0 %5135
      %v5138 = vrot.slane %v5062, 3
      %v5139 = vrot.slane %v5063, 2
      %v5140 = vsel %vm2987, %v5139, %v5138
      %v5141 = vrot.slane %v5064, 1
      %v5142 = vsel %vm2990, %v5141, %v5140
      %v5143 = vsel %vm2993, %v5065, %v5142
      %5144 = vrot.lane.b32.xlu0 %v5143, 56
      %v5145 = vpop.permute.xlu0 %5144
      %v5147 = vmul.f32 %v5136, %v5145
      %v5148 = vsub.f32 1.0, %v5147
      %5150 = vrot.lane.b32.xlu0 %v5148, 72
      %v5151 = vpop.permute.xlu0 %5150
      %v5153 = vmul.f32 %v5132, %v5151
      %5155 = vset.pattern.permute.xlu0 76
      %5156 = vperm.xlu0 %5155, %v5153
      %v5157 = vpop.permute.xlu0 %5156
      %v5159 = vrot.slane %v5062, 4
      %v5160 = vrot.slane %v5063, 3
      %v5161 = vsel %vm2987, %v5160, %v5159
      %v5162 = vrot.slane %v5064, 2
      %v5163 = vsel %vm2990, %v5162, %v5161
      %v5164 = vrot.slane %v5065, 1
      %v5165 = vsel %vm2993, %v5164, %v5163
      %5166 = vrot.lane.b32.xlu0 %v5165, 56
      %v5167 = vpop.permute.xlu0 %5166
      %v5169 = vmul.f32 %v5157, %v5167
      %v5170 = vsub.f32 1.0, %v5169
      %5172 = vrot.lane.b32.xlu0 %v5170, 72
      %v5173 = vpop.permute.xlu0 %5172
      %v5175 = vmul.f32 %v5153, %v5173
      %5177 = vset.pattern.permute.xlu0 77
      %5178 = vperm.xlu0 %5177, %v5175
      %v5179 = vpop.permute.xlu0 %5178
      %v5181 = vrot.slane %v5062, 5
      %v5182 = vrot.slane %v5063, 4
      %v5183 = vsel %vm2987, %v5182, %v5181
      %v5184 = vrot.slane %v5064, 3
      %v5185 = vsel %vm2990, %v5184, %v5183
      %v5186 = vrot.slane %v5065, 2
      %v5187 = vsel %vm2993, %v5186, %v5185
      %5188 = vrot.lane.b32.xlu0 %v5187, 56
      %v5189 = vpop.permute.xlu0 %5188
      %v5191 = vmul.f32 %v5179, %v5189
      %v5192 = vsub.f32 1.0, %v5191
      %5194 = vrot.lane.b32.xlu0 %v5192, 72
      %v5195 = vpop.permute.xlu0 %5194
      %v5197 = vmul.f32 %v5175, %v5195
      %5199 = vset.pattern.permute.xlu0 78
      %5200 = vperm.xlu0 %5199, %v5197
      %v5201 = vpop.permute.xlu0 %5200
      %v5203 = vrot.slane %v5062, 6
      %v5204 = vrot.slane %v5063, 5
      %v5205 = vsel %vm2987, %v5204, %v5203
      %v5206 = vrot.slane %v5064, 4
      %v5207 = vsel %vm2990, %v5206, %v5205
      %v5208 = vrot.slane %v5065, 3
      %v5209 = vsel %vm2993, %v5208, %v5207
      %5210 = vrot.lane.b32.xlu0 %v5209, 56
      %v5211 = vpop.permute.xlu0 %5210
      %v5213 = vmul.f32 %v5201, %v5211
      %v5214 = vsub.f32 1.0, %v5213
      %5216 = vrot.lane.b32.xlu0 %v5214, 72
      %v5217 = vpop.permute.xlu0 %5216
      %v5219 = vmul.f32 %v5197, %v5217
      %5221 = vset.pattern.permute.xlu0 79
      %5222 = vperm.xlu0 %5221, %v5219
      %v5223 = vpop.permute.xlu0 %5222
      %v5225 = vrot.slane %v5062, 7
      %v5226 = vrot.slane %v5063, 6
      %v5227 = vsel %vm2987, %v5226, %v5225
      %v5228 = vrot.slane %v5064, 5
      %v5229 = vsel %vm2990, %v5228, %v5227
      %v5230 = vrot.slane %v5065, 4
      %v5231 = vsel %vm2993, %v5230, %v5229
      %5232 = vrot.lane.b32.xlu0 %v5231, 56
      %v5233 = vpop.permute.xlu0 %5232
      %v5235 = vmul.f32 %v5223, %v5233
      %v5236 = vsub.f32 1.0, %v5235
      %5238 = vrot.lane.b32.xlu0 %v5236, 72
      %v5239 = vpop.permute.xlu0 %5238
      %v5241 = vmul.f32 %v5219, %v5239
      %5243 = vset.pattern.permute.xlu0 72
      %5244 = vperm.xlu0 %5243, %v5241
      %v5245 = vpop.permute.xlu0 %5244
      %v5248 = vmul.f32 %v5245, %v5080
      %5249 = vset.pattern.permute.xlu0 73
      %5250 = vperm.xlu0 %5249, %v5241
      %v5251 = vpop.permute.xlu0 %5250
      %v5254 = vmul.f32 %v5251, %v5101
      %5255 = vset.pattern.permute.xlu0 74
      %5256 = vperm.xlu0 %5255, %v5241
      %v5257 = vpop.permute.xlu0 %5256
      %v5260 = vmul.f32 %v5257, %v5122
      %5261 = vset.pattern.permute.xlu0 75
      %5262 = vperm.xlu0 %5261, %v5241
      %v5263 = vpop.permute.xlu0 %5262
      %v5266 = vmul.f32 %v5263, %v5143
      %5267 = vset.pattern.permute.xlu0 76
      %5268 = vperm.xlu0 %5267, %v5241
      %v5269 = vpop.permute.xlu0 %5268
      %v5272 = vmul.f32 %v5269, %v5165
      %5273 = vset.pattern.permute.xlu0 77
      %5274 = vperm.xlu0 %5273, %v5241
      %v5275 = vpop.permute.xlu0 %5274
      %v5278 = vmul.f32 %v5275, %v5187
      %5279 = vset.pattern.permute.xlu0 78
      %5280 = vperm.xlu0 %5279, %v5241
      %v5281 = vpop.permute.xlu0 %5280
      %v5284 = vmul.f32 %v5281, %v5209
      %5285 = vset.pattern.permute.xlu0 79
      %5286 = vperm.xlu0 %5285, %v5241
      %v5287 = vpop.permute.xlu0 %5286
      %v5290 = vmul.f32 %v5287, %v5231
      %v5291 = vmax.f32 %v5248, %v5254
      %v5292 = vmax.f32 %v5260, %v5266
      %v5293 = vmax.f32 %v5272, %v5278
      %v5294 = vmax.f32 %v5284, %v5290
      %v5295 = vmax.f32 %v5291, %v5292
      %v5296 = vmax.f32 %v5293, %v5294
      %v5297 = vmax.f32 %v5295, %v5296
      %v5298 = vsub.f32 1.0, %v5297
      %v5299 = vmul.f32 %v5061, %v5298
      %v5300 = vld [vmem:[#allocation2 + $0x50] sm:$0xff]
      %v5301 = vld [vmem:[#allocation2 + $0xd0] sm:$0xff]
      %v5302 = vld [vmem:[#allocation2 + $0x150] sm:$0xff]
      %v5303 = vld [vmem:[#allocation2 + $0x1d0] sm:$0xff]
      %5305 = vset.pattern.permute.xlu0 80
      %5306 = vperm.xlu0 %5305, %v5299
      %v5307 = vpop.permute.xlu0 %5306
      %v5313 = vrot.slane %v5301, 7
      %v5314 = vsel %vm2987, %v5313, %v5300
      %v5315 = vrot.slane %v5302, 6
      %v5316 = vsel %vm2990, %v5315, %v5314
      %v5317 = vrot.slane %v5303, 5
      %v5318 = vsel %vm2993, %v5317, %v5316
      %5319 = vrot.lane.b32.xlu0 %v5318, 48
      %v5320 = vpop.permute.xlu0 %5319
      %v5322 = vmul.f32 %v5307, %v5320
      %v5323 = vsub.f32 1.0, %v5322
      %5325 = vrot.lane.b32.xlu0 %v5323, 80
      %v5326 = vpop.permute.xlu0 %5325
      %v5328 = vmul.f32 %v5299, %v5326
      %5330 = vset.pattern.permute.xlu0 81
      %5331 = vperm.xlu0 %5330, %v5328
      %v5332 = vpop.permute.xlu0 %5331
      %v5334 = vrot.slane %v5300, 1
      %v5335 = vsel %vm2987, %v5301, %v5334
      %v5336 = vrot.slane %v5302, 7
      %v5337 = vsel %vm2990, %v5336, %v5335
      %v5338 = vrot.slane %v5303, 6
      %v5339 = vsel %vm2993, %v5338, %v5337
      %5340 = vrot.lane.b32.xlu0 %v5339, 48
      %v5341 = vpop.permute.xlu0 %5340
      %v5343 = vmul.f32 %v5332, %v5341
      %v5344 = vsub.f32 1.0, %v5343
      %5346 = vrot.lane.b32.xlu0 %v5344, 80
      %v5347 = vpop.permute.xlu0 %5346
      %v5349 = vmul.f32 %v5328, %v5347
      %5351 = vset.pattern.permute.xlu0 82
      %5352 = vperm.xlu0 %5351, %v5349
      %v5353 = vpop.permute.xlu0 %5352
      %v5355 = vrot.slane %v5300, 2
      %v5356 = vrot.slane %v5301, 1
      %v5357 = vsel %vm2987, %v5356, %v5355
      %v5358 = vsel %vm2990, %v5302, %v5357
      %v5359 = vrot.slane %v5303, 7
      %v5360 = vsel %vm2993, %v5359, %v5358
      %5361 = vrot.lane.b32.xlu0 %v5360, 48
      %v5362 = vpop.permute.xlu0 %5361
      %v5364 = vmul.f32 %v5353, %v5362
      %v5365 = vsub.f32 1.0, %v5364
      %5367 = vrot.lane.b32.xlu0 %v5365, 80
      %v5368 = vpop.permute.xlu0 %5367
      %v5370 = vmul.f32 %v5349, %v5368
      %5372 = vset.pattern.permute.xlu0 83
      %5373 = vperm.xlu0 %5372, %v5370
      %v5374 = vpop.permute.xlu0 %5373
      %v5376 = vrot.slane %v5300, 3
      %v5377 = vrot.slane %v5301, 2
      %v5378 = vsel %vm2987, %v5377, %v5376
      %v5379 = vrot.slane %v5302, 1
      %v5380 = vsel %vm2990, %v5379, %v5378
      %v5381 = vsel %vm2993, %v5303, %v5380
      %5382 = vrot.lane.b32.xlu0 %v5381, 48
      %v5383 = vpop.permute.xlu0 %5382
      %v5385 = vmul.f32 %v5374, %v5383
      %v5386 = vsub.f32 1.0, %v5385
      %5388 = vrot.lane.b32.xlu0 %v5386, 80
      %v5389 = vpop.permute.xlu0 %5388
      %v5391 = vmul.f32 %v5370, %v5389
      %5393 = vset.pattern.permute.xlu0 84
      %5394 = vperm.xlu0 %5393, %v5391
      %v5395 = vpop.permute.xlu0 %5394
      %v5397 = vrot.slane %v5300, 4
      %v5398 = vrot.slane %v5301, 3
      %v5399 = vsel %vm2987, %v5398, %v5397
      %v5400 = vrot.slane %v5302, 2
      %v5401 = vsel %vm2990, %v5400, %v5399
      %v5402 = vrot.slane %v5303, 1
      %v5403 = vsel %vm2993, %v5402, %v5401
      %5404 = vrot.lane.b32.xlu0 %v5403, 48
      %v5405 = vpop.permute.xlu0 %5404
      %v5407 = vmul.f32 %v5395, %v5405
      %v5408 = vsub.f32 1.0, %v5407
      %5410 = vrot.lane.b32.xlu0 %v5408, 80
      %v5411 = vpop.permute.xlu0 %5410
      %v5413 = vmul.f32 %v5391, %v5411
      %5415 = vset.pattern.permute.xlu0 85
      %5416 = vperm.xlu0 %5415, %v5413
      %v5417 = vpop.permute.xlu0 %5416
      %v5419 = vrot.slane %v5300, 5
      %v5420 = vrot.slane %v5301, 4
      %v5421 = vsel %vm2987, %v5420, %v5419
      %v5422 = vrot.slane %v5302, 3
      %v5423 = vsel %vm2990, %v5422, %v5421
      %v5424 = vrot.slane %v5303, 2
      %v5425 = vsel %vm2993, %v5424, %v5423
      %5426 = vrot.lane.b32.xlu0 %v5425, 48
      %v5427 = vpop.permute.xlu0 %5426
      %v5429 = vmul.f32 %v5417, %v5427
      %v5430 = vsub.f32 1.0, %v5429
      %5432 = vrot.lane.b32.xlu0 %v5430, 80
      %v5433 = vpop.permute.xlu0 %5432
      %v5435 = vmul.f32 %v5413, %v5433
      %5437 = vset.pattern.permute.xlu0 86
      %5438 = vperm.xlu0 %5437, %v5435
      %v5439 = vpop.permute.xlu0 %5438
      %v5441 = vrot.slane %v5300, 6
      %v5442 = vrot.slane %v5301, 5
      %v5443 = vsel %vm2987, %v5442, %v5441
      %v5444 = vrot.slane %v5302, 4
      %v5445 = vsel %vm2990, %v5444, %v5443
      %v5446 = vrot.slane %v5303, 3
      %v5447 = vsel %vm2993, %v5446, %v5445
      %5448 = vrot.lane.b32.xlu0 %v5447, 48
      %v5449 = vpop.permute.xlu0 %5448
      %v5451 = vmul.f32 %v5439, %v5449
      %v5452 = vsub.f32 1.0, %v5451
      %5454 = vrot.lane.b32.xlu0 %v5452, 80
      %v5455 = vpop.permute.xlu0 %5454
      %v5457 = vmul.f32 %v5435, %v5455
      %5459 = vset.pattern.permute.xlu0 87
      %5460 = vperm.xlu0 %5459, %v5457
      %v5461 = vpop.permute.xlu0 %5460
      %v5463 = vrot.slane %v5300, 7
      %v5464 = vrot.slane %v5301, 6
      %v5465 = vsel %vm2987, %v5464, %v5463
      %v5466 = vrot.slane %v5302, 5
      %v5467 = vsel %vm2990, %v5466, %v5465
      %v5468 = vrot.slane %v5303, 4
      %v5469 = vsel %vm2993, %v5468, %v5467
      %5470 = vrot.lane.b32.xlu0 %v5469, 48
      %v5471 = vpop.permute.xlu0 %5470
      %v5473 = vmul.f32 %v5461, %v5471
      %v5474 = vsub.f32 1.0, %v5473
      %5476 = vrot.lane.b32.xlu0 %v5474, 80
      %v5477 = vpop.permute.xlu0 %5476
      %v5479 = vmul.f32 %v5457, %v5477
      %5481 = vset.pattern.permute.xlu0 80
      %5482 = vperm.xlu0 %5481, %v5479
      %v5483 = vpop.permute.xlu0 %5482
      %v5486 = vmul.f32 %v5483, %v5318
      %5487 = vset.pattern.permute.xlu0 81
      %5488 = vperm.xlu0 %5487, %v5479
      %v5489 = vpop.permute.xlu0 %5488
      %v5492 = vmul.f32 %v5489, %v5339
      %5493 = vset.pattern.permute.xlu0 82
      %5494 = vperm.xlu0 %5493, %v5479
      %v5495 = vpop.permute.xlu0 %5494
      %v5498 = vmul.f32 %v5495, %v5360
      %5499 = vset.pattern.permute.xlu0 83
      %5500 = vperm.xlu0 %5499, %v5479
      %v5501 = vpop.permute.xlu0 %5500
      %v5504 = vmul.f32 %v5501, %v5381
      %5505 = vset.pattern.permute.xlu0 84
      %5506 = vperm.xlu0 %5505, %v5479
      %v5507 = vpop.permute.xlu0 %5506
      %v5510 = vmul.f32 %v5507, %v5403
      %5511 = vset.pattern.permute.xlu0 85
      %5512 = vperm.xlu0 %5511, %v5479
      %v5513 = vpop.permute.xlu0 %5512
      %v5516 = vmul.f32 %v5513, %v5425
      %5517 = vset.pattern.permute.xlu0 86
      %5518 = vperm.xlu0 %5517, %v5479
      %v5519 = vpop.permute.xlu0 %5518
      %v5522 = vmul.f32 %v5519, %v5447
      %5523 = vset.pattern.permute.xlu0 87
      %5524 = vperm.xlu0 %5523, %v5479
      %v5525 = vpop.permute.xlu0 %5524
      %v5528 = vmul.f32 %v5525, %v5469
      %v5529 = vmax.f32 %v5486, %v5492
      %v5530 = vmax.f32 %v5498, %v5504
      %v5531 = vmax.f32 %v5510, %v5516
      %v5532 = vmax.f32 %v5522, %v5528
      %v5533 = vmax.f32 %v5529, %v5530
      %v5534 = vmax.f32 %v5531, %v5532
      %v5535 = vmax.f32 %v5533, %v5534
      %v5536 = vsub.f32 1.0, %v5535
      %v5537 = vmul.f32 %v5299, %v5536
      %v5538 = vld [vmem:[#allocation2 + $0x58] sm:$0xff]
      %v5539 = vld [vmem:[#allocation2 + $0xd8] sm:$0xff]
      %v5540 = vld [vmem:[#allocation2 + $0x158] sm:$0xff]
      %v5541 = vld [vmem:[#allocation2 + $0x1d8] sm:$0xff]
      %5543 = vset.pattern.permute.xlu0 88
      %5544 = vperm.xlu0 %5543, %v5537
      %v5545 = vpop.permute.xlu0 %5544
      %v5551 = vrot.slane %v5539, 7
      %v5552 = vsel %vm2987, %v5551, %v5538
      %v5553 = vrot.slane %v5540, 6
      %v5554 = vsel %vm2990, %v5553, %v5552
      %v5555 = vrot.slane %v5541, 5
      %v5556 = vsel %vm2993, %v5555, %v5554
      %5557 = vrot.lane.b32.xlu0 %v5556, 40
      %v5558 = vpop.permute.xlu0 %5557
      %v5560 = vmul.f32 %v5545, %v5558
      %v5561 = vsub.f32 1.0, %v5560
      %5563 = vrot.lane.b32.xlu0 %v5561, 88
      %v5564 = vpop.permute.xlu0 %5563
      %v5566 = vmul.f32 %v5537, %v5564
      %5568 = vset.pattern.permute.xlu0 89
      %5569 = vperm.xlu0 %5568, %v5566
      %v5570 = vpop.permute.xlu0 %5569
      %v5572 = vrot.slane %v5538, 1
      %v5573 = vsel %vm2987, %v5539, %v5572
      %v5574 = vrot.slane %v5540, 7
      %v5575 = vsel %vm2990, %v5574, %v5573
      %v5576 = vrot.slane %v5541, 6
      %v5577 = vsel %vm2993, %v5576, %v5575
      %5578 = vrot.lane.b32.xlu0 %v5577, 40
      %v5579 = vpop.permute.xlu0 %5578
      %v5581 = vmul.f32 %v5570, %v5579
      %v5582 = vsub.f32 1.0, %v5581
      %5584 = vrot.lane.b32.xlu0 %v5582, 88
      %v5585 = vpop.permute.xlu0 %5584
      %v5587 = vmul.f32 %v5566, %v5585
      %5589 = vset.pattern.permute.xlu0 90
      %5590 = vperm.xlu0 %5589, %v5587
      %v5591 = vpop.permute.xlu0 %5590
      %v5593 = vrot.slane %v5538, 2
      %v5594 = vrot.slane %v5539, 1
      %v5595 = vsel %vm2987, %v5594, %v5593
      %v5596 = vsel %vm2990, %v5540, %v5595
      %v5597 = vrot.slane %v5541, 7
      %v5598 = vsel %vm2993, %v5597, %v5596
      %5599 = vrot.lane.b32.xlu0 %v5598, 40
      %v5600 = vpop.permute.xlu0 %5599
      %v5602 = vmul.f32 %v5591, %v5600
      %v5603 = vsub.f32 1.0, %v5602
      %5605 = vrot.lane.b32.xlu0 %v5603, 88
      %v5606 = vpop.permute.xlu0 %5605
      %v5608 = vmul.f32 %v5587, %v5606
      %5610 = vset.pattern.permute.xlu0 91
      %5611 = vperm.xlu0 %5610, %v5608
      %v5612 = vpop.permute.xlu0 %5611
      %v5614 = vrot.slane %v5538, 3
      %v5615 = vrot.slane %v5539, 2
      %v5616 = vsel %vm2987, %v5615, %v5614
      %v5617 = vrot.slane %v5540, 1
      %v5618 = vsel %vm2990, %v5617, %v5616
      %v5619 = vsel %vm2993, %v5541, %v5618
      %5620 = vrot.lane.b32.xlu0 %v5619, 40
      %v5621 = vpop.permute.xlu0 %5620
      %v5623 = vmul.f32 %v5612, %v5621
      %v5624 = vsub.f32 1.0, %v5623
      %5626 = vrot.lane.b32.xlu0 %v5624, 88
      %v5627 = vpop.permute.xlu0 %5626
      %v5629 = vmul.f32 %v5608, %v5627
      %5631 = vset.pattern.permute.xlu0 92
      %5632 = vperm.xlu0 %5631, %v5629
      %v5633 = vpop.permute.xlu0 %5632
      %v5635 = vrot.slane %v5538, 4
      %v5636 = vrot.slane %v5539, 3
      %v5637 = vsel %vm2987, %v5636, %v5635
      %v5638 = vrot.slane %v5540, 2
      %v5639 = vsel %vm2990, %v5638, %v5637
      %v5640 = vrot.slane %v5541, 1
      %v5641 = vsel %vm2993, %v5640, %v5639
      %5642 = vrot.lane.b32.xlu0 %v5641, 40
      %v5643 = vpop.permute.xlu0 %5642
      %v5645 = vmul.f32 %v5633, %v5643
      %v5646 = vsub.f32 1.0, %v5645
      %5648 = vrot.lane.b32.xlu0 %v5646, 88
      %v5649 = vpop.permute.xlu0 %5648
      %v5651 = vmul.f32 %v5629, %v5649
      %5653 = vset.pattern.permute.xlu0 93
      %5654 = vperm.xlu0 %5653, %v5651
      %v5655 = vpop.permute.xlu0 %5654
      %v5657 = vrot.slane %v5538, 5
      %v5658 = vrot.slane %v5539, 4
      %v5659 = vsel %vm2987, %v5658, %v5657
      %v5660 = vrot.slane %v5540, 3
      %v5661 = vsel %vm2990, %v5660, %v5659
      %v5662 = vrot.slane %v5541, 2
      %v5663 = vsel %vm2993, %v5662, %v5661
      %5664 = vrot.lane.b32.xlu0 %v5663, 40
      %v5665 = vpop.permute.xlu0 %5664
      %v5667 = vmul.f32 %v5655, %v5665
      %v5668 = vsub.f32 1.0, %v5667
      %5670 = vrot.lane.b32.xlu0 %v5668, 88
      %v5671 = vpop.permute.xlu0 %5670
      %v5673 = vmul.f32 %v5651, %v5671
      %5675 = vset.pattern.permute.xlu0 94
      %5676 = vperm.xlu0 %5675, %v5673
      %v5677 = vpop.permute.xlu0 %5676
      %v5679 = vrot.slane %v5538, 6
      %v5680 = vrot.slane %v5539, 5
      %v5681 = vsel %vm2987, %v5680, %v5679
      %v5682 = vrot.slane %v5540, 4
      %v5683 = vsel %vm2990, %v5682, %v5681
      %v5684 = vrot.slane %v5541, 3
      %v5685 = vsel %vm2993, %v5684, %v5683
      %5686 = vrot.lane.b32.xlu0 %v5685, 40
      %v5687 = vpop.permute.xlu0 %5686
      %v5689 = vmul.f32 %v5677, %v5687
      %v5690 = vsub.f32 1.0, %v5689
      %5692 = vrot.lane.b32.xlu0 %v5690, 88
      %v5693 = vpop.permute.xlu0 %5692
      %v5695 = vmul.f32 %v5673, %v5693
      %5697 = vset.pattern.permute.xlu0 95
      %5698 = vperm.xlu0 %5697, %v5695
      %v5699 = vpop.permute.xlu0 %5698
      %v5701 = vrot.slane %v5538, 7
      %v5702 = vrot.slane %v5539, 6
      %v5703 = vsel %vm2987, %v5702, %v5701
      %v5704 = vrot.slane %v5540, 5
      %v5705 = vsel %vm2990, %v5704, %v5703
      %v5706 = vrot.slane %v5541, 4
      %v5707 = vsel %vm2993, %v5706, %v5705
      %5708 = vrot.lane.b32.xlu0 %v5707, 40
      %v5709 = vpop.permute.xlu0 %5708
      %v5711 = vmul.f32 %v5699, %v5709
      %v5712 = vsub.f32 1.0, %v5711
      %5714 = vrot.lane.b32.xlu0 %v5712, 88
      %v5715 = vpop.permute.xlu0 %5714
      %v5717 = vmul.f32 %v5695, %v5715
      %5719 = vset.pattern.permute.xlu0 88
      %5720 = vperm.xlu0 %5719, %v5717
      %v5721 = vpop.permute.xlu0 %5720
      %v5724 = vmul.f32 %v5721, %v5556
      %5725 = vset.pattern.permute.xlu0 89
      %5726 = vperm.xlu0 %5725, %v5717
      %v5727 = vpop.permute.xlu0 %5726
      %v5730 = vmul.f32 %v5727, %v5577
      %5731 = vset.pattern.permute.xlu0 90
      %5732 = vperm.xlu0 %5731, %v5717
      %v5733 = vpop.permute.xlu0 %5732
      %v5736 = vmul.f32 %v5733, %v5598
      %5737 = vset.pattern.permute.xlu0 91
      %5738 = vperm.xlu0 %5737, %v5717
      %v5739 = vpop.permute.xlu0 %5738
      %v5742 = vmul.f32 %v5739, %v5619
      %5743 = vset.pattern.permute.xlu0 92
      %5744 = vperm.xlu0 %5743, %v5717
      %v5745 = vpop.permute.xlu0 %5744
      %v5748 = vmul.f32 %v5745, %v5641
      %5749 = vset.pattern.permute.xlu0 93
      %5750 = vperm.xlu0 %5749, %v5717
      %v5751 = vpop.permute.xlu0 %5750
      %v5754 = vmul.f32 %v5751, %v5663
      %5755 = vset.pattern.permute.xlu0 94
      %5756 = vperm.xlu0 %5755, %v5717
      %v5757 = vpop.permute.xlu0 %5756
      %v5760 = vmul.f32 %v5757, %v5685
      %5761 = vset.pattern.permute.xlu0 95
      %5762 = vperm.xlu0 %5761, %v5717
      %v5763 = vpop.permute.xlu0 %5762
      %v5766 = vmul.f32 %v5763, %v5707
      %v5767 = vmax.f32 %v5724, %v5730
      %v5768 = vmax.f32 %v5736, %v5742
      %v5769 = vmax.f32 %v5748, %v5754
      %v5770 = vmax.f32 %v5760, %v5766
      %v5771 = vmax.f32 %v5767, %v5768
      %v5772 = vmax.f32 %v5769, %v5770
      %v5773 = vmax.f32 %v5771, %v5772
      %v5774 = vsub.f32 1.0, %v5773
      %v5775 = vmul.f32 %v5537, %v5774
      %v5776 = vld [vmem:[#allocation2 + $0x60] sm:$0xff]
      %v5777 = vld [vmem:[#allocation2 + $0xe0] sm:$0xff]
      %v5778 = vld [vmem:[#allocation2 + $0x160] sm:$0xff]
      %v5779 = vld [vmem:[#allocation2 + $0x1e0] sm:$0xff]
      %5781 = vset.pattern.permute.xlu0 96
      %5782 = vperm.xlu0 %5781, %v5775
      %v5783 = vpop.permute.xlu0 %5782
      %v5789 = vrot.slane %v5777, 7
      %v5790 = vsel %vm2987, %v5789, %v5776
      %v5791 = vrot.slane %v5778, 6
      %v5792 = vsel %vm2990, %v5791, %v5790
      %v5793 = vrot.slane %v5779, 5
      %v5794 = vsel %vm2993, %v5793, %v5792
      %5795 = vrot.lane.b32.xlu0 %v5794, 32
      %v5796 = vpop.permute.xlu0 %5795
      %v5798 = vmul.f32 %v5783, %v5796
      %v5799 = vsub.f32 1.0, %v5798
      %5801 = vrot.lane.b32.xlu0 %v5799, 96
      %v5802 = vpop.permute.xlu0 %5801
      %v5804 = vmul.f32 %v5775, %v5802
      %5806 = vset.pattern.permute.xlu0 97
      %5807 = vperm.xlu0 %5806, %v5804
      %v5808 = vpop.permute.xlu0 %5807
      %v5810 = vrot.slane %v5776, 1
      %v5811 = vsel %vm2987, %v5777, %v5810
      %v5812 = vrot.slane %v5778, 7
      %v5813 = vsel %vm2990, %v5812, %v5811
      %v5814 = vrot.slane %v5779, 6
      %v5815 = vsel %vm2993, %v5814, %v5813
      %5816 = vrot.lane.b32.xlu0 %v5815, 32
      %v5817 = vpop.permute.xlu0 %5816
      %v5819 = vmul.f32 %v5808, %v5817
      %v5820 = vsub.f32 1.0, %v5819
      %5822 = vrot.lane.b32.xlu0 %v5820, 96
      %v5823 = vpop.permute.xlu0 %5822
      %v5825 = vmul.f32 %v5804, %v5823
      %5827 = vset.pattern.permute.xlu0 98
      %5828 = vperm.xlu0 %5827, %v5825
      %v5829 = vpop.permute.xlu0 %5828
      %v5831 = vrot.slane %v5776, 2
      %v5832 = vrot.slane %v5777, 1
      %v5833 = vsel %vm2987, %v5832, %v5831
      %v5834 = vsel %vm2990, %v5778, %v5833
      %v5835 = vrot.slane %v5779, 7
      %v5836 = vsel %vm2993, %v5835, %v5834
      %5837 = vrot.lane.b32.xlu0 %v5836, 32
      %v5838 = vpop.permute.xlu0 %5837
      %v5840 = vmul.f32 %v5829, %v5838
      %v5841 = vsub.f32 1.0, %v5840
      %5843 = vrot.lane.b32.xlu0 %v5841, 96
      %v5844 = vpop.permute.xlu0 %5843
      %v5846 = vmul.f32 %v5825, %v5844
      %5848 = vset.pattern.permute.xlu0 99
      %5849 = vperm.xlu0 %5848, %v5846
      %v5850 = vpop.permute.xlu0 %5849
      %v5852 = vrot.slane %v5776, 3
      %v5853 = vrot.slane %v5777, 2
      %v5854 = vsel %vm2987, %v5853, %v5852
      %v5855 = vrot.slane %v5778, 1
      %v5856 = vsel %vm2990, %v5855, %v5854
      %v5857 = vsel %vm2993, %v5779, %v5856
      %5858 = vrot.lane.b32.xlu0 %v5857, 32
      %v5859 = vpop.permute.xlu0 %5858
      %v5861 = vmul.f32 %v5850, %v5859
      %v5862 = vsub.f32 1.0, %v5861
      %5864 = vrot.lane.b32.xlu0 %v5862, 96
      %v5865 = vpop.permute.xlu0 %5864
      %v5867 = vmul.f32 %v5846, %v5865
      %5869 = vset.pattern.permute.xlu0 100
      %5870 = vperm.xlu0 %5869, %v5867
      %v5871 = vpop.permute.xlu0 %5870
      %v5873 = vrot.slane %v5776, 4
      %v5874 = vrot.slane %v5777, 3
      %v5875 = vsel %vm2987, %v5874, %v5873
      %v5876 = vrot.slane %v5778, 2
      %v5877 = vsel %vm2990, %v5876, %v5875
      %v5878 = vrot.slane %v5779, 1
      %v5879 = vsel %vm2993, %v5878, %v5877
      %5880 = vrot.lane.b32.xlu0 %v5879, 32
      %v5881 = vpop.permute.xlu0 %5880
      %v5883 = vmul.f32 %v5871, %v5881
      %v5884 = vsub.f32 1.0, %v5883
      %5886 = vrot.lane.b32.xlu0 %v5884, 96
      %v5887 = vpop.permute.xlu0 %5886
      %v5889 = vmul.f32 %v5867, %v5887
      %5891 = vset.pattern.permute.xlu0 101
      %5892 = vperm.xlu0 %5891, %v5889
      %v5893 = vpop.permute.xlu0 %5892
      %v5895 = vrot.slane %v5776, 5
      %v5896 = vrot.slane %v5777, 4
      %v5897 = vsel %vm2987, %v5896, %v5895
      %v5898 = vrot.slane %v5778, 3
      %v5899 = vsel %vm2990, %v5898, %v5897
      %v5900 = vrot.slane %v5779, 2
      %v5901 = vsel %vm2993, %v5900, %v5899
      %5902 = vrot.lane.b32.xlu0 %v5901, 32
      %v5903 = vpop.permute.xlu0 %5902
      %v5905 = vmul.f32 %v5893, %v5903
      %v5906 = vsub.f32 1.0, %v5905
      %5908 = vrot.lane.b32.xlu0 %v5906, 96
      %v5909 = vpop.permute.xlu0 %5908
      %v5911 = vmul.f32 %v5889, %v5909
      %5913 = vset.pattern.permute.xlu0 102
      %5914 = vperm.xlu0 %5913, %v5911
      %v5915 = vpop.permute.xlu0 %5914
      %v5917 = vrot.slane %v5776, 6
      %v5918 = vrot.slane %v5777, 5
      %v5919 = vsel %vm2987, %v5918, %v5917
      %v5920 = vrot.slane %v5778, 4
      %v5921 = vsel %vm2990, %v5920, %v5919
      %v5922 = vrot.slane %v5779, 3
      %v5923 = vsel %vm2993, %v5922, %v5921
      %5924 = vrot.lane.b32.xlu0 %v5923, 32
      %v5925 = vpop.permute.xlu0 %5924
      %v5927 = vmul.f32 %v5915, %v5925
      %v5928 = vsub.f32 1.0, %v5927
      %5930 = vrot.lane.b32.xlu0 %v5928, 96
      %v5931 = vpop.permute.xlu0 %5930
      %v5933 = vmul.f32 %v5911, %v5931
      %5935 = vset.pattern.permute.xlu0 103
      %5936 = vperm.xlu0 %5935, %v5933
      %v5937 = vpop.permute.xlu0 %5936
      %v5939 = vrot.slane %v5776, 7
      %v5940 = vrot.slane %v5777, 6
      %v5941 = vsel %vm2987, %v5940, %v5939
      %v5942 = vrot.slane %v5778, 5
      %v5943 = vsel %vm2990, %v5942, %v5941
      %v5944 = vrot.slane %v5779, 4
      %v5945 = vsel %vm2993, %v5944, %v5943
      %5946 = vrot.lane.b32.xlu0 %v5945, 32
      %v5947 = vpop.permute.xlu0 %5946
      %v5949 = vmul.f32 %v5937, %v5947
      %v5950 = vsub.f32 1.0, %v5949
      %5952 = vrot.lane.b32.xlu0 %v5950, 96
      %v5953 = vpop.permute.xlu0 %5952
      %v5955 = vmul.f32 %v5933, %v5953
      %5957 = vset.pattern.permute.xlu0 96
      %5958 = vperm.xlu0 %5957, %v5955
      %v5959 = vpop.permute.xlu0 %5958
      %v5962 = vmul.f32 %v5959, %v5794
      %5963 = vset.pattern.permute.xlu0 97
      %5964 = vperm.xlu0 %5963, %v5955
      %v5965 = vpop.permute.xlu0 %5964
      %v5968 = vmul.f32 %v5965, %v5815
      %5969 = vset.pattern.permute.xlu0 98
      %5970 = vperm.xlu0 %5969, %v5955
      %v5971 = vpop.permute.xlu0 %5970
      %v5974 = vmul.f32 %v5971, %v5836
      %5975 = vset.pattern.permute.xlu0 99
      %5976 = vperm.xlu0 %5975, %v5955
      %v5977 = vpop.permute.xlu0 %5976
      %v5980 = vmul.f32 %v5977, %v5857
      %5981 = vset.pattern.permute.xlu0 100
      %5982 = vperm.xlu0 %5981, %v5955
      %v5983 = vpop.permute.xlu0 %5982
      %v5986 = vmul.f32 %v5983, %v5879
      %5987 = vset.pattern.permute.xlu0 101
      %5988 = vperm.xlu0 %5987, %v5955
      %v5989 = vpop.permute.xlu0 %5988
      %v5992 = vmul.f32 %v5989, %v5901
      %5993 = vset.pattern.permute.xlu0 102
      %5994 = vperm.xlu0 %5993, %v5955
      %v5995 = vpop.permute.xlu0 %5994
      %v5998 = vmul.f32 %v5995, %v5923
      %5999 = vset.pattern.permute.xlu0 103
      %6000 = vperm.xlu0 %5999, %v5955
      %v6001 = vpop.permute.xlu0 %6000
      %v6004 = vmul.f32 %v6001, %v5945
      %v6005 = vmax.f32 %v5962, %v5968
      %v6006 = vmax.f32 %v5974, %v5980
      %v6007 = vmax.f32 %v5986, %v5992
      %v6008 = vmax.f32 %v5998, %v6004
      %v6009 = vmax.f32 %v6005, %v6006
      %v6010 = vmax.f32 %v6007, %v6008
      %v6011 = vmax.f32 %v6009, %v6010
      %v6012 = vsub.f32 1.0, %v6011
      %v6013 = vmul.f32 %v5775, %v6012
      %v6014 = vld [vmem:[#allocation2 + $0x68] sm:$0xff]
      %v6015 = vld [vmem:[#allocation2 + $0xe8] sm:$0xff]
      %v6016 = vld [vmem:[#allocation2 + $0x168] sm:$0xff]
      %v6017 = vld [vmem:[#allocation2 + $0x1e8] sm:$0xff]
      %6019 = vset.pattern.permute.xlu0 104
      %6020 = vperm.xlu0 %6019, %v6013
      %v6021 = vpop.permute.xlu0 %6020
      %v6027 = vrot.slane %v6015, 7
      %v6028 = vsel %vm2987, %v6027, %v6014
      %v6029 = vrot.slane %v6016, 6
      %v6030 = vsel %vm2990, %v6029, %v6028
      %v6031 = vrot.slane %v6017, 5
      %v6032 = vsel %vm2993, %v6031, %v6030
      %6033 = vrot.lane.b32.xlu0 %v6032, 24
      %v6034 = vpop.permute.xlu0 %6033
      %v6036 = vmul.f32 %v6021, %v6034
      %v6037 = vsub.f32 1.0, %v6036
      %6039 = vrot.lane.b32.xlu0 %v6037, 104
      %v6040 = vpop.permute.xlu0 %6039
      %v6042 = vmul.f32 %v6013, %v6040
      %6044 = vset.pattern.permute.xlu0 105
      %6045 = vperm.xlu0 %6044, %v6042
      %v6046 = vpop.permute.xlu0 %6045
      %v6048 = vrot.slane %v6014, 1
      %v6049 = vsel %vm2987, %v6015, %v6048
      %v6050 = vrot.slane %v6016, 7
      %v6051 = vsel %vm2990, %v6050, %v6049
      %v6052 = vrot.slane %v6017, 6
      %v6053 = vsel %vm2993, %v6052, %v6051
      %6054 = vrot.lane.b32.xlu0 %v6053, 24
      %v6055 = vpop.permute.xlu0 %6054
      %v6057 = vmul.f32 %v6046, %v6055
      %v6058 = vsub.f32 1.0, %v6057
      %6060 = vrot.lane.b32.xlu0 %v6058, 104
      %v6061 = vpop.permute.xlu0 %6060
      %v6063 = vmul.f32 %v6042, %v6061
      %6065 = vset.pattern.permute.xlu0 106
      %6066 = vperm.xlu0 %6065, %v6063
      %v6067 = vpop.permute.xlu0 %6066
      %v6069 = vrot.slane %v6014, 2
      %v6070 = vrot.slane %v6015, 1
      %v6071 = vsel %vm2987, %v6070, %v6069
      %v6072 = vsel %vm2990, %v6016, %v6071
      %v6073 = vrot.slane %v6017, 7
      %v6074 = vsel %vm2993, %v6073, %v6072
      %6075 = vrot.lane.b32.xlu0 %v6074, 24
      %v6076 = vpop.permute.xlu0 %6075
      %v6078 = vmul.f32 %v6067, %v6076
      %v6079 = vsub.f32 1.0, %v6078
      %6081 = vrot.lane.b32.xlu0 %v6079, 104
      %v6082 = vpop.permute.xlu0 %6081
      %v6084 = vmul.f32 %v6063, %v6082
      %6086 = vset.pattern.permute.xlu0 107
      %6087 = vperm.xlu0 %6086, %v6084
      %v6088 = vpop.permute.xlu0 %6087
      %v6090 = vrot.slane %v6014, 3
      %v6091 = vrot.slane %v6015, 2
      %v6092 = vsel %vm2987, %v6091, %v6090
      %v6093 = vrot.slane %v6016, 1
      %v6094 = vsel %vm2990, %v6093, %v6092
      %v6095 = vsel %vm2993, %v6017, %v6094
      %6096 = vrot.lane.b32.xlu0 %v6095, 24
      %v6097 = vpop.permute.xlu0 %6096
      %v6099 = vmul.f32 %v6088, %v6097
      %v6100 = vsub.f32 1.0, %v6099
      %6102 = vrot.lane.b32.xlu0 %v6100, 104
      %v6103 = vpop.permute.xlu0 %6102
      %v6105 = vmul.f32 %v6084, %v6103
      %6107 = vset.pattern.permute.xlu0 108
      %6108 = vperm.xlu0 %6107, %v6105
      %v6109 = vpop.permute.xlu0 %6108
      %v6111 = vrot.slane %v6014, 4
      %v6112 = vrot.slane %v6015, 3
      %v6113 = vsel %vm2987, %v6112, %v6111
      %v6114 = vrot.slane %v6016, 2
      %v6115 = vsel %vm2990, %v6114, %v6113
      %v6116 = vrot.slane %v6017, 1
      %v6117 = vsel %vm2993, %v6116, %v6115
      %6118 = vrot.lane.b32.xlu0 %v6117, 24
      %v6119 = vpop.permute.xlu0 %6118
      %v6121 = vmul.f32 %v6109, %v6119
      %v6122 = vsub.f32 1.0, %v6121
      %6124 = vrot.lane.b32.xlu0 %v6122, 104
      %v6125 = vpop.permute.xlu0 %6124
      %v6127 = vmul.f32 %v6105, %v6125
      %6129 = vset.pattern.permute.xlu0 109
      %6130 = vperm.xlu0 %6129, %v6127
      %v6131 = vpop.permute.xlu0 %6130
      %v6133 = vrot.slane %v6014, 5
      %v6134 = vrot.slane %v6015, 4
      %v6135 = vsel %vm2987, %v6134, %v6133
      %v6136 = vrot.slane %v6016, 3
      %v6137 = vsel %vm2990, %v6136, %v6135
      %v6138 = vrot.slane %v6017, 2
      %v6139 = vsel %vm2993, %v6138, %v6137
      %6140 = vrot.lane.b32.xlu0 %v6139, 24
      %v6141 = vpop.permute.xlu0 %6140
      %v6143 = vmul.f32 %v6131, %v6141
      %v6144 = vsub.f32 1.0, %v6143
      %6146 = vrot.lane.b32.xlu0 %v6144, 104
      %v6147 = vpop.permute.xlu0 %6146
      %v6149 = vmul.f32 %v6127, %v6147
      %6151 = vset.pattern.permute.xlu0 110
      %6152 = vperm.xlu0 %6151, %v6149
      %v6153 = vpop.permute.xlu0 %6152
      %v6155 = vrot.slane %v6014, 6
      %v6156 = vrot.slane %v6015, 5
      %v6157 = vsel %vm2987, %v6156, %v6155
      %v6158 = vrot.slane %v6016, 4
      %v6159 = vsel %vm2990, %v6158, %v6157
      %v6160 = vrot.slane %v6017, 3
      %v6161 = vsel %vm2993, %v6160, %v6159
      %6162 = vrot.lane.b32.xlu0 %v6161, 24
      %v6163 = vpop.permute.xlu0 %6162
      %v6165 = vmul.f32 %v6153, %v6163
      %v6166 = vsub.f32 1.0, %v6165
      %6168 = vrot.lane.b32.xlu0 %v6166, 104
      %v6169 = vpop.permute.xlu0 %6168
      %v6171 = vmul.f32 %v6149, %v6169
      %6173 = vset.pattern.permute.xlu0 111
      %6174 = vperm.xlu0 %6173, %v6171
      %v6175 = vpop.permute.xlu0 %6174
      %v6177 = vrot.slane %v6014, 7
      %v6178 = vrot.slane %v6015, 6
      %v6179 = vsel %vm2987, %v6178, %v6177
      %v6180 = vrot.slane %v6016, 5
      %v6181 = vsel %vm2990, %v6180, %v6179
      %v6182 = vrot.slane %v6017, 4
      %v6183 = vsel %vm2993, %v6182, %v6181
      %6184 = vrot.lane.b32.xlu0 %v6183, 24
      %v6185 = vpop.permute.xlu0 %6184
      %v6187 = vmul.f32 %v6175, %v6185
      %v6188 = vsub.f32 1.0, %v6187
      %6190 = vrot.lane.b32.xlu0 %v6188, 104
      %v6191 = vpop.permute.xlu0 %6190
      %v6193 = vmul.f32 %v6171, %v6191
      %6195 = vset.pattern.permute.xlu0 104
      %6196 = vperm.xlu0 %6195, %v6193
      %v6197 = vpop.permute.xlu0 %6196
      %v6200 = vmul.f32 %v6197, %v6032
      %6201 = vset.pattern.permute.xlu0 105
      %6202 = vperm.xlu0 %6201, %v6193
      %v6203 = vpop.permute.xlu0 %6202
      %v6206 = vmul.f32 %v6203, %v6053
      %6207 = vset.pattern.permute.xlu0 106
      %6208 = vperm.xlu0 %6207, %v6193
      %v6209 = vpop.permute.xlu0 %6208
      %v6212 = vmul.f32 %v6209, %v6074
      %6213 = vset.pattern.permute.xlu0 107
      %6214 = vperm.xlu0 %6213, %v6193
      %v6215 = vpop.permute.xlu0 %6214
      %v6218 = vmul.f32 %v6215, %v6095
      %6219 = vset.pattern.permute.xlu0 108
      %6220 = vperm.xlu0 %6219, %v6193
      %v6221 = vpop.permute.xlu0 %6220
      %v6224 = vmul.f32 %v6221, %v6117
      %6225 = vset.pattern.permute.xlu0 109
      %6226 = vperm.xlu0 %6225, %v6193
      %v6227 = vpop.permute.xlu0 %6226
      %v6230 = vmul.f32 %v6227, %v6139
      %6231 = vset.pattern.permute.xlu0 110
      %6232 = vperm.xlu0 %6231, %v6193
      %v6233 = vpop.permute.xlu0 %6232
      %v6236 = vmul.f32 %v6233, %v6161
      %6237 = vset.pattern.permute.xlu0 111
      %6238 = vperm.xlu0 %6237, %v6193
      %v6239 = vpop.permute.xlu0 %6238
      %v6242 = vmul.f32 %v6239, %v6183
      %v6243 = vmax.f32 %v6200, %v6206
      %v6244 = vmax.f32 %v6212, %v6218
      %v6245 = vmax.f32 %v6224, %v6230
      %v6246 = vmax.f32 %v6236, %v6242
      %v6247 = vmax.f32 %v6243, %v6244
      %v6248 = vmax.f32 %v6245, %v6246
      %v6249 = vmax.f32 %v6247, %v6248
      %v6250 = vsub.f32 1.0, %v6249
      %v6251 = vmul.f32 %v6013, %v6250
      %v6252 = vld [vmem:[#allocation2 + $0x70] sm:$0xff]
      %v6253 = vld [vmem:[#allocation2 + $0xf0] sm:$0xff]
      %v6254 = vld [vmem:[#allocation2 + $0x170] sm:$0xff]
      %v6255 = vld [vmem:[#allocation2 + $0x1f0] sm:$0xff]
      %6257 = vset.pattern.permute.xlu0 112
      %6258 = vperm.xlu0 %6257, %v6251
      %v6259 = vpop.permute.xlu0 %6258
      %v6265 = vrot.slane %v6253, 7
      %v6266 = vsel %vm2987, %v6265, %v6252
      %v6267 = vrot.slane %v6254, 6
      %v6268 = vsel %vm2990, %v6267, %v6266
      %v6269 = vrot.slane %v6255, 5
      %v6270 = vsel %vm2993, %v6269, %v6268
      %6271 = vrot.lane.b32.xlu0 %v6270, 16
      %v6272 = vpop.permute.xlu0 %6271
      %v6274 = vmul.f32 %v6259, %v6272
      %v6275 = vsub.f32 1.0, %v6274
      %6277 = vrot.lane.b32.xlu0 %v6275, 112
      %v6278 = vpop.permute.xlu0 %6277
      %v6280 = vmul.f32 %v6251, %v6278
      %6282 = vset.pattern.permute.xlu0 113
      %6283 = vperm.xlu0 %6282, %v6280
      %v6284 = vpop.permute.xlu0 %6283
      %v6286 = vrot.slane %v6252, 1
      %v6287 = vsel %vm2987, %v6253, %v6286
      %v6288 = vrot.slane %v6254, 7
      %v6289 = vsel %vm2990, %v6288, %v6287
      %v6290 = vrot.slane %v6255, 6
      %v6291 = vsel %vm2993, %v6290, %v6289
      %6292 = vrot.lane.b32.xlu0 %v6291, 16
      %v6293 = vpop.permute.xlu0 %6292
      %v6295 = vmul.f32 %v6284, %v6293
      %v6296 = vsub.f32 1.0, %v6295
      %6298 = vrot.lane.b32.xlu0 %v6296, 112
      %v6299 = vpop.permute.xlu0 %6298
      %v6301 = vmul.f32 %v6280, %v6299
      %6303 = vset.pattern.permute.xlu0 114
      %6304 = vperm.xlu0 %6303, %v6301
      %v6305 = vpop.permute.xlu0 %6304
      %v6307 = vrot.slane %v6252, 2
      %v6308 = vrot.slane %v6253, 1
      %v6309 = vsel %vm2987, %v6308, %v6307
      %v6310 = vsel %vm2990, %v6254, %v6309
      %v6311 = vrot.slane %v6255, 7
      %v6312 = vsel %vm2993, %v6311, %v6310
      %6313 = vrot.lane.b32.xlu0 %v6312, 16
      %v6314 = vpop.permute.xlu0 %6313
      %v6316 = vmul.f32 %v6305, %v6314
      %v6317 = vsub.f32 1.0, %v6316
      %6319 = vrot.lane.b32.xlu0 %v6317, 112
      %v6320 = vpop.permute.xlu0 %6319
      %v6322 = vmul.f32 %v6301, %v6320
      %6324 = vset.pattern.permute.xlu0 115
      %6325 = vperm.xlu0 %6324, %v6322
      %v6326 = vpop.permute.xlu0 %6325
      %v6328 = vrot.slane %v6252, 3
      %v6329 = vrot.slane %v6253, 2
      %v6330 = vsel %vm2987, %v6329, %v6328
      %v6331 = vrot.slane %v6254, 1
      %v6332 = vsel %vm2990, %v6331, %v6330
      %v6333 = vsel %vm2993, %v6255, %v6332
      %6334 = vrot.lane.b32.xlu0 %v6333, 16
      %v6335 = vpop.permute.xlu0 %6334
      %v6337 = vmul.f32 %v6326, %v6335
      %v6338 = vsub.f32 1.0, %v6337
      %6340 = vrot.lane.b32.xlu0 %v6338, 112
      %v6341 = vpop.permute.xlu0 %6340
      %v6343 = vmul.f32 %v6322, %v6341
      %6345 = vset.pattern.permute.xlu0 116
      %6346 = vperm.xlu0 %6345, %v6343
      %v6347 = vpop.permute.xlu0 %6346
      %v6349 = vrot.slane %v6252, 4
      %v6350 = vrot.slane %v6253, 3
      %v6351 = vsel %vm2987, %v6350, %v6349
      %v6352 = vrot.slane %v6254, 2
      %v6353 = vsel %vm2990, %v6352, %v6351
      %v6354 = vrot.slane %v6255, 1
      %v6355 = vsel %vm2993, %v6354, %v6353
      %6356 = vrot.lane.b32.xlu0 %v6355, 16
      %v6357 = vpop.permute.xlu0 %6356
      %v6359 = vmul.f32 %v6347, %v6357
      %v6360 = vsub.f32 1.0, %v6359
      %6362 = vrot.lane.b32.xlu0 %v6360, 112
      %v6363 = vpop.permute.xlu0 %6362
      %v6365 = vmul.f32 %v6343, %v6363
      %6367 = vset.pattern.permute.xlu0 117
      %6368 = vperm.xlu0 %6367, %v6365
      %v6369 = vpop.permute.xlu0 %6368
      %v6371 = vrot.slane %v6252, 5
      %v6372 = vrot.slane %v6253, 4
      %v6373 = vsel %vm2987, %v6372, %v6371
      %v6374 = vrot.slane %v6254, 3
      %v6375 = vsel %vm2990, %v6374, %v6373
      %v6376 = vrot.slane %v6255, 2
      %v6377 = vsel %vm2993, %v6376, %v6375
      %6378 = vrot.lane.b32.xlu0 %v6377, 16
      %v6379 = vpop.permute.xlu0 %6378
      %v6381 = vmul.f32 %v6369, %v6379
      %v6382 = vsub.f32 1.0, %v6381
      %6384 = vrot.lane.b32.xlu0 %v6382, 112
      %v6385 = vpop.permute.xlu0 %6384
      %v6387 = vmul.f32 %v6365, %v6385
      %6389 = vset.pattern.permute.xlu0 118
      %6390 = vperm.xlu0 %6389, %v6387
      %v6391 = vpop.permute.xlu0 %6390
      %v6393 = vrot.slane %v6252, 6
      %v6394 = vrot.slane %v6253, 5
      %v6395 = vsel %vm2987, %v6394, %v6393
      %v6396 = vrot.slane %v6254, 4
      %v6397 = vsel %vm2990, %v6396, %v6395
      %v6398 = vrot.slane %v6255, 3
      %v6399 = vsel %vm2993, %v6398, %v6397
      %6400 = vrot.lane.b32.xlu0 %v6399, 16
      %v6401 = vpop.permute.xlu0 %6400
      %v6403 = vmul.f32 %v6391, %v6401
      %v6404 = vsub.f32 1.0, %v6403
      %6406 = vrot.lane.b32.xlu0 %v6404, 112
      %v6407 = vpop.permute.xlu0 %6406
      %v6409 = vmul.f32 %v6387, %v6407
      %6411 = vset.pattern.permute.xlu0 119
      %6412 = vperm.xlu0 %6411, %v6409
      %v6413 = vpop.permute.xlu0 %6412
      %v6415 = vrot.slane %v6252, 7
      %v6416 = vrot.slane %v6253, 6
      %v6417 = vsel %vm2987, %v6416, %v6415
      %v6418 = vrot.slane %v6254, 5
      %v6419 = vsel %vm2990, %v6418, %v6417
      %v6420 = vrot.slane %v6255, 4
      %v6421 = vsel %vm2993, %v6420, %v6419
      %6422 = vrot.lane.b32.xlu0 %v6421, 16
      %v6423 = vpop.permute.xlu0 %6422
      %v6425 = vmul.f32 %v6413, %v6423
      %v6426 = vsub.f32 1.0, %v6425
      %6428 = vrot.lane.b32.xlu0 %v6426, 112
      %v6429 = vpop.permute.xlu0 %6428
      %v6431 = vmul.f32 %v6409, %v6429
      %6433 = vset.pattern.permute.xlu0 112
      %6434 = vperm.xlu0 %6433, %v6431
      %v6435 = vpop.permute.xlu0 %6434
      %v6438 = vmul.f32 %v6435, %v6270
      %6439 = vset.pattern.permute.xlu0 113
      %6440 = vperm.xlu0 %6439, %v6431
      %v6441 = vpop.permute.xlu0 %6440
      %v6444 = vmul.f32 %v6441, %v6291
      %6445 = vset.pattern.permute.xlu0 114
      %6446 = vperm.xlu0 %6445, %v6431
      %v6447 = vpop.permute.xlu0 %6446
      %v6450 = vmul.f32 %v6447, %v6312
      %6451 = vset.pattern.permute.xlu0 115
      %6452 = vperm.xlu0 %6451, %v6431
      %v6453 = vpop.permute.xlu0 %6452
      %v6456 = vmul.f32 %v6453, %v6333
      %6457 = vset.pattern.permute.xlu0 116
      %6458 = vperm.xlu0 %6457, %v6431
      %v6459 = vpop.permute.xlu0 %6458
      %v6462 = vmul.f32 %v6459, %v6355
      %6463 = vset.pattern.permute.xlu0 117
      %6464 = vperm.xlu0 %6463, %v6431
      %v6465 = vpop.permute.xlu0 %6464
      %v6468 = vmul.f32 %v6465, %v6377
      %6469 = vset.pattern.permute.xlu0 118
      %6470 = vperm.xlu0 %6469, %v6431
      %v6471 = vpop.permute.xlu0 %6470
      %v6474 = vmul.f32 %v6471, %v6399
      %6475 = vset.pattern.permute.xlu0 119
      %6476 = vperm.xlu0 %6475, %v6431
      %v6477 = vpop.permute.xlu0 %6476
      %v6480 = vmul.f32 %v6477, %v6421
      %v6481 = vmax.f32 %v6438, %v6444
      %v6482 = vmax.f32 %v6450, %v6456
      %v6483 = vmax.f32 %v6462, %v6468
      %v6484 = vmax.f32 %v6474, %v6480
      %v6485 = vmax.f32 %v6481, %v6482
      %v6486 = vmax.f32 %v6483, %v6484
      %v6487 = vmax.f32 %v6485, %v6486
      %v6488 = vsub.f32 1.0, %v6487
      %v6489 = vmul.f32 %v6251, %v6488
      %v6490 = vld [vmem:[#allocation2 + $0x78] sm:$0xff]
      %v6491 = vld [vmem:[#allocation2 + $0xf8] sm:$0xff]
      %v6492 = vld [vmem:[#allocation2 + $0x178] sm:$0xff]
      %v6493 = vld [vmem:[#allocation2 + $0x1f8] sm:$0xff]
      %6495 = vset.pattern.permute.xlu0 120
      %6496 = vperm.xlu0 %6495, %v6489
      %v6497 = vpop.permute.xlu0 %6496
      %v6503 = vrot.slane %v6491, 7
      %v6504 = vsel %vm2987, %v6503, %v6490
      %v6505 = vrot.slane %v6492, 6
      %v6506 = vsel %vm2990, %v6505, %v6504
      %v6507 = vrot.slane %v6493, 5
      %v6508 = vsel %vm2993, %v6507, %v6506
      %6509 = vrot.lane.b32.xlu0 %v6508, 8
      %v6510 = vpop.permute.xlu0 %6509
      %v6512 = vmul.f32 %v6497, %v6510
      %v6513 = vsub.f32 1.0, %v6512
      %6515 = vrot.lane.b32.xlu0 %v6513, 120
      %v6516 = vpop.permute.xlu0 %6515
      %v6518 = vmul.f32 %v6489, %v6516
      %6520 = vset.pattern.permute.xlu0 121
      %6521 = vperm.xlu0 %6520, %v6518
      %v6522 = vpop.permute.xlu0 %6521
      %v6524 = vrot.slane %v6490, 1
      %v6525 = vsel %vm2987, %v6491, %v6524
      %v6526 = vrot.slane %v6492, 7
      %v6527 = vsel %vm2990, %v6526, %v6525
      %v6528 = vrot.slane %v6493, 6
      %v6529 = vsel %vm2993, %v6528, %v6527
      %6530 = vrot.lane.b32.xlu0 %v6529, 8
      %v6531 = vpop.permute.xlu0 %6530
      %v6533 = vmul.f32 %v6522, %v6531
      %v6534 = vsub.f32 1.0, %v6533
      %6536 = vrot.lane.b32.xlu0 %v6534, 120
      %v6537 = vpop.permute.xlu0 %6536
      %v6539 = vmul.f32 %v6518, %v6537
      %6541 = vset.pattern.permute.xlu0 122
      %6542 = vperm.xlu0 %6541, %v6539
      %v6543 = vpop.permute.xlu0 %6542
      %v6545 = vrot.slane %v6490, 2
      %v6546 = vrot.slane %v6491, 1
      %v6547 = vsel %vm2987, %v6546, %v6545
      %v6548 = vsel %vm2990, %v6492, %v6547
      %v6549 = vrot.slane %v6493, 7
      %v6550 = vsel %vm2993, %v6549, %v6548
      %6551 = vrot.lane.b32.xlu0 %v6550, 8
      %v6552 = vpop.permute.xlu0 %6551
      %v6554 = vmul.f32 %v6543, %v6552
      %v6555 = vsub.f32 1.0, %v6554
      %6557 = vrot.lane.b32.xlu0 %v6555, 120
      %v6558 = vpop.permute.xlu0 %6557
      %v6560 = vmul.f32 %v6539, %v6558
      %6562 = vset.pattern.permute.xlu0 123
      %6563 = vperm.xlu0 %6562, %v6560
      %v6564 = vpop.permute.xlu0 %6563
      %v6566 = vrot.slane %v6490, 3
      %v6567 = vrot.slane %v6491, 2
      %v6568 = vsel %vm2987, %v6567, %v6566
      %v6569 = vrot.slane %v6492, 1
      %v6570 = vsel %vm2990, %v6569, %v6568
      %v6571 = vsel %vm2993, %v6493, %v6570
      %6572 = vrot.lane.b32.xlu0 %v6571, 8
      %v6573 = vpop.permute.xlu0 %6572
      %v6575 = vmul.f32 %v6564, %v6573
      %v6576 = vsub.f32 1.0, %v6575
      %6578 = vrot.lane.b32.xlu0 %v6576, 120
      %v6579 = vpop.permute.xlu0 %6578
      %v6581 = vmul.f32 %v6560, %v6579
      %6583 = vset.pattern.permute.xlu0 124
      %6584 = vperm.xlu0 %6583, %v6581
      %v6585 = vpop.permute.xlu0 %6584
      %v6587 = vrot.slane %v6490, 4
      %v6588 = vrot.slane %v6491, 3
      %v6589 = vsel %vm2987, %v6588, %v6587
      %v6590 = vrot.slane %v6492, 2
      %v6591 = vsel %vm2990, %v6590, %v6589
      %v6592 = vrot.slane %v6493, 1
      %v6593 = vsel %vm2993, %v6592, %v6591
      %6594 = vrot.lane.b32.xlu0 %v6593, 8
      %v6595 = vpop.permute.xlu0 %6594
      %v6597 = vmul.f32 %v6585, %v6595
      %v6598 = vsub.f32 1.0, %v6597
      %6600 = vrot.lane.b32.xlu0 %v6598, 120
      %v6601 = vpop.permute.xlu0 %6600
      %v6603 = vmul.f32 %v6581, %v6601
      %6605 = vset.pattern.permute.xlu0 125
      %6606 = vperm.xlu0 %6605, %v6603
      %v6607 = vpop.permute.xlu0 %6606
      %v6609 = vrot.slane %v6490, 5
      %v6610 = vrot.slane %v6491, 4
      %v6611 = vsel %vm2987, %v6610, %v6609
      %v6612 = vrot.slane %v6492, 3
      %v6613 = vsel %vm2990, %v6612, %v6611
      %v6614 = vrot.slane %v6493, 2
      %v6615 = vsel %vm2993, %v6614, %v6613
      %6616 = vrot.lane.b32.xlu0 %v6615, 8
      %v6617 = vpop.permute.xlu0 %6616
      %v6619 = vmul.f32 %v6607, %v6617
      %v6620 = vsub.f32 1.0, %v6619
      %6622 = vrot.lane.b32.xlu0 %v6620, 120
      %v6623 = vpop.permute.xlu0 %6622
      %v6625 = vmul.f32 %v6603, %v6623
      %6627 = vset.pattern.permute.xlu0 126
      %6628 = vperm.xlu0 %6627, %v6625
      %v6629 = vpop.permute.xlu0 %6628
      %v6631 = vrot.slane %v6490, 6
      %v6632 = vrot.slane %v6491, 5
      %v6633 = vsel %vm2987, %v6632, %v6631
      %v6634 = vrot.slane %v6492, 4
      %v6635 = vsel %vm2990, %v6634, %v6633
      %v6636 = vrot.slane %v6493, 3
      %v6637 = vsel %vm2993, %v6636, %v6635
      %6638 = vrot.lane.b32.xlu0 %v6637, 8
      %v6639 = vpop.permute.xlu0 %6638
      %v6641 = vmul.f32 %v6629, %v6639
      %v6642 = vsub.f32 1.0, %v6641
      %6644 = vrot.lane.b32.xlu0 %v6642, 120
      %v6645 = vpop.permute.xlu0 %6644
      %v6647 = vmul.f32 %v6625, %v6645
      %6649 = vset.pattern.permute.xlu0 127
      %6650 = vperm.xlu0 %6649, %v6647
      %v6651 = vpop.permute.xlu0 %6650
      %v6653 = vrot.slane %v6490, 7
      %v6654 = vrot.slane %v6491, 6
      %v6655 = vsel %vm2987, %v6654, %v6653
      %v6656 = vrot.slane %v6492, 5
      %v6657 = vsel %vm2990, %v6656, %v6655
      %v6658 = vrot.slane %v6493, 4
      %v6659 = vsel %vm2993, %v6658, %v6657
      %6660 = vrot.lane.b32.xlu0 %v6659, 8
      %v6661 = vpop.permute.xlu0 %6660
      %v6663 = vmul.f32 %v6651, %v6661
      %v6664 = vsub.f32 1.0, %v6663
      %6666 = vrot.lane.b32.xlu0 %v6664, 120
      %v6667 = vpop.permute.xlu0 %6666
      %v6669 = vmul.f32 %v6647, %v6667
      %6671 = vset.pattern.permute.xlu0 120
      %6672 = vperm.xlu0 %6671, %v6669
      %v6673 = vpop.permute.xlu0 %6672
      %v6676 = vmul.f32 %v6673, %v6508
      %6677 = vset.pattern.permute.xlu0 121
      %6678 = vperm.xlu0 %6677, %v6669
      %v6679 = vpop.permute.xlu0 %6678
      %v6682 = vmul.f32 %v6679, %v6529
      %6683 = vset.pattern.permute.xlu0 122
      %6684 = vperm.xlu0 %6683, %v6669
      %v6685 = vpop.permute.xlu0 %6684
      %v6688 = vmul.f32 %v6685, %v6550
      %6689 = vset.pattern.permute.xlu0 123
      %6690 = vperm.xlu0 %6689, %v6669
      %v6691 = vpop.permute.xlu0 %6690
      %v6694 = vmul.f32 %v6691, %v6571
      %6695 = vset.pattern.permute.xlu0 124
      %6696 = vperm.xlu0 %6695, %v6669
      %v6697 = vpop.permute.xlu0 %6696
      %v6700 = vmul.f32 %v6697, %v6593
      %6701 = vset.pattern.permute.xlu0 125
      %6702 = vperm.xlu0 %6701, %v6669
      %v6703 = vpop.permute.xlu0 %6702
      %v6706 = vmul.f32 %v6703, %v6615
      %6707 = vset.pattern.permute.xlu0 126
      %6708 = vperm.xlu0 %6707, %v6669
      %v6709 = vpop.permute.xlu0 %6708
      %v6712 = vmul.f32 %v6709, %v6637
      %6713 = vset.pattern.permute.xlu0 127
      %6714 = vperm.xlu0 %6713, %v6669
      %v6715 = vpop.permute.xlu0 %6714
      %v6718 = vmul.f32 %v6715, %v6659
      %v6719 = vmax.f32 %v6676, %v6682
      %v6720 = vmax.f32 %v6688, %v6694
      %v6721 = vmax.f32 %v6700, %v6706
      %v6722 = vmax.f32 %v6712, %v6718
      %v6723 = vmax.f32 %v6719, %v6720
      %v6724 = vmax.f32 %v6721, %v6722
      %v6725 = vmax.f32 %v6723, %v6724
      %v6726 = vsub.f32 1.0, %v6725
      %v6727 = vmul.f32 %v6489, %v6726
      %6728 = vst [vmem:[%s205] sm:$0xf] %v6727
      %p6729 = scmp.lt.s32.totalorder %s14, 1
      %s6730 = scalar_select %p6729, %s14, 1
      %s6731 = smul.addr %s6730, 4
      %s6732 = scalar_lea.vmem %s3, %s6731
      // Predicated region
      $region33: #{run.3} parent=31 // pred_check
        %p6733 = pneg %p110
      $region34: #{run.3} parent=31 // pred_check_branch
        %6735 = sbr.rel (%p6733) target = $region36
      $region35: #{run.3} parent=31 // pred_region
        _
      $region36: #{run.3} parent=31 // pred_fallthru
        _
    $region32: #{run.3} parent=5 // pred_fallthru
      _
    %p6736 = scmp.le.s32.totalorder 2, %s9
    // Predicated region
    $region37: #{run.3} parent=5 // pred_check
      %p6737 = pneg %p6736
    $region38: #{run.3} parent=5 // pred_check_branch
      %6739 = sbr.rel (%p6737) target = $region40
    $region39: #{run.3} parent=5 // pred_region
      %s6740 = ssub.s32 %s9, 2
      // Predicated region
      $region41: #{run.3} parent=39 // pred_check
        %p6741 = pneg %p116
      $region42: #{run.3} parent=39 // pred_check_branch
        %6743 = sbr.rel (%p6741) target = $region44
      $region43: #{run.3} parent=39 // pred_region
        %p6744 = scmp.lt.s32.totalorder %s15, 1
        %s6745 = scalar_select %p6744, %s15, 1
        %s6746 = smul.addr %s6745, 4
        %s6747 = scalar_lea.vmem %s3, %s6746
      $region44: #{run.3} parent=39 // pred_fallthru
        _
    $region40: #{run.3} parent=5 // pred_fallthru
      _
  $region6: #{run.3} parent=0 // loop_footer
    %s13 = sadd.s32 1, %s9
  $region7: #{run.3} parent=0 // loop_footer_branch
    %8 = sbr.rel target = $region3
  $region8: #{run.3} parent=0 // loop_exit
    _

</llo_original>
